<compile_context>
chip_gen: v6e
topology: v6e:2x2x1
jax: 0.10.0
libtpu: 0.0.40
codegen_flags: <defaults>
</compile_context>

<pallas_src>
import functools

import jax
import jax.numpy as jnp
import numpy as np
from jax.experimental import pallas as pl
from jax.experimental.pallas import tpu as pltpu

C = 128  # in_channels == out_channels == 128 (hardcoded in the PyTorch module)
_TAPS = tuple((dh, dw) for dh in (-1, 0, 1) for dw in (-1, 0, 1))


# ----------------------------------------------------------------------------
# One-time probe: pltpu.roll convention / availability (per device kind, dtype)
# ----------------------------------------------------------------------------
def _roll_probe_kernel(x_ref, o_ref):
    o_ref[...] = pltpu.roll(x_ref[...], shift=1, axis=0)


_ROLL_MODE_CACHE = {}


def _probe_roll_mode(dtype):
    """+1: pltpu.roll matches jnp.roll; -1: opposite sign; 0: unusable."""
    try:
        key = (jax.devices()[0].device_kind, jnp.dtype(dtype).name)
    except Exception:
        key = ("unknown", jnp.dtype(dtype).name)
    if key in _ROLL_MODE_CACHE:
        return _ROLL_MODE_CACHE[key]
    mode = 0
    try:
        rows = 16  # exercises packed-sublane odd shift for bf16 too
        ramp = jnp.broadcast_to(
            jnp.arange(rows, dtype=jnp.float32)[:, None], (rows, 128)).astype(dtype)
        out = pl.pallas_call(
            _roll_probe_kernel,
            out_shape=jax.ShapeDtypeStruct((rows, 128), dtype),
        )(ramp)
        v = float(jax.block_until_ready(out)[0, 0])
        if v == float(rows - 1):
            mode = 1
        elif v == 1.0:
            mode = -1
    except Exception:
        mode = 0
    _ROLL_MODE_CACHE[key] = mode
    return mode


# ----------------------------------------------------------------------------
# Kernel
# ----------------------------------------------------------------------------
def iteration_block_kernel(x_ref, mask_ref, w1_ref, w2_ref, w3_ref, w4_ref,
                           o_ref, *, W, roll_mode, roll_bf16):
    nb, HWp, _ = x_ref.shape
    M = nb * HWp
    x = x_ref[...].reshape(M, C)  # f32 (M, C); free reshape since HWp % 8 == 0

    def shift_rows(a, off):
        # out[i, :] = a[(i + off) % M, :]; wrapped / cross-image rows are masked.
        if off == 0:
            return a
        if roll_mode == 1:                  # pltpu.roll follows jnp.roll convention
            return pltpu.roll(a, shift=(-off) % M, axis=0)
        if roll_mode == -1:                 # opposite rotation direction
            return pltpu.roll(a, shift=off % M, axis=0)
        return jnp.roll(a, -off, axis=0)    # safe fallback (slower: relayout copies)

    def conv3x3(act_f32, w_ref, residual=None):
        # 9 rolled+masked bf16 taps, each fed straight to the MXU and accumulated
        # in f32 (no im2col strip / VMEM round-trip).
        act = act_f32.astype(jnp.bfloat16) if roll_bf16 else act_f32
        acc = residual if residual is not None else jnp.zeros((M, C), jnp.float32)
        for t, (dh, dw) in enumerate(_TAPS):
            tap = shift_rows(act, dh * W + dw)
            if not roll_bf16:
                tap = tap.astype(jnp.bfloat16)
            if (dh, dw) != (0, 0):
                tap = tap * mask_ref[t]          # lane-dense bf16 mask, plain vmul
            acc = acc + jnp.dot(tap, w_ref[t],
                                preferred_element_type=jnp.float32)
        return jnp.maximum(acc, 0.0)

    l1 = conv3x3(x, w1_ref)
    l2 = conv3x3(l1, w2_ref, residual=x)
    l3 = conv3x3(l2, w3_ref)
    l4 = conv3x3(l3, w4_ref, residual=l2)

    o_ref[...] = l4.reshape(nb, HWp, C).astype(o_ref.dtype)


# ----------------------------------------------------------------------------
# Wrapper
# ----------------------------------------------------------------------------
def _pick_batch_block(N, HWp, cap=2048):
    """LARGEST divisor nb of N with nb*HWp <= cap (amortizes the ~0.35 us
    per-grid-step overhead and fills MXU rows), while keeping >= 2 grid steps
    when N >= 2 so both v7x TensorCores get work (v5e/v6e: 1 TC, unaffected)."""
    best = 1
    for nb in range(1, N + 1):
        if N % nb:
            continue
        if nb * HWp > cap:
            continue
        if N >= 2 and N // nb < 2:
            continue
        best = nb
    return best


def _tap_masks(nb, H, W, HWp):
    """(9, nb*HWp, C) bf16 lane-dense masks: 1 where tap (dh, dw) reads an
    in-image pixel, 0 for out-of-image / cross-image / padded rows."""
    HW = H * W
    hh, ww = np.meshgrid(np.arange(H), np.arange(W), indexing="ij")
    rows = []
    for dh, dw in _TAPS:
        ok = ((hh + dh >= 0) & (hh + dh < H) & (ww + dw >= 0) & (ww + dw < W))
        flat = np.zeros((HWp,), dtype=np.float32)
        flat[:HW] = ok.reshape(-1)
        rows.append(np.tile(flat, nb))
    m = np.stack(rows, axis=0)                                   # (9, nb*HWp)
    m = np.ascontiguousarray(np.broadcast_to(m[:, :, None], (9, nb * HWp, C)))
    return jnp.asarray(m, dtype=jnp.bfloat16)


def iteration_block(x, w1, w2, w3, w4):
    """x: (N, H, W, 128) f32 NHWC; wi: (3, 3, 128, 128) f32 HWIO. Returns NHWC f32."""
    N, H, W, Cx = x.shape
    assert Cx == C
    HW = H * W
    HWp = ((HW + 7) // 8) * 8            # pad rows -> sublane rolls always aligned

    nb = _pick_batch_block(N, HWp)
    M = nb * HWp

    # Prefer packed-bf16 hardware rolls (half the XLU/VALU/load work on v6e/v7x);
    # fall back to f32 pltpu.roll, then jnp.roll (correct, slower).
    mode_bf16 = _probe_roll_mode(jnp.bfloat16)
    if mode_bf16 != 0:
        roll_mode, roll_bf16 = mode_bf16, True
    else:
        roll_mode, roll_bf16 = _probe_roll_mode(jnp.float32), False

    x_flat = x.reshape(N, HW, C)
    if HWp != HW:
        x_flat = jnp.pad(x_flat, ((0, 0), (0, HWp - HW), (0, 0)))

    masks = _tap_masks(nb, H, W, HWp)                            # (9, M, C) bf16
    # Per-tap weights (9, C_in, C_out), cast once to bf16 for the MXU.
    w_packed = [w.reshape(9, C, C).astype(jnp.bfloat16) for w in (w1, w2, w3, w4)]

    act_spec = pl.BlockSpec((nb, HWp, C), lambda n: (n, 0, 0))
    msk_spec = pl.BlockSpec((9, M, C), lambda n: (0, 0, 0))
    wgt_spec = pl.BlockSpec((9, C, C), lambda n: (0, 0, 0))

    # Explicit VMEM budget once blocks grow past the smallest default (16 MiB v5e).
    act_bytes = nb * HWp * C * 4
    est = (4 * act_bytes                       # in + out, double-buffered
           + 2 * masks.size * 2                # grid-invariant masks (2 bufs)
           + 2 * sum(w.size * 2 for w in w_packed)
           + 8 * M * C * 4)                    # in-kernel f32/bf16 intermediates
    vmem_limit = min(int(est * 1.5), 100 * 2 ** 20) if est > 14 * 2 ** 20 else None

    kernel = functools.partial(iteration_block_kernel, W=W,
                               roll_mode=roll_mode, roll_bf16=roll_bf16)

    out = pl.pallas_call(
        kernel,
        out_shape=jax.ShapeDtypeStruct((N, HWp, C), jnp.float32),
        grid=(N // nb,),
        in_specs=[act_spec, msk_spec] + [wgt_spec] * 4,
        out_specs=act_spec,
        compiler_params=pltpu.CompilerParams(
            dimension_semantics=("parallel",),
            vmem_limit_bytes=vmem_limit,
        ),
    )(x_flat, masks, *w_packed)
    # TODO(synk): for very large single images (blocks beyond v7x's 64 MiB VMEM)
    # add H-row spatial tiling with a 1-row halo; not needed at these sizes.
    return out[:, :HW, :].reshape(N, H, W, C)


# ----------------------------------------------------------------------------
# Reference + test
# ----------------------------------------------------------------------------
def _reference(x, w1, w2, w3, w4):
    """Pure-JAX f32 reference matching the PyTorch forward (NHWC / HWIO)."""
    def conv(inp, w):
        return jax.lax.conv_general_dilated(
            inp, w, window_strides=(1, 1), padding="SAME",
            dimension_numbers=("NHWC", "HWIO", "NHWC"),
            precision=jax.lax.Precision.HIGHEST)
    l1 = jax.nn.relu(conv(x, w1))
    l2 = jax.nn.relu(conv(l1, w2) + x)
    l3 = jax.nn.relu(conv(l2, w3))
    l4 = jax.nn.relu(conv(l3, w4) + l2)
    return l4


if __name__ == "__main__":
    N, H, W = 2, 8, 8

    key = jax.random.PRNGKey(0)
    kx, k1, k2, k3, k4 = jax.random.split(key, 5)

    x = jax.random.normal(kx, (N, H, W, C), dtype=jnp.float32)
    scale = (2.0 / (3 * 3 * C)) ** 0.5     # Kaiming-ish scale, fan_in = 3*3*128
    w1 = scale * jax.random.normal(k1, (3, 3, C, C), dtype=jnp.float32)
    w2 = scale * jax.random.normal(k2, (3, 3, C, C), dtype=jnp.float32)
    w3 = scale * jax.random.normal(k3, (3, 3, C, C), dtype=jnp.float32)
    w4 = scale * jax.random.normal(k4, (3, 3, C, C), dtype=jnp.float32)

    out = jax.block_until_ready(iteration_block(x, w1, w2, w3, w4))
    ref = jax.block_until_ready(_reference(x, w1, w2, w3, w4))

    assert out.shape == (N, H, W, C)
    # bf16 MXU inputs compound across 4 chained convs (f32 accumulation), so use
    # a magnitude-normalized tolerance; a wrong roll/mask would give O(1) errors.
    max_err = float(jnp.max(jnp.abs(out - ref)))
    ref_mag = float(jnp.max(jnp.abs(ref)))
    assert max_err <= 0.05 * ref_mag + 0.05, (max_err, ref_mag)

    print("KERNEL_OK")
</pallas_src>

<mosaic_0001>
module attributes {stable_mosaic.version = 11 : i64} {
  func.func @_roll_probe_kernel(%arg0: memref<16x128xbf16, #tpu.memory_space<vmem>>, %arg1: memref<16x128xbf16, #tpu.memory_space<vmem>>) attributes {dimension_semantics = [], scalar_prefetch = 0 : i64, scratch_operands = 0 : i64, tpu.core_type = #tpu.core_type<tc>} {
    %c0 = arith.constant 0 : index
    %c0_0 = arith.constant 0 : index
    %0 = vector.load %arg0[%c0, %c0_0] : memref<16x128xbf16, #tpu.memory_space<vmem>>, vector<16x128xbf16>
    %c1_i32 = arith.constant 1 : i32
    %1 = tpu.dynamic_rotate %0 by %c1_i32 dim 0 : vector<16x128xbf16>, i32 -> vector<16x128xbf16>
    %c0_1 = arith.constant 0 : index
    %c0_2 = arith.constant 0 : index
    %2 = vector.load %arg1[%c0_1, %c0_2] : memref<16x128xbf16, #tpu.memory_space<vmem>>, vector<16x128xbf16>
    tpu.vector_store %arg1[%c0_1, %c0_2], %1 {strides = array<i32>} : memref<16x128xbf16, #tpu.memory_space<vmem>>, vector<16x128xbf16>,
    return
  }
}

module attributes {stable_mosaic.version = 11 : i64} {
  func.func @_roll_probe_kernel(%arg0: memref<16x128xf32, #tpu.memory_space<vmem>>, %arg1: memref<16x128xf32, #tpu.memory_space<vmem>>) attributes {dimension_semantics = [], scalar_prefetch = 0 : i64, scratch_operands = 0 : i64, tpu.core_type = #tpu.core_type<tc>} {
    %c0 = arith.constant 0 : index
    %c0_0 = arith.constant 0 : index
    %0 = vector.load %arg0[%c0, %c0_0] : memref<16x128xf32, #tpu.memory_space<vmem>>, vector<16x128xf32>
    %c1_i32 = arith.constant 1 : i32
    %1 = tpu.dynamic_rotate %0 by %c1_i32 dim 0 : vector<16x128xf32>, i32 -> vector<16x128xf32>
    %c0_1 = arith.constant 0 : index
    %c0_2 = arith.constant 0 : index
    %2 = vector.load %arg1[%c0_1, %c0_2] : memref<16x128xf32, #tpu.memory_space<vmem>>, vector<16x128xf32>
    tpu.vector_store %arg1[%c0_1, %c0_2], %1 {strides = array<i32>} : memref<16x128xf32, #tpu.memory_space<vmem>>, vector<16x128xf32>,
    return
  }
}

module attributes {stable_mosaic.version = 11 : i64} {
  func.func @iteration_block_kernel(%arg0: i32, %arg1: memref<1x64x128xf32, #tpu.memory_space<vmem>>, %arg2: memref<9x64x128xbf16, #tpu.memory_space<vmem>>, %arg3: memref<9x128x128xbf16, #tpu.memory_space<vmem>>, %arg4: memref<9x128x128xbf16, #tpu.memory_space<vmem>>, %arg5: memref<9x128x128xbf16, #tpu.memory_space<vmem>>, %arg6: memref<9x128x128xbf16, #tpu.memory_space<vmem>>, %arg7: memref<1x64x128xf32, #tpu.memory_space<vmem>>) attributes {dimension_semantics = [#tpu.dimension_semantics<parallel>], iteration_bounds = array<i64: 2>, scalar_prefetch = 0 : i64, scratch_operands = 0 : i64, tpu.core_type = #tpu.core_type<tc>, window_params = [{transform_indices = @transform_0, window_bounds = array<i64: 1, 64, 128>}, {pipeline_mode = #tpu.pipeline_mode<synchronous>, transform_indices = @transform_1, window_bounds = array<i64: 9, 64, 128>}, {pipeline_mode = #tpu.pipeline_mode<synchronous>, transform_indices = @transform_2, window_bounds = array<i64: 9, 128, 128>}, {pipeline_mode = #tpu.pipeline_mode<synchronous>, transform_indices = @transform_3, window_bounds = array<i64: 9, 128, 128>}, {pipeline_mode = #tpu.pipeline_mode<synchronous>, transform_indices = @transform_4, window_bounds = array<i64: 9, 128, 128>}, {pipeline_mode = #tpu.pipeline_mode<synchronous>, transform_indices = @transform_5, window_bounds = array<i64: 9, 128, 128>}, {transform_indices = @transform_6, window_bounds = array<i64: 1, 64, 128>}]} {
    %c0 = arith.constant 0 : index
    %c0_0 = arith.constant 0 : index
    %c0_1 = arith.constant 0 : index
    %0 = vector.load %arg1[%c0, %c0_0, %c0_1] : memref<1x64x128xf32, #tpu.memory_space<vmem>>, vector<1x64x128xf32>
    %1 = vector.shape_cast %0 : vector<1x64x128xf32> to vector<64x128xf32>
    %cst = arith.constant 0.000000e+00 : f32
    %2 = vector.broadcast %cst : f32 to vector<64x128xf32>
    %3 = vector.extract_strided_slice %1 {offsets = [55, 0], sizes = [9, 128], strides = [1, 1]} : vector<64x128xf32> to vector<9x128xf32>
    %4 = vector.extract_strided_slice %1 {offsets = [0, 0], sizes = [55, 128], strides = [1, 1]} : vector<64x128xf32> to vector<55x128xf32>
    %5 = tpu.concatenate %3, %4 in 0 : vector<9x128xf32>, vector<55x128xf32> -> vector<64x128xf32>
    %6 = arith.truncf %5 : vector<64x128xf32> to vector<64x128xbf16>
    %c0_2 = arith.constant 0 : index
    %c0_3 = arith.constant 0 : index
    %c0_4 = arith.constant 0 : index
    %7 = vector.load %arg2[%c0_2, %c0_3, %c0_4] : memref<9x64x128xbf16, #tpu.memory_space<vmem>>, vector<1x64x128xbf16>
    %8 = vector.shape_cast %7 : vector<1x64x128xbf16> to vector<64x128xbf16>
    %9 = arith.mulf %6, %8 : vector<64x128xbf16>
    %c0_5 = arith.constant 0 : index
    %c0_6 = arith.constant 0 : index
    %c0_7 = arith.constant 0 : index
    %10 = vector.load %arg3[%c0_5, %c0_6, %c0_7] : memref<9x128x128xbf16, #tpu.memory_space<vmem>>, vector<1x128x128xbf16>
    %11 = vector.shape_cast %10 : vector<1x128x128xbf16> to vector<128x128xbf16>
    %cst_8 = arith.constant dense<0.000000e+00> : vector<64x128xf32>
    %12 = tpu.matmul %9, %11, %cst_8 {dimension_numbers = #tpu.dot_dimension_numbers<[1], [0], [0], [1], [0, 0, 1, 1], [], []>} : vector<64x128xbf16>, vector<128x128xbf16>, vector<64x128xf32> -> vector<64x128xf32>
    %13 = arith.addf %2, %12 : vector<64x128xf32>
    %14 = vector.extract_strided_slice %1 {offsets = [56, 0], sizes = [8, 128], strides = [1, 1]} : vector<64x128xf32> to vector<8x128xf32>
    %15 = vector.extract_strided_slice %1 {offsets = [0, 0], sizes = [56, 128], strides = [1, 1]} : vector<64x128xf32> to vector<56x128xf32>
    %16 = tpu.concatenate %14, %15 in 0 : vector<8x128xf32>, vector<56x128xf32> -> vector<64x128xf32>
    %17 = arith.truncf %16 : vector<64x128xf32> to vector<64x128xbf16>
    %c1 = arith.constant 1 : index
    %c0_9 = arith.constant 0 : index
    %c0_10 = arith.constant 0 : index
    %18 = vector.load %arg2[%c1, %c0_9, %c0_10] : memref<9x64x128xbf16, #tpu.memory_space<vmem>>, vector<1x64x128xbf16>
    %19 = vector.shape_cast %18 : vector<1x64x128xbf16> to vector<64x128xbf16>
    %20 = arith.mulf %17, %19 : vector<64x128xbf16>
    %c1_11 = arith.constant 1 : index
    %c0_12 = arith.constant 0 : index
    %c0_13 = arith.constant 0 : index
    %21 = vector.load %arg3[%c1_11, %c0_12, %c0_13] : memref<9x128x128xbf16, #tpu.memory_space<vmem>>, vector<1x128x128xbf16>
    %22 = vector.shape_cast %21 : vector<1x128x128xbf16> to vector<128x128xbf16>
    %cst_14 = arith.constant dense<0.000000e+00> : vector<64x128xf32>
    %23 = tpu.matmul %20, %22, %cst_14 {dimension_numbers = #tpu.dot_dimension_numbers<[1], [0], [0], [1], [0, 0, 1, 1], [], []>} : vector<64x128xbf16>, vector<128x128xbf16>, vector<64x128xf32> -> vector<64x128xf32>
    %24 = arith.addf %13, %23 : vector<64x128xf32>
    %25 = vector.extract_strided_slice %1 {offsets = [57, 0], sizes = [7, 128], strides = [1, 1]} : vector<64x128xf32> to vector<7x128xf32>
    %26 = vector.extract_strided_slice %1 {offsets = [0, 0], sizes = [57, 128], strides = [1, 1]} : vector<64x128xf32> to vector<57x128xf32>
    %27 = tpu.concatenate %25, %26 in 0 : vector<7x128xf32>, vector<57x128xf32> -> vector<64x128xf32>
    %28 = arith.truncf %27 : vector<64x128xf32> to vector<64x128xbf16>
    %c2 = arith.constant 2 : index
    %c0_15 = arith.constant 0 : index
    %c0_16 = arith.constant 0 : index
    %29 = vector.load %arg2[%c2, %c0_15, %c0_16] : memref<9x64x128xbf16, #tpu.memory_space<vmem>>, vector<1x64x128xbf16>
    %30 = vector.shape_cast %29 : vector<1x64x128xbf16> to vector<64x128xbf16>
    %31 = arith.mulf %28, %30 : vector<64x128xbf16>
    %c2_17 = arith.constant 2 : index
    %c0_18 = arith.constant 0 : index
    %c0_19 = arith.constant 0 : index
    %32 = vector.load %arg3[%c2_17, %c0_18, %c0_19] : memref<9x128x128xbf16, #tpu.memory_space<vmem>>, vector<1x128x128xbf16>
    %33 = vector.shape_cast %32 : vector<1x128x128xbf16> to vector<128x128xbf16>
    %cst_20 = arith.constant dense<0.000000e+00> : vector<64x128xf32>
    %34 = tpu.matmul %31, %33, %cst_20 {dimension_numbers = #tpu.dot_dimension_numbers<[1], [0], [0], [1], [0, 0, 1, 1], [], []>} : vector<64x128xbf16>, vector<128x128xbf16>, vector<64x128xf32> -> vector<64x128xf32>
    %35 = arith.addf %24, %34 : vector<64x128xf32>
    %36 = vector.extract_strided_slice %1 {offsets = [63, 0], sizes = [1, 128], strides = [1, 1]} : vector<64x128xf32> to vector<1x128xf32>
    %37 = vector.extract_strided_slice %1 {offsets = [0, 0], sizes = [63, 128], strides = [1, 1]} : vector<64x128xf32> to vector<63x128xf32>
    %38 = tpu.concatenate %36, %37 in 0 : vector<1x128xf32>, vector<63x128xf32> -> vector<64x128xf32>
    %39 = arith.truncf %38 : vector<64x128xf32> to vector<64x128xbf16>
    %c3 = arith.constant 3 : index
    %c0_21 = arith.constant 0 : index
    %c0_22 = arith.constant 0 : index
    %40 = vector.load %arg2[%c3, %c0_21, %c0_22] : memref<9x64x128xbf16, #tpu.memory_space<vmem>>, vector<1x64x128xbf16>
    %41 = vector.shape_cast %40 : vector<1x64x128xbf16> to vector<64x128xbf16>
    %42 = arith.mulf %39, %41 : vector<64x128xbf16>
    %c3_23 = arith.constant 3 : index
    %c0_24 = arith.constant 0 : index
    %c0_25 = arith.constant 0 : index
    %43 = vector.load %arg3[%c3_23, %c0_24, %c0_25] : memref<9x128x128xbf16, #tpu.memory_space<vmem>>, vector<1x128x128xbf16>
    %44 = vector.shape_cast %43 : vector<1x128x128xbf16> to vector<128x128xbf16>
    %cst_26 = arith.constant dense<0.000000e+00> : vector<64x128xf32>
    %45 = tpu.matmul %42, %44, %cst_26 {dimension_numbers = #tpu.dot_dimension_numbers<[1], [0], [0], [1], [0, 0, 1, 1], [], []>} : vector<64x128xbf16>, vector<128x128xbf16>, vector<64x128xf32> -> vector<64x128xf32>
    %46 = arith.addf %35, %45 : vector<64x128xf32>
    %47 = arith.truncf %1 : vector<64x128xf32> to vector<64x128xbf16>
    %c4 = arith.constant 4 : index
    %c0_27 = arith.constant 0 : index
    %c0_28 = arith.constant 0 : index
    %48 = vector.load %arg3[%c4, %c0_27, %c0_28] : memref<9x128x128xbf16, #tpu.memory_space<vmem>>, vector<1x128x128xbf16>
    %49 = vector.shape_cast %48 : vector<1x128x128xbf16> to vector<128x128xbf16>
    %cst_29 = arith.constant dense<0.000000e+00> : vector<64x128xf32>
    %50 = tpu.matmul %47, %49, %cst_29 {dimension_numbers = #tpu.dot_dimension_numbers<[1], [0], [0], [1], [0, 0, 1, 1], [], []>} : vector<64x128xbf16>, vector<128x128xbf16>, vector<64x128xf32> -> vector<64x128xf32>
    %51 = arith.addf %46, %50 : vector<64x128xf32>
    %52 = vector.extract_strided_slice %1 {offsets = [1, 0], sizes = [63, 128], strides = [1, 1]} : vector<64x128xf32> to vector<63x128xf32>
    %53 = vector.extract_strided_slice %1 {offsets = [0, 0], sizes = [1, 128], strides = [1, 1]} : vector<64x128xf32> to vector<1x128xf32>
    %54 = tpu.concatenate %52, %53 in 0 : vector<63x128xf32>, vector<1x128xf32> -> vector<64x128xf32>
    %55 = arith.truncf %54 : vector<64x128xf32> to vector<64x128xbf16>
    %c5 = arith.constant 5 : index
    %c0_30 = arith.constant 0 : index
    %c0_31 = arith.constant 0 : index
    %56 = vector.load %arg2[%c5, %c0_30, %c0_31] : memref<9x64x128xbf16, #tpu.memory_space<vmem>>, vector<1x64x128xbf16>
    %57 = vector.shape_cast %56 : vector<1x64x128xbf16> to vector<64x128xbf16>
    %58 = arith.mulf %55, %57 : vector<64x128xbf16>
    %c5_32 = arith.constant 5 : index
    %c0_33 = arith.constant 0 : index
    %c0_34 = arith.constant 0 : index
    %59 = vector.load %arg3[%c5_32, %c0_33, %c0_34] : memref<9x128x128xbf16, #tpu.memory_space<vmem>>, vector<1x128x128xbf16>
    %60 = vector.shape_cast %59 : vector<1x128x128xbf16> to vector<128x128xbf16>
    %cst_35 = arith.constant dense<0.000000e+00> : vector<64x128xf32>
    %61 = tpu.matmul %58, %60, %cst_35 {dimension_numbers = #tpu.dot_dimension_numbers<[1], [0], [0], [1], [0, 0, 1, 1], [], []>} : vector<64x128xbf16>, vector<128x128xbf16>, vector<64x128xf32> -> vector<64x128xf32>
    %62 = arith.addf %51, %61 : vector<64x128xf32>
    %63 = vector.extract_strided_slice %1 {offsets = [7, 0], sizes = [57, 128], strides = [1, 1]} : vector<64x128xf32> to vector<57x128xf32>
    %64 = vector.extract_strided_slice %1 {offsets = [0, 0], sizes = [7, 128], strides = [1, 1]} : vector<64x128xf32> to vector<7x128xf32>
    %65 = tpu.concatenate %63, %64 in 0 : vector<57x128xf32>, vector<7x128xf32> -> vector<64x128xf32>
    %66 = arith.truncf %65 : vector<64x128xf32> to vector<64x128xbf16>
    %c6 = arith.constant 6 : index
    %c0_36 = arith.constant 0 : index
    %c0_37 = arith.constant 0 : index
    %67 = vector.load %arg2[%c6, %c0_36, %c0_37] : memref<9x64x128xbf16, #tpu.memory_space<vmem>>, vector<1x64x128xbf16>
    %68 = vector.shape_cast %67 : vector<1x64x128xbf16> to vector<64x128xbf16>
    %69 = arith.mulf %66, %68 : vector<64x128xbf16>
    %c6_38 = arith.constant 6 : index
    %c0_39 = arith.constant 0 : index
    %c0_40 = arith.constant 0 : index
    %70 = vector.load %arg3[%c6_38, %c0_39, %c0_40] : memref<9x128x128xbf16, #tpu.memory_space<vmem>>, vector<1x128x128xbf16>
    %71 = vector.shape_cast %70 : vector<1x128x128xbf16> to vector<128x128xbf16>
    %cst_41 = arith.constant dense<0.000000e+00> : vector<64x128xf32>
    %72 = tpu.matmul %69, %71, %cst_41 {dimension_numbers = #tpu.dot_dimension_numbers<[1], [0], [0], [1], [0, 0, 1, 1], [], []>} : vector<64x128xbf16>, vector<128x128xbf16>, vector<64x128xf32> -> vector<64x128xf32>
    %73 = arith.addf %62, %72 : vector<64x128xf32>
    %74 = vector.extract_strided_slice %1 {offsets = [8, 0], sizes = [56, 128], strides = [1, 1]} : vector<64x128xf32> to vector<56x128xf32>
    %75 = vector.extract_strided_slice %1 {offsets = [0, 0], sizes = [8, 128], strides = [1, 1]} : vector<64x128xf32> to vector<8x128xf32>
    %76 = tpu.concatenate %74, %75 in 0 : vector<56x128xf32>, vector<8x128xf32> -> vector<64x128xf32>
    %77 = arith.truncf %76 : vector<64x128xf32> to vector<64x128xbf16>
    %c7 = arith.constant 7 : index
    %c0_42 = arith.constant 0 : index
    %c0_43 = arith.constant 0 : index
    %78 = vector.load %arg2[%c7, %c0_42, %c0_43] : memref<9x64x128xbf16, #tpu.memory_space<vmem>>, vector<1x64x128xbf16>
    %79 = vector.shape_cast %78 : vector<1x64x128xbf16> to vector<64x128xbf16>
    %80 = arith.mulf %77, %79 : vector<64x128xbf16>
    %c7_44 = arith.constant 7 : index
    %c0_45 = arith.constant 0 : index
    %c0_46 = arith.constant 0 : index
    %81 = vector.load %arg3[%c7_44, %c0_45, %c0_46] : memref<9x128x128xbf16, #tpu.memory_space<vmem>>, vector<1x128x128xbf16>
    %82 = vector.shape_cast %81 : vector<1x128x128xbf16> to vector<128x128xbf16>
    %cst_47 = arith.constant dense<0.000000e+00> : vector<64x128xf32>
    %83 = tpu.matmul %80, %82, %cst_47 {dimension_numbers = #tpu.dot_dimension_numbers<[1], [0], [0], [1], [0, 0, 1, 1], [], []>} : vector<64x128xbf16>, vector<128x128xbf16>, vector<64x128xf32> -> vector<64x128xf32>
    %84 = arith.addf %73, %83 : vector<64x128xf32>
    %85 = vector.extract_strided_slice %1 {offsets = [9, 0], sizes = [55, 128], strides = [1, 1]} : vector<64x128xf32> to vector<55x128xf32>
    %86 = vector.extract_strided_slice %1 {offsets = [0, 0], sizes = [9, 128], strides = [1, 1]} : vector<64x128xf32> to vector<9x128xf32>
    %87 = tpu.concatenate %85, %86 in 0 : vector<55x128xf32>, vector<9x128xf32> -> vector<64x128xf32>
    %88 = arith.truncf %87 : vector<64x128xf32> to vector<64x128xbf16>
    %c8 = arith.constant 8 : index
    %c0_48 = arith.constant 0 : index
    %c0_49 = arith.constant 0 : index
    %89 = vector.load %arg2[%c8, %c0_48, %c0_49] : memref<9x64x128xbf16, #tpu.memory_space<vmem>>, vector<1x64x128xbf16>
    %90 = vector.shape_cast %89 : vector<1x64x128xbf16> to vector<64x128xbf16>
    %91 = arith.mulf %88, %90 : vector<64x128xbf16>
    %c8_50 = arith.constant 8 : index
    %c0_51 = arith.constant 0 : index
    %c0_52 = arith.constant 0 : index
    %92 = vector.load %arg3[%c8_50, %c0_51, %c0_52] : memref<9x128x128xbf16, #tpu.memory_space<vmem>>, vector<1x128x128xbf16>
    %93 = vector.shape_cast %92 : vector<1x128x128xbf16> to vector<128x128xbf16>
    %cst_53 = arith.constant dense<0.000000e+00> : vector<64x128xf32>
    %94 = tpu.matmul %91, %93, %cst_53 {dimension_numbers = #tpu.dot_dimension_numbers<[1], [0], [0], [1], [0, 0, 1, 1], [], []>} : vector<64x128xbf16>, vector<128x128xbf16>, vector<64x128xf32> -> vector<64x128xf32>
    %95 = arith.addf %84, %94 : vector<64x128xf32>
    %cst_54 = arith.constant 0.000000e+00 : f32
    %96 = vector.broadcast %cst_54 : f32 to vector<64x128xf32>
    %97 = arith.maximumf %95, %96 : vector<64x128xf32>
    %98 = vector.extract_strided_slice %97 {offsets = [55, 0], sizes = [9, 128], strides = [1, 1]} : vector<64x128xf32> to vector<9x128xf32>
    %99 = vector.extract_strided_slice %97 {offsets = [0, 0], sizes = [55, 128], strides = [1, 1]} : vector<64x128xf32> to vector<55x128xf32>
    %100 = tpu.concatenate %98, %99 in 0 : vector<9x128xf32>, vector<55x128xf32> -> vector<64x128xf32>
    %101 = arith.truncf %100 : vector<64x128xf32> to vector<64x128xbf16>
    %c0_55 = arith.constant 0 : index
    %c0_56 = arith.constant 0 : index
    %c0_57 = arith.constant 0 : index
    %102 = vector.load %arg2[%c0_55, %c0_56, %c0_57] : memref<9x64x128xbf16, #tpu.memory_space<vmem>>, vector<1x64x128xbf16>
    %103 = vector.shape_cast %102 : vector<1x64x128xbf16> to vector<64x128xbf16>
    %104 = arith.mulf %101, %103 : vector<64x128xbf16>
    %c0_58 = arith.constant 0 : index
    %c0_59 = arith.constant 0 : index
    %c0_60 = arith.constant 0 : index
    %105 = vector.load %arg4[%c0_58, %c0_59, %c0_60] : memref<9x128x128xbf16, #tpu.memory_space<vmem>>, vector<1x128x128xbf16>
    %106 = vector.shape_cast %105 : vector<1x128x128xbf16> to vector<128x128xbf16>
    %cst_61 = arith.constant dense<0.000000e+00> : vector<64x128xf32>
    %107 = tpu.matmul %104, %106, %cst_61 {dimension_numbers = #tpu.dot_dimension_numbers<[1], [0], [0], [1], [0, 0, 1, 1], [], []>} : vector<64x128xbf16>, vector<128x128xbf16>, vector<64x128xf32> -> vector<64x128xf32>
    %108 = arith.addf %1, %107 : vector<64x128xf32>
    %109 = vector.extract_strided_slice %97 {offsets = [56, 0], sizes = [8, 128], strides = [1, 1]} : vector<64x128xf32> to vector<8x128xf32>
    %110 = vector.extract_strided_slice %97 {offsets = [0, 0], sizes = [56, 128], strides = [1, 1]} : vector<64x128xf32> to vector<56x128xf32>
    %111 = tpu.concatenate %109, %110 in 0 : vector<8x128xf32>, vector<56x128xf32> -> vector<64x128xf32>
    %112 = arith.truncf %111 : vector<64x128xf32> to vector<64x128xbf16>
    %c1_62 = arith.constant 1 : index
    %c0_63 = arith.constant 0 : index
    %c0_64 = arith.constant 0 : index
    %113 = vector.load %arg2[%c1_62, %c0_63, %c0_64] : memref<9x64x128xbf16, #tpu.memory_space<vmem>>, vector<1x64x128xbf16>
    %114 = vector.shape_cast %113 : vector<1x64x128xbf16> to vector<64x128xbf16>
    %115 = arith.mulf %112, %114 : vector<64x128xbf16>
    %c1_65 = arith.constant 1 : index
    %c0_66 = arith.constant 0 : index
    %c0_67 = arith.constant 0 : index
    %116 = vector.load %arg4[%c1_65, %c0_66, %c0_67] : memref<9x128x128xbf16, #tpu.memory_space<vmem>>, vector<1x128x128xbf16>
    %117 = vector.shape_cast %116 : vector<1x128x128xbf16> to vector<128x128xbf16>
    %cst_68 = arith.constant dense<0.000000e+00> : vector<64x128xf32>
    %118 = tpu.matmul %115, %117, %cst_68 {dimension_numbers = #tpu.dot_dimension_numbers<[1], [0], [0], [1], [0, 0, 1, 1], [], []>} : vector<64x128xbf16>, vector<128x128xbf16>, vector<64x128xf32> -> vector<64x128xf32>
    %119 = arith.addf %108, %118 : vector<64x128xf32>
    %120 = vector.extract_strided_slice %97 {offsets = [57, 0], sizes = [7, 128], strides = [1, 1]} : vector<64x128xf32> to vector<7x128xf32>
    %121 = vector.extract_strided_slice %97 {offsets = [0, 0], sizes = [57, 128], strides = [1, 1]} : vector<64x128xf32> to vector<57x128xf32>
    %122 = tpu.concatenate %120, %121 in 0 : vector<7x128xf32>, vector<57x128xf32> -> vector<64x128xf32>
    %123 = arith.truncf %122 : vector<64x128xf32> to vector<64x128xbf16>
    %c2_69 = arith.constant 2 : index
    %c0_70 = arith.constant 0 : index
    %c0_71 = arith.constant 0 : index
    %124 = vector.load %arg2[%c2_69, %c0_70, %c0_71] : memref<9x64x128xbf16, #tpu.memory_space<vmem>>, vector<1x64x128xbf16>
    %125 = vector.shape_cast %124 : vector<1x64x128xbf16> to vector<64x128xbf16>
    %126 = arith.mulf %123, %125 : vector<64x128xbf16>
    %c2_72 = arith.constant 2 : index
    %c0_73 = arith.constant 0 : index
    %c0_74 = arith.constant 0 : index
    %127 = vector.load %arg4[%c2_72, %c0_73, %c0_74] : memref<9x128x128xbf16, #tpu.memory_space<vmem>>, vector<1x128x128xbf16>
    %128 = vector.shape_cast %127 : vector<1x128x128xbf16> to vector<128x128xbf16>
    %cst_75 = arith.constant dense<0.000000e+00> : vector<64x128xf32>
    %129 = tpu.matmul %126, %128, %cst_75 {dimension_numbers = #tpu.dot_dimension_numbers<[1], [0], [0], [1], [0, 0, 1, 1], [], []>} : vector<64x128xbf16>, vector<128x128xbf16>, vector<64x128xf32> -> vector<64x128xf32>
    %130 = arith.addf %119, %129 : vector<64x128xf32>
    %131 = vector.extract_strided_slice %97 {offsets = [63, 0], sizes = [1, 128], strides = [1, 1]} : vector<64x128xf32> to vector<1x128xf32>
    %132 = vector.extract_strided_slice %97 {offsets = [0, 0], sizes = [63, 128], strides = [1, 1]} : vector<64x128xf32> to vector<63x128xf32>
    %133 = tpu.concatenate %131, %132 in 0 : vector<1x128xf32>, vector<63x128xf32> -> vector<64x128xf32>
    %134 = arith.truncf %133 : vector<64x128xf32> to vector<64x128xbf16>
    %c3_76 = arith.constant 3 : index
    %c0_77 = arith.constant 0 : index
    %c0_78 = arith.constant 0 : index
    %135 = vector.load %arg2[%c3_76, %c0_77, %c0_78] : memref<9x64x128xbf16, #tpu.memory_space<vmem>>, vector<1x64x128xbf16>
    %136 = vector.shape_cast %135 : vector<1x64x128xbf16> to vector<64x128xbf16>
    %137 = arith.mulf %134, %136 : vector<64x128xbf16>
    %c3_79 = arith.constant 3 : index
    %c0_80 = arith.constant 0 : index
    %c0_81 = arith.constant 0 : index
    %138 = vector.load %arg4[%c3_79, %c0_80, %c0_81] : memref<9x128x128xbf16, #tpu.memory_space<vmem>>, vector<1x128x128xbf16>
    %139 = vector.shape_cast %138 : vector<1x128x128xbf16> to vector<128x128xbf16>
    %cst_82 = arith.constant dense<0.000000e+00> : vector<64x128xf32>
    %140 = tpu.matmul %137, %139, %cst_82 {dimension_numbers = #tpu.dot_dimension_numbers<[1], [0], [0], [1], [0, 0, 1, 1], [], []>} : vector<64x128xbf16>, vector<128x128xbf16>, vector<64x128xf32> -> vector<64x128xf32>
    %141 = arith.addf %130, %140 : vector<64x128xf32>
    %142 = arith.truncf %97 : vector<64x128xf32> to vector<64x128xbf16>
    %c4_83 = arith.constant 4 : index
    %c0_84 = arith.constant 0 : index
    %c0_85 = arith.constant 0 : index
    %143 = vector.load %arg4[%c4_83, %c0_84, %c0_85] : memref<9x128x128xbf16, #tpu.memory_space<vmem>>, vector<1x128x128xbf16>
    %144 = vector.shape_cast %143 : vector<1x128x128xbf16> to vector<128x128xbf16>
    %cst_86 = arith.constant dense<0.000000e+00> : vector<64x128xf32>
    %145 = tpu.matmul %142, %144, %cst_86 {dimension_numbers = #tpu.dot_dimension_numbers<[1], [0], [0], [1], [0, 0, 1, 1], [], []>} : vector<64x128xbf16>, vector<128x128xbf16>, vector<64x128xf32> -> vector<64x128xf32>
    %146 = arith.addf %141, %145 : vector<64x128xf32>
    %147 = vector.extract_strided_slice %97 {offsets = [1, 0], sizes = [63, 128], strides = [1, 1]} : vector<64x128xf32> to vector<63x128xf32>
    %148 = vector.extract_strided_slice %97 {offsets = [0, 0], sizes = [1, 128], strides = [1, 1]} : vector<64x128xf32> to vector<1x128xf32>
    %149 = tpu.concatenate %147, %148 in 0 : vector<63x128xf32>, vector<1x128xf32> -> vector<64x128xf32>
    %150 = arith.truncf %149 : vector<64x128xf32> to vector<64x128xbf16>
    %c5_87 = arith.constant 5 : index
    %c0_88 = arith.constant 0 : index
    %c0_89 = arith.constant 0 : index
    %151 = vector.load %arg2[%c5_87, %c0_88, %c0_89] : memref<9x64x128xbf16, #tpu.memory_space<vmem>>, vector<1x64x128xbf16>
    %152 = vector.shape_cast %151 : vector<1x64x128xbf16> to vector<64x128xbf16>
    %153 = arith.mulf %150, %152 : vector<64x128xbf16>
    %c5_90 = arith.constant 5 : index
    %c0_91 = arith.constant 0 : index
    %c0_92 = arith.constant 0 : index
    %154 = vector.load %arg4[%c5_90, %c0_91, %c0_92] : memref<9x128x128xbf16, #tpu.memory_space<vmem>>, vector<1x128x128xbf16>
    %155 = vector.shape_cast %154 : vector<1x128x128xbf16> to vector<128x128xbf16>
    %cst_93 = arith.constant dense<0.000000e+00> : vector<64x128xf32>
    %156 = tpu.matmul %153, %155, %cst_93 {dimension_numbers = #tpu.dot_dimension_numbers<[1], [0], [0], [1], [0, 0, 1, 1], [], []>} : vector<64x128xbf16>, vector<128x128xbf16>, vector<64x128xf32> -> vector<64x128xf32>
    %157 = arith.addf %146, %156 : vector<64x128xf32>
    %158 = vector.extract_strided_slice %97 {offsets = [7, 0], sizes = [57, 128], strides = [1, 1]} : vector<64x128xf32> to vector<57x128xf32>
    %159 = vector.extract_strided_slice %97 {offsets = [0, 0], sizes = [7, 128], strides = [1, 1]} : vector<64x128xf32> to vector<7x128xf32>
    %160 = tpu.concatenate %158, %159 in 0 : vector<57x128xf32>, vector<7x128xf32> -> vector<64x128xf32>
    %161 = arith.truncf %160 : vector<64x128xf32> to vector<64x128xbf16>
    %c6_94 = arith.constant 6 : index
    %c0_95 = arith.constant 0 : index
    %c0_96 = arith.constant 0 : index
    %162 = vector.load %arg2[%c6_94, %c0_95, %c0_96] : memref<9x64x128xbf16, #tpu.memory_space<vmem>>, vector<1x64x128xbf16>
    %163 = vector.shape_cast %162 : vector<1x64x128xbf16> to vector<64x128xbf16>
    %164 = arith.mulf %161, %163 : vector<64x128xbf16>
    %c6_97 = arith.constant 6 : index
    %c0_98 = arith.constant 0 : index
    %c0_99 = arith.constant 0 : index
    %165 = vector.load %arg4[%c6_97, %c0_98, %c0_99] : memref<9x128x128xbf16, #tpu.memory_space<vmem>>, vector<1x128x128xbf16>
    %166 = vector.shape_cast %165 : vector<1x128x128xbf16> to vector<128x128xbf16>
    %cst_100 = arith.constant dense<0.000000e+00> : vector<64x128xf32>
    %167 = tpu.matmul %164, %166, %cst_100 {dimension_numbers = #tpu.dot_dimension_numbers<[1], [0], [0], [1], [0, 0, 1, 1], [], []>} : vector<64x128xbf16>, vector<128x128xbf16>, vector<64x128xf32> -> vector<64x128xf32>
    %168 = arith.addf %157, %167 : vector<64x128xf32>
    %169 = vector.extract_strided_slice %97 {offsets = [8, 0], sizes = [56, 128], strides = [1, 1]} : vector<64x128xf32> to vector<56x128xf32>
    %170 = vector.extract_strided_slice %97 {offsets = [0, 0], sizes = [8, 128], strides = [1, 1]} : vector<64x128xf32> to vector<8x128xf32>
    %171 = tpu.concatenate %169, %170 in 0 : vector<56x128xf32>, vector<8x128xf32> -> vector<64x128xf32>
    %172 = arith.truncf %171 : vector<64x128xf32> to vector<64x128xbf16>
    %c7_101 = arith.constant 7 : index
    %c0_102 = arith.constant 0 : index
    %c0_103 = arith.constant 0 : index
    %173 = vector.load %arg2[%c7_101, %c0_102, %c0_103] : memref<9x64x128xbf16, #tpu.memory_space<vmem>>, vector<1x64x128xbf16>
    %174 = vector.shape_cast %173 : vector<1x64x128xbf16> to vector<64x128xbf16>
    %175 = arith.mulf %172, %174 : vector<64x128xbf16>
    %c7_104 = arith.constant 7 : index
    %c0_105 = arith.constant 0 : index
    %c0_106 = arith.constant 0 : index
    %176 = vector.load %arg4[%c7_104, %c0_105, %c0_106] : memref<9x128x128xbf16, #tpu.memory_space<vmem>>, vector<1x128x128xbf16>
    %177 = vector.shape_cast %176 : vector<1x128x128xbf16> to vector<128x128xbf16>
    %cst_107 = arith.constant dense<0.000000e+00> : vector<64x128xf32>
    %178 = tpu.matmul %175, %177, %cst_107 {dimension_numbers = #tpu.dot_dimension_numbers<[1], [0], [0], [1], [0, 0, 1, 1], [], []>} : vector<64x128xbf16>, vector<128x128xbf16>, vector<64x128xf32> -> vector<64x128xf32>
    %179 = arith.addf %168, %178 : vector<64x128xf32>
    %180 = vector.extract_strided_slice %97 {offsets = [9, 0], sizes = [55, 128], strides = [1, 1]} : vector<64x128xf32> to vector<55x128xf32>
    %181 = vector.extract_strided_slice %97 {offsets = [0, 0], sizes = [9, 128], strides = [1, 1]} : vector<64x128xf32> to vector<9x128xf32>
    %182 = tpu.concatenate %180, %181 in 0 : vector<55x128xf32>, vector<9x128xf32> -> vector<64x128xf32>
    %183 = arith.truncf %182 : vector<64x128xf32> to vector<64x128xbf16>
    %c8_108 = arith.constant 8 : index
    %c0_109 = arith.constant 0 : index
    %c0_110 = arith.constant 0 : index
    %184 = vector.load %arg2[%c8_108, %c0_109, %c0_110] : memref<9x64x128xbf16, #tpu.memory_space<vmem>>, vector<1x64x128xbf16>
    %185 = vector.shape_cast %184 : vector<1x64x128xbf16> to vector<64x128xbf16>
    %186 = arith.mulf %183, %185 : vector<64x128xbf16>
    %c8_111 = arith.constant 8 : index
    %c0_112 = arith.constant 0 : index
    %c0_113 = arith.constant 0 : index
    %187 = vector.load %arg4[%c8_111, %c0_112, %c0_113] : memref<9x128x128xbf16, #tpu.memory_space<vmem>>, vector<1x128x128xbf16>
    %188 = vector.shape_cast %187 : vector<1x128x128xbf16> to vector<128x128xbf16>
    %cst_114 = arith.constant dense<0.000000e+00> : vector<64x128xf32>
    %189 = tpu.matmul %186, %188, %cst_114 {dimension_numbers = #tpu.dot_dimension_numbers<[1], [0], [0], [1], [0, 0, 1, 1], [], []>} : vector<64x128xbf16>, vector<128x128xbf16>, vector<64x128xf32> -> vector<64x128xf32>
    %190 = arith.addf %179, %189 : vector<64x128xf32>
    %cst_115 = arith.constant 0.000000e+00 : f32
    %191 = vector.broadcast %cst_115 : f32 to vector<64x128xf32>
    %192 = arith.maximumf %190, %191 : vector<64x128xf32>
    %cst_116 = arith.constant 0.000000e+00 : f32
    %193 = vector.broadcast %cst_116 : f32 to vector<64x128xf32>
    %194 = vector.extract_strided_slice %192 {offsets = [55, 0], sizes = [9, 128], strides = [1, 1]} : vector<64x128xf32> to vector<9x128xf32>
    %195 = vector.extract_strided_slice %192 {offsets = [0, 0], sizes = [55, 128], strides = [1, 1]} : vector<64x128xf32> to vector<55x128xf32>
    %196 = tpu.concatenate %194, %195 in 0 : vector<9x128xf32>, vector<55x128xf32> -> vector<64x128xf32>
    %197 = arith.truncf %196 : vector<64x128xf32> to vector<64x128xbf16>
    %c0_117 = arith.constant 0 : index
    %c0_118 = arith.constant 0 : index
    %c0_119 = arith.constant 0 : index
    %198 = vector.load %arg2[%c0_117, %c0_118, %c0_119] : memref<9x64x128xbf16, #tpu.memory_space<vmem>>, vector<1x64x128xbf16>
    %199 = vector.shape_cast %198 : vector<1x64x128xbf16> to vector<64x128xbf16>
    %200 = arith.mulf %197, %199 : vector<64x128xbf16>
    %c0_120 = arith.constant 0 : index
    %c0_121 = arith.constant 0 : index
    %c0_122 = arith.constant 0 : index
    %201 = vector.load %arg5[%c0_120, %c0_121, %c0_122] : memref<9x128x128xbf16, #tpu.memory_space<vmem>>, vector<1x128x128xbf16>
    %202 = vector.shape_cast %201 : vector<1x128x128xbf16> to vector<128x128xbf16>
    %cst_123 = arith.constant dense<0.000000e+00> : vector<64x128xf32>
    %203 = tpu.matmul %200, %202, %cst_123 {dimension_numbers = #tpu.dot_dimension_numbers<[1], [0], [0], [1], [0, 0, 1, 1], [], []>} : vector<64x128xbf16>, vector<128x128xbf16>, vector<64x128xf32> -> vector<64x128xf32>
    %204 = arith.addf %193, %203 : vector<64x128xf32>
    %205 = vector.extract_strided_slice %192 {offsets = [56, 0], sizes = [8, 128], strides = [1, 1]} : vector<64x128xf32> to vector<8x128xf32>
    %206 = vector.extract_strided_slice %192 {offsets = [0, 0], sizes = [56, 128], strides = [1, 1]} : vector<64x128xf32> to vector<56x128xf32>
    %207 = tpu.concatenate %205, %206 in 0 : vector<8x128xf32>, vector<56x128xf32> -> vector<64x128xf32>
    %208 = arith.truncf %207 : vector<64x128xf32> to vector<64x128xbf16>
    %c1_124 = arith.constant 1 : index
    %c0_125 = arith.constant 0 : index
    %c0_126 = arith.constant 0 : index
    %209 = vector.load %arg2[%c1_124, %c0_125, %c0_126] : memref<9x64x128xbf16, #tpu.memory_space<vmem>>, vector<1x64x128xbf16>
    %210 = vector.shape_cast %209 : vector<1x64x128xbf16> to vector<64x128xbf16>
    %211 = arith.mulf %208, %210 : vector<64x128xbf16>
    %c1_127 = arith.constant 1 : index
    %c0_128 = arith.constant 0 : index
    %c0_129 = arith.constant 0 : index
    %212 = vector.load %arg5[%c1_127, %c0_128, %c0_129] : memref<9x128x128xbf16, #tpu.memory_space<vmem>>, vector<1x128x128xbf16>
    %213 = vector.shape_cast %212 : vector<1x128x128xbf16> to vector<128x128xbf16>
    %cst_130 = arith.constant dense<0.000000e+00> : vector<64x128xf32>
    %214 = tpu.matmul %211, %213, %cst_130 {dimension_numbers = #tpu.dot_dimension_numbers<[1], [0], [0], [1], [0, 0, 1, 1], [], []>} : vector<64x128xbf16>, vector<128x128xbf16>, vector<64x128xf32> -> vector<64x128xf32>
    %215 = arith.addf %204, %214 : vector<64x128xf32>
    %216 = vector.extract_strided_slice %192 {offsets = [57, 0], sizes = [7, 128], strides = [1, 1]} : vector<64x128xf32> to vector<7x128xf32>
    %217 = vector.extract_strided_slice %192 {offsets = [0, 0], sizes = [57, 128], strides = [1, 1]} : vector<64x128xf32> to vector<57x128xf32>
    %218 = tpu.concatenate %216, %217 in 0 : vector<7x128xf32>, vector<57x128xf32> -> vector<64x128xf32>
    %219 = arith.truncf %218 : vector<64x128xf32> to vector<64x128xbf16>
    %c2_131 = arith.constant 2 : index
    %c0_132 = arith.constant 0 : index
    %c0_133 = arith.constant 0 : index
    %220 = vector.load %arg2[%c2_131, %c0_132, %c0_133] : memref<9x64x128xbf16, #tpu.memory_space<vmem>>, vector<1x64x128xbf16>
    %221 = vector.shape_cast %220 : vector<1x64x128xbf16> to vector<64x128xbf16>
    %222 = arith.mulf %219, %221 : vector<64x128xbf16>
    %c2_134 = arith.constant 2 : index
    %c0_135 = arith.constant 0 : index
    %c0_136 = arith.constant 0 : index
    %223 = vector.load %arg5[%c2_134, %c0_135, %c0_136] : memref<9x128x128xbf16, #tpu.memory_space<vmem>>, vector<1x128x128xbf16>
    %224 = vector.shape_cast %223 : vector<1x128x128xbf16> to vector<128x128xbf16>
    %cst_137 = arith.constant dense<0.000000e+00> : vector<64x128xf32>
    %225 = tpu.matmul %222, %224, %cst_137 {dimension_numbers = #tpu.dot_dimension_numbers<[1], [0], [0], [1], [0, 0, 1, 1], [], []>} : vector<64x128xbf16>, vector<128x128xbf16>, vector<64x128xf32> -> vector<64x128xf32>
    %226 = arith.addf %215, %225 : vector<64x128xf32>
    %227 = vector.extract_strided_slice %192 {offsets = [63, 0], sizes = [1, 128], strides = [1, 1]} : vector<64x128xf32> to vector<1x128xf32>
    %228 = vector.extract_strided_slice %192 {offsets = [0, 0], sizes = [63, 128], strides = [1, 1]} : vector<64x128xf32> to vector<63x128xf32>
    %229 = tpu.concatenate %227, %228 in 0 : vector<1x128xf32>, vector<63x128xf32> -> vector<64x128xf32>
    %230 = arith.truncf %229 : vector<64x128xf32> to vector<64x128xbf16>
    %c3_138 = arith.constant 3 : index
    %c0_139 = arith.constant 0 : index
    %c0_140 = arith.constant 0 : index
    %231 = vector.load %arg2[%c3_138, %c0_139, %c0_140] : memref<9x64x128xbf16, #tpu.memory_space<vmem>>, vector<1x64x128xbf16>
    %232 = vector.shape_cast %231 : vector<1x64x128xbf16> to vector<64x128xbf16>
    %233 = arith.mulf %230, %232 : vector<64x128xbf16>
    %c3_141 = arith.constant 3 : index
    %c0_142 = arith.constant 0 : index
    %c0_143 = arith.constant 0 : index
    %234 = vector.load %arg5[%c3_141, %c0_142, %c0_143] : memref<9x128x128xbf16, #tpu.memory_space<vmem>>, vector<1x128x128xbf16>
    %235 = vector.shape_cast %234 : vector<1x128x128xbf16> to vector<128x128xbf16>
    %cst_144 = arith.constant dense<0.000000e+00> : vector<64x128xf32>
    %236 = tpu.matmul %233, %235, %cst_144 {dimension_numbers = #tpu.dot_dimension_numbers<[1], [0], [0], [1], [0, 0, 1, 1], [], []>} : vector<64x128xbf16>, vector<128x128xbf16>, vector<64x128xf32> -> vector<64x128xf32>
    %237 = arith.addf %226, %236 : vector<64x128xf32>
    %238 = arith.truncf %192 : vector<64x128xf32> to vector<64x128xbf16>
    %c4_145 = arith.constant 4 : index
    %c0_146 = arith.constant 0 : index
    %c0_147 = arith.constant 0 : index
    %239 = vector.load %arg5[%c4_145, %c0_146, %c0_147] : memref<9x128x128xbf16, #tpu.memory_space<vmem>>, vector<1x128x128xbf16>
    %240 = vector.shape_cast %239 : vector<1x128x128xbf16> to vector<128x128xbf16>
    %cst_148 = arith.constant dense<0.000000e+00> : vector<64x128xf32>
    %241 = tpu.matmul %238, %240, %cst_148 {dimension_numbers = #tpu.dot_dimension_numbers<[1], [0], [0], [1], [0, 0, 1, 1], [], []>} : vector<64x128xbf16>, vector<128x128xbf16>, vector<64x128xf32> -> vector<64x128xf32>
    %242 = arith.addf %237, %241 : vector<64x128xf32>
    %243 = vector.extract_strided_slice %192 {offsets = [1, 0], sizes = [63, 128], strides = [1, 1]} : vector<64x128xf32> to vector<63x128xf32>
    %244 = vector.extract_strided_slice %192 {offsets = [0, 0], sizes = [1, 128], strides = [1, 1]} : vector<64x128xf32> to vector<1x128xf32>
    %245 = tpu.concatenate %243, %244 in 0 : vector<63x128xf32>, vector<1x128xf32> -> vector<64x128xf32>
    %246 = arith.truncf %245 : vector<64x128xf32> to vector<64x128xbf16>
    %c5_149 = arith.constant 5 : index
    %c0_150 = arith.constant 0 : index
    %c0_151 = arith.constant 0 : index
    %247 = vector.load %arg2[%c5_149, %c0_150, %c0_151] : memref<9x64x128xbf16, #tpu.memory_space<vmem>>, vector<1x64x128xbf16>
    %248 = vector.shape_cast %247 : vector<1x64x128xbf16> to vector<64x128xbf16>
    %249 = arith.mulf %246, %248 : vector<64x128xbf16>
    %c5_152 = arith.constant 5 : index
    %c0_153 = arith.constant 0 : index
    %c0_154 = arith.constant 0 : index
    %250 = vector.load %arg5[%c5_152, %c0_153, %c0_154] : memref<9x128x128xbf16, #tpu.memory_space<vmem>>, vector<1x128x128xbf16>
    %251 = vector.shape_cast %250 : vector<1x128x128xbf16> to vector<128x128xbf16>
    %cst_155 = arith.constant dense<0.000000e+00> : vector<64x128xf32>
    %252 = tpu.matmul %249, %251, %cst_155 {dimension_numbers = #tpu.dot_dimension_numbers<[1], [0], [0], [1], [0, 0, 1, 1], [], []>} : vector<64x128xbf16>, vector<128x128xbf16>, vector<64x128xf32> -> vector<64x128xf32>
    %253 = arith.addf %242, %252 : vector<64x128xf32>
    %254 = vector.extract_strided_slice %192 {offsets = [7, 0], sizes = [57, 128], strides = [1, 1]} : vector<64x128xf32> to vector<57x128xf32>
    %255 = vector.extract_strided_slice %192 {offsets = [0, 0], sizes = [7, 128], strides = [1, 1]} : vector<64x128xf32> to vector<7x128xf32>
    %256 = tpu.concatenate %254, %255 in 0 : vector<57x128xf32>, vector<7x128xf32> -> vector<64x128xf32>
    %257 = arith.truncf %256 : vector<64x128xf32> to vector<64x128xbf16>
    %c6_156 = arith.constant 6 : index
    %c0_157 = arith.constant 0 : index
    %c0_158 = arith.constant 0 : index
    %258 = vector.load %arg2[%c6_156, %c0_157, %c0_158] : memref<9x64x128xbf16, #tpu.memory_space<vmem>>, vector<1x64x128xbf16>
    %259 = vector.shape_cast %258 : vector<1x64x128xbf16> to vector<64x128xbf16>
    %260 = arith.mulf %257, %259 : vector<64x128xbf16>
    %c6_159 = arith.constant 6 : index
    %c0_160 = arith.constant 0 : index
    %c0_161 = arith.constant 0 : index
    %261 = vector.load %arg5[%c6_159, %c0_160, %c0_161] : memref<9x128x128xbf16, #tpu.memory_space<vmem>>, vector<1x128x128xbf16>
    %262 = vector.shape_cast %261 : vector<1x128x128xbf16> to vector<128x128xbf16>
    %cst_162 = arith.constant dense<0.000000e+00> : vector<64x128xf32>
    %263 = tpu.matmul %260, %262, %cst_162 {dimension_numbers = #tpu.dot_dimension_numbers<[1], [0], [0], [1], [0, 0, 1, 1], [], []>} : vector<64x128xbf16>, vector<128x128xbf16>, vector<64x128xf32> -> vector<64x128xf32>
    %264 = arith.addf %253, %263 : vector<64x128xf32>
    %265 = vector.extract_strided_slice %192 {offsets = [8, 0], sizes = [56, 128], strides = [1, 1]} : vector<64x128xf32> to vector<56x128xf32>
    %266 = vector.extract_strided_slice %192 {offsets = [0, 0], sizes = [8, 128], strides = [1, 1]} : vector<64x128xf32> to vector<8x128xf32>
    %267 = tpu.concatenate %265, %266 in 0 : vector<56x128xf32>, vector<8x128xf32> -> vector<64x128xf32>
    %268 = arith.truncf %267 : vector<64x128xf32> to vector<64x128xbf16>
    %c7_163 = arith.constant 7 : index
    %c0_164 = arith.constant 0 : index
    %c0_165 = arith.constant 0 : index
    %269 = vector.load %arg2[%c7_163, %c0_164, %c0_165] : memref<9x64x128xbf16, #tpu.memory_space<vmem>>, vector<1x64x128xbf16>
    %270 = vector.shape_cast %269 : vector<1x64x128xbf16> to vector<64x128xbf16>
    %271 = arith.mulf %268, %270 : vector<64x128xbf16>
    %c7_166 = arith.constant 7 : index
    %c0_167 = arith.constant 0 : index
    %c0_168 = arith.constant 0 : index
    %272 = vector.load %arg5[%c7_166, %c0_167, %c0_168] : memref<9x128x128xbf16, #tpu.memory_space<vmem>>, vector<1x128x128xbf16>
    %273 = vector.shape_cast %272 : vector<1x128x128xbf16> to vector<128x128xbf16>
    %cst_169 = arith.constant dense<0.000000e+00> : vector<64x128xf32>
    %274 = tpu.matmul %271, %273, %cst_169 {dimension_numbers = #tpu.dot_dimension_numbers<[1], [0], [0], [1], [0, 0, 1, 1], [], []>} : vector<64x128xbf16>, vector<128x128xbf16>, vector<64x128xf32> -> vector<64x128xf32>
    %275 = arith.addf %264, %274 : vector<64x128xf32>
    %276 = vector.extract_strided_slice %192 {offsets = [9, 0], sizes = [55, 128], strides = [1, 1]} : vector<64x128xf32> to vector<55x128xf32>
    %277 = vector.extract_strided_slice %192 {offsets = [0, 0], sizes = [9, 128], strides = [1, 1]} : vector<64x128xf32> to vector<9x128xf32>
    %278 = tpu.concatenate %276, %277 in 0 : vector<55x128xf32>, vector<9x128xf32> -> vector<64x128xf32>
    %279 = arith.truncf %278 : vector<64x128xf32> to vector<64x128xbf16>
    %c8_170 = arith.constant 8 : index
    %c0_171 = arith.constant 0 : index
    %c0_172 = arith.constant 0 : index
    %280 = vector.load %arg2[%c8_170, %c0_171, %c0_172] : memref<9x64x128xbf16, #tpu.memory_space<vmem>>, vector<1x64x128xbf16>
    %281 = vector.shape_cast %280 : vector<1x64x128xbf16> to vector<64x128xbf16>
    %282 = arith.mulf %279, %281 : vector<64x128xbf16>
    %c8_173 = arith.constant 8 : index
    %c0_174 = arith.constant 0 : index
    %c0_175 = arith.constant 0 : index
    %283 = vector.load %arg5[%c8_173, %c0_174, %c0_175] : memref<9x128x128xbf16, #tpu.memory_space<vmem>>, vector<1x128x128xbf16>
    %284 = vector.shape_cast %283 : vector<1x128x128xbf16> to vector<128x128xbf16>
    %cst_176 = arith.constant dense<0.000000e+00> : vector<64x128xf32>
    %285 = tpu.matmul %282, %284, %cst_176 {dimension_numbers = #tpu.dot_dimension_numbers<[1], [0], [0], [1], [0, 0, 1, 1], [], []>} : vector<64x128xbf16>, vector<128x128xbf16>, vector<64x128xf32> -> vector<64x128xf32>
    %286 = arith.addf %275, %285 : vector<64x128xf32>
    %cst_177 = arith.constant 0.000000e+00 : f32
    %287 = vector.broadcast %cst_177 : f32 to vector<64x128xf32>
    %288 = arith.maximumf %286, %287 : vector<64x128xf32>
    %289 = vector.extract_strided_slice %288 {offsets = [55, 0], sizes = [9, 128], strides = [1, 1]} : vector<64x128xf32> to vector<9x128xf32>
    %290 = vector.extract_strided_slice %288 {offsets = [0, 0], sizes = [55, 128], strides = [1, 1]} : vector<64x128xf32> to vector<55x128xf32>
    %291 = tpu.concatenate %289, %290 in 0 : vector<9x128xf32>, vector<55x128xf32> -> vector<64x128xf32>
    %292 = arith.truncf %291 : vector<64x128xf32> to vector<64x128xbf16>
    %c0_178 = arith.constant 0 : index
    %c0_179 = arith.constant 0 : index
    %c0_180 = arith.constant 0 : index
    %293 = vector.load %arg2[%c0_178, %c0_179, %c0_180] : memref<9x64x128xbf16, #tpu.memory_space<vmem>>, vector<1x64x128xbf16>
    %294 = vector.shape_cast %293 : vector<1x64x128xbf16> to vector<64x128xbf16>
    %295 = arith.mulf %292, %294 : vector<64x128xbf16>
    %c0_181 = arith.constant 0 : index
    %c0_182 = arith.constant 0 : index
    %c0_183 = arith.constant 0 : index
    %296 = vector.load %arg6[%c0_181, %c0_182, %c0_183] : memref<9x128x128xbf16, #tpu.memory_space<vmem>>, vector<1x128x128xbf16>
    %297 = vector.shape_cast %296 : vector<1x128x128xbf16> to vector<128x128xbf16>
    %cst_184 = arith.constant dense<0.000000e+00> : vector<64x128xf32>
    %298 = tpu.matmul %295, %297, %cst_184 {dimension_numbers = #tpu.dot_dimension_numbers<[1], [0], [0], [1], [0, 0, 1, 1], [], []>} : vector<64x128xbf16>, vector<128x128xbf16>, vector<64x128xf32> -> vector<64x128xf32>
    %299 = arith.addf %192, %298 : vector<64x128xf32>
    %300 = vector.extract_strided_slice %288 {offsets = [56, 0], sizes = [8, 128], strides = [1, 1]} : vector<64x128xf32> to vector<8x128xf32>
    %301 = vector.extract_strided_slice %288 {offsets = [0, 0], sizes = [56, 128], strides = [1, 1]} : vector<64x128xf32> to vector<56x128xf32>
    %302 = tpu.concatenate %300, %301 in 0 : vector<8x128xf32>, vector<56x128xf32> -> vector<64x128xf32>
    %303 = arith.truncf %302 : vector<64x128xf32> to vector<64x128xbf16>
    %c1_185 = arith.constant 1 : index
    %c0_186 = arith.constant 0 : index
    %c0_187 = arith.constant 0 : index
    %304 = vector.load %arg2[%c1_185, %c0_186, %c0_187] : memref<9x64x128xbf16, #tpu.memory_space<vmem>>, vector<1x64x128xbf16>
    %305 = vector.shape_cast %304 : vector<1x64x128xbf16> to vector<64x128xbf16>
    %306 = arith.mulf %303, %305 : vector<64x128xbf16>
    %c1_188 = arith.constant 1 : index
    %c0_189 = arith.constant 0 : index
    %c0_190 = arith.constant 0 : index
    %307 = vector.load %arg6[%c1_188, %c0_189, %c0_190] : memref<9x128x128xbf16, #tpu.memory_space<vmem>>, vector<1x128x128xbf16>
    %308 = vector.shape_cast %307 : vector<1x128x128xbf16> to vector<128x128xbf16>
    %cst_191 = arith.constant dense<0.000000e+00> : vector<64x128xf32>
    %309 = tpu.matmul %306, %308, %cst_191 {dimension_numbers = #tpu.dot_dimension_numbers<[1], [0], [0], [1], [0, 0, 1, 1], [], []>} : vector<64x128xbf16>, vector<128x128xbf16>, vector<64x128xf32> -> vector<64x128xf32>
    %310 = arith.addf %299, %309 : vector<64x128xf32>
    %311 = vector.extract_strided_slice %288 {offsets = [57, 0], sizes = [7, 128], strides = [1, 1]} : vector<64x128xf32> to vector<7x128xf32>
    %312 = vector.extract_strided_slice %288 {offsets = [0, 0], sizes = [57, 128], strides = [1, 1]} : vector<64x128xf32> to vector<57x128xf32>
    %313 = tpu.concatenate %311, %312 in 0 : vector<7x128xf32>, vector<57x128xf32> -> vector<64x128xf32>
    %314 = arith.truncf %313 : vector<64x128xf32> to vector<64x128xbf16>
    %c2_192 = arith.constant 2 : index
    %c0_193 = arith.constant 0 : index
    %c0_194 = arith.constant 0 : index
    %315 = vector.load %arg2[%c2_192, %c0_193, %c0_194] : memref<9x64x128xbf16, #tpu.memory_space<vmem>>, vector<1x64x128xbf16>
    %316 = vector.shape_cast %315 : vector<1x64x128xbf16> to vector<64x128xbf16>
    %317 = arith.mulf %314, %316 : vector<64x128xbf16>
    %c2_195 = arith.constant 2 : index
    %c0_196 = arith.constant 0 : index
    %c0_197 = arith.constant 0 : index
    %318 = vector.load %arg6[%c2_195, %c0_196, %c0_197] : memref<9x128x128xbf16, #tpu.memory_space<vmem>>, vector<1x128x128xbf16>
    %319 = vector.shape_cast %318 : vector<1x128x128xbf16> to vector<128x128xbf16>
    %cst_198 = arith.constant dense<0.000000e+00> : vector<64x128xf32>
    %320 = tpu.matmul %317, %319, %cst_198 {dimension_numbers = #tpu.dot_dimension_numbers<[1], [0], [0], [1], [0, 0, 1, 1], [], []>} : vector<64x128xbf16>, vector<128x128xbf16>, vector<64x128xf32> -> vector<64x128xf32>
    %321 = arith.addf %310, %320 : vector<64x128xf32>
    %322 = vector.extract_strided_slice %288 {offsets = [63, 0], sizes = [1, 128], strides = [1, 1]} : vector<64x128xf32> to vector<1x128xf32>
    %323 = vector.extract_strided_slice %288 {offsets = [0, 0], sizes = [63, 128], strides = [1, 1]} : vector<64x128xf32> to vector<63x128xf32>
    %324 = tpu.concatenate %322, %323 in 0 : vector<1x128xf32>, vector<63x128xf32> -> vector<64x128xf32>
    %325 = arith.truncf %324 : vector<64x128xf32> to vector<64x128xbf16>
    %c3_199 = arith.constant 3 : index
    %c0_200 = arith.constant 0 : index
    %c0_201 = arith.constant 0 : index
    %326 = vector.load %arg2[%c3_199, %c0_200, %c0_201] : memref<9x64x128xbf16, #tpu.memory_space<vmem>>, vector<1x64x128xbf16>
    %327 = vector.shape_cast %326 : vector<1x64x128xbf16> to vector<64x128xbf16>
    %328 = arith.mulf %325, %327 : vector<64x128xbf16>
    %c3_202 = arith.constant 3 : index
    %c0_203 = arith.constant 0 : index
    %c0_204 = arith.constant 0 : index
    %329 = vector.load %arg6[%c3_202, %c0_203, %c0_204] : memref<9x128x128xbf16, #tpu.memory_space<vmem>>, vector<1x128x128xbf16>
    %330 = vector.shape_cast %329 : vector<1x128x128xbf16> to vector<128x128xbf16>
    %cst_205 = arith.constant dense<0.000000e+00> : vector<64x128xf32>
    %331 = tpu.matmul %328, %330, %cst_205 {dimension_numbers = #tpu.dot_dimension_numbers<[1], [0], [0], [1], [0, 0, 1, 1], [], []>} : vector<64x128xbf16>, vector<128x128xbf16>, vector<64x128xf32> -> vector<64x128xf32>
    %332 = arith.addf %321, %331 : vector<64x128xf32>
    %333 = arith.truncf %288 : vector<64x128xf32> to vector<64x128xbf16>
    %c4_206 = arith.constant 4 : index
    %c0_207 = arith.constant 0 : index
    %c0_208 = arith.constant 0 : index
    %334 = vector.load %arg6[%c4_206, %c0_207, %c0_208] : memref<9x128x128xbf16, #tpu.memory_space<vmem>>, vector<1x128x128xbf16>
    %335 = vector.shape_cast %334 : vector<1x128x128xbf16> to vector<128x128xbf16>
    %cst_209 = arith.constant dense<0.000000e+00> : vector<64x128xf32>
    %336 = tpu.matmul %333, %335, %cst_209 {dimension_numbers = #tpu.dot_dimension_numbers<[1], [0], [0], [1], [0, 0, 1, 1], [], []>} : vector<64x128xbf16>, vector<128x128xbf16>, vector<64x128xf32> -> vector<64x128xf32>
    %337 = arith.addf %332, %336 : vector<64x128xf32>
    %338 = vector.extract_strided_slice %288 {offsets = [1, 0], sizes = [63, 128], strides = [1, 1]} : vector<64x128xf32> to vector<63x128xf32>
    %339 = vector.extract_strided_slice %288 {offsets = [0, 0], sizes = [1, 128], strides = [1, 1]} : vector<64x128xf32> to vector<1x128xf32>
    %340 = tpu.concatenate %338, %339 in 0 : vector<63x128xf32>, vector<1x128xf32> -> vector<64x128xf32>
    %341 = arith.truncf %340 : vector<64x128xf32> to vector<64x128xbf16>
    %c5_210 = arith.constant 5 : index
    %c0_211 = arith.constant 0 : index
    %c0_212 = arith.constant 0 : index
    %342 = vector.load %arg2[%c5_210, %c0_211, %c0_212] : memref<9x64x128xbf16, #tpu.memory_space<vmem>>, vector<1x64x128xbf16>
    %343 = vector.shape_cast %342 : vector<1x64x128xbf16> to vector<64x128xbf16>
    %344 = arith.mulf %341, %343 : vector<64x128xbf16>
    %c5_213 = arith.constant 5 : index
    %c0_214 = arith.constant 0 : index
    %c0_215 = arith.constant 0 : index
    %345 = vector.load %arg6[%c5_213, %c0_214, %c0_215] : memref<9x128x128xbf16, #tpu.memory_space<vmem>>, vector<1x128x128xbf16>
    %346 = vector.shape_cast %345 : vector<1x128x128xbf16> to vector<128x128xbf16>
    %cst_216 = arith.constant dense<0.000000e+00> : vector<64x128xf32>
    %347 = tpu.matmul %344, %346, %cst_216 {dimension_numbers = #tpu.dot_dimension_numbers<[1], [0], [0], [1], [0, 0, 1, 1], [], []>} : vector<64x128xbf16>, vector<128x128xbf16>, vector<64x128xf32> -> vector<64x128xf32>
    %348 = arith.addf %337, %347 : vector<64x128xf32>
    %349 = vector.extract_strided_slice %288 {offsets = [7, 0], sizes = [57, 128], strides = [1, 1]} : vector<64x128xf32> to vector<57x128xf32>
    %350 = vector.extract_strided_slice %288 {offsets = [0, 0], sizes = [7, 128], strides = [1, 1]} : vector<64x128xf32> to vector<7x128xf32>
    %351 = tpu.concatenate %349, %350 in 0 : vector<57x128xf32>, vector<7x128xf32> -> vector<64x128xf32>
    %352 = arith.truncf %351 : vector<64x128xf32> to vector<64x128xbf16>
    %c6_217 = arith.constant 6 : index
    %c0_218 = arith.constant 0 : index
    %c0_219 = arith.constant 0 : index
    %353 = vector.load %arg2[%c6_217, %c0_218, %c0_219] : memref<9x64x128xbf16, #tpu.memory_space<vmem>>, vector<1x64x128xbf16>
    %354 = vector.shape_cast %353 : vector<1x64x128xbf16> to vector<64x128xbf16>
    %355 = arith.mulf %352, %354 : vector<64x128xbf16>
    %c6_220 = arith.constant 6 : index
    %c0_221 = arith.constant 0 : index
    %c0_222 = arith.constant 0 : index
    %356 = vector.load %arg6[%c6_220, %c0_221, %c0_222] : memref<9x128x128xbf16, #tpu.memory_space<vmem>>, vector<1x128x128xbf16>
    %357 = vector.shape_cast %356 : vector<1x128x128xbf16> to vector<128x128xbf16>
    %cst_223 = arith.constant dense<0.000000e+00> : vector<64x128xf32>
    %358 = tpu.matmul %355, %357, %cst_223 {dimension_numbers = #tpu.dot_dimension_numbers<[1], [0], [0], [1], [0, 0, 1, 1], [], []>} : vector<64x128xbf16>, vector<128x128xbf16>, vector<64x128xf32> -> vector<64x128xf32>
    %359 = arith.addf %348, %358 : vector<64x128xf32>
    %360 = vector.extract_strided_slice %288 {offsets = [8, 0], sizes = [56, 128], strides = [1, 1]} : vector<64x128xf32> to vector<56x128xf32>
    %361 = vector.extract_strided_slice %288 {offsets = [0, 0], sizes = [8, 128], strides = [1, 1]} : vector<64x128xf32> to vector<8x128xf32>
    %362 = tpu.concatenate %360, %361 in 0 : vector<56x128xf32>, vector<8x128xf32> -> vector<64x128xf32>
    %363 = arith.truncf %362 : vector<64x128xf32> to vector<64x128xbf16>
    %c7_224 = arith.constant 7 : index
    %c0_225 = arith.constant 0 : index
    %c0_226 = arith.constant 0 : index
    %364 = vector.load %arg2[%c7_224, %c0_225, %c0_226] : memref<9x64x128xbf16, #tpu.memory_space<vmem>>, vector<1x64x128xbf16>
    %365 = vector.shape_cast %364 : vector<1x64x128xbf16> to vector<64x128xbf16>
    %366 = arith.mulf %363, %365 : vector<64x128xbf16>
    %c7_227 = arith.constant 7 : index
    %c0_228 = arith.constant 0 : index
    %c0_229 = arith.constant 0 : index
    %367 = vector.load %arg6[%c7_227, %c0_228, %c0_229] : memref<9x128x128xbf16, #tpu.memory_space<vmem>>, vector<1x128x128xbf16>
    %368 = vector.shape_cast %367 : vector<1x128x128xbf16> to vector<128x128xbf16>
    %cst_230 = arith.constant dense<0.000000e+00> : vector<64x128xf32>
    %369 = tpu.matmul %366, %368, %cst_230 {dimension_numbers = #tpu.dot_dimension_numbers<[1], [0], [0], [1], [0, 0, 1, 1], [], []>} : vector<64x128xbf16>, vector<128x128xbf16>, vector<64x128xf32> -> vector<64x128xf32>
    %370 = arith.addf %359, %369 : vector<64x128xf32>
    %371 = vector.extract_strided_slice %288 {offsets = [9, 0], sizes = [55, 128], strides = [1, 1]} : vector<64x128xf32> to vector<55x128xf32>
    %372 = vector.extract_strided_slice %288 {offsets = [0, 0], sizes = [9, 128], strides = [1, 1]} : vector<64x128xf32> to vector<9x128xf32>
    %373 = tpu.concatenate %371, %372 in 0 : vector<55x128xf32>, vector<9x128xf32> -> vector<64x128xf32>
    %374 = arith.truncf %373 : vector<64x128xf32> to vector<64x128xbf16>
    %c8_231 = arith.constant 8 : index
    %c0_232 = arith.constant 0 : index
    %c0_233 = arith.constant 0 : index
    %375 = vector.load %arg2[%c8_231, %c0_232, %c0_233] : memref<9x64x128xbf16, #tpu.memory_space<vmem>>, vector<1x64x128xbf16>
    %376 = vector.shape_cast %375 : vector<1x64x128xbf16> to vector<64x128xbf16>
    %377 = arith.mulf %374, %376 : vector<64x128xbf16>
    %c8_234 = arith.constant 8 : index
    %c0_235 = arith.constant 0 : index
    %c0_236 = arith.constant 0 : index
    %378 = vector.load %arg6[%c8_234, %c0_235, %c0_236] : memref<9x128x128xbf16, #tpu.memory_space<vmem>>, vector<1x128x128xbf16>
    %379 = vector.shape_cast %378 : vector<1x128x128xbf16> to vector<128x128xbf16>
    %cst_237 = arith.constant dense<0.000000e+00> : vector<64x128xf32>
    %380 = tpu.matmul %377, %379, %cst_237 {dimension_numbers = #tpu.dot_dimension_numbers<[1], [0], [0], [1], [0, 0, 1, 1], [], []>} : vector<64x128xbf16>, vector<128x128xbf16>, vector<64x128xf32> -> vector<64x128xf32>
    %381 = arith.addf %370, %380 : vector<64x128xf32>
    %cst_238 = arith.constant 0.000000e+00 : f32
    %382 = vector.broadcast %cst_238 : f32 to vector<64x128xf32>
    %383 = arith.maximumf %381, %382 : vector<64x128xf32>
    %384 = vector.shape_cast %383 : vector<64x128xf32> to vector<1x64x128xf32>
    %c0_239 = arith.constant 0 : index
    %c0_240 = arith.constant 0 : index
    %c0_241 = arith.constant 0 : index
    %385 = vector.load %arg7[%c0_239, %c0_240, %c0_241] : memref<1x64x128xf32, #tpu.memory_space<vmem>>, vector<1x64x128xf32>
    tpu.vector_store %arg7[%c0_239, %c0_240, %c0_241], %384 {strides = array<i32>} : memref<1x64x128xf32, #tpu.memory_space<vmem>>, vector<1x64x128xf32>,
    return
  }
  func.func @transform_0(%arg0: i32) -> (i32, i32, i32) {
    %c0_i32 = arith.constant 0 : i32
    %c0_i32_0 = arith.constant 0 : i32
    %c0_i32_1 = arith.constant 0 : i32
    return %arg0, %c0_i32, %c0_i32_0 : i32, i32, i32
  }
  func.func @transform_1(%arg0: i32) -> (i32, i32, i32) {
    %c0_i32 = arith.constant 0 : i32
    %c0_i32_0 = arith.constant 0 : i32
    %c0_i32_1 = arith.constant 0 : i32
    %c0_i32_2 = arith.constant 0 : i32
    return %c0_i32, %c0_i32_0, %c0_i32_1 : i32, i32, i32
  }
  func.func @transform_2(%arg0: i32) -> (i32, i32, i32) {
    %c0_i32 = arith.constant 0 : i32
    %c0_i32_0 = arith.constant 0 : i32
    %c0_i32_1 = arith.constant 0 : i32
    %c0_i32_2 = arith.constant 0 : i32
    return %c0_i32, %c0_i32_0, %c0_i32_1 : i32, i32, i32
  }
  func.func @transform_3(%arg0: i32) -> (i32, i32, i32) {
    %c0_i32 = arith.constant 0 : i32
    %c0_i32_0 = arith.constant 0 : i32
    %c0_i32_1 = arith.constant 0 : i32
    %c0_i32_2 = arith.constant 0 : i32
    return %c0_i32, %c0_i32_0, %c0_i32_1 : i32, i32, i32
  }
  func.func @transform_4(%arg0: i32) -> (i32, i32, i32) {
    %c0_i32 = arith.constant 0 : i32
    %c0_i32_0 = arith.constant 0 : i32
    %c0_i32_1 = arith.constant 0 : i32
    %c0_i32_2 = arith.constant 0 : i32
    return %c0_i32, %c0_i32_0, %c0_i32_1 : i32, i32, i32
  }
  func.func @transform_5(%arg0: i32) -> (i32, i32, i32) {
    %c0_i32 = arith.constant 0 : i32
    %c0_i32_0 = arith.constant 0 : i32
    %c0_i32_1 = arith.constant 0 : i32
    %c0_i32_2 = arith.constant 0 : i32
    return %c0_i32, %c0_i32_0, %c0_i32_1 : i32, i32, i32
  }
  func.func @transform_6(%arg0: i32) -> (i32, i32, i32) {
    %c0_i32 = arith.constant 0 : i32
    %c0_i32_0 = arith.constant 0 : i32
    %c0_i32_1 = arith.constant 0 : i32
    return %arg0, %c0_i32, %c0_i32_0 : i32, i32, i32
  }
}

</mosaic_0001>

<llo_original>
// kernel: tpu_custom_call.1
$region0: #{tpu_custom_call.1}
  #allocation0 [shape = 'u32[]', space=smem, size = 0x4, offset = 0x4, fixed_abs, tag = 'smem constant byte address 0x4 - core index']
  #allocation1 [shape = 'u32[144,128]{1,0:T(1,128)}', space=vmem, size = 0x12000, scoped, tag = 'internal scratch']
  %s0 = inlined_call_operand.hbm [shape: f32[16,128], index: 0, kind: input, shape index: {}]
  %s1 = inlined_call_operand.hbm [shape: f32[16,128], index: 1, kind: output, shape index: {}]
  %s2 = sld [smem:[#allocation0]]
  $region18: #{tpu_custom_call.1} parent=0
    _
  %s4 = ssub.s32 1, %s2
  %s5 = scalar_select 0, %s4, %s2
  $region1: #{tpu_custom_call.1} parent=0
    #allocation2 [shape = 'u8[8192]{0}', space=vmem, size = 0x2000, scoped, tag = 'input window, operand 0, single buffered']
    #allocation3 [shape = 's32[1]{0}', space=sflag, size = 0x4, scoped, tag = 'scoped memory for tpu_custom_call.1']
    #allocation4 [shape = 's32[1]{0}', space=sflag, size = 0x4, scoped, tag = 'scoped memory for tpu_custom_call.1']
    #allocation5 [shape = 'u8[8192]{0}', space=vmem, size = 0x2000, scoped, tag = 'output window, operand 0, single buffered']
    %6 = vsyncpa [#allocation3], 0
    %7 = vsyncpa [#allocation4], 0
    // Predicated region
    $region2: #{tpu_custom_call.1} parent=1 // pred_check
      _
    $region3: #{tpu_custom_call.1} parent=1 // pred_check_branch
      %9 = sbr.rel (0) target = $region5
    $region4: #{tpu_custom_call.1} parent=1 // pred_region
      %s11 = ssub.s32 256, 256
      %12 = vsyncadd [#allocation3], %s11
      %s13 = sshll.u32 [#allocation2], 4
      %s14 = int_to_ptr.vmem [resolvable:$true] %s13
      %19 = dma.hbm_to_vmem [thread:$0]  %s0, 256, %s14, [#allocation3], 128, 128, 8
    $region5: #{tpu_custom_call.1} parent=1 // pred_fallthru
      _
    // Predicated region
    $region6: #{tpu_custom_call.1} parent=1 // pred_check
      _
    $region7: #{tpu_custom_call.1} parent=1 // pred_check_branch
      %21 = sbr.rel (0) target = $region9
    $region8: #{tpu_custom_call.1} parent=1 // pred_region
      %22 = dma.done [#allocation3], 256
    $region9: #{tpu_custom_call.1} parent=1 // pred_fallthru
      _
    %v23 = vld [vmem:[#allocation2] sm:$0xff]
    %v24 = vld [vmem:[#allocation2 + $0x8] sm:$0xff]
    %v25 = vrot.slane %v23, 7
    %v26 = vrot.slane %v24, 7
    %v27 = vlaneseq
    %v28 = vshrl.u32 %v27, 7
    %vm29 = vcmp.lt.s32.totalorder %v28, 1
    %v30 = vsel %vm29, %v25, %v26
    %v31 = vsel %vm29, %v26, %v25
    %32 = vst [vmem:[#allocation5] sm:$0xff] %v31
    %33 = vst [vmem:[#allocation5 + $0x8] sm:$0xff] %v30
    // Predicated region
    $region10: #{tpu_custom_call.1} parent=1 // pred_check
      _
    $region11: #{tpu_custom_call.1} parent=1 // pred_check_branch
      %35 = sbr.rel (0) target = $region13
    $region12: #{tpu_custom_call.1} parent=1 // pred_region
      %s37 = ssub.s32 256, 256
      %38 = vsyncadd [#allocation4], %s37
      %s39 = sshll.u32 [#allocation5], 4
      %s40 = int_to_ptr.vmem [resolvable:$true] %s39
      %45 = dma.vmem_to_hbm [thread:$0]  %s40, 256, %s1, [#allocation4], 128, 128, 8
    $region13: #{tpu_custom_call.1} parent=1 // pred_fallthru
      _
    // Predicated region
    $region14: #{tpu_custom_call.1} parent=1 // pred_check
      _
    $region15: #{tpu_custom_call.1} parent=1 // pred_check_branch
      %47 = sbr.rel (0) target = $region17
    $region16: #{tpu_custom_call.1} parent=1 // pred_region
      %48 = dma.done [#allocation4], 256
    $region17: #{tpu_custom_call.1} parent=1 // pred_fallthru
      _
    %49 = vsyncpa [#allocation3], 1
    %50 = vsyncpa [#allocation4], 1

// kernel: tpu_custom_call.1
$region0: #{tpu_custom_call.1}
  #allocation0 [shape = 'u32[]', space=smem, size = 0x4, offset = 0x4, fixed_abs, tag = 'smem constant byte address 0x4 - core index']
  #allocation1 [shape = 'u32[144,128]{1,0:T(1,128)}', space=vmem, size = 0x12000, scoped, tag = 'internal scratch']
  %s0 = inlined_call_operand.hbm [shape: f32[2,64,128], index: 0, kind: input, shape index: {}]
  %s1 = inlined_call_operand.hbm [shape: bf16[9,64,128], index: 1, kind: input, shape index: {}]
  %s2 = inlined_call_operand.hbm [shape: bf16[9,128,128], index: 2, kind: input, shape index: {}]
  %s3 = inlined_call_operand.hbm [shape: bf16[9,128,128], index: 3, kind: input, shape index: {}]
  %s4 = inlined_call_operand.hbm [shape: bf16[9,128,128], index: 4, kind: input, shape index: {}]
  %s5 = inlined_call_operand.hbm [shape: bf16[9,128,128], index: 5, kind: input, shape index: {}]
  %s6 = inlined_call_operand.hbm [shape: f32[2,64,128], index: 6, kind: output, shape index: {}]
  %s7 = sld [smem:[#allocation0]]
  $region81: #{tpu_custom_call.1} parent=0
    _
  %s9 = ssub.s32 1, %s7
  %s10 = scalar_select 0, %s9, %s7
  $region1: #{tpu_custom_call.1} parent=0
    #allocation2 [shape = 'u8[65536]{0}', space=vmem, size = 0x10000, scoped, tag = 'input window, operand 0']
    #allocation3 [shape = 's32[2]{0}', space=sflag, size = 0x8, scoped, tag = 'scoped memory for tpu_custom_call.1']
    #allocation4 [shape = 's32[2]{0}', space=sflag, size = 0x8, scoped, tag = 'scoped memory for tpu_custom_call.1']
    #allocation5 [shape = 'u8[147456]{0}', space=vmem, size = 0x24000, scoped, tag = 'input window, operand 1, single buffered']
    #allocation6 [shape = 's32[1]{0}', space=sflag, size = 0x4, scoped, tag = 'scoped memory for tpu_custom_call.1']
    #allocation7 [shape = 'u8[294912]{0}', space=vmem, size = 0x48000, scoped, tag = 'input window, operand 2, single buffered']
    #allocation8 [shape = 'u8[294912]{0}', space=vmem, size = 0x48000, scoped, tag = 'input window, operand 3, single buffered']
    #allocation9 [shape = 's32[1]{0}', space=sflag, size = 0x4, scoped, tag = 'scoped memory for tpu_custom_call.1']
    #allocation10 [shape = 'u8[294912]{0}', space=vmem, size = 0x48000, scoped, tag = 'input window, operand 4, single buffered']
    #allocation11 [shape = 'u8[294912]{0}', space=vmem, size = 0x48000, scoped, tag = 'input window, operand 5, single buffered']
    #allocation12 [shape = 's32[1]{0}', space=sflag, size = 0x4, scoped, tag = 'scoped memory for tpu_custom_call.1']
    #allocation13 [shape = 'u8[65536]{0}', space=vmem, size = 0x10000, scoped, tag = 'output window, operand 0']
    %11 = vsyncpa [#allocation3], 0
    %s12 = scalar_lea.sflag [#allocation3], 1
    %13 = vsyncpa %s12, 0
    %14 = vsyncpa [#allocation6], 0
    %15 = vsyncpa [#allocation9], 0
    %16 = vsyncpa [#allocation12], 0
    %17 = vsyncpa [#allocation4], 0
    %s18 = scalar_lea.sflag [#allocation4], 1
    %19 = vsyncpa %s18, 0
    loop: start=0, step=1, limit=4
    $region2: #{tpu_custom_call.1} parent=1 // loop_pre_header
      _
    $region3: #{tpu_custom_call.1} parent=1 // loop_header
      %s21 = sphi 0, %s25
      %p22 = scmp.ge.s32.totalorder %s21, 4
      %s31 = sphi 0, %s33
      %s34 = sphi 0, %s31
      %s35 = sphi 0, %s34
      %s51 = sphi 0, %s35
      %s55 = sphi 0, %s55
      %s57 = sphi 0, %s55
      %s58 = sphi 0, %s57
      %s72 = sphi 0, %s58
      %s76 = sphi 0, %s76
      %s78 = sphi 0, %s76
      %s79 = sphi 0, %s78
      %s93 = sphi 0, %s79
      %s97 = sphi 0, %s97
      %s99 = sphi 0, %s97
      %s100 = sphi 0, %s99
      %s114 = sphi 0, %s100
      %s118 = sphi 0, %s118
      %s120 = sphi 0, %s118
      %s121 = sphi 0, %s120
      %s135 = sphi 0, %s121
      %s139 = sphi 0, %s139
      %s141 = sphi 0, %s139
      %s142 = sphi 0, %s141
      %s156 = sphi 0, %s142
      %s162 = sphi 0, %s164
      %s165 = sphi 0, %s162
      %s166 = sphi 0, %s165
      %s182 = sphi 0, %s166
    $region4: #{tpu_custom_call.1} parent=1 // loop_header_branch
      %24 = sbr.rel (%p22) target = $region8
    $region5: #{tpu_custom_call.1} parent=1 // loop_body
      %s26 = ssub.s32 %s21, 1
      %s27 = ssub.s32 %s21, 2
      %s28 = sadd.s32 %s21, 1
      %s29 = ssub.s32 %s21, %s28
      %p30 = scmp.eq.s32.totalorder %s29, 0
      %s32 = sadd.s32 %s31, 1
      %s33 = scalar_select %p30, %s31, %s32
      %p36 = pneg %p30
      %p37 = scmp.eq.s32.totalorder %s21, 1
      %p38 = por %p36, %p37
      %p39 = scmp.ne.s32.totalorder %s31, %s34
      %p40 = scmp.eq.s32.totalorder %s21, 0
      %p41 = por %p39, %p40
      %p42 = scmp.ne.s32.totalorder %s31, %s34
      %p43 = scmp.eq.s32.totalorder %s26, 1
      %p44 = por %p42, %p43
      %p45 = scmp.ne.s32.totalorder %s34, %s35
      %p46 = scmp.eq.s32.totalorder %s26, 0
      %p47 = por %p45, %p46
      %p48 = scmp.ne.s32.totalorder %s34, %s35
      %p49 = scmp.eq.s32.totalorder %s27, 1
      %p50 = por %p48, %p49
      %p52 = scmp.ne.s32.totalorder %s35, %s51
      %p53 = scmp.eq.s32.totalorder %s27, 0
      %p54 = por %p52, %p53
      %s56 = sadd.s32 %s55, 1
      %p59 = scmp.eq.s32.totalorder %s21, 1
      %p60 = scmp.ne.s32.totalorder %s55, %s57
      %p61 = scmp.eq.s32.totalorder %s21, 0
      %p62 = por %p60, %p61
      %p63 = scmp.ne.s32.totalorder %s55, %s57
      %p64 = scmp.eq.s32.totalorder %s26, 1
      %p65 = por %p63, %p64
      %p66 = scmp.ne.s32.totalorder %s57, %s58
      %p67 = scmp.eq.s32.totalorder %s26, 0
      %p68 = por %p66, %p67
      %p69 = scmp.ne.s32.totalorder %s57, %s58
      %p70 = scmp.eq.s32.totalorder %s27, 1
      %p71 = por %p69, %p70
      %p73 = scmp.ne.s32.totalorder %s58, %s72
      %p74 = scmp.eq.s32.totalorder %s27, 0
      %p75 = por %p73, %p74
      %s77 = sadd.s32 %s76, 1
      %p80 = scmp.eq.s32.totalorder %s21, 1
      %p81 = scmp.ne.s32.totalorder %s76, %s78
      %p82 = scmp.eq.s32.totalorder %s21, 0
      %p83 = por %p81, %p82
      %p84 = scmp.ne.s32.totalorder %s76, %s78
      %p85 = scmp.eq.s32.totalorder %s26, 1
      %p86 = por %p84, %p85
      %p87 = scmp.ne.s32.totalorder %s78, %s79
      %p88 = scmp.eq.s32.totalorder %s26, 0
      %p89 = por %p87, %p88
      %p90 = scmp.ne.s32.totalorder %s78, %s79
      %p91 = scmp.eq.s32.totalorder %s27, 1
      %p92 = por %p90, %p91
      %p94 = scmp.ne.s32.totalorder %s79, %s93
      %p95 = scmp.eq.s32.totalorder %s27, 0
      %p96 = por %p94, %p95
      %s98 = sadd.s32 %s97, 1
      %p101 = scmp.eq.s32.totalorder %s21, 1
      %p102 = scmp.ne.s32.totalorder %s97, %s99
      %p103 = scmp.eq.s32.totalorder %s21, 0
      %p104 = por %p102, %p103
      %p105 = scmp.ne.s32.totalorder %s97, %s99
      %p106 = scmp.eq.s32.totalorder %s26, 1
      %p107 = por %p105, %p106
      %p108 = scmp.ne.s32.totalorder %s99, %s100
      %p109 = scmp.eq.s32.totalorder %s26, 0
      %p110 = por %p108, %p109
      %p111 = scmp.ne.s32.totalorder %s99, %s100
      %p112 = scmp.eq.s32.totalorder %s27, 1
      %p113 = por %p111, %p112
      %p115 = scmp.ne.s32.totalorder %s100, %s114
      %p116 = scmp.eq.s32.totalorder %s27, 0
      %p117 = por %p115, %p116
      %s119 = sadd.s32 %s118, 1
      %p122 = scmp.eq.s32.totalorder %s21, 1
      %p123 = scmp.ne.s32.totalorder %s118, %s120
      %p124 = scmp.eq.s32.totalorder %s21, 0
      %p125 = por %p123, %p124
      %p126 = scmp.ne.s32.totalorder %s118, %s120
      %p127 = scmp.eq.s32.totalorder %s26, 1
      %p128 = por %p126, %p127
      %p129 = scmp.ne.s32.totalorder %s120, %s121
      %p130 = scmp.eq.s32.totalorder %s26, 0
      %p131 = por %p129, %p130
      %p132 = scmp.ne.s32.totalorder %s120, %s121
      %p133 = scmp.eq.s32.totalorder %s27, 1
      %p134 = por %p132, %p133
      %p136 = scmp.ne.s32.totalorder %s121, %s135
      %p137 = scmp.eq.s32.totalorder %s27, 0
      %p138 = por %p136, %p137
      %s140 = sadd.s32 %s139, 1
      %p143 = scmp.eq.s32.totalorder %s21, 1
      %p144 = scmp.ne.s32.totalorder %s139, %s141
      %p145 = scmp.eq.s32.totalorder %s21, 0
      %p146 = por %p144, %p145
      %p147 = scmp.ne.s32.totalorder %s139, %s141
      %p148 = scmp.eq.s32.totalorder %s26, 1
      %p149 = por %p147, %p148
      %p150 = scmp.ne.s32.totalorder %s141, %s142
      %p151 = scmp.eq.s32.totalorder %s26, 0
      %p152 = por %p150, %p151
      %p153 = scmp.ne.s32.totalorder %s141, %s142
      %p154 = scmp.eq.s32.totalorder %s27, 1
      %p155 = por %p153, %p154
      %p157 = scmp.ne.s32.totalorder %s142, %s156
      %p158 = scmp.eq.s32.totalorder %s27, 0
      %p159 = por %p157, %p158
      %s160 = ssub.s32 %s21, %s28
      %p161 = scmp.eq.s32.totalorder %s160, 0
      %s163 = sadd.s32 %s162, 1
      %s164 = scalar_select %p161, %s162, %s163
      %p167 = pneg %p161
      %p168 = scmp.eq.s32.totalorder %s21, 1
      %p169 = por %p167, %p168
      %p170 = scmp.ne.s32.totalorder %s162, %s165
      %p171 = scmp.eq.s32.totalorder %s21, 0
      %p172 = por %p170, %p171
      %p173 = scmp.ne.s32.totalorder %s162, %s165
      %p174 = scmp.eq.s32.totalorder %s26, 1
      %p175 = por %p173, %p174
      %p176 = scmp.ne.s32.totalorder %s165, %s166
      %p177 = scmp.eq.s32.totalorder %s26, 0
      %p178 = por %p176, %p177
      %p179 = scmp.ne.s32.totalorder %s165, %s166
      %p180 = scmp.eq.s32.totalorder %s27, 1
      %p181 = por %p179, %p180
      %p183 = scmp.ne.s32.totalorder %s166, %s182
      %p184 = scmp.eq.s32.totalorder %s27, 0
      %p185 = por %p183, %p184
      %p186 = scmp.le.s32.totalorder 1, %s21
      %p187 = scmp.lt.s32.totalorder %s21, 3
      %p188 = pnand %p186, %p187
      %p189 = pneg %p188
      // Predicated region
      $region9: #{tpu_custom_call.1} parent=5 // pred_check
        _
      $region10: #{tpu_custom_call.1} parent=5 // pred_check_branch
        %191 = sbr.rel (%p188) target = $region12
      $region11: #{tpu_custom_call.1} parent=5 // pred_region
        %s192 = ssub.s32 %s21, 1
        // Predicated region
        $region13: #{tpu_custom_call.1} parent=11 // pred_check
          %p193 = pneg %p68
        $region14: #{tpu_custom_call.1} parent=11 // pred_check_branch
          %195 = sbr.rel (%p193) target = $region16
        $region15: #{tpu_custom_call.1} parent=11 // pred_region
          %s197 = ssub.s32 4608, 4608
          %198 = vsyncadd [#allocation6], %s197
          %s199 = sshll.u32 [#allocation5], 4
          %s200 = int_to_ptr.vmem [resolvable:$true] %s199
          %205 = dma.hbm_to_vmem [thread:$0]  %s1, 4608, %s200, [#allocation6], 64, 64, 4
        $region16: #{tpu_custom_call.1} parent=11 // pred_fallthru
          _
        // Predicated region
        $region17: #{tpu_custom_call.1} parent=11 // pred_check
          %p206 = pneg %p89
        $region18: #{tpu_custom_call.1} parent=11 // pred_check_branch
          %208 = sbr.rel (%p206) target = $region20
        $region19: #{tpu_custom_call.1} parent=11 // pred_region
          %s210 = ssub.s32 9216, 9216
          %211 = vsyncadd [#allocation6], %s210
          %s212 = sshll.u32 [#allocation7], 4
          %s213 = int_to_ptr.vmem [resolvable:$true] %s212
          %218 = dma.hbm_to_vmem [thread:$0]  %s2, 9216, %s213, [#allocation6], 64, 64, 4
        $region20: #{tpu_custom_call.1} parent=11 // pred_fallthru
          _
        // Predicated region
        $region21: #{tpu_custom_call.1} parent=11 // pred_check
          %p219 = pneg %p110
        $region22: #{tpu_custom_call.1} parent=11 // pred_check_branch
          %221 = sbr.rel (%p219) target = $region24
        $region23: #{tpu_custom_call.1} parent=11 // pred_region
          %s223 = ssub.s32 9216, 9216
          %224 = vsyncadd [#allocation9], %s223
          %s225 = sshll.u32 [#allocation8], 4
          %s226 = int_to_ptr.vmem [resolvable:$true] %s225
          %231 = dma.hbm_to_vmem [thread:$0]  %s3, 9216, %s226, [#allocation9], 64, 64, 4
        $region24: #{tpu_custom_call.1} parent=11 // pred_fallthru
          _
        // Predicated region
        $region25: #{tpu_custom_call.1} parent=11 // pred_check
          %p232 = pneg %p131
        $region26: #{tpu_custom_call.1} parent=11 // pred_check_branch
          %234 = sbr.rel (%p232) target = $region28
        $region27: #{tpu_custom_call.1} parent=11 // pred_region
          %s236 = ssub.s32 9216, 9216
          %237 = vsyncadd [#allocation9], %s236
          %s238 = sshll.u32 [#allocation10], 4
          %s239 = int_to_ptr.vmem [resolvable:$true] %s238
          %244 = dma.hbm_to_vmem [thread:$0]  %s4, 9216, %s239, [#allocation9], 64, 64, 4
        $region28: #{tpu_custom_call.1} parent=11 // pred_fallthru
          _
        // Predicated region
        $region29: #{tpu_custom_call.1} parent=11 // pred_check
          %p245 = pneg %p152
        $region30: #{tpu_custom_call.1} parent=11 // pred_check_branch
          %247 = sbr.rel (%p245) target = $region32
        $region31: #{tpu_custom_call.1} parent=11 // pred_region
          %s249 = ssub.s32 9216, 9216
          %250 = vsyncadd [#allocation12], %s249
          %s251 = sshll.u32 [#allocation11], 4
          %s252 = int_to_ptr.vmem [resolvable:$true] %s251
          %257 = dma.hbm_to_vmem [thread:$0]  %s5, 9216, %s252, [#allocation12], 64, 64, 4
        $region32: #{tpu_custom_call.1} parent=11 // pred_fallthru
          _
      $region12: #{tpu_custom_call.1} parent=5 // pred_fallthru
        _
      %p258 = scmp.lt.s32.totalorder %s21, 2
      // Predicated region
      $region33: #{tpu_custom_call.1} parent=5 // pred_check
        %p259 = pneg %p258
      $region34: #{tpu_custom_call.1} parent=5 // pred_check_branch
        %261 = sbr.rel (%p259) target = $region36
      $region35: #{tpu_custom_call.1} parent=5 // pred_region
        // Predicated region
        $region37: #{tpu_custom_call.1} parent=35 // pred_check
          %p262 = pneg %p41
        $region38: #{tpu_custom_call.1} parent=35 // pred_check_branch
          %264 = sbr.rel (%p262) target = $region40
        $region39: #{tpu_custom_call.1} parent=35 // pred_region
          %s265 = sand.u32 %s31, 1
          %s266 = scalar_lea.sflag [#allocation3], %s265
          %s267 = sand.u32 %s31, 1
          %s268 = smul.addr %s267, 64
          %s269 = scalar_lea.vmem [#allocation2], %s268
          %s271 = ssub.s32 1024, 1024
          %272 = vsyncadd %s266, %s271
          %s273 = smul.addr %s21, 8
          %s274 = smul.addr %s273, 128
          %s275 = scalar_lea.hbm %s0, %s274
          %s276 = sshll.u32 %s269, 4
          %s277 = int_to_ptr.vmem [resolvable:$true] %s276
          %282 = dma.hbm_to_vmem [thread:$0]  %s275, 1024, %s277, %s266, 128, 128, 8
        $region40: #{tpu_custom_call.1} parent=35 // pred_fallthru
          _
      $region36: #{tpu_custom_call.1} parent=5 // pred_fallthru
        _
      %p283 = scmp.le.s32.totalorder 1, %s21
      %p284 = scmp.lt.s32.totalorder %s21, 3
      %p285 = pnand %p283, %p284
      %p286 = pneg %p285
      // Predicated region
      $region41: #{tpu_custom_call.1} parent=5 // pred_check
        _
      $region42: #{tpu_custom_call.1} parent=5 // pred_check_branch
        %288 = sbr.rel (%p285) target = $region44
      $region43: #{tpu_custom_call.1} parent=5 // pred_region
        %s289 = ssub.s32 %s21, 1
        %s290 = sand.u32 %s34, 1
        %s291 = scalar_lea.sflag [#allocation3], %s290
        %s292 = sand.u32 %s34, 1
        %s293 = smul.addr %s292, 64
        %s294 = scalar_lea.vmem [#allocation2], %s293
        // Predicated region
        $region45: #{tpu_custom_call.1} parent=43 // pred_check
          %p295 = pneg %p47
        $region46: #{tpu_custom_call.1} parent=43 // pred_check_branch
          %297 = sbr.rel (%p295) target = $region48
        $region47: #{tpu_custom_call.1} parent=43 // pred_region
          %298 = dma.done %s291, 1024
        $region48: #{tpu_custom_call.1} parent=43 // pred_fallthru
          _
        // Predicated region
        $region49: #{tpu_custom_call.1} parent=43 // pred_check
          %p299 = pneg %p68
        $region50: #{tpu_custom_call.1} parent=43 // pred_check_branch
          %301 = sbr.rel (%p299) target = $region52
        $region51: #{tpu_custom_call.1} parent=43 // pred_region
          %302 = dma.done [#allocation6], 4608
        $region52: #{tpu_custom_call.1} parent=43 // pred_fallthru
          _
        // Predicated region
        $region53: #{tpu_custom_call.1} parent=43 // pred_check
          %p303 = pneg %p89
        $region54: #{tpu_custom_call.1} parent=43 // pred_check_branch
          %305 = sbr.rel (%p303) target = $region56
        $region55: #{tpu_custom_call.1} parent=43 // pred_region
          %306 = dma.done [#allocation6], 9216
        $region56: #{tpu_custom_call.1} parent=43 // pred_fallthru
          _
        // Predicated region
        $region57: #{tpu_custom_call.1} parent=43 // pred_check
          %p307 = pneg %p110
        $region58: #{tpu_custom_call.1} parent=43 // pred_check_branch
          %309 = sbr.rel (%p307) target = $region60
        $region59: #{tpu_custom_call.1} parent=43 // pred_region
          %310 = dma.done [#allocation9], 9216
        $region60: #{tpu_custom_call.1} parent=43 // pred_fallthru
          _
        // Predicated region
        $region61: #{tpu_custom_call.1} parent=43 // pred_check
          %p311 = pneg %p131
        $region62: #{tpu_custom_call.1} parent=43 // pred_check_branch
          %313 = sbr.rel (%p311) target = $region64
        $region63: #{tpu_custom_call.1} parent=43 // pred_region
          %314 = dma.done [#allocation9], 9216
        $region64: #{tpu_custom_call.1} parent=43 // pred_fallthru
          _
        // Predicated region
        $region65: #{tpu_custom_call.1} parent=43 // pred_check
          %p315 = pneg %p152
        $region66: #{tpu_custom_call.1} parent=43 // pred_check_branch
          %317 = sbr.rel (%p315) target = $region68
        $region67: #{tpu_custom_call.1} parent=43 // pred_region
          %318 = dma.done [#allocation12], 9216
        $region68: #{tpu_custom_call.1} parent=43 // pred_fallthru
          _
        %s319 = sand.u32 %s34, 1
        %s320 = scalar_lea.sflag [#allocation3], %s319
        %s321 = sand.u32 %s34, 1
        %s322 = smul.addr %s321, 64
        %s323 = scalar_lea.vmem [#allocation2], %s322
        %p324 = pneg %p47
        %p325 = pneg %p44
        %p326 = pneg %p68
        %p327 = pneg %p65
        %p328 = pneg %p89
        %p329 = pneg %p86
        %p330 = pneg %p110
        %p331 = pneg %p107
        %p332 = pneg %p131
        %p333 = pneg %p128
        %p334 = pneg %p152
        %p335 = pneg %p149
        %p336 = pneg %p178
        %p337 = pneg %p175
        %s338 = sand.u32 %s165, 1
        %s339 = scalar_lea.sflag [#allocation4], %s338
        %s340 = sand.u32 %s165, 1
        %s341 = smul.addr %s340, 64
        %s342 = scalar_lea.vmem [#allocation13], %s341
        %v344 = vld [vmem:[%s294] sm:$0xff]
        %v345 = vld [vmem:[%s294 + $0x8] sm:$0xff]
        %v346 = vld [vmem:[%s294 + $0x10] sm:$0xff]
        %v347 = vld [vmem:[%s294 + $0x18] sm:$0xff]
        %v348 = vld [vmem:[%s294 + $0x20] sm:$0xff]
        %v349 = vld [vmem:[%s294 + $0x28] sm:$0xff]
        %v350 = vld [vmem:[%s294 + $0x30] sm:$0xff]
        %v351 = vld [vmem:[%s294 + $0x38] sm:$0xff]
        %vm354 = vcmask 1040384
        %v355 = vrot.slane %v350, 7
        %v356 = vrot.slane %v351, 7
        %v357 = vsel %vm354, %v355, %v356
        %v366 = vrot.slane %v344, 7
        %v367 = vrot.slane %v345, 7
        %v368 = vsel %vm354, %v366, %v367
        %v369 = vrot.slane %v346, 7
        %v370 = vsel %vm354, %v367, %v369
        %v371 = vrot.slane %v347, 7
        %v372 = vsel %vm354, %v369, %v371
        %v373 = vrot.slane %v348, 7
        %v374 = vsel %vm354, %v371, %v373
        %v375 = vrot.slane %v349, 7
        %v376 = vsel %vm354, %v373, %v375
        %v377 = vsel %vm354, %v375, %v355
        %v385 = vsel %vm354, %v356, %v366
        %v386 = vpack.c.bf16 %v385, %v357
        %v387 = vpack.c.bf16 %v370, %v368
        %v388 = vpack.c.bf16 %v374, %v372
        %v389 = vpack.c.bf16 %v377, %v376
        %v390 = vld [vmem:[#allocation5] sm:$0xf]
        %v391 = vld [vmem:[#allocation5 + $0x4] sm:$0xf]
        %v392 = vld [vmem:[#allocation5 + $0x8] sm:$0xf]
        %v393 = vld [vmem:[#allocation5 + $0xc] sm:$0xf]
        %v394 = vld [vmem:[#allocation5 + $0x10] sm:$0xf]
        %v395 = vld [vmem:[#allocation5 + $0x14] sm:$0xf]
        %v396 = vld [vmem:[#allocation5 + $0x18] sm:$0xf]
        %v397 = vld [vmem:[#allocation5 + $0x1c] sm:$0xf]
        %v406 = vunpack.c.l.b16 %v390
        %v407 = vunpack.c.l.b16 %v391
        %v408 = vunpack.c.l.b16 %v392
        %v409 = vunpack.c.l.b16 %v393
        %v410 = vunpack.c.l.b16 %v394
        %v411 = vunpack.c.l.b16 %v395
        %v412 = vunpack.c.l.b16 %v396
        %v413 = vunpack.c.l.b16 %v397
        %v414 = vpack.c.b16 %v407, %v406
        %v415 = vpack.c.b16 %v409, %v408
        %v416 = vpack.c.b16 %v411, %v410
        %v417 = vpack.c.b16 %v413, %v412
        %v422 = vmul.bf16 %v386, %v414
        %v423 = vmul.bf16 %v387, %v415
        %v424 = vmul.bf16 %v388, %v416
        %v425 = vmul.bf16 %v389, %v417
        %v426 = vld [vmem:[#allocation7] sm:$0xf]
        %v427 = vld [vmem:[#allocation7 + $0x4] sm:$0xf]
        %v428 = vld [vmem:[#allocation7 + $0x8] sm:$0xf]
        %v429 = vld [vmem:[#allocation7 + $0xc] sm:$0xf]
        %v430 = vld [vmem:[#allocation7 + $0x10] sm:$0xf]
        %v431 = vld [vmem:[#allocation7 + $0x14] sm:$0xf]
        %v432 = vld [vmem:[#allocation7 + $0x18] sm:$0xf]
        %v433 = vld [vmem:[#allocation7 + $0x1c] sm:$0xf]
        %v434 = vld [vmem:[#allocation7 + $0x20] sm:$0xf]
        %v435 = vld [vmem:[#allocation7 + $0x24] sm:$0xf]
        %v436 = vld [vmem:[#allocation7 + $0x28] sm:$0xf]
        %v437 = vld [vmem:[#allocation7 + $0x2c] sm:$0xf]
        %v438 = vld [vmem:[#allocation7 + $0x30] sm:$0xf]
        %v439 = vld [vmem:[#allocation7 + $0x34] sm:$0xf]
        %v440 = vld [vmem:[#allocation7 + $0x38] sm:$0xf]
        %v441 = vld [vmem:[#allocation7 + $0x3c] sm:$0xf]
        %v442 = vpack.c.bf16 %v344, %v351
        %v443 = vpack.c.bf16 %v346, %v345
        %v444 = vpack.c.bf16 %v348, %v347
        %v445 = vpack.c.bf16 %v350, %v349
        %s446 = scalar_lea.vmem [#allocation5], 32
        %v447 = vld [vmem:[%s446] sm:$0xf]
        %v448 = vld [vmem:[%s446 + $0x4] sm:$0xf]
        %v449 = vld [vmem:[%s446 + $0x8] sm:$0xf]
        %v450 = vld [vmem:[%s446 + $0xc] sm:$0xf]
        %v451 = vld [vmem:[%s446 + $0x10] sm:$0xf]
        %v452 = vld [vmem:[%s446 + $0x14] sm:$0xf]
        %v453 = vld [vmem:[%s446 + $0x18] sm:$0xf]
        %v454 = vld [vmem:[%s446 + $0x1c] sm:$0xf]
        %v463 = vunpack.c.l.b16 %v447
        %v464 = vunpack.c.l.b16 %v448
        %v465 = vunpack.c.l.b16 %v449
        %v466 = vunpack.c.l.b16 %v450
        %v467 = vunpack.c.l.b16 %v451
        %v468 = vunpack.c.l.b16 %v452
        %v469 = vunpack.c.l.b16 %v453
        %v470 = vunpack.c.l.b16 %v454
        %v471 = vpack.c.b16 %v464, %v463
        %v472 = vpack.c.b16 %v466, %v465
        %v473 = vpack.c.b16 %v468, %v467
        %v474 = vpack.c.b16 %v470, %v469
        %v479 = vmul.bf16 %v442, %v471
        %v480 = vmul.bf16 %v443, %v472
        %v481 = vmul.bf16 %v444, %v473
        %v482 = vmul.bf16 %v445, %v474
        %s483 = scalar_lea.vmem [#allocation7], 64
        %v484 = vld [vmem:[%s483] sm:$0xf]
        %v485 = vld [vmem:[%s483 + $0x4] sm:$0xf]
        %v486 = vld [vmem:[%s483 + $0x8] sm:$0xf]
        %v487 = vld [vmem:[%s483 + $0xc] sm:$0xf]
        %v488 = vld [vmem:[%s483 + $0x10] sm:$0xf]
        %v489 = vld [vmem:[%s483 + $0x14] sm:$0xf]
        %v490 = vld [vmem:[%s483 + $0x18] sm:$0xf]
        %v491 = vld [vmem:[%s483 + $0x1c] sm:$0xf]
        %v492 = vld [vmem:[%s483 + $0x20] sm:$0xf]
        %v493 = vld [vmem:[%s483 + $0x24] sm:$0xf]
        %v494 = vld [vmem:[%s483 + $0x28] sm:$0xf]
        %v495 = vld [vmem:[%s483 + $0x2c] sm:$0xf]
        %v496 = vld [vmem:[%s483 + $0x30] sm:$0xf]
        %v497 = vld [vmem:[%s483 + $0x34] sm:$0xf]
        %v498 = vld [vmem:[%s483 + $0x38] sm:$0xf]
        %v499 = vld [vmem:[%s483 + $0x3c] sm:$0xf]
        %v516 = vunpack.c.l.b16 %v484
        %v517 = vunpack.c.l.b16 %v485
        %v518 = vunpack.c.l.b16 %v486
        %v519 = vunpack.c.l.b16 %v487
        %v520 = vunpack.c.l.b16 %v488
        %v521 = vunpack.c.l.b16 %v489
        %v522 = vunpack.c.l.b16 %v490
        %v523 = vunpack.c.l.b16 %v491
        %v524 = vunpack.c.l.b16 %v492
        %v525 = vunpack.c.l.b16 %v493
        %v526 = vunpack.c.l.b16 %v494
        %v527 = vunpack.c.l.b16 %v495
        %v528 = vunpack.c.l.b16 %v496
        %v529 = vunpack.c.l.b16 %v497
        %v530 = vunpack.c.l.b16 %v498
        %v531 = vunpack.c.l.b16 %v499
        %v532 = vpack.c.b16 %v517, %v516
        %v533 = vpack.c.b16 %v519, %v518
        %v534 = vpack.c.b16 %v521, %v520
        %v535 = vpack.c.b16 %v523, %v522
        %v536 = vpack.c.b16 %v525, %v524
        %v537 = vpack.c.b16 %v527, %v526
        %v538 = vpack.c.b16 %v529, %v528
        %v539 = vpack.c.b16 %v531, %v530
        %548 = vmatprep.subr.bf16.mxu0 0
        %549 = vmatpush1.bf16.msra.mxu0 %v539
        %550 = vmatprep.subr.bf16.mxu0 0
        %551 = vmatpush1.bf16.msra.mxu0 %v538
        %552 = vmatprep.subr.bf16.mxu0 0
        %553 = vmatpush1.bf16.msra.mxu0 %v537
        %554 = vmatprep.subr.bf16.mxu0 0
        %555 = vmatpush1.bf16.msra.mxu0 %v536
        %556 = vmatprep.subr.bf16.mxu0 0
        %557 = vmatpush1.bf16.msra.mxu0 %v535
        %558 = vmatprep.subr.bf16.mxu0 0
        %559 = vmatpush1.bf16.msra.mxu0 %v534
        %560 = vmatprep.subr.bf16.mxu0 0
        %561 = vmatpush1.bf16.msra.mxu0 %v533
        %562 = vmatprep.subr.bf16.mxu0 0
        %563 = vmatpush1.bf16.msra.mxu0 %v532
        %564 = vmatprep.subr.bf16.mxu0 0
        %565 = vmatpush2.bf16.msra.mxu0 0
        %566 = vmatprep.subr.bf16.mxu0 0
        %567 = vmatpush2.bf16.msra.mxu0 0
        %568 = vmatprep.subr.bf16.mxu0 0
        %569 = vmatpush2.bf16.msra.mxu0 0
        %570 = vmatprep.subr.bf16.mxu0 0
        %571 = vmatpush2.bf16.msra.mxu0 0
        %572 = vmatprep.subr.bf16.mxu0 0
        %573 = vmatpush2.bf16.msra.mxu0 0
        %574 = vmatprep.subr.bf16.mxu0 0
        %575 = vmatpush2.bf16.msra.mxu0 0
        %576 = vmatprep.subr.bf16.mxu0 0
        %577 = vmatpush2.bf16.msra.mxu0 0
        %578 = vmatprep.subr.bf16.mxu0 0
        %579 = vmatpush2.bf16.msra.mxu0 0
        %580 = vmatprep.mubr.bf16.mxu0 0
        %581 = vmatmul.mubr.bf16.gmra.mxu0 %v479
        %v582 = vpop.f32.mrf.mxu0
        %v583 = vadd.f32 0.0, %v582
        %v584 = vpop.f32.mrf.mxu0
        %v585 = vpop.f32.mrf.mxu0
        %v586 = vadd.f32 0.0, %v585
        %v587 = vpop.f32.mrf.mxu0
        %588 = vmatprep.mubr.bf16.mxu0 0
        %589 = vmatmul.mubr.bf16.gmra.mxu0 %v480
        %v590 = vpop.f32.mrf.mxu0
        %v591 = vadd.f32 0.0, %v590
        %v592 = vpop.f32.mrf.mxu0
        %v593 = vpop.f32.mrf.mxu0
        %v594 = vadd.f32 0.0, %v593
        %v595 = vpop.f32.mrf.mxu0
        %596 = vmatprep.mubr.bf16.mxu0 0
        %597 = vmatmul.mubr.bf16.gmra.mxu0 %v481
        %v598 = vpop.f32.mrf.mxu0
        %v599 = vadd.f32 0.0, %v598
        %v600 = vpop.f32.mrf.mxu0
        %v601 = vpop.f32.mrf.mxu0
        %v602 = vadd.f32 0.0, %v601
        %v603 = vpop.f32.mrf.mxu0
        %604 = vmatprep.mubr.bf16.mxu0 0
        %605 = vmatmul.mubr.bf16.gmra.mxu0 %v482
        %v606 = vpop.f32.mrf.mxu0
        %v607 = vadd.f32 0.0, %v606
        %v608 = vpop.f32.mrf.mxu0
        %v609 = vpop.f32.mrf.mxu0
        %v610 = vadd.f32 0.0, %v609
        %v611 = vpop.f32.mrf.mxu0
        %612 = vdwg.mxu0
        %v629 = vunpack.c.l.b16 %v426
        %v630 = vunpack.c.l.b16 %v427
        %v631 = vunpack.c.l.b16 %v428
        %v632 = vunpack.c.l.b16 %v429
        %v633 = vunpack.c.l.b16 %v430
        %v634 = vunpack.c.l.b16 %v431
        %v635 = vunpack.c.l.b16 %v432
        %v636 = vunpack.c.l.b16 %v433
        %v637 = vunpack.c.l.b16 %v434
        %v638 = vunpack.c.l.b16 %v435
        %v639 = vunpack.c.l.b16 %v436
        %v640 = vunpack.c.l.b16 %v437
        %v641 = vunpack.c.l.b16 %v438
        %v642 = vunpack.c.l.b16 %v439
        %v643 = vunpack.c.l.b16 %v440
        %v644 = vunpack.c.l.b16 %v441
        %v645 = vpack.c.b16 %v630, %v629
        %v646 = vpack.c.b16 %v632, %v631
        %v647 = vpack.c.b16 %v634, %v633
        %v648 = vpack.c.b16 %v636, %v635
        %v649 = vpack.c.b16 %v638, %v637
        %v650 = vpack.c.b16 %v640, %v639
        %v651 = vpack.c.b16 %v642, %v641
        %v652 = vpack.c.b16 %v644, %v643
        %661 = vmatprep.subr.bf16.mxu0 0
        %662 = vmatpush1.bf16.msra.mxu0 %v652
        %663 = vmatprep.subr.bf16.mxu0 0
        %664 = vmatpush1.bf16.msra.mxu0 %v651
        %665 = vmatprep.subr.bf16.mxu0 0
        %666 = vmatpush1.bf16.msra.mxu0 %v650
        %667 = vmatprep.subr.bf16.mxu0 0
        %668 = vmatpush1.bf16.msra.mxu0 %v649
        %669 = vmatprep.subr.bf16.mxu0 0
        %670 = vmatpush1.bf16.msra.mxu0 %v648
        %671 = vmatprep.subr.bf16.mxu0 0
        %672 = vmatpush1.bf16.msra.mxu0 %v647
        %673 = vmatprep.subr.bf16.mxu0 0
        %674 = vmatpush1.bf16.msra.mxu0 %v646
        %675 = vmatprep.subr.bf16.mxu0 0
        %676 = vmatpush1.bf16.msra.mxu0 %v645
        %677 = vmatprep.subr.bf16.mxu0 0
        %678 = vmatpush2.bf16.msra.mxu0 0
        %679 = vmatprep.subr.bf16.mxu0 0
        %680 = vmatpush2.bf16.msra.mxu0 0
        %681 = vmatprep.subr.bf16.mxu0 0
        %682 = vmatpush2.bf16.msra.mxu0 0
        %683 = vmatprep.subr.bf16.mxu0 0
        %684 = vmatpush2.bf16.msra.mxu0 0
        %685 = vmatprep.subr.bf16.mxu0 0
        %686 = vmatpush2.bf16.msra.mxu0 0
        %687 = vmatprep.subr.bf16.mxu0 0
        %688 = vmatpush2.bf16.msra.mxu0 0
        %689 = vmatprep.subr.bf16.mxu0 0
        %690 = vmatpush2.bf16.msra.mxu0 0
        %691 = vmatprep.subr.bf16.mxu0 0
        %692 = vmatpush2.bf16.msra.mxu0 0
        %693 = vmatprep.mubr.bf16.mxu0 0
        %694 = vmatmul.mubr.bf16.gmra.mxu0 %v422
        %v695 = vpop.f32.mrf.mxu0
        %v696 = vadd.f32 %v583, %v695
        %v697 = vpop.f32.mrf.mxu0
        %v698 = vpop.f32.mrf.mxu0
        %v699 = vadd.f32 %v586, %v698
        %v700 = vpop.f32.mrf.mxu0
        %701 = vmatprep.mubr.bf16.mxu0 0
        %702 = vmatmul.mubr.bf16.gmra.mxu0 %v423
        %v703 = vpop.f32.mrf.mxu0
        %v704 = vadd.f32 %v591, %v703
        %v705 = vpop.f32.mrf.mxu0
        %v706 = vpop.f32.mrf.mxu0
        %v707 = vadd.f32 %v594, %v706
        %v708 = vpop.f32.mrf.mxu0
        %709 = vmatprep.mubr.bf16.mxu0 0
        %710 = vmatmul.mubr.bf16.gmra.mxu0 %v424
        %v711 = vpop.f32.mrf.mxu0
        %v712 = vadd.f32 %v599, %v711
        %v713 = vpop.f32.mrf.mxu0
        %v714 = vpop.f32.mrf.mxu0
        %v715 = vadd.f32 %v602, %v714
        %v716 = vpop.f32.mrf.mxu0
        %717 = vmatprep.mubr.bf16.mxu0 0
        %718 = vmatmul.mubr.bf16.gmra.mxu0 %v425
        %v719 = vpop.f32.mrf.mxu0
        %v720 = vadd.f32 %v607, %v719
        %v721 = vpop.f32.mrf.mxu0
        %v722 = vpop.f32.mrf.mxu0
        %v723 = vadd.f32 %v610, %v722
        %v724 = vpop.f32.mrf.mxu0
        %725 = vdwg.mxu0
        %v726 = vrot.slane %v351, 1
        %vm728 = vcmask 1046528
        %v729 = vrot.slane %v344, 1
        %v730 = vrot.slane %v345, 1
        %v731 = vsel %vm728, %v729, %v730
        %v732 = vrot.slane %v346, 1
        %v733 = vsel %vm728, %v730, %v732
        %v734 = vrot.slane %v347, 1
        %v735 = vsel %vm728, %v732, %v734
        %v736 = vrot.slane %v348, 1
        %v737 = vsel %vm728, %v734, %v736
        %v738 = vrot.slane %v349, 1
        %v739 = vsel %vm728, %v736, %v738
        %v740 = vrot.slane %v350, 1
        %v741 = vsel %vm728, %v738, %v740
        %v742 = vsel %vm728, %v740, %v726
        %v751 = vsel %vm728, %v726, %v729
        %v752 = vpack.c.bf16 %v731, %v751
        %v753 = vpack.c.bf16 %v735, %v733
        %v754 = vpack.c.bf16 %v739, %v737
        %v755 = vpack.c.bf16 %v742, %v741
        %s756 = scalar_lea.vmem [#allocation5], 64
        %v757 = vld [vmem:[%s756] sm:$0xf]
        %v758 = vld [vmem:[%s756 + $0x4] sm:$0xf]
        %v759 = vld [vmem:[%s756 + $0x8] sm:$0xf]
        %v760 = vld [vmem:[%s756 + $0xc] sm:$0xf]
        %v761 = vld [vmem:[%s756 + $0x10] sm:$0xf]
        %v762 = vld [vmem:[%s756 + $0x14] sm:$0xf]
        %v763 = vld [vmem:[%s756 + $0x18] sm:$0xf]
        %v764 = vld [vmem:[%s756 + $0x1c] sm:$0xf]
        %v773 = vunpack.c.l.b16 %v757
        %v774 = vunpack.c.l.b16 %v758
        %v775 = vunpack.c.l.b16 %v759
        %v776 = vunpack.c.l.b16 %v760
        %v777 = vunpack.c.l.b16 %v761
        %v778 = vunpack.c.l.b16 %v762
        %v779 = vunpack.c.l.b16 %v763
        %v780 = vunpack.c.l.b16 %v764
        %v781 = vpack.c.b16 %v774, %v773
        %v782 = vpack.c.b16 %v776, %v775
        %v783 = vpack.c.b16 %v778, %v777
        %v784 = vpack.c.b16 %v780, %v779
        %v789 = vmul.bf16 %v752, %v781
        %v790 = vmul.bf16 %v753, %v782
        %v791 = vmul.bf16 %v754, %v783
        %v792 = vmul.bf16 %v755, %v784
        %s793 = scalar_lea.vmem [#allocation7], 128
        %v794 = vld [vmem:[%s793] sm:$0xf]
        %v795 = vld [vmem:[%s793 + $0x4] sm:$0xf]
        %v796 = vld [vmem:[%s793 + $0x8] sm:$0xf]
        %v797 = vld [vmem:[%s793 + $0xc] sm:$0xf]
        %v798 = vld [vmem:[%s793 + $0x10] sm:$0xf]
        %v799 = vld [vmem:[%s793 + $0x14] sm:$0xf]
        %v800 = vld [vmem:[%s793 + $0x18] sm:$0xf]
        %v801 = vld [vmem:[%s793 + $0x1c] sm:$0xf]
        %v802 = vld [vmem:[%s793 + $0x20] sm:$0xf]
        %v803 = vld [vmem:[%s793 + $0x24] sm:$0xf]
        %v804 = vld [vmem:[%s793 + $0x28] sm:$0xf]
        %v805 = vld [vmem:[%s793 + $0x2c] sm:$0xf]
        %v806 = vld [vmem:[%s793 + $0x30] sm:$0xf]
        %v807 = vld [vmem:[%s793 + $0x34] sm:$0xf]
        %v808 = vld [vmem:[%s793 + $0x38] sm:$0xf]
        %v809 = vld [vmem:[%s793 + $0x3c] sm:$0xf]
        %v826 = vunpack.c.l.b16 %v794
        %v827 = vunpack.c.l.b16 %v795
        %v828 = vunpack.c.l.b16 %v796
        %v829 = vunpack.c.l.b16 %v797
        %v830 = vunpack.c.l.b16 %v798
        %v831 = vunpack.c.l.b16 %v799
        %v832 = vunpack.c.l.b16 %v800
        %v833 = vunpack.c.l.b16 %v801
        %v834 = vunpack.c.l.b16 %v802
        %v835 = vunpack.c.l.b16 %v803
        %v836 = vunpack.c.l.b16 %v804
        %v837 = vunpack.c.l.b16 %v805
        %v838 = vunpack.c.l.b16 %v806
        %v839 = vunpack.c.l.b16 %v807
        %v840 = vunpack.c.l.b16 %v808
        %v841 = vunpack.c.l.b16 %v809
        %v842 = vpack.c.b16 %v827, %v826
        %v843 = vpack.c.b16 %v829, %v828
        %v844 = vpack.c.b16 %v831, %v830
        %v845 = vpack.c.b16 %v833, %v832
        %v846 = vpack.c.b16 %v835, %v834
        %v847 = vpack.c.b16 %v837, %v836
        %v848 = vpack.c.b16 %v839, %v838
        %v849 = vpack.c.b16 %v841, %v840
        %858 = vmatprep.subr.bf16.mxu0 0
        %859 = vmatpush1.bf16.msra.mxu0 %v849
        %860 = vmatprep.subr.bf16.mxu0 0
        %861 = vmatpush1.bf16.msra.mxu0 %v848
        %862 = vmatprep.subr.bf16.mxu0 0
        %863 = vmatpush1.bf16.msra.mxu0 %v847
        %864 = vmatprep.subr.bf16.mxu0 0
        %865 = vmatpush1.bf16.msra.mxu0 %v846
        %866 = vmatprep.subr.bf16.mxu0 0
        %867 = vmatpush1.bf16.msra.mxu0 %v845
        %868 = vmatprep.subr.bf16.mxu0 0
        %869 = vmatpush1.bf16.msra.mxu0 %v844
        %870 = vmatprep.subr.bf16.mxu0 0
        %871 = vmatpush1.bf16.msra.mxu0 %v843
        %872 = vmatprep.subr.bf16.mxu0 0
        %873 = vmatpush1.bf16.msra.mxu0 %v842
        %874 = vmatprep.subr.bf16.mxu0 0
        %875 = vmatpush2.bf16.msra.mxu0 0
        %876 = vmatprep.subr.bf16.mxu0 0
        %877 = vmatpush2.bf16.msra.mxu0 0
        %878 = vmatprep.subr.bf16.mxu0 0
        %879 = vmatpush2.bf16.msra.mxu0 0
        %880 = vmatprep.subr.bf16.mxu0 0
        %881 = vmatpush2.bf16.msra.mxu0 0
        %882 = vmatprep.subr.bf16.mxu0 0
        %883 = vmatpush2.bf16.msra.mxu0 0
        %884 = vmatprep.subr.bf16.mxu0 0
        %885 = vmatpush2.bf16.msra.mxu0 0
        %886 = vmatprep.subr.bf16.mxu0 0
        %887 = vmatpush2.bf16.msra.mxu0 0
        %888 = vmatprep.subr.bf16.mxu0 0
        %889 = vmatpush2.bf16.msra.mxu0 0
        %890 = vmatprep.mubr.bf16.mxu0 0
        %891 = vmatmul.mubr.bf16.gmra.mxu0 %v789
        %v892 = vpop.f32.mrf.mxu0
        %v893 = vadd.f32 0.0, %v892
        %v894 = vpop.f32.mrf.mxu0
        %v895 = vpop.f32.mrf.mxu0
        %v896 = vadd.f32 0.0, %v895
        %v897 = vpop.f32.mrf.mxu0
        %898 = vmatprep.mubr.bf16.mxu0 0
        %899 = vmatmul.mubr.bf16.gmra.mxu0 %v790
        %v900 = vpop.f32.mrf.mxu0
        %v901 = vadd.f32 0.0, %v900
        %v902 = vpop.f32.mrf.mxu0
        %v903 = vpop.f32.mrf.mxu0
        %v904 = vadd.f32 0.0, %v903
        %v905 = vpop.f32.mrf.mxu0
        %906 = vmatprep.mubr.bf16.mxu0 0
        %907 = vmatmul.mubr.bf16.gmra.mxu0 %v791
        %v908 = vpop.f32.mrf.mxu0
        %v909 = vadd.f32 0.0, %v908
        %v910 = vpop.f32.mrf.mxu0
        %v911 = vpop.f32.mrf.mxu0
        %v912 = vadd.f32 0.0, %v911
        %v913 = vpop.f32.mrf.mxu0
        %914 = vmatprep.mubr.bf16.mxu0 0
        %915 = vmatmul.mubr.bf16.gmra.mxu0 %v792
        %v916 = vpop.f32.mrf.mxu0
        %v917 = vadd.f32 0.0, %v916
        %v918 = vpop.f32.mrf.mxu0
        %v919 = vpop.f32.mrf.mxu0
        %v920 = vadd.f32 0.0, %v919
        %v921 = vpop.f32.mrf.mxu0
        %922 = vdwg.mxu0
        %v923 = vadd.f32 %v696, %v893
        %v924 = vadd.f32 %v699, %v896
        %v925 = vadd.f32 %v704, %v901
        %v926 = vadd.f32 %v707, %v904
        %v927 = vadd.f32 %v712, %v909
        %v928 = vadd.f32 %v715, %v912
        %v929 = vadd.f32 %v720, %v917
        %v930 = vadd.f32 %v723, %v920
        %v931 = vpack.c.bf16 %v368, %v385
        %v932 = vpack.c.bf16 %v372, %v370
        %v933 = vpack.c.bf16 %v376, %v374
        %v934 = vpack.c.bf16 %v357, %v377
        %s935 = scalar_lea.vmem [#allocation5], 96
        %v936 = vld [vmem:[%s935] sm:$0xf]
        %v937 = vld [vmem:[%s935 + $0x4] sm:$0xf]
        %v938 = vld [vmem:[%s935 + $0x8] sm:$0xf]
        %v939 = vld [vmem:[%s935 + $0xc] sm:$0xf]
        %v940 = vld [vmem:[%s935 + $0x10] sm:$0xf]
        %v941 = vld [vmem:[%s935 + $0x14] sm:$0xf]
        %v942 = vld [vmem:[%s935 + $0x18] sm:$0xf]
        %v943 = vld [vmem:[%s935 + $0x1c] sm:$0xf]
        %v952 = vunpack.c.l.b16 %v936
        %v953 = vunpack.c.l.b16 %v937
        %v954 = vunpack.c.l.b16 %v938
        %v955 = vunpack.c.l.b16 %v939
        %v956 = vunpack.c.l.b16 %v940
        %v957 = vunpack.c.l.b16 %v941
        %v958 = vunpack.c.l.b16 %v942
        %v959 = vunpack.c.l.b16 %v943
        %v960 = vpack.c.b16 %v953, %v952
        %v961 = vpack.c.b16 %v955, %v954
        %v962 = vpack.c.b16 %v957, %v956
        %v963 = vpack.c.b16 %v959, %v958
        %v968 = vmul.bf16 %v931, %v960
        %v969 = vmul.bf16 %v932, %v961
        %v970 = vmul.bf16 %v933, %v962
        %v971 = vmul.bf16 %v934, %v963
        %s972 = scalar_lea.vmem [#allocation7], 192
        %v973 = vld [vmem:[%s972] sm:$0xf]
        %v974 = vld [vmem:[%s972 + $0x4] sm:$0xf]
        %v975 = vld [vmem:[%s972 + $0x8] sm:$0xf]
        %v976 = vld [vmem:[%s972 + $0xc] sm:$0xf]
        %v977 = vld [vmem:[%s972 + $0x10] sm:$0xf]
        %v978 = vld [vmem:[%s972 + $0x14] sm:$0xf]
        %v979 = vld [vmem:[%s972 + $0x18] sm:$0xf]
        %v980 = vld [vmem:[%s972 + $0x1c] sm:$0xf]
        %v981 = vld [vmem:[%s972 + $0x20] sm:$0xf]
        %v982 = vld [vmem:[%s972 + $0x24] sm:$0xf]
        %v983 = vld [vmem:[%s972 + $0x28] sm:$0xf]
        %v984 = vld [vmem:[%s972 + $0x2c] sm:$0xf]
        %v985 = vld [vmem:[%s972 + $0x30] sm:$0xf]
        %v986 = vld [vmem:[%s972 + $0x34] sm:$0xf]
        %v987 = vld [vmem:[%s972 + $0x38] sm:$0xf]
        %v988 = vld [vmem:[%s972 + $0x3c] sm:$0xf]
        %v1005 = vunpack.c.l.b16 %v973
        %v1006 = vunpack.c.l.b16 %v974
        %v1007 = vunpack.c.l.b16 %v975
        %v1008 = vunpack.c.l.b16 %v976
        %v1009 = vunpack.c.l.b16 %v977
        %v1010 = vunpack.c.l.b16 %v978
        %v1011 = vunpack.c.l.b16 %v979
        %v1012 = vunpack.c.l.b16 %v980
        %v1013 = vunpack.c.l.b16 %v981
        %v1014 = vunpack.c.l.b16 %v982
        %v1015 = vunpack.c.l.b16 %v983
        %v1016 = vunpack.c.l.b16 %v984
        %v1017 = vunpack.c.l.b16 %v985
        %v1018 = vunpack.c.l.b16 %v986
        %v1019 = vunpack.c.l.b16 %v987
        %v1020 = vunpack.c.l.b16 %v988
        %v1021 = vpack.c.b16 %v1006, %v1005
        %v1022 = vpack.c.b16 %v1008, %v1007
        %v1023 = vpack.c.b16 %v1010, %v1009
        %v1024 = vpack.c.b16 %v1012, %v1011
        %v1025 = vpack.c.b16 %v1014, %v1013
        %v1026 = vpack.c.b16 %v1016, %v1015
        %v1027 = vpack.c.b16 %v1018, %v1017
        %v1028 = vpack.c.b16 %v1020, %v1019
        %1037 = vmatprep.subr.bf16.mxu0 0
        %1038 = vmatpush1.bf16.msra.mxu0 %v1028
        %1039 = vmatprep.subr.bf16.mxu0 0
        %1040 = vmatpush1.bf16.msra.mxu0 %v1027
        %1041 = vmatprep.subr.bf16.mxu0 0
        %1042 = vmatpush1.bf16.msra.mxu0 %v1026
        %1043 = vmatprep.subr.bf16.mxu0 0
        %1044 = vmatpush1.bf16.msra.mxu0 %v1025
        %1045 = vmatprep.subr.bf16.mxu0 0
        %1046 = vmatpush1.bf16.msra.mxu0 %v1024
        %1047 = vmatprep.subr.bf16.mxu0 0
        %1048 = vmatpush1.bf16.msra.mxu0 %v1023
        %1049 = vmatprep.subr.bf16.mxu0 0
        %1050 = vmatpush1.bf16.msra.mxu0 %v1022
        %1051 = vmatprep.subr.bf16.mxu0 0
        %1052 = vmatpush1.bf16.msra.mxu0 %v1021
        %1053 = vmatprep.subr.bf16.mxu0 0
        %1054 = vmatpush2.bf16.msra.mxu0 0
        %1055 = vmatprep.subr.bf16.mxu0 0
        %1056 = vmatpush2.bf16.msra.mxu0 0
        %1057 = vmatprep.subr.bf16.mxu0 0
        %1058 = vmatpush2.bf16.msra.mxu0 0
        %1059 = vmatprep.subr.bf16.mxu0 0
        %1060 = vmatpush2.bf16.msra.mxu0 0
        %1061 = vmatprep.subr.bf16.mxu0 0
        %1062 = vmatpush2.bf16.msra.mxu0 0
        %1063 = vmatprep.subr.bf16.mxu0 0
        %1064 = vmatpush2.bf16.msra.mxu0 0
        %1065 = vmatprep.subr.bf16.mxu0 0
        %1066 = vmatpush2.bf16.msra.mxu0 0
        %1067 = vmatprep.subr.bf16.mxu0 0
        %1068 = vmatpush2.bf16.msra.mxu0 0
        %1069 = vmatprep.mubr.bf16.mxu0 0
        %1070 = vmatmul.mubr.bf16.gmra.mxu0 %v968
        %v1071 = vpop.f32.mrf.mxu0
        %v1072 = vadd.f32 0.0, %v1071
        %v1073 = vpop.f32.mrf.mxu0
        %v1074 = vpop.f32.mrf.mxu0
        %v1075 = vadd.f32 0.0, %v1074
        %v1076 = vpop.f32.mrf.mxu0
        %1077 = vmatprep.mubr.bf16.mxu0 0
        %1078 = vmatmul.mubr.bf16.gmra.mxu0 %v969
        %v1079 = vpop.f32.mrf.mxu0
        %v1080 = vadd.f32 0.0, %v1079
        %v1081 = vpop.f32.mrf.mxu0
        %v1082 = vpop.f32.mrf.mxu0
        %v1083 = vadd.f32 0.0, %v1082
        %v1084 = vpop.f32.mrf.mxu0
        %1085 = vmatprep.mubr.bf16.mxu0 0
        %1086 = vmatmul.mubr.bf16.gmra.mxu0 %v970
        %v1087 = vpop.f32.mrf.mxu0
        %v1088 = vadd.f32 0.0, %v1087
        %v1089 = vpop.f32.mrf.mxu0
        %v1090 = vpop.f32.mrf.mxu0
        %v1091 = vadd.f32 0.0, %v1090
        %v1092 = vpop.f32.mrf.mxu0
        %1093 = vmatprep.mubr.bf16.mxu0 0
        %1094 = vmatmul.mubr.bf16.gmra.mxu0 %v971
        %v1095 = vpop.f32.mrf.mxu0
        %v1096 = vadd.f32 0.0, %v1095
        %v1097 = vpop.f32.mrf.mxu0
        %v1098 = vpop.f32.mrf.mxu0
        %v1099 = vadd.f32 0.0, %v1098
        %v1100 = vpop.f32.mrf.mxu0
        %1101 = vdwg.mxu0
        %v1102 = vadd.f32 %v923, %v1072
        %v1103 = vadd.f32 %v924, %v1075
        %v1104 = vadd.f32 %v925, %v1080
        %v1105 = vadd.f32 %v926, %v1083
        %v1106 = vadd.f32 %v927, %v1088
        %v1107 = vadd.f32 %v928, %v1091
        %v1108 = vadd.f32 %v929, %v1096
        %v1109 = vadd.f32 %v930, %v1099
        %v1110 = vpack.c.bf16 %v345, %v344
        %v1111 = vpack.c.bf16 %v347, %v346
        %v1112 = vpack.c.bf16 %v349, %v348
        %v1113 = vpack.c.bf16 %v351, %v350
        %s1114 = scalar_lea.vmem [#allocation7], 256
        %v1115 = vld [vmem:[%s1114] sm:$0xf]
        %v1116 = vld [vmem:[%s1114 + $0x4] sm:$0xf]
        %v1117 = vld [vmem:[%s1114 + $0x8] sm:$0xf]
        %v1118 = vld [vmem:[%s1114 + $0xc] sm:$0xf]
        %v1119 = vld [vmem:[%s1114 + $0x10] sm:$0xf]
        %v1120 = vld [vmem:[%s1114 + $0x14] sm:$0xf]
        %v1121 = vld [vmem:[%s1114 + $0x18] sm:$0xf]
        %v1122 = vld [vmem:[%s1114 + $0x1c] sm:$0xf]
        %v1123 = vld [vmem:[%s1114 + $0x20] sm:$0xf]
        %v1124 = vld [vmem:[%s1114 + $0x24] sm:$0xf]
        %v1125 = vld [vmem:[%s1114 + $0x28] sm:$0xf]
        %v1126 = vld [vmem:[%s1114 + $0x2c] sm:$0xf]
        %v1127 = vld [vmem:[%s1114 + $0x30] sm:$0xf]
        %v1128 = vld [vmem:[%s1114 + $0x34] sm:$0xf]
        %v1129 = vld [vmem:[%s1114 + $0x38] sm:$0xf]
        %v1130 = vld [vmem:[%s1114 + $0x3c] sm:$0xf]
        %v1147 = vunpack.c.l.b16 %v1115
        %v1148 = vunpack.c.l.b16 %v1116
        %v1149 = vunpack.c.l.b16 %v1117
        %v1150 = vunpack.c.l.b16 %v1118
        %v1151 = vunpack.c.l.b16 %v1119
        %v1152 = vunpack.c.l.b16 %v1120
        %v1153 = vunpack.c.l.b16 %v1121
        %v1154 = vunpack.c.l.b16 %v1122
        %v1155 = vunpack.c.l.b16 %v1123
        %v1156 = vunpack.c.l.b16 %v1124
        %v1157 = vunpack.c.l.b16 %v1125
        %v1158 = vunpack.c.l.b16 %v1126
        %v1159 = vunpack.c.l.b16 %v1127
        %v1160 = vunpack.c.l.b16 %v1128
        %v1161 = vunpack.c.l.b16 %v1129
        %v1162 = vunpack.c.l.b16 %v1130
        %v1163 = vpack.c.b16 %v1148, %v1147
        %v1164 = vpack.c.b16 %v1150, %v1149
        %v1165 = vpack.c.b16 %v1152, %v1151
        %v1166 = vpack.c.b16 %v1154, %v1153
        %v1167 = vpack.c.b16 %v1156, %v1155
        %v1168 = vpack.c.b16 %v1158, %v1157
        %v1169 = vpack.c.b16 %v1160, %v1159
        %v1170 = vpack.c.b16 %v1162, %v1161
        %1179 = vmatprep.subr.bf16.mxu0 0
        %1180 = vmatpush1.bf16.msra.mxu0 %v1170
        %1181 = vmatprep.subr.bf16.mxu0 0
        %1182 = vmatpush1.bf16.msra.mxu0 %v1169
        %1183 = vmatprep.subr.bf16.mxu0 0
        %1184 = vmatpush1.bf16.msra.mxu0 %v1168
        %1185 = vmatprep.subr.bf16.mxu0 0
        %1186 = vmatpush1.bf16.msra.mxu0 %v1167
        %1187 = vmatprep.subr.bf16.mxu0 0
        %1188 = vmatpush1.bf16.msra.mxu0 %v1166
        %1189 = vmatprep.subr.bf16.mxu0 0
        %1190 = vmatpush1.bf16.msra.mxu0 %v1165
        %1191 = vmatprep.subr.bf16.mxu0 0
        %1192 = vmatpush1.bf16.msra.mxu0 %v1164
        %1193 = vmatprep.subr.bf16.mxu0 0
        %1194 = vmatpush1.bf16.msra.mxu0 %v1163
        %1195 = vmatprep.subr.bf16.mxu0 0
        %1196 = vmatpush2.bf16.msra.mxu0 0
        %1197 = vmatprep.subr.bf16.mxu0 0
        %1198 = vmatpush2.bf16.msra.mxu0 0
        %1199 = vmatprep.subr.bf16.mxu0 0
        %1200 = vmatpush2.bf16.msra.mxu0 0
        %1201 = vmatprep.subr.bf16.mxu0 0
        %1202 = vmatpush2.bf16.msra.mxu0 0
        %1203 = vmatprep.subr.bf16.mxu0 0
        %1204 = vmatpush2.bf16.msra.mxu0 0
        %1205 = vmatprep.subr.bf16.mxu0 0
        %1206 = vmatpush2.bf16.msra.mxu0 0
        %1207 = vmatprep.subr.bf16.mxu0 0
        %1208 = vmatpush2.bf16.msra.mxu0 0
        %1209 = vmatprep.subr.bf16.mxu0 0
        %1210 = vmatpush2.bf16.msra.mxu0 0
        %1211 = vmatprep.mubr.bf16.mxu0 0
        %1212 = vmatmul.mubr.bf16.gmra.mxu0 %v1110
        %v1213 = vpop.f32.mrf.mxu0
        %v1214 = vadd.f32 0.0, %v1213
        %v1215 = vpop.f32.mrf.mxu0
        %v1216 = vpop.f32.mrf.mxu0
        %v1217 = vadd.f32 0.0, %v1216
        %v1218 = vpop.f32.mrf.mxu0
        %1219 = vmatprep.mubr.bf16.mxu0 0
        %1220 = vmatmul.mubr.bf16.gmra.mxu0 %v1111
        %v1221 = vpop.f32.mrf.mxu0
        %v1222 = vadd.f32 0.0, %v1221
        %v1223 = vpop.f32.mrf.mxu0
        %v1224 = vpop.f32.mrf.mxu0
        %v1225 = vadd.f32 0.0, %v1224
        %v1226 = vpop.f32.mrf.mxu0
        %1227 = vmatprep.mubr.bf16.mxu0 0
        %1228 = vmatmul.mubr.bf16.gmra.mxu0 %v1112
        %v1229 = vpop.f32.mrf.mxu0
        %v1230 = vadd.f32 0.0, %v1229
        %v1231 = vpop.f32.mrf.mxu0
        %v1232 = vpop.f32.mrf.mxu0
        %v1233 = vadd.f32 0.0, %v1232
        %v1234 = vpop.f32.mrf.mxu0
        %1235 = vmatprep.mubr.bf16.mxu0 0
        %1236 = vmatmul.mubr.bf16.gmra.mxu0 %v1113
        %v1237 = vpop.f32.mrf.mxu0
        %v1238 = vadd.f32 0.0, %v1237
        %v1239 = vpop.f32.mrf.mxu0
        %v1240 = vpop.f32.mrf.mxu0
        %v1241 = vadd.f32 0.0, %v1240
        %v1242 = vpop.f32.mrf.mxu0
        %1243 = vdwg.mxu0
        %v1244 = vadd.f32 %v1102, %v1214
        %v1245 = vadd.f32 %v1103, %v1217
        %v1246 = vadd.f32 %v1104, %v1222
        %v1247 = vadd.f32 %v1105, %v1225
        %v1248 = vadd.f32 %v1106, %v1230
        %v1249 = vadd.f32 %v1107, %v1233
        %v1250 = vadd.f32 %v1108, %v1238
        %v1251 = vadd.f32 %v1109, %v1241
        %v1252 = vpack.c.bf16 %v733, %v731
        %v1253 = vpack.c.bf16 %v737, %v735
        %v1254 = vpack.c.bf16 %v741, %v739
        %v1255 = vpack.c.bf16 %v751, %v742
        %s1256 = scalar_lea.vmem [#allocation5], 160
        %v1257 = vld [vmem:[%s1256] sm:$0xf]
        %v1258 = vld [vmem:[%s1256 + $0x4] sm:$0xf]
        %v1259 = vld [vmem:[%s1256 + $0x8] sm:$0xf]
        %v1260 = vld [vmem:[%s1256 + $0xc] sm:$0xf]
        %v1261 = vld [vmem:[%s1256 + $0x10] sm:$0xf]
        %v1262 = vld [vmem:[%s1256 + $0x14] sm:$0xf]
        %v1263 = vld [vmem:[%s1256 + $0x18] sm:$0xf]
        %v1264 = vld [vmem:[%s1256 + $0x1c] sm:$0xf]
        %v1273 = vunpack.c.l.b16 %v1257
        %v1274 = vunpack.c.l.b16 %v1258
        %v1275 = vunpack.c.l.b16 %v1259
        %v1276 = vunpack.c.l.b16 %v1260
        %v1277 = vunpack.c.l.b16 %v1261
        %v1278 = vunpack.c.l.b16 %v1262
        %v1279 = vunpack.c.l.b16 %v1263
        %v1280 = vunpack.c.l.b16 %v1264
        %v1281 = vpack.c.b16 %v1274, %v1273
        %v1282 = vpack.c.b16 %v1276, %v1275
        %v1283 = vpack.c.b16 %v1278, %v1277
        %v1284 = vpack.c.b16 %v1280, %v1279
        %v1289 = vmul.bf16 %v1252, %v1281
        %v1290 = vmul.bf16 %v1253, %v1282
        %v1291 = vmul.bf16 %v1254, %v1283
        %v1292 = vmul.bf16 %v1255, %v1284
        %s1293 = scalar_lea.vmem [#allocation7], 320
        %v1294 = vld [vmem:[%s1293] sm:$0xf]
        %v1295 = vld [vmem:[%s1293 + $0x4] sm:$0xf]
        %v1296 = vld [vmem:[%s1293 + $0x8] sm:$0xf]
        %v1297 = vld [vmem:[%s1293 + $0xc] sm:$0xf]
        %v1298 = vld [vmem:[%s1293 + $0x10] sm:$0xf]
        %v1299 = vld [vmem:[%s1293 + $0x14] sm:$0xf]
        %v1300 = vld [vmem:[%s1293 + $0x18] sm:$0xf]
        %v1301 = vld [vmem:[%s1293 + $0x1c] sm:$0xf]
        %v1302 = vld [vmem:[%s1293 + $0x20] sm:$0xf]
        %v1303 = vld [vmem:[%s1293 + $0x24] sm:$0xf]
        %v1304 = vld [vmem:[%s1293 + $0x28] sm:$0xf]
        %v1305 = vld [vmem:[%s1293 + $0x2c] sm:$0xf]
        %v1306 = vld [vmem:[%s1293 + $0x30] sm:$0xf]
        %v1307 = vld [vmem:[%s1293 + $0x34] sm:$0xf]
        %v1308 = vld [vmem:[%s1293 + $0x38] sm:$0xf]
        %v1309 = vld [vmem:[%s1293 + $0x3c] sm:$0xf]
        %v1326 = vunpack.c.l.b16 %v1294
        %v1327 = vunpack.c.l.b16 %v1295
        %v1328 = vunpack.c.l.b16 %v1296
        %v1329 = vunpack.c.l.b16 %v1297
        %v1330 = vunpack.c.l.b16 %v1298
        %v1331 = vunpack.c.l.b16 %v1299
        %v1332 = vunpack.c.l.b16 %v1300
        %v1333 = vunpack.c.l.b16 %v1301
        %v1334 = vunpack.c.l.b16 %v1302
        %v1335 = vunpack.c.l.b16 %v1303
        %v1336 = vunpack.c.l.b16 %v1304
        %v1337 = vunpack.c.l.b16 %v1305
        %v1338 = vunpack.c.l.b16 %v1306
        %v1339 = vunpack.c.l.b16 %v1307
        %v1340 = vunpack.c.l.b16 %v1308
        %v1341 = vunpack.c.l.b16 %v1309
        %v1342 = vpack.c.b16 %v1327, %v1326
        %v1343 = vpack.c.b16 %v1329, %v1328
        %v1344 = vpack.c.b16 %v1331, %v1330
        %v1345 = vpack.c.b16 %v1333, %v1332
        %v1346 = vpack.c.b16 %v1335, %v1334
        %v1347 = vpack.c.b16 %v1337, %v1336
        %v1348 = vpack.c.b16 %v1339, %v1338
        %v1349 = vpack.c.b16 %v1341, %v1340
        %1358 = vmatprep.subr.bf16.mxu0 0
        %1359 = vmatpush1.bf16.msra.mxu0 %v1349
        %1360 = vmatprep.subr.bf16.mxu0 0
        %1361 = vmatpush1.bf16.msra.mxu0 %v1348
        %1362 = vmatprep.subr.bf16.mxu0 0
        %1363 = vmatpush1.bf16.msra.mxu0 %v1347
        %1364 = vmatprep.subr.bf16.mxu0 0
        %1365 = vmatpush1.bf16.msra.mxu0 %v1346
        %1366 = vmatprep.subr.bf16.mxu0 0
        %1367 = vmatpush1.bf16.msra.mxu0 %v1345
        %1368 = vmatprep.subr.bf16.mxu0 0
        %1369 = vmatpush1.bf16.msra.mxu0 %v1344
        %1370 = vmatprep.subr.bf16.mxu0 0
        %1371 = vmatpush1.bf16.msra.mxu0 %v1343
        %1372 = vmatprep.subr.bf16.mxu0 0
        %1373 = vmatpush1.bf16.msra.mxu0 %v1342
        %1374 = vmatprep.subr.bf16.mxu0 0
        %1375 = vmatpush2.bf16.msra.mxu0 0
        %1376 = vmatprep.subr.bf16.mxu0 0
        %1377 = vmatpush2.bf16.msra.mxu0 0
        %1378 = vmatprep.subr.bf16.mxu0 0
        %1379 = vmatpush2.bf16.msra.mxu0 0
        %1380 = vmatprep.subr.bf16.mxu0 0
        %1381 = vmatpush2.bf16.msra.mxu0 0
        %1382 = vmatprep.subr.bf16.mxu0 0
        %1383 = vmatpush2.bf16.msra.mxu0 0
        %1384 = vmatprep.subr.bf16.mxu0 0
        %1385 = vmatpush2.bf16.msra.mxu0 0
        %1386 = vmatprep.subr.bf16.mxu0 0
        %1387 = vmatpush2.bf16.msra.mxu0 0
        %1388 = vmatprep.subr.bf16.mxu0 0
        %1389 = vmatpush2.bf16.msra.mxu0 0
        %1390 = vmatprep.mubr.bf16.mxu0 0
        %1391 = vmatmul.mubr.bf16.gmra.mxu0 %v1289
        %v1392 = vpop.f32.mrf.mxu0
        %v1393 = vadd.f32 0.0, %v1392
        %v1394 = vpop.f32.mrf.mxu0
        %v1395 = vpop.f32.mrf.mxu0
        %v1396 = vadd.f32 0.0, %v1395
        %v1397 = vpop.f32.mrf.mxu0
        %1398 = vmatprep.mubr.bf16.mxu0 0
        %1399 = vmatmul.mubr.bf16.gmra.mxu0 %v1290
        %v1400 = vpop.f32.mrf.mxu0
        %v1401 = vadd.f32 0.0, %v1400
        %v1402 = vpop.f32.mrf.mxu0
        %v1403 = vpop.f32.mrf.mxu0
        %v1404 = vadd.f32 0.0, %v1403
        %v1405 = vpop.f32.mrf.mxu0
        %1406 = vmatprep.mubr.bf16.mxu0 0
        %1407 = vmatmul.mubr.bf16.gmra.mxu0 %v1291
        %v1408 = vpop.f32.mrf.mxu0
        %v1409 = vadd.f32 0.0, %v1408
        %v1410 = vpop.f32.mrf.mxu0
        %v1411 = vpop.f32.mrf.mxu0
        %v1412 = vadd.f32 0.0, %v1411
        %v1413 = vpop.f32.mrf.mxu0
        %1414 = vmatprep.mubr.bf16.mxu0 0
        %1415 = vmatmul.mubr.bf16.gmra.mxu0 %v1292
        %v1416 = vpop.f32.mrf.mxu0
        %v1417 = vadd.f32 0.0, %v1416
        %v1418 = vpop.f32.mrf.mxu0
        %v1419 = vpop.f32.mrf.mxu0
        %v1420 = vadd.f32 0.0, %v1419
        %v1421 = vpop.f32.mrf.mxu0
        %1422 = vdwg.mxu0
        %v1423 = vadd.f32 %v1244, %v1393
        %v1424 = vadd.f32 %v1245, %v1396
        %v1425 = vadd.f32 %v1246, %v1401
        %v1426 = vadd.f32 %v1247, %v1404
        %v1427 = vadd.f32 %v1248, %v1409
        %v1428 = vadd.f32 %v1249, %v1412
        %v1429 = vadd.f32 %v1250, %v1417
        %v1430 = vadd.f32 %v1251, %v1420
        %s1431 = scalar_lea.vmem [#allocation5], 192
        %v1432 = vld [vmem:[%s1431] sm:$0xf]
        %v1433 = vld [vmem:[%s1431 + $0x4] sm:$0xf]
        %v1434 = vld [vmem:[%s1431 + $0x8] sm:$0xf]
        %v1435 = vld [vmem:[%s1431 + $0xc] sm:$0xf]
        %v1436 = vld [vmem:[%s1431 + $0x10] sm:$0xf]
        %v1437 = vld [vmem:[%s1431 + $0x14] sm:$0xf]
        %v1438 = vld [vmem:[%s1431 + $0x18] sm:$0xf]
        %v1439 = vld [vmem:[%s1431 + $0x1c] sm:$0xf]
        %v1448 = vunpack.c.l.b16 %v1432
        %v1449 = vunpack.c.l.b16 %v1433
        %v1450 = vunpack.c.l.b16 %v1434
        %v1451 = vunpack.c.l.b16 %v1435
        %v1452 = vunpack.c.l.b16 %v1436
        %v1453 = vunpack.c.l.b16 %v1437
        %v1454 = vunpack.c.l.b16 %v1438
        %v1455 = vunpack.c.l.b16 %v1439
        %v1456 = vpack.c.b16 %v1449, %v1448
        %v1457 = vpack.c.b16 %v1451, %v1450
        %v1458 = vpack.c.b16 %v1453, %v1452
        %v1459 = vpack.c.b16 %v1455, %v1454
        %v1464 = vmul.bf16 %v387, %v1456
        %v1465 = vmul.bf16 %v388, %v1457
        %v1466 = vmul.bf16 %v389, %v1458
        %v1467 = vmul.bf16 %v386, %v1459
        %s1468 = scalar_lea.vmem [#allocation7], 384
        %v1469 = vld [vmem:[%s1468] sm:$0xf]
        %v1470 = vld [vmem:[%s1468 + $0x4] sm:$0xf]
        %v1471 = vld [vmem:[%s1468 + $0x8] sm:$0xf]
        %v1472 = vld [vmem:[%s1468 + $0xc] sm:$0xf]
        %v1473 = vld [vmem:[%s1468 + $0x10] sm:$0xf]
        %v1474 = vld [vmem:[%s1468 + $0x14] sm:$0xf]
        %v1475 = vld [vmem:[%s1468 + $0x18] sm:$0xf]
        %v1476 = vld [vmem:[%s1468 + $0x1c] sm:$0xf]
        %v1477 = vld [vmem:[%s1468 + $0x20] sm:$0xf]
        %v1478 = vld [vmem:[%s1468 + $0x24] sm:$0xf]
        %v1479 = vld [vmem:[%s1468 + $0x28] sm:$0xf]
        %v1480 = vld [vmem:[%s1468 + $0x2c] sm:$0xf]
        %v1481 = vld [vmem:[%s1468 + $0x30] sm:$0xf]
        %v1482 = vld [vmem:[%s1468 + $0x34] sm:$0xf]
        %v1483 = vld [vmem:[%s1468 + $0x38] sm:$0xf]
        %v1484 = vld [vmem:[%s1468 + $0x3c] sm:$0xf]
        %v1501 = vunpack.c.l.b16 %v1469
        %v1502 = vunpack.c.l.b16 %v1470
        %v1503 = vunpack.c.l.b16 %v1471
        %v1504 = vunpack.c.l.b16 %v1472
        %v1505 = vunpack.c.l.b16 %v1473
        %v1506 = vunpack.c.l.b16 %v1474
        %v1507 = vunpack.c.l.b16 %v1475
        %v1508 = vunpack.c.l.b16 %v1476
        %v1509 = vunpack.c.l.b16 %v1477
        %v1510 = vunpack.c.l.b16 %v1478
        %v1511 = vunpack.c.l.b16 %v1479
        %v1512 = vunpack.c.l.b16 %v1480
        %v1513 = vunpack.c.l.b16 %v1481
        %v1514 = vunpack.c.l.b16 %v1482
        %v1515 = vunpack.c.l.b16 %v1483
        %v1516 = vunpack.c.l.b16 %v1484
        %v1517 = vpack.c.b16 %v1502, %v1501
        %v1518 = vpack.c.b16 %v1504, %v1503
        %v1519 = vpack.c.b16 %v1506, %v1505
        %v1520 = vpack.c.b16 %v1508, %v1507
        %v1521 = vpack.c.b16 %v1510, %v1509
        %v1522 = vpack.c.b16 %v1512, %v1511
        %v1523 = vpack.c.b16 %v1514, %v1513
        %v1524 = vpack.c.b16 %v1516, %v1515
        %1533 = vmatprep.subr.bf16.mxu0 0
        %1534 = vmatpush1.bf16.msra.mxu0 %v1524
        %1535 = vmatprep.subr.bf16.mxu0 0
        %1536 = vmatpush1.bf16.msra.mxu0 %v1523
        %1537 = vmatprep.subr.bf16.mxu0 0
        %1538 = vmatpush1.bf16.msra.mxu0 %v1522
        %1539 = vmatprep.subr.bf16.mxu0 0
        %1540 = vmatpush1.bf16.msra.mxu0 %v1521
        %1541 = vmatprep.subr.bf16.mxu0 0
        %1542 = vmatpush1.bf16.msra.mxu0 %v1520
        %1543 = vmatprep.subr.bf16.mxu0 0
        %1544 = vmatpush1.bf16.msra.mxu0 %v1519
        %1545 = vmatprep.subr.bf16.mxu0 0
        %1546 = vmatpush1.bf16.msra.mxu0 %v1518
        %1547 = vmatprep.subr.bf16.mxu0 0
        %1548 = vmatpush1.bf16.msra.mxu0 %v1517
        %1549 = vmatprep.subr.bf16.mxu0 0
        %1550 = vmatpush2.bf16.msra.mxu0 0
        %1551 = vmatprep.subr.bf16.mxu0 0
        %1552 = vmatpush2.bf16.msra.mxu0 0
        %1553 = vmatprep.subr.bf16.mxu0 0
        %1554 = vmatpush2.bf16.msra.mxu0 0
        %1555 = vmatprep.subr.bf16.mxu0 0
        %1556 = vmatpush2.bf16.msra.mxu0 0
        %1557 = vmatprep.subr.bf16.mxu0 0
        %1558 = vmatpush2.bf16.msra.mxu0 0
        %1559 = vmatprep.subr.bf16.mxu0 0
        %1560 = vmatpush2.bf16.msra.mxu0 0
        %1561 = vmatprep.subr.bf16.mxu0 0
        %1562 = vmatpush2.bf16.msra.mxu0 0
        %1563 = vmatprep.subr.bf16.mxu0 0
        %1564 = vmatpush2.bf16.msra.mxu0 0
        %1565 = vmatprep.mubr.bf16.mxu0 0
        %1566 = vmatmul.mubr.bf16.gmra.mxu0 %v1464
        %v1567 = vpop.f32.mrf.mxu0
        %v1568 = vadd.f32 0.0, %v1567
        %v1569 = vpop.f32.mrf.mxu0
        %v1570 = vpop.f32.mrf.mxu0
        %v1571 = vadd.f32 0.0, %v1570
        %v1572 = vpop.f32.mrf.mxu0
        %1573 = vmatprep.mubr.bf16.mxu0 0
        %1574 = vmatmul.mubr.bf16.gmra.mxu0 %v1465
        %v1575 = vpop.f32.mrf.mxu0
        %v1576 = vadd.f32 0.0, %v1575
        %v1577 = vpop.f32.mrf.mxu0
        %v1578 = vpop.f32.mrf.mxu0
        %v1579 = vadd.f32 0.0, %v1578
        %v1580 = vpop.f32.mrf.mxu0
        %1581 = vmatprep.mubr.bf16.mxu0 0
        %1582 = vmatmul.mubr.bf16.gmra.mxu0 %v1466
        %v1583 = vpop.f32.mrf.mxu0
        %v1584 = vadd.f32 0.0, %v1583
        %v1585 = vpop.f32.mrf.mxu0
        %v1586 = vpop.f32.mrf.mxu0
        %v1587 = vadd.f32 0.0, %v1586
        %v1588 = vpop.f32.mrf.mxu0
        %1589 = vmatprep.mubr.bf16.mxu0 0
        %1590 = vmatmul.mubr.bf16.gmra.mxu0 %v1467
        %v1591 = vpop.f32.mrf.mxu0
        %v1592 = vadd.f32 0.0, %v1591
        %v1593 = vpop.f32.mrf.mxu0
        %v1594 = vpop.f32.mrf.mxu0
        %v1595 = vadd.f32 0.0, %v1594
        %v1596 = vpop.f32.mrf.mxu0
        %1597 = vdwg.mxu0
        %v1598 = vadd.f32 %v1423, %v1568
        %v1599 = vadd.f32 %v1424, %v1571
        %v1600 = vadd.f32 %v1425, %v1576
        %v1601 = vadd.f32 %v1426, %v1579
        %v1602 = vadd.f32 %v1427, %v1584
        %v1603 = vadd.f32 %v1428, %v1587
        %v1604 = vadd.f32 %v1429, %v1592
        %v1605 = vadd.f32 %v1430, %v1595
        %s1606 = scalar_lea.vmem [#allocation5], 224
        %v1607 = vld [vmem:[%s1606] sm:$0xf]
        %v1608 = vld [vmem:[%s1606 + $0x4] sm:$0xf]
        %v1609 = vld [vmem:[%s1606 + $0x8] sm:$0xf]
        %v1610 = vld [vmem:[%s1606 + $0xc] sm:$0xf]
        %v1611 = vld [vmem:[%s1606 + $0x10] sm:$0xf]
        %v1612 = vld [vmem:[%s1606 + $0x14] sm:$0xf]
        %v1613 = vld [vmem:[%s1606 + $0x18] sm:$0xf]
        %v1614 = vld [vmem:[%s1606 + $0x1c] sm:$0xf]
        %v1623 = vunpack.c.l.b16 %v1607
        %v1624 = vunpack.c.l.b16 %v1608
        %v1625 = vunpack.c.l.b16 %v1609
        %v1626 = vunpack.c.l.b16 %v1610
        %v1627 = vunpack.c.l.b16 %v1611
        %v1628 = vunpack.c.l.b16 %v1612
        %v1629 = vunpack.c.l.b16 %v1613
        %v1630 = vunpack.c.l.b16 %v1614
        %v1631 = vpack.c.b16 %v1624, %v1623
        %v1632 = vpack.c.b16 %v1626, %v1625
        %v1633 = vpack.c.b16 %v1628, %v1627
        %v1634 = vpack.c.b16 %v1630, %v1629
        %v1639 = vmul.bf16 %v443, %v1631
        %v1640 = vmul.bf16 %v444, %v1632
        %v1641 = vmul.bf16 %v445, %v1633
        %v1642 = vmul.bf16 %v442, %v1634
        %s1643 = scalar_lea.vmem [#allocation7], 448
        %v1644 = vld [vmem:[%s1643] sm:$0xf]
        %v1645 = vld [vmem:[%s1643 + $0x4] sm:$0xf]
        %v1646 = vld [vmem:[%s1643 + $0x8] sm:$0xf]
        %v1647 = vld [vmem:[%s1643 + $0xc] sm:$0xf]
        %v1648 = vld [vmem:[%s1643 + $0x10] sm:$0xf]
        %v1649 = vld [vmem:[%s1643 + $0x14] sm:$0xf]
        %v1650 = vld [vmem:[%s1643 + $0x18] sm:$0xf]
        %v1651 = vld [vmem:[%s1643 + $0x1c] sm:$0xf]
        %v1652 = vld [vmem:[%s1643 + $0x20] sm:$0xf]
        %v1653 = vld [vmem:[%s1643 + $0x24] sm:$0xf]
        %v1654 = vld [vmem:[%s1643 + $0x28] sm:$0xf]
        %v1655 = vld [vmem:[%s1643 + $0x2c] sm:$0xf]
        %v1656 = vld [vmem:[%s1643 + $0x30] sm:$0xf]
        %v1657 = vld [vmem:[%s1643 + $0x34] sm:$0xf]
        %v1658 = vld [vmem:[%s1643 + $0x38] sm:$0xf]
        %v1659 = vld [vmem:[%s1643 + $0x3c] sm:$0xf]
        %v1676 = vunpack.c.l.b16 %v1644
        %v1677 = vunpack.c.l.b16 %v1645
        %v1678 = vunpack.c.l.b16 %v1646
        %v1679 = vunpack.c.l.b16 %v1647
        %v1680 = vunpack.c.l.b16 %v1648
        %v1681 = vunpack.c.l.b16 %v1649
        %v1682 = vunpack.c.l.b16 %v1650
        %v1683 = vunpack.c.l.b16 %v1651
        %v1684 = vunpack.c.l.b16 %v1652
        %v1685 = vunpack.c.l.b16 %v1653
        %v1686 = vunpack.c.l.b16 %v1654
        %v1687 = vunpack.c.l.b16 %v1655
        %v1688 = vunpack.c.l.b16 %v1656
        %v1689 = vunpack.c.l.b16 %v1657
        %v1690 = vunpack.c.l.b16 %v1658
        %v1691 = vunpack.c.l.b16 %v1659
        %v1692 = vpack.c.b16 %v1677, %v1676
        %v1693 = vpack.c.b16 %v1679, %v1678
        %v1694 = vpack.c.b16 %v1681, %v1680
        %v1695 = vpack.c.b16 %v1683, %v1682
        %v1696 = vpack.c.b16 %v1685, %v1684
        %v1697 = vpack.c.b16 %v1687, %v1686
        %v1698 = vpack.c.b16 %v1689, %v1688
        %v1699 = vpack.c.b16 %v1691, %v1690
        %1708 = vmatprep.subr.bf16.mxu0 0
        %1709 = vmatpush1.bf16.msra.mxu0 %v1699
        %1710 = vmatprep.subr.bf16.mxu0 0
        %1711 = vmatpush1.bf16.msra.mxu0 %v1698
        %1712 = vmatprep.subr.bf16.mxu0 0
        %1713 = vmatpush1.bf16.msra.mxu0 %v1697
        %1714 = vmatprep.subr.bf16.mxu0 0
        %1715 = vmatpush1.bf16.msra.mxu0 %v1696
        %1716 = vmatprep.subr.bf16.mxu0 0
        %1717 = vmatpush1.bf16.msra.mxu0 %v1695
        %1718 = vmatprep.subr.bf16.mxu0 0
        %1719 = vmatpush1.bf16.msra.mxu0 %v1694
        %1720 = vmatprep.subr.bf16.mxu0 0
        %1721 = vmatpush1.bf16.msra.mxu0 %v1693
        %1722 = vmatprep.subr.bf16.mxu0 0
        %1723 = vmatpush1.bf16.msra.mxu0 %v1692
        %1724 = vmatprep.subr.bf16.mxu0 0
        %1725 = vmatpush2.bf16.msra.mxu0 0
        %1726 = vmatprep.subr.bf16.mxu0 0
        %1727 = vmatpush2.bf16.msra.mxu0 0
        %1728 = vmatprep.subr.bf16.mxu0 0
        %1729 = vmatpush2.bf16.msra.mxu0 0
        %1730 = vmatprep.subr.bf16.mxu0 0
        %1731 = vmatpush2.bf16.msra.mxu0 0
        %1732 = vmatprep.subr.bf16.mxu0 0
        %1733 = vmatpush2.bf16.msra.mxu0 0
        %1734 = vmatprep.subr.bf16.mxu0 0
        %1735 = vmatpush2.bf16.msra.mxu0 0
        %1736 = vmatprep.subr.bf16.mxu0 0
        %1737 = vmatpush2.bf16.msra.mxu0 0
        %1738 = vmatprep.subr.bf16.mxu0 0
        %1739 = vmatpush2.bf16.msra.mxu0 0
        %1740 = vmatprep.mubr.bf16.mxu0 0
        %1741 = vmatmul.mubr.bf16.gmra.mxu0 %v1639
        %v1742 = vpop.f32.mrf.mxu0
        %v1743 = vadd.f32 0.0, %v1742
        %v1744 = vpop.f32.mrf.mxu0
        %v1745 = vpop.f32.mrf.mxu0
        %v1746 = vadd.f32 0.0, %v1745
        %v1747 = vpop.f32.mrf.mxu0
        %1748 = vmatprep.mubr.bf16.mxu0 0
        %1749 = vmatmul.mubr.bf16.gmra.mxu0 %v1640
        %v1750 = vpop.f32.mrf.mxu0
        %v1751 = vadd.f32 0.0, %v1750
        %v1752 = vpop.f32.mrf.mxu0
        %v1753 = vpop.f32.mrf.mxu0
        %v1754 = vadd.f32 0.0, %v1753
        %v1755 = vpop.f32.mrf.mxu0
        %1756 = vmatprep.mubr.bf16.mxu0 0
        %1757 = vmatmul.mubr.bf16.gmra.mxu0 %v1641
        %v1758 = vpop.f32.mrf.mxu0
        %v1759 = vadd.f32 0.0, %v1758
        %v1760 = vpop.f32.mrf.mxu0
        %v1761 = vpop.f32.mrf.mxu0
        %v1762 = vadd.f32 0.0, %v1761
        %v1763 = vpop.f32.mrf.mxu0
        %1764 = vmatprep.mubr.bf16.mxu0 0
        %1765 = vmatmul.mubr.bf16.gmra.mxu0 %v1642
        %v1766 = vpop.f32.mrf.mxu0
        %v1767 = vadd.f32 0.0, %v1766
        %v1768 = vpop.f32.mrf.mxu0
        %v1769 = vpop.f32.mrf.mxu0
        %v1770 = vadd.f32 0.0, %v1769
        %v1771 = vpop.f32.mrf.mxu0
        %1772 = vdwg.mxu0
        %v1773 = vadd.f32 %v1598, %v1743
        %v1774 = vadd.f32 %v1599, %v1746
        %v1775 = vadd.f32 %v1600, %v1751
        %v1776 = vadd.f32 %v1601, %v1754
        %v1777 = vadd.f32 %v1602, %v1759
        %v1778 = vadd.f32 %v1603, %v1762
        %v1779 = vadd.f32 %v1604, %v1767
        %v1780 = vadd.f32 %v1605, %v1770
        %s1781 = scalar_lea.vmem [#allocation5], 256
        %v1782 = vld [vmem:[%s1781] sm:$0xf]
        %v1783 = vld [vmem:[%s1781 + $0x4] sm:$0xf]
        %v1784 = vld [vmem:[%s1781 + $0x8] sm:$0xf]
        %v1785 = vld [vmem:[%s1781 + $0xc] sm:$0xf]
        %v1786 = vld [vmem:[%s1781 + $0x10] sm:$0xf]
        %v1787 = vld [vmem:[%s1781 + $0x14] sm:$0xf]
        %v1788 = vld [vmem:[%s1781 + $0x18] sm:$0xf]
        %v1789 = vld [vmem:[%s1781 + $0x1c] sm:$0xf]
        %v1798 = vunpack.c.l.b16 %v1782
        %v1799 = vunpack.c.l.b16 %v1783
        %v1800 = vunpack.c.l.b16 %v1784
        %v1801 = vunpack.c.l.b16 %v1785
        %v1802 = vunpack.c.l.b16 %v1786
        %v1803 = vunpack.c.l.b16 %v1787
        %v1804 = vunpack.c.l.b16 %v1788
        %v1805 = vunpack.c.l.b16 %v1789
        %v1806 = vpack.c.b16 %v1799, %v1798
        %v1807 = vpack.c.b16 %v1801, %v1800
        %v1808 = vpack.c.b16 %v1803, %v1802
        %v1809 = vpack.c.b16 %v1805, %v1804
        %v1814 = vmul.bf16 %v753, %v1806
        %v1815 = vmul.bf16 %v754, %v1807
        %v1816 = vmul.bf16 %v755, %v1808
        %v1817 = vmul.bf16 %v752, %v1809
        %s1818 = scalar_lea.vmem [#allocation7], 512
        %v1819 = vld [vmem:[%s1818] sm:$0xf]
        %v1820 = vld [vmem:[%s1818 + $0x4] sm:$0xf]
        %v1821 = vld [vmem:[%s1818 + $0x8] sm:$0xf]
        %v1822 = vld [vmem:[%s1818 + $0xc] sm:$0xf]
        %v1823 = vld [vmem:[%s1818 + $0x10] sm:$0xf]
        %v1824 = vld [vmem:[%s1818 + $0x14] sm:$0xf]
        %v1825 = vld [vmem:[%s1818 + $0x18] sm:$0xf]
        %v1826 = vld [vmem:[%s1818 + $0x1c] sm:$0xf]
        %v1827 = vld [vmem:[%s1818 + $0x20] sm:$0xf]
        %v1828 = vld [vmem:[%s1818 + $0x24] sm:$0xf]
        %v1829 = vld [vmem:[%s1818 + $0x28] sm:$0xf]
        %v1830 = vld [vmem:[%s1818 + $0x2c] sm:$0xf]
        %v1831 = vld [vmem:[%s1818 + $0x30] sm:$0xf]
        %v1832 = vld [vmem:[%s1818 + $0x34] sm:$0xf]
        %v1833 = vld [vmem:[%s1818 + $0x38] sm:$0xf]
        %v1834 = vld [vmem:[%s1818 + $0x3c] sm:$0xf]
        %v1851 = vunpack.c.l.b16 %v1819
        %v1852 = vunpack.c.l.b16 %v1820
        %v1853 = vunpack.c.l.b16 %v1821
        %v1854 = vunpack.c.l.b16 %v1822
        %v1855 = vunpack.c.l.b16 %v1823
        %v1856 = vunpack.c.l.b16 %v1824
        %v1857 = vunpack.c.l.b16 %v1825
        %v1858 = vunpack.c.l.b16 %v1826
        %v1859 = vunpack.c.l.b16 %v1827
        %v1860 = vunpack.c.l.b16 %v1828
        %v1861 = vunpack.c.l.b16 %v1829
        %v1862 = vunpack.c.l.b16 %v1830
        %v1863 = vunpack.c.l.b16 %v1831
        %v1864 = vunpack.c.l.b16 %v1832
        %v1865 = vunpack.c.l.b16 %v1833
        %v1866 = vunpack.c.l.b16 %v1834
        %v1867 = vpack.c.b16 %v1852, %v1851
        %v1868 = vpack.c.b16 %v1854, %v1853
        %v1869 = vpack.c.b16 %v1856, %v1855
        %v1870 = vpack.c.b16 %v1858, %v1857
        %v1871 = vpack.c.b16 %v1860, %v1859
        %v1872 = vpack.c.b16 %v1862, %v1861
        %v1873 = vpack.c.b16 %v1864, %v1863
        %v1874 = vpack.c.b16 %v1866, %v1865
        %1883 = vmatprep.subr.bf16.mxu0 0
        %1884 = vmatpush1.bf16.msra.mxu0 %v1874
        %1885 = vmatprep.subr.bf16.mxu0 0
        %1886 = vmatpush1.bf16.msra.mxu0 %v1873
        %1887 = vmatprep.subr.bf16.mxu0 0
        %1888 = vmatpush1.bf16.msra.mxu0 %v1872
        %1889 = vmatprep.subr.bf16.mxu0 0
        %1890 = vmatpush1.bf16.msra.mxu0 %v1871
        %1891 = vmatprep.subr.bf16.mxu0 0
        %1892 = vmatpush1.bf16.msra.mxu0 %v1870
        %1893 = vmatprep.subr.bf16.mxu0 0
        %1894 = vmatpush1.bf16.msra.mxu0 %v1869
        %1895 = vmatprep.subr.bf16.mxu0 0
        %1896 = vmatpush1.bf16.msra.mxu0 %v1868
        %1897 = vmatprep.subr.bf16.mxu0 0
        %1898 = vmatpush1.bf16.msra.mxu0 %v1867
        %1899 = vmatprep.subr.bf16.mxu0 0
        %1900 = vmatpush2.bf16.msra.mxu0 0
        %1901 = vmatprep.subr.bf16.mxu0 0
        %1902 = vmatpush2.bf16.msra.mxu0 0
        %1903 = vmatprep.subr.bf16.mxu0 0
        %1904 = vmatpush2.bf16.msra.mxu0 0
        %1905 = vmatprep.subr.bf16.mxu0 0
        %1906 = vmatpush2.bf16.msra.mxu0 0
        %1907 = vmatprep.subr.bf16.mxu0 0
        %1908 = vmatpush2.bf16.msra.mxu0 0
        %1909 = vmatprep.subr.bf16.mxu0 0
        %1910 = vmatpush2.bf16.msra.mxu0 0
        %1911 = vmatprep.subr.bf16.mxu0 0
        %1912 = vmatpush2.bf16.msra.mxu0 0
        %1913 = vmatprep.subr.bf16.mxu0 0
        %1914 = vmatpush2.bf16.msra.mxu0 0
        %1915 = vmatprep.mubr.bf16.mxu0 0
        %1916 = vmatmul.mubr.bf16.gmra.mxu0 %v1814
        %v1917 = vpop.f32.mrf.mxu0
        %v1918 = vadd.f32 0.0, %v1917
        %v1919 = vpop.f32.mrf.mxu0
        %v1920 = vpop.f32.mrf.mxu0
        %v1921 = vadd.f32 0.0, %v1920
        %v1922 = vpop.f32.mrf.mxu0
        %1923 = vmatprep.mubr.bf16.mxu0 0
        %1924 = vmatmul.mubr.bf16.gmra.mxu0 %v1815
        %v1925 = vpop.f32.mrf.mxu0
        %v1926 = vadd.f32 0.0, %v1925
        %v1927 = vpop.f32.mrf.mxu0
        %v1928 = vpop.f32.mrf.mxu0
        %v1929 = vadd.f32 0.0, %v1928
        %v1930 = vpop.f32.mrf.mxu0
        %1931 = vmatprep.mubr.bf16.mxu0 0
        %1932 = vmatmul.mubr.bf16.gmra.mxu0 %v1816
        %v1933 = vpop.f32.mrf.mxu0
        %v1934 = vadd.f32 0.0, %v1933
        %v1935 = vpop.f32.mrf.mxu0
        %v1936 = vpop.f32.mrf.mxu0
        %v1937 = vadd.f32 0.0, %v1936
        %v1938 = vpop.f32.mrf.mxu0
        %1939 = vmatprep.mubr.bf16.mxu0 0
        %1940 = vmatmul.mubr.bf16.gmra.mxu0 %v1817
        %v1941 = vpop.f32.mrf.mxu0
        %v1942 = vadd.f32 0.0, %v1941
        %v1943 = vpop.f32.mrf.mxu0
        %v1944 = vpop.f32.mrf.mxu0
        %v1945 = vadd.f32 0.0, %v1944
        %v1946 = vpop.f32.mrf.mxu0
        %1947 = vdwg.mxu0
        %v1948 = vadd.f32 %v1773, %v1918
        %v1949 = vadd.f32 %v1774, %v1921
        %v1950 = vadd.f32 %v1775, %v1926
        %v1951 = vadd.f32 %v1776, %v1929
        %v1952 = vadd.f32 %v1777, %v1934
        %v1953 = vadd.f32 %v1778, %v1937
        %v1954 = vadd.f32 %v1779, %v1942
        %v1955 = vadd.f32 %v1780, %v1945
        %v1956 = vmax.f32 %v1948, 0.0
        %v1957 = vmax.f32 %v1949, 0.0
        %v1958 = vmax.f32 %v1950, 0.0
        %v1959 = vmax.f32 %v1951, 0.0
        %v1960 = vmax.f32 %v1952, 0.0
        %v1961 = vmax.f32 %v1953, 0.0
        %v1962 = vmax.f32 %v1954, 0.0
        %v1963 = vmax.f32 %v1955, 0.0
        %v1966 = vrot.slane %v1962, 7
        %v1967 = vrot.slane %v1963, 7
        %v1968 = vsel %vm354, %v1966, %v1967
        %v1977 = vrot.slane %v1956, 7
        %v1978 = vrot.slane %v1957, 7
        %v1979 = vsel %vm354, %v1977, %v1978
        %v1980 = vrot.slane %v1958, 7
        %v1981 = vsel %vm354, %v1978, %v1980
        %v1982 = vrot.slane %v1959, 7
        %v1983 = vsel %vm354, %v1980, %v1982
        %v1984 = vrot.slane %v1960, 7
        %v1985 = vsel %vm354, %v1982, %v1984
        %v1986 = vrot.slane %v1961, 7
        %v1987 = vsel %vm354, %v1984, %v1986
        %v1988 = vsel %vm354, %v1986, %v1966
        %v1996 = vsel %vm354, %v1967, %v1977
        %v1997 = vpack.c.bf16 %v1996, %v1968
        %v1998 = vpack.c.bf16 %v1981, %v1979
        %v1999 = vpack.c.bf16 %v1985, %v1983
        %v2000 = vpack.c.bf16 %v1988, %v1987
        %v2001 = vmul.bf16 %v1997, %v414
        %v2002 = vmul.bf16 %v1998, %v415
        %v2003 = vmul.bf16 %v1999, %v416
        %v2004 = vmul.bf16 %v2000, %v417
        %v2005 = vld [vmem:[#allocation8] sm:$0xf]
        %v2006 = vld [vmem:[#allocation8 + $0x4] sm:$0xf]
        %v2007 = vld [vmem:[#allocation8 + $0x8] sm:$0xf]
        %v2008 = vld [vmem:[#allocation8 + $0xc] sm:$0xf]
        %v2009 = vld [vmem:[#allocation8 + $0x10] sm:$0xf]
        %v2010 = vld [vmem:[#allocation8 + $0x14] sm:$0xf]
        %v2011 = vld [vmem:[#allocation8 + $0x18] sm:$0xf]
        %v2012 = vld [vmem:[#allocation8 + $0x1c] sm:$0xf]
        %v2013 = vld [vmem:[#allocation8 + $0x20] sm:$0xf]
        %v2014 = vld [vmem:[#allocation8 + $0x24] sm:$0xf]
        %v2015 = vld [vmem:[#allocation8 + $0x28] sm:$0xf]
        %v2016 = vld [vmem:[#allocation8 + $0x2c] sm:$0xf]
        %v2017 = vld [vmem:[#allocation8 + $0x30] sm:$0xf]
        %v2018 = vld [vmem:[#allocation8 + $0x34] sm:$0xf]
        %v2019 = vld [vmem:[#allocation8 + $0x38] sm:$0xf]
        %v2020 = vld [vmem:[#allocation8 + $0x3c] sm:$0xf]
        %v2037 = vunpack.c.l.b16 %v2005
        %v2038 = vunpack.c.l.b16 %v2006
        %v2039 = vunpack.c.l.b16 %v2007
        %v2040 = vunpack.c.l.b16 %v2008
        %v2041 = vunpack.c.l.b16 %v2009
        %v2042 = vunpack.c.l.b16 %v2010
        %v2043 = vunpack.c.l.b16 %v2011
        %v2044 = vunpack.c.l.b16 %v2012
        %v2045 = vunpack.c.l.b16 %v2013
        %v2046 = vunpack.c.l.b16 %v2014
        %v2047 = vunpack.c.l.b16 %v2015
        %v2048 = vunpack.c.l.b16 %v2016
        %v2049 = vunpack.c.l.b16 %v2017
        %v2050 = vunpack.c.l.b16 %v2018
        %v2051 = vunpack.c.l.b16 %v2019
        %v2052 = vunpack.c.l.b16 %v2020
        %v2053 = vpack.c.b16 %v2038, %v2037
        %v2054 = vpack.c.b16 %v2040, %v2039
        %v2055 = vpack.c.b16 %v2042, %v2041
        %v2056 = vpack.c.b16 %v2044, %v2043
        %v2057 = vpack.c.b16 %v2046, %v2045
        %v2058 = vpack.c.b16 %v2048, %v2047
        %v2059 = vpack.c.b16 %v2050, %v2049
        %v2060 = vpack.c.b16 %v2052, %v2051
        %2069 = vmatprep.subr.bf16.mxu0 0
        %2070 = vmatpush1.bf16.msra.mxu0 %v2060
        %2071 = vmatprep.subr.bf16.mxu0 0
        %2072 = vmatpush1.bf16.msra.mxu0 %v2059
        %2073 = vmatprep.subr.bf16.mxu0 0
        %2074 = vmatpush1.bf16.msra.mxu0 %v2058
        %2075 = vmatprep.subr.bf16.mxu0 0
        %2076 = vmatpush1.bf16.msra.mxu0 %v2057
        %2077 = vmatprep.subr.bf16.mxu0 0
        %2078 = vmatpush1.bf16.msra.mxu0 %v2056
        %2079 = vmatprep.subr.bf16.mxu0 0
        %2080 = vmatpush1.bf16.msra.mxu0 %v2055
        %2081 = vmatprep.subr.bf16.mxu0 0
        %2082 = vmatpush1.bf16.msra.mxu0 %v2054
        %2083 = vmatprep.subr.bf16.mxu0 0
        %2084 = vmatpush1.bf16.msra.mxu0 %v2053
        %2085 = vmatprep.subr.bf16.mxu0 0
        %2086 = vmatpush2.bf16.msra.mxu0 0
        %2087 = vmatprep.subr.bf16.mxu0 0
        %2088 = vmatpush2.bf16.msra.mxu0 0
        %2089 = vmatprep.subr.bf16.mxu0 0
        %2090 = vmatpush2.bf16.msra.mxu0 0
        %2091 = vmatprep.subr.bf16.mxu0 0
        %2092 = vmatpush2.bf16.msra.mxu0 0
        %2093 = vmatprep.subr.bf16.mxu0 0
        %2094 = vmatpush2.bf16.msra.mxu0 0
        %2095 = vmatprep.subr.bf16.mxu0 0
        %2096 = vmatpush2.bf16.msra.mxu0 0
        %2097 = vmatprep.subr.bf16.mxu0 0
        %2098 = vmatpush2.bf16.msra.mxu0 0
        %2099 = vmatprep.subr.bf16.mxu0 0
        %2100 = vmatpush2.bf16.msra.mxu0 0
        %2101 = vmatprep.mubr.bf16.mxu0 0
        %2102 = vmatmul.mubr.bf16.gmra.mxu0 %v2001
        %v2103 = vpop.f32.mrf.mxu0
        %v2104 = vadd.f32 0.0, %v2103
        %v2105 = vpop.f32.mrf.mxu0
        %v2106 = vpop.f32.mrf.mxu0
        %v2107 = vadd.f32 0.0, %v2106
        %v2108 = vpop.f32.mrf.mxu0
        %2109 = vmatprep.mubr.bf16.mxu0 0
        %2110 = vmatmul.mubr.bf16.gmra.mxu0 %v2002
        %v2111 = vpop.f32.mrf.mxu0
        %v2112 = vadd.f32 0.0, %v2111
        %v2113 = vpop.f32.mrf.mxu0
        %v2114 = vpop.f32.mrf.mxu0
        %v2115 = vadd.f32 0.0, %v2114
        %v2116 = vpop.f32.mrf.mxu0
        %2117 = vmatprep.mubr.bf16.mxu0 0
        %2118 = vmatmul.mubr.bf16.gmra.mxu0 %v2003
        %v2119 = vpop.f32.mrf.mxu0
        %v2120 = vadd.f32 0.0, %v2119
        %v2121 = vpop.f32.mrf.mxu0
        %v2122 = vpop.f32.mrf.mxu0
        %v2123 = vadd.f32 0.0, %v2122
        %v2124 = vpop.f32.mrf.mxu0
        %2125 = vmatprep.mubr.bf16.mxu0 0
        %2126 = vmatmul.mubr.bf16.gmra.mxu0 %v2004
        %v2127 = vpop.f32.mrf.mxu0
        %v2128 = vadd.f32 0.0, %v2127
        %v2129 = vpop.f32.mrf.mxu0
        %v2130 = vpop.f32.mrf.mxu0
        %v2131 = vadd.f32 0.0, %v2130
        %v2132 = vpop.f32.mrf.mxu0
        %2133 = vdwg.mxu0
        %v2134 = vadd.f32 %v344, %v2104
        %v2135 = vadd.f32 %v345, %v2107
        %v2136 = vadd.f32 %v346, %v2112
        %v2137 = vadd.f32 %v347, %v2115
        %v2138 = vadd.f32 %v348, %v2120
        %v2139 = vadd.f32 %v349, %v2123
        %v2140 = vadd.f32 %v350, %v2128
        %v2141 = vadd.f32 %v351, %v2131
        %v2142 = vpack.c.bf16 %v1956, %v1963
        %v2143 = vpack.c.bf16 %v1958, %v1957
        %v2144 = vpack.c.bf16 %v1960, %v1959
        %v2145 = vpack.c.bf16 %v1962, %v1961
        %v2146 = vmul.bf16 %v2142, %v471
        %v2147 = vmul.bf16 %v2143, %v472
        %v2148 = vmul.bf16 %v2144, %v473
        %v2149 = vmul.bf16 %v2145, %v474
        %s2150 = scalar_lea.vmem [#allocation8], 64
        %v2151 = vld [vmem:[%s2150] sm:$0xf]
        %v2152 = vld [vmem:[%s2150 + $0x4] sm:$0xf]
        %v2153 = vld [vmem:[%s2150 + $0x8] sm:$0xf]
        %v2154 = vld [vmem:[%s2150 + $0xc] sm:$0xf]
        %v2155 = vld [vmem:[%s2150 + $0x10] sm:$0xf]
        %v2156 = vld [vmem:[%s2150 + $0x14] sm:$0xf]
        %v2157 = vld [vmem:[%s2150 + $0x18] sm:$0xf]
        %v2158 = vld [vmem:[%s2150 + $0x1c] sm:$0xf]
        %v2159 = vld [vmem:[%s2150 + $0x20] sm:$0xf]
        %v2160 = vld [vmem:[%s2150 + $0x24] sm:$0xf]
        %v2161 = vld [vmem:[%s2150 + $0x28] sm:$0xf]
        %v2162 = vld [vmem:[%s2150 + $0x2c] sm:$0xf]
        %v2163 = vld [vmem:[%s2150 + $0x30] sm:$0xf]
        %v2164 = vld [vmem:[%s2150 + $0x34] sm:$0xf]
        %v2165 = vld [vmem:[%s2150 + $0x38] sm:$0xf]
        %v2166 = vld [vmem:[%s2150 + $0x3c] sm:$0xf]
        %v2183 = vunpack.c.l.b16 %v2151
        %v2184 = vunpack.c.l.b16 %v2152
        %v2185 = vunpack.c.l.b16 %v2153
        %v2186 = vunpack.c.l.b16 %v2154
        %v2187 = vunpack.c.l.b16 %v2155
        %v2188 = vunpack.c.l.b16 %v2156
        %v2189 = vunpack.c.l.b16 %v2157
        %v2190 = vunpack.c.l.b16 %v2158
        %v2191 = vunpack.c.l.b16 %v2159
        %v2192 = vunpack.c.l.b16 %v2160
        %v2193 = vunpack.c.l.b16 %v2161
        %v2194 = vunpack.c.l.b16 %v2162
        %v2195 = vunpack.c.l.b16 %v2163
        %v2196 = vunpack.c.l.b16 %v2164
        %v2197 = vunpack.c.l.b16 %v2165
        %v2198 = vunpack.c.l.b16 %v2166
        %v2199 = vpack.c.b16 %v2184, %v2183
        %v2200 = vpack.c.b16 %v2186, %v2185
        %v2201 = vpack.c.b16 %v2188, %v2187
        %v2202 = vpack.c.b16 %v2190, %v2189
        %v2203 = vpack.c.b16 %v2192, %v2191
        %v2204 = vpack.c.b16 %v2194, %v2193
        %v2205 = vpack.c.b16 %v2196, %v2195
        %v2206 = vpack.c.b16 %v2198, %v2197
        %2215 = vmatprep.subr.bf16.mxu0 0
        %2216 = vmatpush1.bf16.msra.mxu0 %v2206
        %2217 = vmatprep.subr.bf16.mxu0 0
        %2218 = vmatpush1.bf16.msra.mxu0 %v2205
        %2219 = vmatprep.subr.bf16.mxu0 0
        %2220 = vmatpush1.bf16.msra.mxu0 %v2204
        %2221 = vmatprep.subr.bf16.mxu0 0
        %2222 = vmatpush1.bf16.msra.mxu0 %v2203
        %2223 = vmatprep.subr.bf16.mxu0 0
        %2224 = vmatpush1.bf16.msra.mxu0 %v2202
        %2225 = vmatprep.subr.bf16.mxu0 0
        %2226 = vmatpush1.bf16.msra.mxu0 %v2201
        %2227 = vmatprep.subr.bf16.mxu0 0
        %2228 = vmatpush1.bf16.msra.mxu0 %v2200
        %2229 = vmatprep.subr.bf16.mxu0 0
        %2230 = vmatpush1.bf16.msra.mxu0 %v2199
        %2231 = vmatprep.subr.bf16.mxu0 0
        %2232 = vmatpush2.bf16.msra.mxu0 0
        %2233 = vmatprep.subr.bf16.mxu0 0
        %2234 = vmatpush2.bf16.msra.mxu0 0
        %2235 = vmatprep.subr.bf16.mxu0 0
        %2236 = vmatpush2.bf16.msra.mxu0 0
        %2237 = vmatprep.subr.bf16.mxu0 0
        %2238 = vmatpush2.bf16.msra.mxu0 0
        %2239 = vmatprep.subr.bf16.mxu0 0
        %2240 = vmatpush2.bf16.msra.mxu0 0
        %2241 = vmatprep.subr.bf16.mxu0 0
        %2242 = vmatpush2.bf16.msra.mxu0 0
        %2243 = vmatprep.subr.bf16.mxu0 0
        %2244 = vmatpush2.bf16.msra.mxu0 0
        %2245 = vmatprep.subr.bf16.mxu0 0
        %2246 = vmatpush2.bf16.msra.mxu0 0
        %2247 = vmatprep.mubr.bf16.mxu0 0
        %2248 = vmatmul.mubr.bf16.gmra.mxu0 %v2146
        %v2249 = vpop.f32.mrf.mxu0
        %v2250 = vadd.f32 0.0, %v2249
        %v2251 = vpop.f32.mrf.mxu0
        %v2252 = vpop.f32.mrf.mxu0
        %v2253 = vadd.f32 0.0, %v2252
        %v2254 = vpop.f32.mrf.mxu0
        %2255 = vmatprep.mubr.bf16.mxu0 0
        %2256 = vmatmul.mubr.bf16.gmra.mxu0 %v2147
        %v2257 = vpop.f32.mrf.mxu0
        %v2258 = vadd.f32 0.0, %v2257
        %v2259 = vpop.f32.mrf.mxu0
        %v2260 = vpop.f32.mrf.mxu0
        %v2261 = vadd.f32 0.0, %v2260
        %v2262 = vpop.f32.mrf.mxu0
        %2263 = vmatprep.mubr.bf16.mxu0 0
        %2264 = vmatmul.mubr.bf16.gmra.mxu0 %v2148
        %v2265 = vpop.f32.mrf.mxu0
        %v2266 = vadd.f32 0.0, %v2265
        %v2267 = vpop.f32.mrf.mxu0
        %v2268 = vpop.f32.mrf.mxu0
        %v2269 = vadd.f32 0.0, %v2268
        %v2270 = vpop.f32.mrf.mxu0
        %2271 = vmatprep.mubr.bf16.mxu0 0
        %2272 = vmatmul.mubr.bf16.gmra.mxu0 %v2149
        %v2273 = vpop.f32.mrf.mxu0
        %v2274 = vadd.f32 0.0, %v2273
        %v2275 = vpop.f32.mrf.mxu0
        %v2276 = vpop.f32.mrf.mxu0
        %v2277 = vadd.f32 0.0, %v2276
        %v2278 = vpop.f32.mrf.mxu0
        %2279 = vdwg.mxu0
        %v2280 = vadd.f32 %v2134, %v2250
        %v2281 = vadd.f32 %v2135, %v2253
        %v2282 = vadd.f32 %v2136, %v2258
        %v2283 = vadd.f32 %v2137, %v2261
        %v2284 = vadd.f32 %v2138, %v2266
        %v2285 = vadd.f32 %v2139, %v2269
        %v2286 = vadd.f32 %v2140, %v2274
        %v2287 = vadd.f32 %v2141, %v2277
        %v2288 = vrot.slane %v1963, 1
        %v2290 = vrot.slane %v1956, 1
        %v2291 = vrot.slane %v1957, 1
        %v2292 = vsel %vm728, %v2290, %v2291
        %v2293 = vrot.slane %v1958, 1
        %v2294 = vsel %vm728, %v2291, %v2293
        %v2295 = vrot.slane %v1959, 1
        %v2296 = vsel %vm728, %v2293, %v2295
        %v2297 = vrot.slane %v1960, 1
        %v2298 = vsel %vm728, %v2295, %v2297
        %v2299 = vrot.slane %v1961, 1
        %v2300 = vsel %vm728, %v2297, %v2299
        %v2301 = vrot.slane %v1962, 1
        %v2302 = vsel %vm728, %v2299, %v2301
        %v2303 = vsel %vm728, %v2301, %v2288
        %v2312 = vsel %vm728, %v2288, %v2290
        %v2313 = vpack.c.bf16 %v2292, %v2312
        %v2314 = vpack.c.bf16 %v2296, %v2294
        %v2315 = vpack.c.bf16 %v2300, %v2298
        %v2316 = vpack.c.bf16 %v2303, %v2302
        %v2317 = vmul.bf16 %v2313, %v781
        %v2318 = vmul.bf16 %v2314, %v782
        %v2319 = vmul.bf16 %v2315, %v783
        %v2320 = vmul.bf16 %v2316, %v784
        %s2321 = scalar_lea.vmem [#allocation8], 128
        %v2322 = vld [vmem:[%s2321] sm:$0xf]
        %v2323 = vld [vmem:[%s2321 + $0x4] sm:$0xf]
        %v2324 = vld [vmem:[%s2321 + $0x8] sm:$0xf]
        %v2325 = vld [vmem:[%s2321 + $0xc] sm:$0xf]
        %v2326 = vld [vmem:[%s2321 + $0x10] sm:$0xf]
        %v2327 = vld [vmem:[%s2321 + $0x14] sm:$0xf]
        %v2328 = vld [vmem:[%s2321 + $0x18] sm:$0xf]
        %v2329 = vld [vmem:[%s2321 + $0x1c] sm:$0xf]
        %v2330 = vld [vmem:[%s2321 + $0x20] sm:$0xf]
        %v2331 = vld [vmem:[%s2321 + $0x24] sm:$0xf]
        %v2332 = vld [vmem:[%s2321 + $0x28] sm:$0xf]
        %v2333 = vld [vmem:[%s2321 + $0x2c] sm:$0xf]
        %v2334 = vld [vmem:[%s2321 + $0x30] sm:$0xf]
        %v2335 = vld [vmem:[%s2321 + $0x34] sm:$0xf]
        %v2336 = vld [vmem:[%s2321 + $0x38] sm:$0xf]
        %v2337 = vld [vmem:[%s2321 + $0x3c] sm:$0xf]
        %v2354 = vunpack.c.l.b16 %v2322
        %v2355 = vunpack.c.l.b16 %v2323
        %v2356 = vunpack.c.l.b16 %v2324
        %v2357 = vunpack.c.l.b16 %v2325
        %v2358 = vunpack.c.l.b16 %v2326
        %v2359 = vunpack.c.l.b16 %v2327
        %v2360 = vunpack.c.l.b16 %v2328
        %v2361 = vunpack.c.l.b16 %v2329
        %v2362 = vunpack.c.l.b16 %v2330
        %v2363 = vunpack.c.l.b16 %v2331
        %v2364 = vunpack.c.l.b16 %v2332
        %v2365 = vunpack.c.l.b16 %v2333
        %v2366 = vunpack.c.l.b16 %v2334
        %v2367 = vunpack.c.l.b16 %v2335
        %v2368 = vunpack.c.l.b16 %v2336
        %v2369 = vunpack.c.l.b16 %v2337
        %v2370 = vpack.c.b16 %v2355, %v2354
        %v2371 = vpack.c.b16 %v2357, %v2356
        %v2372 = vpack.c.b16 %v2359, %v2358
        %v2373 = vpack.c.b16 %v2361, %v2360
        %v2374 = vpack.c.b16 %v2363, %v2362
        %v2375 = vpack.c.b16 %v2365, %v2364
        %v2376 = vpack.c.b16 %v2367, %v2366
        %v2377 = vpack.c.b16 %v2369, %v2368
        %2386 = vmatprep.subr.bf16.mxu0 0
        %2387 = vmatpush1.bf16.msra.mxu0 %v2377
        %2388 = vmatprep.subr.bf16.mxu0 0
        %2389 = vmatpush1.bf16.msra.mxu0 %v2376
        %2390 = vmatprep.subr.bf16.mxu0 0
        %2391 = vmatpush1.bf16.msra.mxu0 %v2375
        %2392 = vmatprep.subr.bf16.mxu0 0
        %2393 = vmatpush1.bf16.msra.mxu0 %v2374
        %2394 = vmatprep.subr.bf16.mxu0 0
        %2395 = vmatpush1.bf16.msra.mxu0 %v2373
        %2396 = vmatprep.subr.bf16.mxu0 0
        %2397 = vmatpush1.bf16.msra.mxu0 %v2372
        %2398 = vmatprep.subr.bf16.mxu0 0
        %2399 = vmatpush1.bf16.msra.mxu0 %v2371
        %2400 = vmatprep.subr.bf16.mxu0 0
        %2401 = vmatpush1.bf16.msra.mxu0 %v2370
        %2402 = vmatprep.subr.bf16.mxu0 0
        %2403 = vmatpush2.bf16.msra.mxu0 0
        %2404 = vmatprep.subr.bf16.mxu0 0
        %2405 = vmatpush2.bf16.msra.mxu0 0
        %2406 = vmatprep.subr.bf16.mxu0 0
        %2407 = vmatpush2.bf16.msra.mxu0 0
        %2408 = vmatprep.subr.bf16.mxu0 0
        %2409 = vmatpush2.bf16.msra.mxu0 0
        %2410 = vmatprep.subr.bf16.mxu0 0
        %2411 = vmatpush2.bf16.msra.mxu0 0
        %2412 = vmatprep.subr.bf16.mxu0 0
        %2413 = vmatpush2.bf16.msra.mxu0 0
        %2414 = vmatprep.subr.bf16.mxu0 0
        %2415 = vmatpush2.bf16.msra.mxu0 0
        %2416 = vmatprep.subr.bf16.mxu0 0
        %2417 = vmatpush2.bf16.msra.mxu0 0
        %2418 = vmatprep.mubr.bf16.mxu0 0
        %2419 = vmatmul.mubr.bf16.gmra.mxu0 %v2317
        %v2420 = vpop.f32.mrf.mxu0
        %v2421 = vadd.f32 0.0, %v2420
        %v2422 = vpop.f32.mrf.mxu0
        %v2423 = vpop.f32.mrf.mxu0
        %v2424 = vadd.f32 0.0, %v2423
        %v2425 = vpop.f32.mrf.mxu0
        %2426 = vmatprep.mubr.bf16.mxu0 0
        %2427 = vmatmul.mubr.bf16.gmra.mxu0 %v2318
        %v2428 = vpop.f32.mrf.mxu0
        %v2429 = vadd.f32 0.0, %v2428
        %v2430 = vpop.f32.mrf.mxu0
        %v2431 = vpop.f32.mrf.mxu0
        %v2432 = vadd.f32 0.0, %v2431
        %v2433 = vpop.f32.mrf.mxu0
        %2434 = vmatprep.mubr.bf16.mxu0 0
        %2435 = vmatmul.mubr.bf16.gmra.mxu0 %v2319
        %v2436 = vpop.f32.mrf.mxu0
        %v2437 = vadd.f32 0.0, %v2436
        %v2438 = vpop.f32.mrf.mxu0
        %v2439 = vpop.f32.mrf.mxu0
        %v2440 = vadd.f32 0.0, %v2439
        %v2441 = vpop.f32.mrf.mxu0
        %2442 = vmatprep.mubr.bf16.mxu0 0
        %2443 = vmatmul.mubr.bf16.gmra.mxu0 %v2320
        %v2444 = vpop.f32.mrf.mxu0
        %v2445 = vadd.f32 0.0, %v2444
        %v2446 = vpop.f32.mrf.mxu0
        %v2447 = vpop.f32.mrf.mxu0
        %v2448 = vadd.f32 0.0, %v2447
        %v2449 = vpop.f32.mrf.mxu0
        %2450 = vdwg.mxu0
        %v2451 = vadd.f32 %v2280, %v2421
        %v2452 = vadd.f32 %v2281, %v2424
        %v2453 = vadd.f32 %v2282, %v2429
        %v2454 = vadd.f32 %v2283, %v2432
        %v2455 = vadd.f32 %v2284, %v2437
        %v2456 = vadd.f32 %v2285, %v2440
        %v2457 = vadd.f32 %v2286, %v2445
        %v2458 = vadd.f32 %v2287, %v2448
        %v2459 = vpack.c.bf16 %v1979, %v1996
        %v2460 = vpack.c.bf16 %v1983, %v1981
        %v2461 = vpack.c.bf16 %v1987, %v1985
        %v2462 = vpack.c.bf16 %v1968, %v1988
        %v2463 = vmul.bf16 %v2459, %v960
        %v2464 = vmul.bf16 %v2460, %v961
        %v2465 = vmul.bf16 %v2461, %v962
        %v2466 = vmul.bf16 %v2462, %v963
        %s2467 = scalar_lea.vmem [#allocation8], 192
        %v2468 = vld [vmem:[%s2467] sm:$0xf]
        %v2469 = vld [vmem:[%s2467 + $0x4] sm:$0xf]
        %v2470 = vld [vmem:[%s2467 + $0x8] sm:$0xf]
        %v2471 = vld [vmem:[%s2467 + $0xc] sm:$0xf]
        %v2472 = vld [vmem:[%s2467 + $0x10] sm:$0xf]
        %v2473 = vld [vmem:[%s2467 + $0x14] sm:$0xf]
        %v2474 = vld [vmem:[%s2467 + $0x18] sm:$0xf]
        %v2475 = vld [vmem:[%s2467 + $0x1c] sm:$0xf]
        %v2476 = vld [vmem:[%s2467 + $0x20] sm:$0xf]
        %v2477 = vld [vmem:[%s2467 + $0x24] sm:$0xf]
        %v2478 = vld [vmem:[%s2467 + $0x28] sm:$0xf]
        %v2479 = vld [vmem:[%s2467 + $0x2c] sm:$0xf]
        %v2480 = vld [vmem:[%s2467 + $0x30] sm:$0xf]
        %v2481 = vld [vmem:[%s2467 + $0x34] sm:$0xf]
        %v2482 = vld [vmem:[%s2467 + $0x38] sm:$0xf]
        %v2483 = vld [vmem:[%s2467 + $0x3c] sm:$0xf]
        %v2500 = vunpack.c.l.b16 %v2468
        %v2501 = vunpack.c.l.b16 %v2469
        %v2502 = vunpack.c.l.b16 %v2470
        %v2503 = vunpack.c.l.b16 %v2471
        %v2504 = vunpack.c.l.b16 %v2472
        %v2505 = vunpack.c.l.b16 %v2473
        %v2506 = vunpack.c.l.b16 %v2474
        %v2507 = vunpack.c.l.b16 %v2475
        %v2508 = vunpack.c.l.b16 %v2476
        %v2509 = vunpack.c.l.b16 %v2477
        %v2510 = vunpack.c.l.b16 %v2478
        %v2511 = vunpack.c.l.b16 %v2479
        %v2512 = vunpack.c.l.b16 %v2480
        %v2513 = vunpack.c.l.b16 %v2481
        %v2514 = vunpack.c.l.b16 %v2482
        %v2515 = vunpack.c.l.b16 %v2483
        %v2516 = vpack.c.b16 %v2501, %v2500
        %v2517 = vpack.c.b16 %v2503, %v2502
        %v2518 = vpack.c.b16 %v2505, %v2504
        %v2519 = vpack.c.b16 %v2507, %v2506
        %v2520 = vpack.c.b16 %v2509, %v2508
        %v2521 = vpack.c.b16 %v2511, %v2510
        %v2522 = vpack.c.b16 %v2513, %v2512
        %v2523 = vpack.c.b16 %v2515, %v2514
        %2532 = vmatprep.subr.bf16.mxu0 0
        %2533 = vmatpush1.bf16.msra.mxu0 %v2523
        %2534 = vmatprep.subr.bf16.mxu0 0
        %2535 = vmatpush1.bf16.msra.mxu0 %v2522
        %2536 = vmatprep.subr.bf16.mxu0 0
        %2537 = vmatpush1.bf16.msra.mxu0 %v2521
        %2538 = vmatprep.subr.bf16.mxu0 0
        %2539 = vmatpush1.bf16.msra.mxu0 %v2520
        %2540 = vmatprep.subr.bf16.mxu0 0
        %2541 = vmatpush1.bf16.msra.mxu0 %v2519
        %2542 = vmatprep.subr.bf16.mxu0 0
        %2543 = vmatpush1.bf16.msra.mxu0 %v2518
        %2544 = vmatprep.subr.bf16.mxu0 0
        %2545 = vmatpush1.bf16.msra.mxu0 %v2517
        %2546 = vmatprep.subr.bf16.mxu0 0
        %2547 = vmatpush1.bf16.msra.mxu0 %v2516
        %2548 = vmatprep.subr.bf16.mxu0 0
        %2549 = vmatpush2.bf16.msra.mxu0 0
        %2550 = vmatprep.subr.bf16.mxu0 0
        %2551 = vmatpush2.bf16.msra.mxu0 0
        %2552 = vmatprep.subr.bf16.mxu0 0
        %2553 = vmatpush2.bf16.msra.mxu0 0
        %2554 = vmatprep.subr.bf16.mxu0 0
        %2555 = vmatpush2.bf16.msra.mxu0 0
        %2556 = vmatprep.subr.bf16.mxu0 0
        %2557 = vmatpush2.bf16.msra.mxu0 0
        %2558 = vmatprep.subr.bf16.mxu0 0
        %2559 = vmatpush2.bf16.msra.mxu0 0
        %2560 = vmatprep.subr.bf16.mxu0 0
        %2561 = vmatpush2.bf16.msra.mxu0 0
        %2562 = vmatprep.subr.bf16.mxu0 0
        %2563 = vmatpush2.bf16.msra.mxu0 0
        %2564 = vmatprep.mubr.bf16.mxu0 0
        %2565 = vmatmul.mubr.bf16.gmra.mxu0 %v2463
        %v2566 = vpop.f32.mrf.mxu0
        %v2567 = vadd.f32 0.0, %v2566
        %v2568 = vpop.f32.mrf.mxu0
        %v2569 = vpop.f32.mrf.mxu0
        %v2570 = vadd.f32 0.0, %v2569
        %v2571 = vpop.f32.mrf.mxu0
        %2572 = vmatprep.mubr.bf16.mxu0 0
        %2573 = vmatmul.mubr.bf16.gmra.mxu0 %v2464
        %v2574 = vpop.f32.mrf.mxu0
        %v2575 = vadd.f32 0.0, %v2574
        %v2576 = vpop.f32.mrf.mxu0
        %v2577 = vpop.f32.mrf.mxu0
        %v2578 = vadd.f32 0.0, %v2577
        %v2579 = vpop.f32.mrf.mxu0
        %2580 = vmatprep.mubr.bf16.mxu0 0
        %2581 = vmatmul.mubr.bf16.gmra.mxu0 %v2465
        %v2582 = vpop.f32.mrf.mxu0
        %v2583 = vadd.f32 0.0, %v2582
        %v2584 = vpop.f32.mrf.mxu0
        %v2585 = vpop.f32.mrf.mxu0
        %v2586 = vadd.f32 0.0, %v2585
        %v2587 = vpop.f32.mrf.mxu0
        %2588 = vmatprep.mubr.bf16.mxu0 0
        %2589 = vmatmul.mubr.bf16.gmra.mxu0 %v2466
        %v2590 = vpop.f32.mrf.mxu0
        %v2591 = vadd.f32 0.0, %v2590
        %v2592 = vpop.f32.mrf.mxu0
        %v2593 = vpop.f32.mrf.mxu0
        %v2594 = vadd.f32 0.0, %v2593
        %v2595 = vpop.f32.mrf.mxu0
        %2596 = vdwg.mxu0
        %v2597 = vadd.f32 %v2451, %v2567
        %v2598 = vadd.f32 %v2452, %v2570
        %v2599 = vadd.f32 %v2453, %v2575
        %v2600 = vadd.f32 %v2454, %v2578
        %v2601 = vadd.f32 %v2455, %v2583
        %v2602 = vadd.f32 %v2456, %v2586
        %v2603 = vadd.f32 %v2457, %v2591
        %v2604 = vadd.f32 %v2458, %v2594
        %v2605 = vpack.c.bf16 %v1957, %v1956
        %v2606 = vpack.c.bf16 %v1959, %v1958
        %v2607 = vpack.c.bf16 %v1961, %v1960
        %v2608 = vpack.c.bf16 %v1963, %v1962
        %s2609 = scalar_lea.vmem [#allocation8], 256
        %v2610 = vld [vmem:[%s2609] sm:$0xf]
        %v2611 = vld [vmem:[%s2609 + $0x4] sm:$0xf]
        %v2612 = vld [vmem:[%s2609 + $0x8] sm:$0xf]
        %v2613 = vld [vmem:[%s2609 + $0xc] sm:$0xf]
        %v2614 = vld [vmem:[%s2609 + $0x10] sm:$0xf]
        %v2615 = vld [vmem:[%s2609 + $0x14] sm:$0xf]
        %v2616 = vld [vmem:[%s2609 + $0x18] sm:$0xf]
        %v2617 = vld [vmem:[%s2609 + $0x1c] sm:$0xf]
        %v2618 = vld [vmem:[%s2609 + $0x20] sm:$0xf]
        %v2619 = vld [vmem:[%s2609 + $0x24] sm:$0xf]
        %v2620 = vld [vmem:[%s2609 + $0x28] sm:$0xf]
        %v2621 = vld [vmem:[%s2609 + $0x2c] sm:$0xf]
        %v2622 = vld [vmem:[%s2609 + $0x30] sm:$0xf]
        %v2623 = vld [vmem:[%s2609 + $0x34] sm:$0xf]
        %v2624 = vld [vmem:[%s2609 + $0x38] sm:$0xf]
        %v2625 = vld [vmem:[%s2609 + $0x3c] sm:$0xf]
        %v2642 = vunpack.c.l.b16 %v2610
        %v2643 = vunpack.c.l.b16 %v2611
        %v2644 = vunpack.c.l.b16 %v2612
        %v2645 = vunpack.c.l.b16 %v2613
        %v2646 = vunpack.c.l.b16 %v2614
        %v2647 = vunpack.c.l.b16 %v2615
        %v2648 = vunpack.c.l.b16 %v2616
        %v2649 = vunpack.c.l.b16 %v2617
        %v2650 = vunpack.c.l.b16 %v2618
        %v2651 = vunpack.c.l.b16 %v2619
        %v2652 = vunpack.c.l.b16 %v2620
        %v2653 = vunpack.c.l.b16 %v2621
        %v2654 = vunpack.c.l.b16 %v2622
        %v2655 = vunpack.c.l.b16 %v2623
        %v2656 = vunpack.c.l.b16 %v2624
        %v2657 = vunpack.c.l.b16 %v2625
        %v2658 = vpack.c.b16 %v2643, %v2642
        %v2659 = vpack.c.b16 %v2645, %v2644
        %v2660 = vpack.c.b16 %v2647, %v2646
        %v2661 = vpack.c.b16 %v2649, %v2648
        %v2662 = vpack.c.b16 %v2651, %v2650
        %v2663 = vpack.c.b16 %v2653, %v2652
        %v2664 = vpack.c.b16 %v2655, %v2654
        %v2665 = vpack.c.b16 %v2657, %v2656
        %2674 = vmatprep.subr.bf16.mxu0 0
        %2675 = vmatpush1.bf16.msra.mxu0 %v2665
        %2676 = vmatprep.subr.bf16.mxu0 0
        %2677 = vmatpush1.bf16.msra.mxu0 %v2664
        %2678 = vmatprep.subr.bf16.mxu0 0
        %2679 = vmatpush1.bf16.msra.mxu0 %v2663
        %2680 = vmatprep.subr.bf16.mxu0 0
        %2681 = vmatpush1.bf16.msra.mxu0 %v2662
        %2682 = vmatprep.subr.bf16.mxu0 0
        %2683 = vmatpush1.bf16.msra.mxu0 %v2661
        %2684 = vmatprep.subr.bf16.mxu0 0
        %2685 = vmatpush1.bf16.msra.mxu0 %v2660
        %2686 = vmatprep.subr.bf16.mxu0 0
        %2687 = vmatpush1.bf16.msra.mxu0 %v2659
        %2688 = vmatprep.subr.bf16.mxu0 0
        %2689 = vmatpush1.bf16.msra.mxu0 %v2658
        %2690 = vmatprep.subr.bf16.mxu0 0
        %2691 = vmatpush2.bf16.msra.mxu0 0
        %2692 = vmatprep.subr.bf16.mxu0 0
        %2693 = vmatpush2.bf16.msra.mxu0 0
        %2694 = vmatprep.subr.bf16.mxu0 0
        %2695 = vmatpush2.bf16.msra.mxu0 0
        %2696 = vmatprep.subr.bf16.mxu0 0
        %2697 = vmatpush2.bf16.msra.mxu0 0
        %2698 = vmatprep.subr.bf16.mxu0 0
        %2699 = vmatpush2.bf16.msra.mxu0 0
        %2700 = vmatprep.subr.bf16.mxu0 0
        %2701 = vmatpush2.bf16.msra.mxu0 0
        %2702 = vmatprep.subr.bf16.mxu0 0
        %2703 = vmatpush2.bf16.msra.mxu0 0
        %2704 = vmatprep.subr.bf16.mxu0 0
        %2705 = vmatpush2.bf16.msra.mxu0 0
        %2706 = vmatprep.mubr.bf16.mxu0 0
        %2707 = vmatmul.mubr.bf16.gmra.mxu0 %v2605
        %v2708 = vpop.f32.mrf.mxu0
        %v2709 = vadd.f32 0.0, %v2708
        %v2710 = vpop.f32.mrf.mxu0
        %v2711 = vpop.f32.mrf.mxu0
        %v2712 = vadd.f32 0.0, %v2711
        %v2713 = vpop.f32.mrf.mxu0
        %2714 = vmatprep.mubr.bf16.mxu0 0
        %2715 = vmatmul.mubr.bf16.gmra.mxu0 %v2606
        %v2716 = vpop.f32.mrf.mxu0
        %v2717 = vadd.f32 0.0, %v2716
        %v2718 = vpop.f32.mrf.mxu0
        %v2719 = vpop.f32.mrf.mxu0
        %v2720 = vadd.f32 0.0, %v2719
        %v2721 = vpop.f32.mrf.mxu0
        %2722 = vmatprep.mubr.bf16.mxu0 0
        %2723 = vmatmul.mubr.bf16.gmra.mxu0 %v2607
        %v2724 = vpop.f32.mrf.mxu0
        %v2725 = vadd.f32 0.0, %v2724
        %v2726 = vpop.f32.mrf.mxu0
        %v2727 = vpop.f32.mrf.mxu0
        %v2728 = vadd.f32 0.0, %v2727
        %v2729 = vpop.f32.mrf.mxu0
        %2730 = vmatprep.mubr.bf16.mxu0 0
        %2731 = vmatmul.mubr.bf16.gmra.mxu0 %v2608
        %v2732 = vpop.f32.mrf.mxu0
        %v2733 = vadd.f32 0.0, %v2732
        %v2734 = vpop.f32.mrf.mxu0
        %v2735 = vpop.f32.mrf.mxu0
        %v2736 = vadd.f32 0.0, %v2735
        %v2737 = vpop.f32.mrf.mxu0
        %2738 = vdwg.mxu0
        %v2739 = vadd.f32 %v2597, %v2709
        %v2740 = vadd.f32 %v2598, %v2712
        %v2741 = vadd.f32 %v2599, %v2717
        %v2742 = vadd.f32 %v2600, %v2720
        %v2743 = vadd.f32 %v2601, %v2725
        %v2744 = vadd.f32 %v2602, %v2728
        %v2745 = vadd.f32 %v2603, %v2733
        %v2746 = vadd.f32 %v2604, %v2736
        %v2747 = vpack.c.bf16 %v2294, %v2292
        %v2748 = vpack.c.bf16 %v2298, %v2296
        %v2749 = vpack.c.bf16 %v2302, %v2300
        %v2750 = vpack.c.bf16 %v2312, %v2303
        %v2751 = vmul.bf16 %v2747, %v1281
        %v2752 = vmul.bf16 %v2748, %v1282
        %v2753 = vmul.bf16 %v2749, %v1283
        %v2754 = vmul.bf16 %v2750, %v1284
        %s2755 = scalar_lea.vmem [#allocation8], 320
        %v2756 = vld [vmem:[%s2755] sm:$0xf]
        %v2757 = vld [vmem:[%s2755 + $0x4] sm:$0xf]
        %v2758 = vld [vmem:[%s2755 + $0x8] sm:$0xf]
        %v2759 = vld [vmem:[%s2755 + $0xc] sm:$0xf]
        %v2760 = vld [vmem:[%s2755 + $0x10] sm:$0xf]
        %v2761 = vld [vmem:[%s2755 + $0x14] sm:$0xf]
        %v2762 = vld [vmem:[%s2755 + $0x18] sm:$0xf]
        %v2763 = vld [vmem:[%s2755 + $0x1c] sm:$0xf]
        %v2764 = vld [vmem:[%s2755 + $0x20] sm:$0xf]
        %v2765 = vld [vmem:[%s2755 + $0x24] sm:$0xf]
        %v2766 = vld [vmem:[%s2755 + $0x28] sm:$0xf]
        %v2767 = vld [vmem:[%s2755 + $0x2c] sm:$0xf]
        %v2768 = vld [vmem:[%s2755 + $0x30] sm:$0xf]
        %v2769 = vld [vmem:[%s2755 + $0x34] sm:$0xf]
        %v2770 = vld [vmem:[%s2755 + $0x38] sm:$0xf]
        %v2771 = vld [vmem:[%s2755 + $0x3c] sm:$0xf]
        %v2788 = vunpack.c.l.b16 %v2756
        %v2789 = vunpack.c.l.b16 %v2757
        %v2790 = vunpack.c.l.b16 %v2758
        %v2791 = vunpack.c.l.b16 %v2759
        %v2792 = vunpack.c.l.b16 %v2760
        %v2793 = vunpack.c.l.b16 %v2761
        %v2794 = vunpack.c.l.b16 %v2762
        %v2795 = vunpack.c.l.b16 %v2763
        %v2796 = vunpack.c.l.b16 %v2764
        %v2797 = vunpack.c.l.b16 %v2765
        %v2798 = vunpack.c.l.b16 %v2766
        %v2799 = vunpack.c.l.b16 %v2767
        %v2800 = vunpack.c.l.b16 %v2768
        %v2801 = vunpack.c.l.b16 %v2769
        %v2802 = vunpack.c.l.b16 %v2770
        %v2803 = vunpack.c.l.b16 %v2771
        %v2804 = vpack.c.b16 %v2789, %v2788
        %v2805 = vpack.c.b16 %v2791, %v2790
        %v2806 = vpack.c.b16 %v2793, %v2792
        %v2807 = vpack.c.b16 %v2795, %v2794
        %v2808 = vpack.c.b16 %v2797, %v2796
        %v2809 = vpack.c.b16 %v2799, %v2798
        %v2810 = vpack.c.b16 %v2801, %v2800
        %v2811 = vpack.c.b16 %v2803, %v2802
        %2820 = vmatprep.subr.bf16.mxu0 0
        %2821 = vmatpush1.bf16.msra.mxu0 %v2811
        %2822 = vmatprep.subr.bf16.mxu0 0
        %2823 = vmatpush1.bf16.msra.mxu0 %v2810
        %2824 = vmatprep.subr.bf16.mxu0 0
        %2825 = vmatpush1.bf16.msra.mxu0 %v2809
        %2826 = vmatprep.subr.bf16.mxu0 0
        %2827 = vmatpush1.bf16.msra.mxu0 %v2808
        %2828 = vmatprep.subr.bf16.mxu0 0
        %2829 = vmatpush1.bf16.msra.mxu0 %v2807
        %2830 = vmatprep.subr.bf16.mxu0 0
        %2831 = vmatpush1.bf16.msra.mxu0 %v2806
        %2832 = vmatprep.subr.bf16.mxu0 0
        %2833 = vmatpush1.bf16.msra.mxu0 %v2805
        %2834 = vmatprep.subr.bf16.mxu0 0
        %2835 = vmatpush1.bf16.msra.mxu0 %v2804
        %2836 = vmatprep.subr.bf16.mxu0 0
        %2837 = vmatpush2.bf16.msra.mxu0 0
        %2838 = vmatprep.subr.bf16.mxu0 0
        %2839 = vmatpush2.bf16.msra.mxu0 0
        %2840 = vmatprep.subr.bf16.mxu0 0
        %2841 = vmatpush2.bf16.msra.mxu0 0
        %2842 = vmatprep.subr.bf16.mxu0 0
        %2843 = vmatpush2.bf16.msra.mxu0 0
        %2844 = vmatprep.subr.bf16.mxu0 0
        %2845 = vmatpush2.bf16.msra.mxu0 0
        %2846 = vmatprep.subr.bf16.mxu0 0
        %2847 = vmatpush2.bf16.msra.mxu0 0
        %2848 = vmatprep.subr.bf16.mxu0 0
        %2849 = vmatpush2.bf16.msra.mxu0 0
        %2850 = vmatprep.subr.bf16.mxu0 0
        %2851 = vmatpush2.bf16.msra.mxu0 0
        %2852 = vmatprep.mubr.bf16.mxu0 0
        %2853 = vmatmul.mubr.bf16.gmra.mxu0 %v2751
        %v2854 = vpop.f32.mrf.mxu0
        %v2855 = vadd.f32 0.0, %v2854
        %v2856 = vpop.f32.mrf.mxu0
        %v2857 = vpop.f32.mrf.mxu0
        %v2858 = vadd.f32 0.0, %v2857
        %v2859 = vpop.f32.mrf.mxu0
        %2860 = vmatprep.mubr.bf16.mxu0 0
        %2861 = vmatmul.mubr.bf16.gmra.mxu0 %v2752
        %v2862 = vpop.f32.mrf.mxu0
        %v2863 = vadd.f32 0.0, %v2862
        %v2864 = vpop.f32.mrf.mxu0
        %v2865 = vpop.f32.mrf.mxu0
        %v2866 = vadd.f32 0.0, %v2865
        %v2867 = vpop.f32.mrf.mxu0
        %2868 = vmatprep.mubr.bf16.mxu0 0
        %2869 = vmatmul.mubr.bf16.gmra.mxu0 %v2753
        %v2870 = vpop.f32.mrf.mxu0
        %v2871 = vadd.f32 0.0, %v2870
        %v2872 = vpop.f32.mrf.mxu0
        %v2873 = vpop.f32.mrf.mxu0
        %v2874 = vadd.f32 0.0, %v2873
        %v2875 = vpop.f32.mrf.mxu0
        %2876 = vmatprep.mubr.bf16.mxu0 0
        %2877 = vmatmul.mubr.bf16.gmra.mxu0 %v2754
        %v2878 = vpop.f32.mrf.mxu0
        %v2879 = vadd.f32 0.0, %v2878
        %v2880 = vpop.f32.mrf.mxu0
        %v2881 = vpop.f32.mrf.mxu0
        %v2882 = vadd.f32 0.0, %v2881
        %v2883 = vpop.f32.mrf.mxu0
        %2884 = vdwg.mxu0
        %v2885 = vadd.f32 %v2739, %v2855
        %v2886 = vadd.f32 %v2740, %v2858
        %v2887 = vadd.f32 %v2741, %v2863
        %v2888 = vadd.f32 %v2742, %v2866
        %v2889 = vadd.f32 %v2743, %v2871
        %v2890 = vadd.f32 %v2744, %v2874
        %v2891 = vadd.f32 %v2745, %v2879
        %v2892 = vadd.f32 %v2746, %v2882
        %v2893 = vmul.bf16 %v1998, %v1456
        %v2894 = vmul.bf16 %v1999, %v1457
        %v2895 = vmul.bf16 %v2000, %v1458
        %v2896 = vmul.bf16 %v1997, %v1459
        %s2897 = scalar_lea.vmem [#allocation8], 384
        %v2898 = vld [vmem:[%s2897] sm:$0xf]
        %v2899 = vld [vmem:[%s2897 + $0x4] sm:$0xf]
        %v2900 = vld [vmem:[%s2897 + $0x8] sm:$0xf]
        %v2901 = vld [vmem:[%s2897 + $0xc] sm:$0xf]
        %v2902 = vld [vmem:[%s2897 + $0x10] sm:$0xf]
        %v2903 = vld [vmem:[%s2897 + $0x14] sm:$0xf]
        %v2904 = vld [vmem:[%s2897 + $0x18] sm:$0xf]
        %v2905 = vld [vmem:[%s2897 + $0x1c] sm:$0xf]
        %v2906 = vld [vmem:[%s2897 + $0x20] sm:$0xf]
        %v2907 = vld [vmem:[%s2897 + $0x24] sm:$0xf]
        %v2908 = vld [vmem:[%s2897 + $0x28] sm:$0xf]
        %v2909 = vld [vmem:[%s2897 + $0x2c] sm:$0xf]
        %v2910 = vld [vmem:[%s2897 + $0x30] sm:$0xf]
        %v2911 = vld [vmem:[%s2897 + $0x34] sm:$0xf]
        %v2912 = vld [vmem:[%s2897 + $0x38] sm:$0xf]
        %v2913 = vld [vmem:[%s2897 + $0x3c] sm:$0xf]
        %v2930 = vunpack.c.l.b16 %v2898
        %v2931 = vunpack.c.l.b16 %v2899
        %v2932 = vunpack.c.l.b16 %v2900
        %v2933 = vunpack.c.l.b16 %v2901
        %v2934 = vunpack.c.l.b16 %v2902
        %v2935 = vunpack.c.l.b16 %v2903
        %v2936 = vunpack.c.l.b16 %v2904
        %v2937 = vunpack.c.l.b16 %v2905
        %v2938 = vunpack.c.l.b16 %v2906
        %v2939 = vunpack.c.l.b16 %v2907
        %v2940 = vunpack.c.l.b16 %v2908
        %v2941 = vunpack.c.l.b16 %v2909
        %v2942 = vunpack.c.l.b16 %v2910
        %v2943 = vunpack.c.l.b16 %v2911
        %v2944 = vunpack.c.l.b16 %v2912
        %v2945 = vunpack.c.l.b16 %v2913
        %v2946 = vpack.c.b16 %v2931, %v2930
        %v2947 = vpack.c.b16 %v2933, %v2932
        %v2948 = vpack.c.b16 %v2935, %v2934
        %v2949 = vpack.c.b16 %v2937, %v2936
        %v2950 = vpack.c.b16 %v2939, %v2938
        %v2951 = vpack.c.b16 %v2941, %v2940
        %v2952 = vpack.c.b16 %v2943, %v2942
        %v2953 = vpack.c.b16 %v2945, %v2944
        %2962 = vmatprep.subr.bf16.mxu0 0
        %2963 = vmatpush1.bf16.msra.mxu0 %v2953
        %2964 = vmatprep.subr.bf16.mxu0 0
        %2965 = vmatpush1.bf16.msra.mxu0 %v2952
        %2966 = vmatprep.subr.bf16.mxu0 0
        %2967 = vmatpush1.bf16.msra.mxu0 %v2951
        %2968 = vmatprep.subr.bf16.mxu0 0
        %2969 = vmatpush1.bf16.msra.mxu0 %v2950
        %2970 = vmatprep.subr.bf16.mxu0 0
        %2971 = vmatpush1.bf16.msra.mxu0 %v2949
        %2972 = vmatprep.subr.bf16.mxu0 0
        %2973 = vmatpush1.bf16.msra.mxu0 %v2948
        %2974 = vmatprep.subr.bf16.mxu0 0
        %2975 = vmatpush1.bf16.msra.mxu0 %v2947
        %2976 = vmatprep.subr.bf16.mxu0 0
        %2977 = vmatpush1.bf16.msra.mxu0 %v2946
        %2978 = vmatprep.subr.bf16.mxu0 0
        %2979 = vmatpush2.bf16.msra.mxu0 0
        %2980 = vmatprep.subr.bf16.mxu0 0
        %2981 = vmatpush2.bf16.msra.mxu0 0
        %2982 = vmatprep.subr.bf16.mxu0 0
        %2983 = vmatpush2.bf16.msra.mxu0 0
        %2984 = vmatprep.subr.bf16.mxu0 0
        %2985 = vmatpush2.bf16.msra.mxu0 0
        %2986 = vmatprep.subr.bf16.mxu0 0
        %2987 = vmatpush2.bf16.msra.mxu0 0
        %2988 = vmatprep.subr.bf16.mxu0 0
        %2989 = vmatpush2.bf16.msra.mxu0 0
        %2990 = vmatprep.subr.bf16.mxu0 0
        %2991 = vmatpush2.bf16.msra.mxu0 0
        %2992 = vmatprep.subr.bf16.mxu0 0
        %2993 = vmatpush2.bf16.msra.mxu0 0
        %2994 = vmatprep.mubr.bf16.mxu0 0
        %2995 = vmatmul.mubr.bf16.gmra.mxu0 %v2893
        %v2996 = vpop.f32.mrf.mxu0
        %v2997 = vadd.f32 0.0, %v2996
        %v2998 = vpop.f32.mrf.mxu0
        %v2999 = vpop.f32.mrf.mxu0
        %v3000 = vadd.f32 0.0, %v2999
        %v3001 = vpop.f32.mrf.mxu0
        %3002 = vmatprep.mubr.bf16.mxu0 0
        %3003 = vmatmul.mubr.bf16.gmra.mxu0 %v2894
        %v3004 = vpop.f32.mrf.mxu0
        %v3005 = vadd.f32 0.0, %v3004
        %v3006 = vpop.f32.mrf.mxu0
        %v3007 = vpop.f32.mrf.mxu0
        %v3008 = vadd.f32 0.0, %v3007
        %v3009 = vpop.f32.mrf.mxu0
        %3010 = vmatprep.mubr.bf16.mxu0 0
        %3011 = vmatmul.mubr.bf16.gmra.mxu0 %v2895
        %v3012 = vpop.f32.mrf.mxu0
        %v3013 = vadd.f32 0.0, %v3012
        %v3014 = vpop.f32.mrf.mxu0
        %v3015 = vpop.f32.mrf.mxu0
        %v3016 = vadd.f32 0.0, %v3015
        %v3017 = vpop.f32.mrf.mxu0
        %3018 = vmatprep.mubr.bf16.mxu0 0
        %3019 = vmatmul.mubr.bf16.gmra.mxu0 %v2896
        %v3020 = vpop.f32.mrf.mxu0
        %v3021 = vadd.f32 0.0, %v3020
        %v3022 = vpop.f32.mrf.mxu0
        %v3023 = vpop.f32.mrf.mxu0
        %v3024 = vadd.f32 0.0, %v3023
        %v3025 = vpop.f32.mrf.mxu0
        %3026 = vdwg.mxu0
        %v3027 = vadd.f32 %v2885, %v2997
        %v3028 = vadd.f32 %v2886, %v3000
        %v3029 = vadd.f32 %v2887, %v3005
        %v3030 = vadd.f32 %v2888, %v3008
        %v3031 = vadd.f32 %v2889, %v3013
        %v3032 = vadd.f32 %v2890, %v3016
        %v3033 = vadd.f32 %v2891, %v3021
        %v3034 = vadd.f32 %v2892, %v3024
        %v3035 = vmul.bf16 %v2143, %v1631
        %v3036 = vmul.bf16 %v2144, %v1632
        %v3037 = vmul.bf16 %v2145, %v1633
        %v3038 = vmul.bf16 %v2142, %v1634
        %s3039 = scalar_lea.vmem [#allocation8], 448
        %v3040 = vld [vmem:[%s3039] sm:$0xf]
        %v3041 = vld [vmem:[%s3039 + $0x4] sm:$0xf]
        %v3042 = vld [vmem:[%s3039 + $0x8] sm:$0xf]
        %v3043 = vld [vmem:[%s3039 + $0xc] sm:$0xf]
        %v3044 = vld [vmem:[%s3039 + $0x10] sm:$0xf]
        %v3045 = vld [vmem:[%s3039 + $0x14] sm:$0xf]
        %v3046 = vld [vmem:[%s3039 + $0x18] sm:$0xf]
        %v3047 = vld [vmem:[%s3039 + $0x1c] sm:$0xf]
        %v3048 = vld [vmem:[%s3039 + $0x20] sm:$0xf]
        %v3049 = vld [vmem:[%s3039 + $0x24] sm:$0xf]
        %v3050 = vld [vmem:[%s3039 + $0x28] sm:$0xf]
        %v3051 = vld [vmem:[%s3039 + $0x2c] sm:$0xf]
        %v3052 = vld [vmem:[%s3039 + $0x30] sm:$0xf]
        %v3053 = vld [vmem:[%s3039 + $0x34] sm:$0xf]
        %v3054 = vld [vmem:[%s3039 + $0x38] sm:$0xf]
        %v3055 = vld [vmem:[%s3039 + $0x3c] sm:$0xf]
        %v3072 = vunpack.c.l.b16 %v3040
        %v3073 = vunpack.c.l.b16 %v3041
        %v3074 = vunpack.c.l.b16 %v3042
        %v3075 = vunpack.c.l.b16 %v3043
        %v3076 = vunpack.c.l.b16 %v3044
        %v3077 = vunpack.c.l.b16 %v3045
        %v3078 = vunpack.c.l.b16 %v3046
        %v3079 = vunpack.c.l.b16 %v3047
        %v3080 = vunpack.c.l.b16 %v3048
        %v3081 = vunpack.c.l.b16 %v3049
        %v3082 = vunpack.c.l.b16 %v3050
        %v3083 = vunpack.c.l.b16 %v3051
        %v3084 = vunpack.c.l.b16 %v3052
        %v3085 = vunpack.c.l.b16 %v3053
        %v3086 = vunpack.c.l.b16 %v3054
        %v3087 = vunpack.c.l.b16 %v3055
        %v3088 = vpack.c.b16 %v3073, %v3072
        %v3089 = vpack.c.b16 %v3075, %v3074
        %v3090 = vpack.c.b16 %v3077, %v3076
        %v3091 = vpack.c.b16 %v3079, %v3078
        %v3092 = vpack.c.b16 %v3081, %v3080
        %v3093 = vpack.c.b16 %v3083, %v3082
        %v3094 = vpack.c.b16 %v3085, %v3084
        %v3095 = vpack.c.b16 %v3087, %v3086
        %3104 = vmatprep.subr.bf16.mxu0 0
        %3105 = vmatpush1.bf16.msra.mxu0 %v3095
        %3106 = vmatprep.subr.bf16.mxu0 0
        %3107 = vmatpush1.bf16.msra.mxu0 %v3094
        %3108 = vmatprep.subr.bf16.mxu0 0
        %3109 = vmatpush1.bf16.msra.mxu0 %v3093
        %3110 = vmatprep.subr.bf16.mxu0 0
        %3111 = vmatpush1.bf16.msra.mxu0 %v3092
        %3112 = vmatprep.subr.bf16.mxu0 0
        %3113 = vmatpush1.bf16.msra.mxu0 %v3091
        %3114 = vmatprep.subr.bf16.mxu0 0
        %3115 = vmatpush1.bf16.msra.mxu0 %v3090
        %3116 = vmatprep.subr.bf16.mxu0 0
        %3117 = vmatpush1.bf16.msra.mxu0 %v3089
        %3118 = vmatprep.subr.bf16.mxu0 0
        %3119 = vmatpush1.bf16.msra.mxu0 %v3088
        %3120 = vmatprep.subr.bf16.mxu0 0
        %3121 = vmatpush2.bf16.msra.mxu0 0
        %3122 = vmatprep.subr.bf16.mxu0 0
        %3123 = vmatpush2.bf16.msra.mxu0 0
        %3124 = vmatprep.subr.bf16.mxu0 0
        %3125 = vmatpush2.bf16.msra.mxu0 0
        %3126 = vmatprep.subr.bf16.mxu0 0
        %3127 = vmatpush2.bf16.msra.mxu0 0
        %3128 = vmatprep.subr.bf16.mxu0 0
        %3129 = vmatpush2.bf16.msra.mxu0 0
        %3130 = vmatprep.subr.bf16.mxu0 0
        %3131 = vmatpush2.bf16.msra.mxu0 0
        %3132 = vmatprep.subr.bf16.mxu0 0
        %3133 = vmatpush2.bf16.msra.mxu0 0
        %3134 = vmatprep.subr.bf16.mxu0 0
        %3135 = vmatpush2.bf16.msra.mxu0 0
        %3136 = vmatprep.mubr.bf16.mxu0 0
        %3137 = vmatmul.mubr.bf16.gmra.mxu0 %v3035
        %v3138 = vpop.f32.mrf.mxu0
        %v3139 = vadd.f32 0.0, %v3138
        %v3140 = vpop.f32.mrf.mxu0
        %v3141 = vpop.f32.mrf.mxu0
        %v3142 = vadd.f32 0.0, %v3141
        %v3143 = vpop.f32.mrf.mxu0
        %3144 = vmatprep.mubr.bf16.mxu0 0
        %3145 = vmatmul.mubr.bf16.gmra.mxu0 %v3036
        %v3146 = vpop.f32.mrf.mxu0
        %v3147 = vadd.f32 0.0, %v3146
        %v3148 = vpop.f32.mrf.mxu0
        %v3149 = vpop.f32.mrf.mxu0
        %v3150 = vadd.f32 0.0, %v3149
        %v3151 = vpop.f32.mrf.mxu0
        %3152 = vmatprep.mubr.bf16.mxu0 0
        %3153 = vmatmul.mubr.bf16.gmra.mxu0 %v3037
        %v3154 = vpop.f32.mrf.mxu0
        %v3155 = vadd.f32 0.0, %v3154
        %v3156 = vpop.f32.mrf.mxu0
        %v3157 = vpop.f32.mrf.mxu0
        %v3158 = vadd.f32 0.0, %v3157
        %v3159 = vpop.f32.mrf.mxu0
        %3160 = vmatprep.mubr.bf16.mxu0 0
        %3161 = vmatmul.mubr.bf16.gmra.mxu0 %v3038
        %v3162 = vpop.f32.mrf.mxu0
        %v3163 = vadd.f32 0.0, %v3162
        %v3164 = vpop.f32.mrf.mxu0
        %v3165 = vpop.f32.mrf.mxu0
        %v3166 = vadd.f32 0.0, %v3165
        %v3167 = vpop.f32.mrf.mxu0
        %3168 = vdwg.mxu0
        %v3169 = vadd.f32 %v3027, %v3139
        %v3170 = vadd.f32 %v3028, %v3142
        %v3171 = vadd.f32 %v3029, %v3147
        %v3172 = vadd.f32 %v3030, %v3150
        %v3173 = vadd.f32 %v3031, %v3155
        %v3174 = vadd.f32 %v3032, %v3158
        %v3175 = vadd.f32 %v3033, %v3163
        %v3176 = vadd.f32 %v3034, %v3166
        %v3177 = vmul.bf16 %v2314, %v1806
        %v3178 = vmul.bf16 %v2315, %v1807
        %v3179 = vmul.bf16 %v2316, %v1808
        %v3180 = vmul.bf16 %v2313, %v1809
        %s3181 = scalar_lea.vmem [#allocation8], 512
        %v3182 = vld [vmem:[%s3181] sm:$0xf]
        %v3183 = vld [vmem:[%s3181 + $0x4] sm:$0xf]
        %v3184 = vld [vmem:[%s3181 + $0x8] sm:$0xf]
        %v3185 = vld [vmem:[%s3181 + $0xc] sm:$0xf]
        %v3186 = vld [vmem:[%s3181 + $0x10] sm:$0xf]
        %v3187 = vld [vmem:[%s3181 + $0x14] sm:$0xf]
        %v3188 = vld [vmem:[%s3181 + $0x18] sm:$0xf]
        %v3189 = vld [vmem:[%s3181 + $0x1c] sm:$0xf]
        %v3190 = vld [vmem:[%s3181 + $0x20] sm:$0xf]
        %v3191 = vld [vmem:[%s3181 + $0x24] sm:$0xf]
        %v3192 = vld [vmem:[%s3181 + $0x28] sm:$0xf]
        %v3193 = vld [vmem:[%s3181 + $0x2c] sm:$0xf]
        %v3194 = vld [vmem:[%s3181 + $0x30] sm:$0xf]
        %v3195 = vld [vmem:[%s3181 + $0x34] sm:$0xf]
        %v3196 = vld [vmem:[%s3181 + $0x38] sm:$0xf]
        %v3197 = vld [vmem:[%s3181 + $0x3c] sm:$0xf]
        %v3214 = vunpack.c.l.b16 %v3182
        %v3215 = vunpack.c.l.b16 %v3183
        %v3216 = vunpack.c.l.b16 %v3184
        %v3217 = vunpack.c.l.b16 %v3185
        %v3218 = vunpack.c.l.b16 %v3186
        %v3219 = vunpack.c.l.b16 %v3187
        %v3220 = vunpack.c.l.b16 %v3188
        %v3221 = vunpack.c.l.b16 %v3189
        %v3222 = vunpack.c.l.b16 %v3190
        %v3223 = vunpack.c.l.b16 %v3191
        %v3224 = vunpack.c.l.b16 %v3192
        %v3225 = vunpack.c.l.b16 %v3193
        %v3226 = vunpack.c.l.b16 %v3194
        %v3227 = vunpack.c.l.b16 %v3195
        %v3228 = vunpack.c.l.b16 %v3196
        %v3229 = vunpack.c.l.b16 %v3197
        %v3230 = vpack.c.b16 %v3215, %v3214
        %v3231 = vpack.c.b16 %v3217, %v3216
        %v3232 = vpack.c.b16 %v3219, %v3218
        %v3233 = vpack.c.b16 %v3221, %v3220
        %v3234 = vpack.c.b16 %v3223, %v3222
        %v3235 = vpack.c.b16 %v3225, %v3224
        %v3236 = vpack.c.b16 %v3227, %v3226
        %v3237 = vpack.c.b16 %v3229, %v3228
        %3246 = vmatprep.subr.bf16.mxu0 0
        %3247 = vmatpush1.bf16.msra.mxu0 %v3237
        %3248 = vmatprep.subr.bf16.mxu0 0
        %3249 = vmatpush1.bf16.msra.mxu0 %v3236
        %3250 = vmatprep.subr.bf16.mxu0 0
        %3251 = vmatpush1.bf16.msra.mxu0 %v3235
        %3252 = vmatprep.subr.bf16.mxu0 0
        %3253 = vmatpush1.bf16.msra.mxu0 %v3234
        %3254 = vmatprep.subr.bf16.mxu0 0
        %3255 = vmatpush1.bf16.msra.mxu0 %v3233
        %3256 = vmatprep.subr.bf16.mxu0 0
        %3257 = vmatpush1.bf16.msra.mxu0 %v3232
        %3258 = vmatprep.subr.bf16.mxu0 0
        %3259 = vmatpush1.bf16.msra.mxu0 %v3231
        %3260 = vmatprep.subr.bf16.mxu0 0
        %3261 = vmatpush1.bf16.msra.mxu0 %v3230
        %3262 = vmatprep.subr.bf16.mxu0 0
        %3263 = vmatpush2.bf16.msra.mxu0 0
        %3264 = vmatprep.subr.bf16.mxu0 0
        %3265 = vmatpush2.bf16.msra.mxu0 0
        %3266 = vmatprep.subr.bf16.mxu0 0
        %3267 = vmatpush2.bf16.msra.mxu0 0
        %3268 = vmatprep.subr.bf16.mxu0 0
        %3269 = vmatpush2.bf16.msra.mxu0 0
        %3270 = vmatprep.subr.bf16.mxu0 0
        %3271 = vmatpush2.bf16.msra.mxu0 0
        %3272 = vmatprep.subr.bf16.mxu0 0
        %3273 = vmatpush2.bf16.msra.mxu0 0
        %3274 = vmatprep.subr.bf16.mxu0 0
        %3275 = vmatpush2.bf16.msra.mxu0 0
        %3276 = vmatprep.subr.bf16.mxu0 0
        %3277 = vmatpush2.bf16.msra.mxu0 0
        %3278 = vmatprep.mubr.bf16.mxu0 0
        %3279 = vmatmul.mubr.bf16.gmra.mxu0 %v3177
        %v3280 = vpop.f32.mrf.mxu0
        %v3281 = vadd.f32 0.0, %v3280
        %v3282 = vpop.f32.mrf.mxu0
        %v3283 = vpop.f32.mrf.mxu0
        %v3284 = vadd.f32 0.0, %v3283
        %v3285 = vpop.f32.mrf.mxu0
        %3286 = vmatprep.mubr.bf16.mxu0 0
        %3287 = vmatmul.mubr.bf16.gmra.mxu0 %v3178
        %v3288 = vpop.f32.mrf.mxu0
        %v3289 = vadd.f32 0.0, %v3288
        %v3290 = vpop.f32.mrf.mxu0
        %v3291 = vpop.f32.mrf.mxu0
        %v3292 = vadd.f32 0.0, %v3291
        %v3293 = vpop.f32.mrf.mxu0
        %3294 = vmatprep.mubr.bf16.mxu0 0
        %3295 = vmatmul.mubr.bf16.gmra.mxu0 %v3179
        %v3296 = vpop.f32.mrf.mxu0
        %v3297 = vadd.f32 0.0, %v3296
        %v3298 = vpop.f32.mrf.mxu0
        %v3299 = vpop.f32.mrf.mxu0
        %v3300 = vadd.f32 0.0, %v3299
        %v3301 = vpop.f32.mrf.mxu0
        %3302 = vmatprep.mubr.bf16.mxu0 0
        %3303 = vmatmul.mubr.bf16.gmra.mxu0 %v3180
        %v3304 = vpop.f32.mrf.mxu0
        %v3305 = vadd.f32 0.0, %v3304
        %v3306 = vpop.f32.mrf.mxu0
        %v3307 = vpop.f32.mrf.mxu0
        %v3308 = vadd.f32 0.0, %v3307
        %v3309 = vpop.f32.mrf.mxu0
        %3310 = vdwg.mxu0
        %v3311 = vadd.f32 %v3169, %v3281
        %v3312 = vadd.f32 %v3170, %v3284
        %v3313 = vadd.f32 %v3171, %v3289
        %v3314 = vadd.f32 %v3172, %v3292
        %v3315 = vadd.f32 %v3173, %v3297
        %v3316 = vadd.f32 %v3174, %v3300
        %v3317 = vadd.f32 %v3175, %v3305
        %v3318 = vadd.f32 %v3176, %v3308
        %v3319 = vmax.f32 %v3311, 0.0
        %v3320 = vmax.f32 %v3312, 0.0
        %v3321 = vmax.f32 %v3313, 0.0
        %v3322 = vmax.f32 %v3314, 0.0
        %v3323 = vmax.f32 %v3315, 0.0
        %v3324 = vmax.f32 %v3316, 0.0
        %v3325 = vmax.f32 %v3317, 0.0
        %v3326 = vmax.f32 %v3318, 0.0
        %v3329 = vrot.slane %v3325, 7
        %v3330 = vrot.slane %v3326, 7
        %v3331 = vsel %vm354, %v3329, %v3330
        %v3340 = vrot.slane %v3319, 7
        %v3341 = vrot.slane %v3320, 7
        %v3342 = vsel %vm354, %v3340, %v3341
        %v3343 = vrot.slane %v3321, 7
        %v3344 = vsel %vm354, %v3341, %v3343
        %v3345 = vrot.slane %v3322, 7
        %v3346 = vsel %vm354, %v3343, %v3345
        %v3347 = vrot.slane %v3323, 7
        %v3348 = vsel %vm354, %v3345, %v3347
        %v3349 = vrot.slane %v3324, 7
        %v3350 = vsel %vm354, %v3347, %v3349
        %v3351 = vsel %vm354, %v3349, %v3329
        %v3359 = vsel %vm354, %v3330, %v3340
        %v3360 = vpack.c.bf16 %v3359, %v3331
        %v3361 = vpack.c.bf16 %v3344, %v3342
        %v3362 = vpack.c.bf16 %v3348, %v3346
        %v3363 = vpack.c.bf16 %v3351, %v3350
        %v3364 = vmul.bf16 %v3360, %v414
        %v3365 = vmul.bf16 %v3361, %v415
        %v3366 = vmul.bf16 %v3362, %v416
        %v3367 = vmul.bf16 %v3363, %v417
        %v3368 = vld [vmem:[#allocation10] sm:$0xf]
        %v3369 = vld [vmem:[#allocation10 + $0x4] sm:$0xf]
        %v3370 = vld [vmem:[#allocation10 + $0x8] sm:$0xf]
        %v3371 = vld [vmem:[#allocation10 + $0xc] sm:$0xf]
        %v3372 = vld [vmem:[#allocation10 + $0x10] sm:$0xf]
        %v3373 = vld [vmem:[#allocation10 + $0x14] sm:$0xf]
        %v3374 = vld [vmem:[#allocation10 + $0x18] sm:$0xf]
        %v3375 = vld [vmem:[#allocation10 + $0x1c] sm:$0xf]
        %v3376 = vld [vmem:[#allocation10 + $0x20] sm:$0xf]
        %v3377 = vld [vmem:[#allocation10 + $0x24] sm:$0xf]
        %v3378 = vld [vmem:[#allocation10 + $0x28] sm:$0xf]
        %v3379 = vld [vmem:[#allocation10 + $0x2c] sm:$0xf]
        %v3380 = vld [vmem:[#allocation10 + $0x30] sm:$0xf]
        %v3381 = vld [vmem:[#allocation10 + $0x34] sm:$0xf]
        %v3382 = vld [vmem:[#allocation10 + $0x38] sm:$0xf]
        %v3383 = vld [vmem:[#allocation10 + $0x3c] sm:$0xf]
        %v3384 = vpack.c.bf16 %v3319, %v3326
        %v3385 = vpack.c.bf16 %v3321, %v3320
        %v3386 = vpack.c.bf16 %v3323, %v3322
        %v3387 = vpack.c.bf16 %v3325, %v3324
        %v3388 = vmul.bf16 %v3384, %v471
        %v3389 = vmul.bf16 %v3385, %v472
        %v3390 = vmul.bf16 %v3386, %v473
        %v3391 = vmul.bf16 %v3387, %v474
        %s3392 = scalar_lea.vmem [#allocation10], 64
        %v3393 = vld [vmem:[%s3392] sm:$0xf]
        %v3394 = vld [vmem:[%s3392 + $0x4] sm:$0xf]
        %v3395 = vld [vmem:[%s3392 + $0x8] sm:$0xf]
        %v3396 = vld [vmem:[%s3392 + $0xc] sm:$0xf]
        %v3397 = vld [vmem:[%s3392 + $0x10] sm:$0xf]
        %v3398 = vld [vmem:[%s3392 + $0x14] sm:$0xf]
        %v3399 = vld [vmem:[%s3392 + $0x18] sm:$0xf]
        %v3400 = vld [vmem:[%s3392 + $0x1c] sm:$0xf]
        %v3401 = vld [vmem:[%s3392 + $0x20] sm:$0xf]
        %v3402 = vld [vmem:[%s3392 + $0x24] sm:$0xf]
        %v3403 = vld [vmem:[%s3392 + $0x28] sm:$0xf]
        %v3404 = vld [vmem:[%s3392 + $0x2c] sm:$0xf]
        %v3405 = vld [vmem:[%s3392 + $0x30] sm:$0xf]
        %v3406 = vld [vmem:[%s3392 + $0x34] sm:$0xf]
        %v3407 = vld [vmem:[%s3392 + $0x38] sm:$0xf]
        %v3408 = vld [vmem:[%s3392 + $0x3c] sm:$0xf]
        %v3425 = vunpack.c.l.b16 %v3393
        %v3426 = vunpack.c.l.b16 %v3394
        %v3427 = vunpack.c.l.b16 %v3395
        %v3428 = vunpack.c.l.b16 %v3396
        %v3429 = vunpack.c.l.b16 %v3397
        %v3430 = vunpack.c.l.b16 %v3398
        %v3431 = vunpack.c.l.b16 %v3399
        %v3432 = vunpack.c.l.b16 %v3400
        %v3433 = vunpack.c.l.b16 %v3401
        %v3434 = vunpack.c.l.b16 %v3402
        %v3435 = vunpack.c.l.b16 %v3403
        %v3436 = vunpack.c.l.b16 %v3404
        %v3437 = vunpack.c.l.b16 %v3405
        %v3438 = vunpack.c.l.b16 %v3406
        %v3439 = vunpack.c.l.b16 %v3407
        %v3440 = vunpack.c.l.b16 %v3408
        %v3441 = vpack.c.b16 %v3426, %v3425
        %v3442 = vpack.c.b16 %v3428, %v3427
        %v3443 = vpack.c.b16 %v3430, %v3429
        %v3444 = vpack.c.b16 %v3432, %v3431
        %v3445 = vpack.c.b16 %v3434, %v3433
        %v3446 = vpack.c.b16 %v3436, %v3435
        %v3447 = vpack.c.b16 %v3438, %v3437
        %v3448 = vpack.c.b16 %v3440, %v3439
        %3457 = vmatprep.subr.bf16.mxu0 0
        %3458 = vmatpush1.bf16.msra.mxu0 %v3448
        %3459 = vmatprep.subr.bf16.mxu0 0
        %3460 = vmatpush1.bf16.msra.mxu0 %v3447
        %3461 = vmatprep.subr.bf16.mxu0 0
        %3462 = vmatpush1.bf16.msra.mxu0 %v3446
        %3463 = vmatprep.subr.bf16.mxu0 0
        %3464 = vmatpush1.bf16.msra.mxu0 %v3445
        %3465 = vmatprep.subr.bf16.mxu0 0
        %3466 = vmatpush1.bf16.msra.mxu0 %v3444
        %3467 = vmatprep.subr.bf16.mxu0 0
        %3468 = vmatpush1.bf16.msra.mxu0 %v3443
        %3469 = vmatprep.subr.bf16.mxu0 0
        %3470 = vmatpush1.bf16.msra.mxu0 %v3442
        %3471 = vmatprep.subr.bf16.mxu0 0
        %3472 = vmatpush1.bf16.msra.mxu0 %v3441
        %3473 = vmatprep.subr.bf16.mxu0 0
        %3474 = vmatpush2.bf16.msra.mxu0 0
        %3475 = vmatprep.subr.bf16.mxu0 0
        %3476 = vmatpush2.bf16.msra.mxu0 0
        %3477 = vmatprep.subr.bf16.mxu0 0
        %3478 = vmatpush2.bf16.msra.mxu0 0
        %3479 = vmatprep.subr.bf16.mxu0 0
        %3480 = vmatpush2.bf16.msra.mxu0 0
        %3481 = vmatprep.subr.bf16.mxu0 0
        %3482 = vmatpush2.bf16.msra.mxu0 0
        %3483 = vmatprep.subr.bf16.mxu0 0
        %3484 = vmatpush2.bf16.msra.mxu0 0
        %3485 = vmatprep.subr.bf16.mxu0 0
        %3486 = vmatpush2.bf16.msra.mxu0 0
        %3487 = vmatprep.subr.bf16.mxu0 0
        %3488 = vmatpush2.bf16.msra.mxu0 0
        %3489 = vmatprep.mubr.bf16.mxu0 0
        %3490 = vmatmul.mubr.bf16.gmra.mxu0 %v3388
        %v3491 = vpop.f32.mrf.mxu0
        %v3492 = vadd.f32 0.0, %v3491
        %v3493 = vpop.f32.mrf.mxu0
        %v3494 = vpop.f32.mrf.mxu0
        %v3495 = vadd.f32 0.0, %v3494
        %v3496 = vpop.f32.mrf.mxu0
        %3497 = vmatprep.mubr.bf16.mxu0 0
        %3498 = vmatmul.mubr.bf16.gmra.mxu0 %v3389
        %v3499 = vpop.f32.mrf.mxu0
        %v3500 = vadd.f32 0.0, %v3499
        %v3501 = vpop.f32.mrf.mxu0
        %v3502 = vpop.f32.mrf.mxu0
        %v3503 = vadd.f32 0.0, %v3502
        %v3504 = vpop.f32.mrf.mxu0
        %3505 = vmatprep.mubr.bf16.mxu0 0
        %3506 = vmatmul.mubr.bf16.gmra.mxu0 %v3390
        %v3507 = vpop.f32.mrf.mxu0
        %v3508 = vadd.f32 0.0, %v3507
        %v3509 = vpop.f32.mrf.mxu0
        %v3510 = vpop.f32.mrf.mxu0
        %v3511 = vadd.f32 0.0, %v3510
        %v3512 = vpop.f32.mrf.mxu0
        %3513 = vmatprep.mubr.bf16.mxu0 0
        %3514 = vmatmul.mubr.bf16.gmra.mxu0 %v3391
        %v3515 = vpop.f32.mrf.mxu0
        %v3516 = vadd.f32 0.0, %v3515
        %v3517 = vpop.f32.mrf.mxu0
        %v3518 = vpop.f32.mrf.mxu0
        %v3519 = vadd.f32 0.0, %v3518
        %v3520 = vpop.f32.mrf.mxu0
        %3521 = vdwg.mxu0
        %v3538 = vunpack.c.l.b16 %v3368
        %v3539 = vunpack.c.l.b16 %v3369
        %v3540 = vunpack.c.l.b16 %v3370
        %v3541 = vunpack.c.l.b16 %v3371
        %v3542 = vunpack.c.l.b16 %v3372
        %v3543 = vunpack.c.l.b16 %v3373
        %v3544 = vunpack.c.l.b16 %v3374
        %v3545 = vunpack.c.l.b16 %v3375
        %v3546 = vunpack.c.l.b16 %v3376
        %v3547 = vunpack.c.l.b16 %v3377
        %v3548 = vunpack.c.l.b16 %v3378
        %v3549 = vunpack.c.l.b16 %v3379
        %v3550 = vunpack.c.l.b16 %v3380
        %v3551 = vunpack.c.l.b16 %v3381
        %v3552 = vunpack.c.l.b16 %v3382
        %v3553 = vunpack.c.l.b16 %v3383
        %v3554 = vpack.c.b16 %v3539, %v3538
        %v3555 = vpack.c.b16 %v3541, %v3540
        %v3556 = vpack.c.b16 %v3543, %v3542
        %v3557 = vpack.c.b16 %v3545, %v3544
        %v3558 = vpack.c.b16 %v3547, %v3546
        %v3559 = vpack.c.b16 %v3549, %v3548
        %v3560 = vpack.c.b16 %v3551, %v3550
        %v3561 = vpack.c.b16 %v3553, %v3552
        %3570 = vmatprep.subr.bf16.mxu0 0
        %3571 = vmatpush1.bf16.msra.mxu0 %v3561
        %3572 = vmatprep.subr.bf16.mxu0 0
        %3573 = vmatpush1.bf16.msra.mxu0 %v3560
        %3574 = vmatprep.subr.bf16.mxu0 0
        %3575 = vmatpush1.bf16.msra.mxu0 %v3559
        %3576 = vmatprep.subr.bf16.mxu0 0
        %3577 = vmatpush1.bf16.msra.mxu0 %v3558
        %3578 = vmatprep.subr.bf16.mxu0 0
        %3579 = vmatpush1.bf16.msra.mxu0 %v3557
        %3580 = vmatprep.subr.bf16.mxu0 0
        %3581 = vmatpush1.bf16.msra.mxu0 %v3556
        %3582 = vmatprep.subr.bf16.mxu0 0
        %3583 = vmatpush1.bf16.msra.mxu0 %v3555
        %3584 = vmatprep.subr.bf16.mxu0 0
        %3585 = vmatpush1.bf16.msra.mxu0 %v3554
        %3586 = vmatprep.subr.bf16.mxu0 0
        %3587 = vmatpush2.bf16.msra.mxu0 0
        %3588 = vmatprep.subr.bf16.mxu0 0
        %3589 = vmatpush2.bf16.msra.mxu0 0
        %3590 = vmatprep.subr.bf16.mxu0 0
        %3591 = vmatpush2.bf16.msra.mxu0 0
        %3592 = vmatprep.subr.bf16.mxu0 0
        %3593 = vmatpush2.bf16.msra.mxu0 0
        %3594 = vmatprep.subr.bf16.mxu0 0
        %3595 = vmatpush2.bf16.msra.mxu0 0
        %3596 = vmatprep.subr.bf16.mxu0 0
        %3597 = vmatpush2.bf16.msra.mxu0 0
        %3598 = vmatprep.subr.bf16.mxu0 0
        %3599 = vmatpush2.bf16.msra.mxu0 0
        %3600 = vmatprep.subr.bf16.mxu0 0
        %3601 = vmatpush2.bf16.msra.mxu0 0
        %3602 = vmatprep.mubr.bf16.mxu0 0
        %3603 = vmatmul.mubr.bf16.gmra.mxu0 %v3364
        %v3604 = vpop.f32.mrf.mxu0
        %v3605 = vadd.f32 %v3492, %v3604
        %v3606 = vpop.f32.mrf.mxu0
        %v3607 = vpop.f32.mrf.mxu0
        %v3608 = vadd.f32 %v3495, %v3607
        %v3609 = vpop.f32.mrf.mxu0
        %3610 = vmatprep.mubr.bf16.mxu0 0
        %3611 = vmatmul.mubr.bf16.gmra.mxu0 %v3365
        %v3612 = vpop.f32.mrf.mxu0
        %v3613 = vadd.f32 %v3500, %v3612
        %v3614 = vpop.f32.mrf.mxu0
        %v3615 = vpop.f32.mrf.mxu0
        %v3616 = vadd.f32 %v3503, %v3615
        %v3617 = vpop.f32.mrf.mxu0
        %3618 = vmatprep.mubr.bf16.mxu0 0
        %3619 = vmatmul.mubr.bf16.gmra.mxu0 %v3366
        %v3620 = vpop.f32.mrf.mxu0
        %v3621 = vadd.f32 %v3508, %v3620
        %v3622 = vpop.f32.mrf.mxu0
        %v3623 = vpop.f32.mrf.mxu0
        %v3624 = vadd.f32 %v3511, %v3623
        %v3625 = vpop.f32.mrf.mxu0
        %3626 = vmatprep.mubr.bf16.mxu0 0
        %3627 = vmatmul.mubr.bf16.gmra.mxu0 %v3367
        %v3628 = vpop.f32.mrf.mxu0
        %v3629 = vadd.f32 %v3516, %v3628
        %v3630 = vpop.f32.mrf.mxu0
        %v3631 = vpop.f32.mrf.mxu0
        %v3632 = vadd.f32 %v3519, %v3631
        %v3633 = vpop.f32.mrf.mxu0
        %3634 = vdwg.mxu0
        %v3635 = vrot.slane %v3326, 1
        %v3637 = vrot.slane %v3319, 1
        %v3638 = vrot.slane %v3320, 1
        %v3639 = vsel %vm728, %v3637, %v3638
        %v3640 = vrot.slane %v3321, 1
        %v3641 = vsel %vm728, %v3638, %v3640
        %v3642 = vrot.slane %v3322, 1
        %v3643 = vsel %vm728, %v3640, %v3642
        %v3644 = vrot.slane %v3323, 1
        %v3645 = vsel %vm728, %v3642, %v3644
        %v3646 = vrot.slane %v3324, 1
        %v3647 = vsel %vm728, %v3644, %v3646
        %v3648 = vrot.slane %v3325, 1
        %v3649 = vsel %vm728, %v3646, %v3648
        %v3650 = vsel %vm728, %v3648, %v3635
        %v3659 = vsel %vm728, %v3635, %v3637
        %v3660 = vpack.c.bf16 %v3639, %v3659
        %v3661 = vpack.c.bf16 %v3643, %v3641
        %v3662 = vpack.c.bf16 %v3647, %v3645
        %v3663 = vpack.c.bf16 %v3650, %v3649
        %v3664 = vmul.bf16 %v3660, %v781
        %v3665 = vmul.bf16 %v3661, %v782
        %v3666 = vmul.bf16 %v3662, %v783
        %v3667 = vmul.bf16 %v3663, %v784
        %s3668 = scalar_lea.vmem [#allocation10], 128
        %v3669 = vld [vmem:[%s3668] sm:$0xf]
        %v3670 = vld [vmem:[%s3668 + $0x4] sm:$0xf]
        %v3671 = vld [vmem:[%s3668 + $0x8] sm:$0xf]
        %v3672 = vld [vmem:[%s3668 + $0xc] sm:$0xf]
        %v3673 = vld [vmem:[%s3668 + $0x10] sm:$0xf]
        %v3674 = vld [vmem:[%s3668 + $0x14] sm:$0xf]
        %v3675 = vld [vmem:[%s3668 + $0x18] sm:$0xf]
        %v3676 = vld [vmem:[%s3668 + $0x1c] sm:$0xf]
        %v3677 = vld [vmem:[%s3668 + $0x20] sm:$0xf]
        %v3678 = vld [vmem:[%s3668 + $0x24] sm:$0xf]
        %v3679 = vld [vmem:[%s3668 + $0x28] sm:$0xf]
        %v3680 = vld [vmem:[%s3668 + $0x2c] sm:$0xf]
        %v3681 = vld [vmem:[%s3668 + $0x30] sm:$0xf]
        %v3682 = vld [vmem:[%s3668 + $0x34] sm:$0xf]
        %v3683 = vld [vmem:[%s3668 + $0x38] sm:$0xf]
        %v3684 = vld [vmem:[%s3668 + $0x3c] sm:$0xf]
        %v3701 = vunpack.c.l.b16 %v3669
        %v3702 = vunpack.c.l.b16 %v3670
        %v3703 = vunpack.c.l.b16 %v3671
        %v3704 = vunpack.c.l.b16 %v3672
        %v3705 = vunpack.c.l.b16 %v3673
        %v3706 = vunpack.c.l.b16 %v3674
        %v3707 = vunpack.c.l.b16 %v3675
        %v3708 = vunpack.c.l.b16 %v3676
        %v3709 = vunpack.c.l.b16 %v3677
        %v3710 = vunpack.c.l.b16 %v3678
        %v3711 = vunpack.c.l.b16 %v3679
        %v3712 = vunpack.c.l.b16 %v3680
        %v3713 = vunpack.c.l.b16 %v3681
        %v3714 = vunpack.c.l.b16 %v3682
        %v3715 = vunpack.c.l.b16 %v3683
        %v3716 = vunpack.c.l.b16 %v3684
        %v3717 = vpack.c.b16 %v3702, %v3701
        %v3718 = vpack.c.b16 %v3704, %v3703
        %v3719 = vpack.c.b16 %v3706, %v3705
        %v3720 = vpack.c.b16 %v3708, %v3707
        %v3721 = vpack.c.b16 %v3710, %v3709
        %v3722 = vpack.c.b16 %v3712, %v3711
        %v3723 = vpack.c.b16 %v3714, %v3713
        %v3724 = vpack.c.b16 %v3716, %v3715
        %3733 = vmatprep.subr.bf16.mxu0 0
        %3734 = vmatpush1.bf16.msra.mxu0 %v3724
        %3735 = vmatprep.subr.bf16.mxu0 0
        %3736 = vmatpush1.bf16.msra.mxu0 %v3723
        %3737 = vmatprep.subr.bf16.mxu0 0
        %3738 = vmatpush1.bf16.msra.mxu0 %v3722
        %3739 = vmatprep.subr.bf16.mxu0 0
        %3740 = vmatpush1.bf16.msra.mxu0 %v3721
        %3741 = vmatprep.subr.bf16.mxu0 0
        %3742 = vmatpush1.bf16.msra.mxu0 %v3720
        %3743 = vmatprep.subr.bf16.mxu0 0
        %3744 = vmatpush1.bf16.msra.mxu0 %v3719
        %3745 = vmatprep.subr.bf16.mxu0 0
        %3746 = vmatpush1.bf16.msra.mxu0 %v3718
        %3747 = vmatprep.subr.bf16.mxu0 0
        %3748 = vmatpush1.bf16.msra.mxu0 %v3717
        %3749 = vmatprep.subr.bf16.mxu0 0
        %3750 = vmatpush2.bf16.msra.mxu0 0
        %3751 = vmatprep.subr.bf16.mxu0 0
        %3752 = vmatpush2.bf16.msra.mxu0 0
        %3753 = vmatprep.subr.bf16.mxu0 0
        %3754 = vmatpush2.bf16.msra.mxu0 0
        %3755 = vmatprep.subr.bf16.mxu0 0
        %3756 = vmatpush2.bf16.msra.mxu0 0
        %3757 = vmatprep.subr.bf16.mxu0 0
        %3758 = vmatpush2.bf16.msra.mxu0 0
        %3759 = vmatprep.subr.bf16.mxu0 0
        %3760 = vmatpush2.bf16.msra.mxu0 0
        %3761 = vmatprep.subr.bf16.mxu0 0
        %3762 = vmatpush2.bf16.msra.mxu0 0
        %3763 = vmatprep.subr.bf16.mxu0 0
        %3764 = vmatpush2.bf16.msra.mxu0 0
        %3765 = vmatprep.mubr.bf16.mxu0 0
        %3766 = vmatmul.mubr.bf16.gmra.mxu0 %v3664
        %v3767 = vpop.f32.mrf.mxu0
        %v3768 = vadd.f32 0.0, %v3767
        %v3769 = vpop.f32.mrf.mxu0
        %v3770 = vpop.f32.mrf.mxu0
        %v3771 = vadd.f32 0.0, %v3770
        %v3772 = vpop.f32.mrf.mxu0
        %3773 = vmatprep.mubr.bf16.mxu0 0
        %3774 = vmatmul.mubr.bf16.gmra.mxu0 %v3665
        %v3775 = vpop.f32.mrf.mxu0
        %v3776 = vadd.f32 0.0, %v3775
        %v3777 = vpop.f32.mrf.mxu0
        %v3778 = vpop.f32.mrf.mxu0
        %v3779 = vadd.f32 0.0, %v3778
        %v3780 = vpop.f32.mrf.mxu0
        %3781 = vmatprep.mubr.bf16.mxu0 0
        %3782 = vmatmul.mubr.bf16.gmra.mxu0 %v3666
        %v3783 = vpop.f32.mrf.mxu0
        %v3784 = vadd.f32 0.0, %v3783
        %v3785 = vpop.f32.mrf.mxu0
        %v3786 = vpop.f32.mrf.mxu0
        %v3787 = vadd.f32 0.0, %v3786
        %v3788 = vpop.f32.mrf.mxu0
        %3789 = vmatprep.mubr.bf16.mxu0 0
        %3790 = vmatmul.mubr.bf16.gmra.mxu0 %v3667
        %v3791 = vpop.f32.mrf.mxu0
        %v3792 = vadd.f32 0.0, %v3791
        %v3793 = vpop.f32.mrf.mxu0
        %v3794 = vpop.f32.mrf.mxu0
        %v3795 = vadd.f32 0.0, %v3794
        %v3796 = vpop.f32.mrf.mxu0
        %3797 = vdwg.mxu0
        %v3798 = vadd.f32 %v3605, %v3768
        %v3799 = vadd.f32 %v3608, %v3771
        %v3800 = vadd.f32 %v3613, %v3776
        %v3801 = vadd.f32 %v3616, %v3779
        %v3802 = vadd.f32 %v3621, %v3784
        %v3803 = vadd.f32 %v3624, %v3787
        %v3804 = vadd.f32 %v3629, %v3792
        %v3805 = vadd.f32 %v3632, %v3795
        %v3806 = vpack.c.bf16 %v3342, %v3359
        %v3807 = vpack.c.bf16 %v3346, %v3344
        %v3808 = vpack.c.bf16 %v3350, %v3348
        %v3809 = vpack.c.bf16 %v3331, %v3351
        %v3810 = vmul.bf16 %v3806, %v960
        %v3811 = vmul.bf16 %v3807, %v961
        %v3812 = vmul.bf16 %v3808, %v962
        %v3813 = vmul.bf16 %v3809, %v963
        %s3814 = scalar_lea.vmem [#allocation10], 192
        %v3815 = vld [vmem:[%s3814] sm:$0xf]
        %v3816 = vld [vmem:[%s3814 + $0x4] sm:$0xf]
        %v3817 = vld [vmem:[%s3814 + $0x8] sm:$0xf]
        %v3818 = vld [vmem:[%s3814 + $0xc] sm:$0xf]
        %v3819 = vld [vmem:[%s3814 + $0x10] sm:$0xf]
        %v3820 = vld [vmem:[%s3814 + $0x14] sm:$0xf]
        %v3821 = vld [vmem:[%s3814 + $0x18] sm:$0xf]
        %v3822 = vld [vmem:[%s3814 + $0x1c] sm:$0xf]
        %v3823 = vld [vmem:[%s3814 + $0x20] sm:$0xf]
        %v3824 = vld [vmem:[%s3814 + $0x24] sm:$0xf]
        %v3825 = vld [vmem:[%s3814 + $0x28] sm:$0xf]
        %v3826 = vld [vmem:[%s3814 + $0x2c] sm:$0xf]
        %v3827 = vld [vmem:[%s3814 + $0x30] sm:$0xf]
        %v3828 = vld [vmem:[%s3814 + $0x34] sm:$0xf]
        %v3829 = vld [vmem:[%s3814 + $0x38] sm:$0xf]
        %v3830 = vld [vmem:[%s3814 + $0x3c] sm:$0xf]
        %v3847 = vunpack.c.l.b16 %v3815
        %v3848 = vunpack.c.l.b16 %v3816
        %v3849 = vunpack.c.l.b16 %v3817
        %v3850 = vunpack.c.l.b16 %v3818
        %v3851 = vunpack.c.l.b16 %v3819
        %v3852 = vunpack.c.l.b16 %v3820
        %v3853 = vunpack.c.l.b16 %v3821
        %v3854 = vunpack.c.l.b16 %v3822
        %v3855 = vunpack.c.l.b16 %v3823
        %v3856 = vunpack.c.l.b16 %v3824
        %v3857 = vunpack.c.l.b16 %v3825
        %v3858 = vunpack.c.l.b16 %v3826
        %v3859 = vunpack.c.l.b16 %v3827
        %v3860 = vunpack.c.l.b16 %v3828
        %v3861 = vunpack.c.l.b16 %v3829
        %v3862 = vunpack.c.l.b16 %v3830
        %v3863 = vpack.c.b16 %v3848, %v3847
        %v3864 = vpack.c.b16 %v3850, %v3849
        %v3865 = vpack.c.b16 %v3852, %v3851
        %v3866 = vpack.c.b16 %v3854, %v3853
        %v3867 = vpack.c.b16 %v3856, %v3855
        %v3868 = vpack.c.b16 %v3858, %v3857
        %v3869 = vpack.c.b16 %v3860, %v3859
        %v3870 = vpack.c.b16 %v3862, %v3861
        %3879 = vmatprep.subr.bf16.mxu0 0
        %3880 = vmatpush1.bf16.msra.mxu0 %v3870
        %3881 = vmatprep.subr.bf16.mxu0 0
        %3882 = vmatpush1.bf16.msra.mxu0 %v3869
        %3883 = vmatprep.subr.bf16.mxu0 0
        %3884 = vmatpush1.bf16.msra.mxu0 %v3868
        %3885 = vmatprep.subr.bf16.mxu0 0
        %3886 = vmatpush1.bf16.msra.mxu0 %v3867
        %3887 = vmatprep.subr.bf16.mxu0 0
        %3888 = vmatpush1.bf16.msra.mxu0 %v3866
        %3889 = vmatprep.subr.bf16.mxu0 0
        %3890 = vmatpush1.bf16.msra.mxu0 %v3865
        %3891 = vmatprep.subr.bf16.mxu0 0
        %3892 = vmatpush1.bf16.msra.mxu0 %v3864
        %3893 = vmatprep.subr.bf16.mxu0 0
        %3894 = vmatpush1.bf16.msra.mxu0 %v3863
        %3895 = vmatprep.subr.bf16.mxu0 0
        %3896 = vmatpush2.bf16.msra.mxu0 0
        %3897 = vmatprep.subr.bf16.mxu0 0
        %3898 = vmatpush2.bf16.msra.mxu0 0
        %3899 = vmatprep.subr.bf16.mxu0 0
        %3900 = vmatpush2.bf16.msra.mxu0 0
        %3901 = vmatprep.subr.bf16.mxu0 0
        %3902 = vmatpush2.bf16.msra.mxu0 0
        %3903 = vmatprep.subr.bf16.mxu0 0
        %3904 = vmatpush2.bf16.msra.mxu0 0
        %3905 = vmatprep.subr.bf16.mxu0 0
        %3906 = vmatpush2.bf16.msra.mxu0 0
        %3907 = vmatprep.subr.bf16.mxu0 0
        %3908 = vmatpush2.bf16.msra.mxu0 0
        %3909 = vmatprep.subr.bf16.mxu0 0
        %3910 = vmatpush2.bf16.msra.mxu0 0
        %3911 = vmatprep.mubr.bf16.mxu0 0
        %3912 = vmatmul.mubr.bf16.gmra.mxu0 %v3810
        %v3913 = vpop.f32.mrf.mxu0
        %v3914 = vadd.f32 0.0, %v3913
        %v3915 = vpop.f32.mrf.mxu0
        %v3916 = vpop.f32.mrf.mxu0
        %v3917 = vadd.f32 0.0, %v3916
        %v3918 = vpop.f32.mrf.mxu0
        %3919 = vmatprep.mubr.bf16.mxu0 0
        %3920 = vmatmul.mubr.bf16.gmra.mxu0 %v3811
        %v3921 = vpop.f32.mrf.mxu0
        %v3922 = vadd.f32 0.0, %v3921
        %v3923 = vpop.f32.mrf.mxu0
        %v3924 = vpop.f32.mrf.mxu0
        %v3925 = vadd.f32 0.0, %v3924
        %v3926 = vpop.f32.mrf.mxu0
        %3927 = vmatprep.mubr.bf16.mxu0 0
        %3928 = vmatmul.mubr.bf16.gmra.mxu0 %v3812
        %v3929 = vpop.f32.mrf.mxu0
        %v3930 = vadd.f32 0.0, %v3929
        %v3931 = vpop.f32.mrf.mxu0
        %v3932 = vpop.f32.mrf.mxu0
        %v3933 = vadd.f32 0.0, %v3932
        %v3934 = vpop.f32.mrf.mxu0
        %3935 = vmatprep.mubr.bf16.mxu0 0
        %3936 = vmatmul.mubr.bf16.gmra.mxu0 %v3813
        %v3937 = vpop.f32.mrf.mxu0
        %v3938 = vadd.f32 0.0, %v3937
        %v3939 = vpop.f32.mrf.mxu0
        %v3940 = vpop.f32.mrf.mxu0
        %v3941 = vadd.f32 0.0, %v3940
        %v3942 = vpop.f32.mrf.mxu0
        %3943 = vdwg.mxu0
        %v3944 = vadd.f32 %v3798, %v3914
        %v3945 = vadd.f32 %v3799, %v3917
        %v3946 = vadd.f32 %v3800, %v3922
        %v3947 = vadd.f32 %v3801, %v3925
        %v3948 = vadd.f32 %v3802, %v3930
        %v3949 = vadd.f32 %v3803, %v3933
        %v3950 = vadd.f32 %v3804, %v3938
        %v3951 = vadd.f32 %v3805, %v3941
        %v3952 = vpack.c.bf16 %v3320, %v3319
        %v3953 = vpack.c.bf16 %v3322, %v3321
        %v3954 = vpack.c.bf16 %v3324, %v3323
        %v3955 = vpack.c.bf16 %v3326, %v3325
        %s3956 = scalar_lea.vmem [#allocation10], 256
        %v3957 = vld [vmem:[%s3956] sm:$0xf]
        %v3958 = vld [vmem:[%s3956 + $0x4] sm:$0xf]
        %v3959 = vld [vmem:[%s3956 + $0x8] sm:$0xf]
        %v3960 = vld [vmem:[%s3956 + $0xc] sm:$0xf]
        %v3961 = vld [vmem:[%s3956 + $0x10] sm:$0xf]
        %v3962 = vld [vmem:[%s3956 + $0x14] sm:$0xf]
        %v3963 = vld [vmem:[%s3956 + $0x18] sm:$0xf]
        %v3964 = vld [vmem:[%s3956 + $0x1c] sm:$0xf]
        %v3965 = vld [vmem:[%s3956 + $0x20] sm:$0xf]
        %v3966 = vld [vmem:[%s3956 + $0x24] sm:$0xf]
        %v3967 = vld [vmem:[%s3956 + $0x28] sm:$0xf]
        %v3968 = vld [vmem:[%s3956 + $0x2c] sm:$0xf]
        %v3969 = vld [vmem:[%s3956 + $0x30] sm:$0xf]
        %v3970 = vld [vmem:[%s3956 + $0x34] sm:$0xf]
        %v3971 = vld [vmem:[%s3956 + $0x38] sm:$0xf]
        %v3972 = vld [vmem:[%s3956 + $0x3c] sm:$0xf]
        %v3989 = vunpack.c.l.b16 %v3957
        %v3990 = vunpack.c.l.b16 %v3958
        %v3991 = vunpack.c.l.b16 %v3959
        %v3992 = vunpack.c.l.b16 %v3960
        %v3993 = vunpack.c.l.b16 %v3961
        %v3994 = vunpack.c.l.b16 %v3962
        %v3995 = vunpack.c.l.b16 %v3963
        %v3996 = vunpack.c.l.b16 %v3964
        %v3997 = vunpack.c.l.b16 %v3965
        %v3998 = vunpack.c.l.b16 %v3966
        %v3999 = vunpack.c.l.b16 %v3967
        %v4000 = vunpack.c.l.b16 %v3968
        %v4001 = vunpack.c.l.b16 %v3969
        %v4002 = vunpack.c.l.b16 %v3970
        %v4003 = vunpack.c.l.b16 %v3971
        %v4004 = vunpack.c.l.b16 %v3972
        %v4005 = vpack.c.b16 %v3990, %v3989
        %v4006 = vpack.c.b16 %v3992, %v3991
        %v4007 = vpack.c.b16 %v3994, %v3993
        %v4008 = vpack.c.b16 %v3996, %v3995
        %v4009 = vpack.c.b16 %v3998, %v3997
        %v4010 = vpack.c.b16 %v4000, %v3999
        %v4011 = vpack.c.b16 %v4002, %v4001
        %v4012 = vpack.c.b16 %v4004, %v4003
        %4021 = vmatprep.subr.bf16.mxu0 0
        %4022 = vmatpush1.bf16.msra.mxu0 %v4012
        %4023 = vmatprep.subr.bf16.mxu0 0
        %4024 = vmatpush1.bf16.msra.mxu0 %v4011
        %4025 = vmatprep.subr.bf16.mxu0 0
        %4026 = vmatpush1.bf16.msra.mxu0 %v4010
        %4027 = vmatprep.subr.bf16.mxu0 0
        %4028 = vmatpush1.bf16.msra.mxu0 %v4009
        %4029 = vmatprep.subr.bf16.mxu0 0
        %4030 = vmatpush1.bf16.msra.mxu0 %v4008
        %4031 = vmatprep.subr.bf16.mxu0 0
        %4032 = vmatpush1.bf16.msra.mxu0 %v4007
        %4033 = vmatprep.subr.bf16.mxu0 0
        %4034 = vmatpush1.bf16.msra.mxu0 %v4006
        %4035 = vmatprep.subr.bf16.mxu0 0
        %4036 = vmatpush1.bf16.msra.mxu0 %v4005
        %4037 = vmatprep.subr.bf16.mxu0 0
        %4038 = vmatpush2.bf16.msra.mxu0 0
        %4039 = vmatprep.subr.bf16.mxu0 0
        %4040 = vmatpush2.bf16.msra.mxu0 0
        %4041 = vmatprep.subr.bf16.mxu0 0
        %4042 = vmatpush2.bf16.msra.mxu0 0
        %4043 = vmatprep.subr.bf16.mxu0 0
        %4044 = vmatpush2.bf16.msra.mxu0 0
        %4045 = vmatprep.subr.bf16.mxu0 0
        %4046 = vmatpush2.bf16.msra.mxu0 0
        %4047 = vmatprep.subr.bf16.mxu0 0
        %4048 = vmatpush2.bf16.msra.mxu0 0
        %4049 = vmatprep.subr.bf16.mxu0 0
        %4050 = vmatpush2.bf16.msra.mxu0 0
        %4051 = vmatprep.subr.bf16.mxu0 0
        %4052 = vmatpush2.bf16.msra.mxu0 0
        %4053 = vmatprep.mubr.bf16.mxu0 0
        %4054 = vmatmul.mubr.bf16.gmra.mxu0 %v3952
        %v4055 = vpop.f32.mrf.mxu0
        %v4056 = vadd.f32 0.0, %v4055
        %v4057 = vpop.f32.mrf.mxu0
        %v4058 = vpop.f32.mrf.mxu0
        %v4059 = vadd.f32 0.0, %v4058
        %v4060 = vpop.f32.mrf.mxu0
        %4061 = vmatprep.mubr.bf16.mxu0 0
        %4062 = vmatmul.mubr.bf16.gmra.mxu0 %v3953
        %v4063 = vpop.f32.mrf.mxu0
        %v4064 = vadd.f32 0.0, %v4063
        %v4065 = vpop.f32.mrf.mxu0
        %v4066 = vpop.f32.mrf.mxu0
        %v4067 = vadd.f32 0.0, %v4066
        %v4068 = vpop.f32.mrf.mxu0
        %4069 = vmatprep.mubr.bf16.mxu0 0
        %4070 = vmatmul.mubr.bf16.gmra.mxu0 %v3954
        %v4071 = vpop.f32.mrf.mxu0
        %v4072 = vadd.f32 0.0, %v4071
        %v4073 = vpop.f32.mrf.mxu0
        %v4074 = vpop.f32.mrf.mxu0
        %v4075 = vadd.f32 0.0, %v4074
        %v4076 = vpop.f32.mrf.mxu0
        %4077 = vmatprep.mubr.bf16.mxu0 0
        %4078 = vmatmul.mubr.bf16.gmra.mxu0 %v3955
        %v4079 = vpop.f32.mrf.mxu0
        %v4080 = vadd.f32 0.0, %v4079
        %v4081 = vpop.f32.mrf.mxu0
        %v4082 = vpop.f32.mrf.mxu0
        %v4083 = vadd.f32 0.0, %v4082
        %v4084 = vpop.f32.mrf.mxu0
        %4085 = vdwg.mxu0
        %v4086 = vadd.f32 %v3944, %v4056
        %v4087 = vadd.f32 %v3945, %v4059
        %v4088 = vadd.f32 %v3946, %v4064
        %v4089 = vadd.f32 %v3947, %v4067
        %v4090 = vadd.f32 %v3948, %v4072
        %v4091 = vadd.f32 %v3949, %v4075
        %v4092 = vadd.f32 %v3950, %v4080
        %v4093 = vadd.f32 %v3951, %v4083
        %v4094 = vpack.c.bf16 %v3641, %v3639
        %v4095 = vpack.c.bf16 %v3645, %v3643
        %v4096 = vpack.c.bf16 %v3649, %v3647
        %v4097 = vpack.c.bf16 %v3659, %v3650
        %v4098 = vmul.bf16 %v4094, %v1281
        %v4099 = vmul.bf16 %v4095, %v1282
        %v4100 = vmul.bf16 %v4096, %v1283
        %v4101 = vmul.bf16 %v4097, %v1284
        %s4102 = scalar_lea.vmem [#allocation10], 320
        %v4103 = vld [vmem:[%s4102] sm:$0xf]
        %v4104 = vld [vmem:[%s4102 + $0x4] sm:$0xf]
        %v4105 = vld [vmem:[%s4102 + $0x8] sm:$0xf]
        %v4106 = vld [vmem:[%s4102 + $0xc] sm:$0xf]
        %v4107 = vld [vmem:[%s4102 + $0x10] sm:$0xf]
        %v4108 = vld [vmem:[%s4102 + $0x14] sm:$0xf]
        %v4109 = vld [vmem:[%s4102 + $0x18] sm:$0xf]
        %v4110 = vld [vmem:[%s4102 + $0x1c] sm:$0xf]
        %v4111 = vld [vmem:[%s4102 + $0x20] sm:$0xf]
        %v4112 = vld [vmem:[%s4102 + $0x24] sm:$0xf]
        %v4113 = vld [vmem:[%s4102 + $0x28] sm:$0xf]
        %v4114 = vld [vmem:[%s4102 + $0x2c] sm:$0xf]
        %v4115 = vld [vmem:[%s4102 + $0x30] sm:$0xf]
        %v4116 = vld [vmem:[%s4102 + $0x34] sm:$0xf]
        %v4117 = vld [vmem:[%s4102 + $0x38] sm:$0xf]
        %v4118 = vld [vmem:[%s4102 + $0x3c] sm:$0xf]
        %v4135 = vunpack.c.l.b16 %v4103
        %v4136 = vunpack.c.l.b16 %v4104
        %v4137 = vunpack.c.l.b16 %v4105
        %v4138 = vunpack.c.l.b16 %v4106
        %v4139 = vunpack.c.l.b16 %v4107
        %v4140 = vunpack.c.l.b16 %v4108
        %v4141 = vunpack.c.l.b16 %v4109
        %v4142 = vunpack.c.l.b16 %v4110
        %v4143 = vunpack.c.l.b16 %v4111
        %v4144 = vunpack.c.l.b16 %v4112
        %v4145 = vunpack.c.l.b16 %v4113
        %v4146 = vunpack.c.l.b16 %v4114
        %v4147 = vunpack.c.l.b16 %v4115
        %v4148 = vunpack.c.l.b16 %v4116
        %v4149 = vunpack.c.l.b16 %v4117
        %v4150 = vunpack.c.l.b16 %v4118
        %v4151 = vpack.c.b16 %v4136, %v4135
        %v4152 = vpack.c.b16 %v4138, %v4137
        %v4153 = vpack.c.b16 %v4140, %v4139
        %v4154 = vpack.c.b16 %v4142, %v4141
        %v4155 = vpack.c.b16 %v4144, %v4143
        %v4156 = vpack.c.b16 %v4146, %v4145
        %v4157 = vpack.c.b16 %v4148, %v4147
        %v4158 = vpack.c.b16 %v4150, %v4149
        %4167 = vmatprep.subr.bf16.mxu0 0
        %4168 = vmatpush1.bf16.msra.mxu0 %v4158
        %4169 = vmatprep.subr.bf16.mxu0 0
        %4170 = vmatpush1.bf16.msra.mxu0 %v4157
        %4171 = vmatprep.subr.bf16.mxu0 0
        %4172 = vmatpush1.bf16.msra.mxu0 %v4156
        %4173 = vmatprep.subr.bf16.mxu0 0
        %4174 = vmatpush1.bf16.msra.mxu0 %v4155
        %4175 = vmatprep.subr.bf16.mxu0 0
        %4176 = vmatpush1.bf16.msra.mxu0 %v4154
        %4177 = vmatprep.subr.bf16.mxu0 0
        %4178 = vmatpush1.bf16.msra.mxu0 %v4153
        %4179 = vmatprep.subr.bf16.mxu0 0
        %4180 = vmatpush1.bf16.msra.mxu0 %v4152
        %4181 = vmatprep.subr.bf16.mxu0 0
        %4182 = vmatpush1.bf16.msra.mxu0 %v4151
        %4183 = vmatprep.subr.bf16.mxu0 0
        %4184 = vmatpush2.bf16.msra.mxu0 0
        %4185 = vmatprep.subr.bf16.mxu0 0
        %4186 = vmatpush2.bf16.msra.mxu0 0
        %4187 = vmatprep.subr.bf16.mxu0 0
        %4188 = vmatpush2.bf16.msra.mxu0 0
        %4189 = vmatprep.subr.bf16.mxu0 0
        %4190 = vmatpush2.bf16.msra.mxu0 0
        %4191 = vmatprep.subr.bf16.mxu0 0
        %4192 = vmatpush2.bf16.msra.mxu0 0
        %4193 = vmatprep.subr.bf16.mxu0 0
        %4194 = vmatpush2.bf16.msra.mxu0 0
        %4195 = vmatprep.subr.bf16.mxu0 0
        %4196 = vmatpush2.bf16.msra.mxu0 0
        %4197 = vmatprep.subr.bf16.mxu0 0
        %4198 = vmatpush2.bf16.msra.mxu0 0
        %4199 = vmatprep.mubr.bf16.mxu0 0
        %4200 = vmatmul.mubr.bf16.gmra.mxu0 %v4098
        %v4201 = vpop.f32.mrf.mxu0
        %v4202 = vadd.f32 0.0, %v4201
        %v4203 = vpop.f32.mrf.mxu0
        %v4204 = vpop.f32.mrf.mxu0
        %v4205 = vadd.f32 0.0, %v4204
        %v4206 = vpop.f32.mrf.mxu0
        %4207 = vmatprep.mubr.bf16.mxu0 0
        %4208 = vmatmul.mubr.bf16.gmra.mxu0 %v4099
        %v4209 = vpop.f32.mrf.mxu0
        %v4210 = vadd.f32 0.0, %v4209
        %v4211 = vpop.f32.mrf.mxu0
        %v4212 = vpop.f32.mrf.mxu0
        %v4213 = vadd.f32 0.0, %v4212
        %v4214 = vpop.f32.mrf.mxu0
        %4215 = vmatprep.mubr.bf16.mxu0 0
        %4216 = vmatmul.mubr.bf16.gmra.mxu0 %v4100
        %v4217 = vpop.f32.mrf.mxu0
        %v4218 = vadd.f32 0.0, %v4217
        %v4219 = vpop.f32.mrf.mxu0
        %v4220 = vpop.f32.mrf.mxu0
        %v4221 = vadd.f32 0.0, %v4220
        %v4222 = vpop.f32.mrf.mxu0
        %4223 = vmatprep.mubr.bf16.mxu0 0
        %4224 = vmatmul.mubr.bf16.gmra.mxu0 %v4101
        %v4225 = vpop.f32.mrf.mxu0
        %v4226 = vadd.f32 0.0, %v4225
        %v4227 = vpop.f32.mrf.mxu0
        %v4228 = vpop.f32.mrf.mxu0
        %v4229 = vadd.f32 0.0, %v4228
        %v4230 = vpop.f32.mrf.mxu0
        %4231 = vdwg.mxu0
        %v4232 = vadd.f32 %v4086, %v4202
        %v4233 = vadd.f32 %v4087, %v4205
        %v4234 = vadd.f32 %v4088, %v4210
        %v4235 = vadd.f32 %v4089, %v4213
        %v4236 = vadd.f32 %v4090, %v4218
        %v4237 = vadd.f32 %v4091, %v4221
        %v4238 = vadd.f32 %v4092, %v4226
        %v4239 = vadd.f32 %v4093, %v4229
        %v4240 = vmul.bf16 %v3361, %v1456
        %v4241 = vmul.bf16 %v3362, %v1457
        %v4242 = vmul.bf16 %v3363, %v1458
        %v4243 = vmul.bf16 %v3360, %v1459
        %s4244 = scalar_lea.vmem [#allocation10], 384
        %v4245 = vld [vmem:[%s4244] sm:$0xf]
        %v4246 = vld [vmem:[%s4244 + $0x4] sm:$0xf]
        %v4247 = vld [vmem:[%s4244 + $0x8] sm:$0xf]
        %v4248 = vld [vmem:[%s4244 + $0xc] sm:$0xf]
        %v4249 = vld [vmem:[%s4244 + $0x10] sm:$0xf]
        %v4250 = vld [vmem:[%s4244 + $0x14] sm:$0xf]
        %v4251 = vld [vmem:[%s4244 + $0x18] sm:$0xf]
        %v4252 = vld [vmem:[%s4244 + $0x1c] sm:$0xf]
        %v4253 = vld [vmem:[%s4244 + $0x20] sm:$0xf]
        %v4254 = vld [vmem:[%s4244 + $0x24] sm:$0xf]
        %v4255 = vld [vmem:[%s4244 + $0x28] sm:$0xf]
        %v4256 = vld [vmem:[%s4244 + $0x2c] sm:$0xf]
        %v4257 = vld [vmem:[%s4244 + $0x30] sm:$0xf]
        %v4258 = vld [vmem:[%s4244 + $0x34] sm:$0xf]
        %v4259 = vld [vmem:[%s4244 + $0x38] sm:$0xf]
        %v4260 = vld [vmem:[%s4244 + $0x3c] sm:$0xf]
        %v4277 = vunpack.c.l.b16 %v4245
        %v4278 = vunpack.c.l.b16 %v4246
        %v4279 = vunpack.c.l.b16 %v4247
        %v4280 = vunpack.c.l.b16 %v4248
        %v4281 = vunpack.c.l.b16 %v4249
        %v4282 = vunpack.c.l.b16 %v4250
        %v4283 = vunpack.c.l.b16 %v4251
        %v4284 = vunpack.c.l.b16 %v4252
        %v4285 = vunpack.c.l.b16 %v4253
        %v4286 = vunpack.c.l.b16 %v4254
        %v4287 = vunpack.c.l.b16 %v4255
        %v4288 = vunpack.c.l.b16 %v4256
        %v4289 = vunpack.c.l.b16 %v4257
        %v4290 = vunpack.c.l.b16 %v4258
        %v4291 = vunpack.c.l.b16 %v4259
        %v4292 = vunpack.c.l.b16 %v4260
        %v4293 = vpack.c.b16 %v4278, %v4277
        %v4294 = vpack.c.b16 %v4280, %v4279
        %v4295 = vpack.c.b16 %v4282, %v4281
        %v4296 = vpack.c.b16 %v4284, %v4283
        %v4297 = vpack.c.b16 %v4286, %v4285
        %v4298 = vpack.c.b16 %v4288, %v4287
        %v4299 = vpack.c.b16 %v4290, %v4289
        %v4300 = vpack.c.b16 %v4292, %v4291
        %4309 = vmatprep.subr.bf16.mxu0 0
        %4310 = vmatpush1.bf16.msra.mxu0 %v4300
        %4311 = vmatprep.subr.bf16.mxu0 0
        %4312 = vmatpush1.bf16.msra.mxu0 %v4299
        %4313 = vmatprep.subr.bf16.mxu0 0
        %4314 = vmatpush1.bf16.msra.mxu0 %v4298
        %4315 = vmatprep.subr.bf16.mxu0 0
        %4316 = vmatpush1.bf16.msra.mxu0 %v4297
        %4317 = vmatprep.subr.bf16.mxu0 0
        %4318 = vmatpush1.bf16.msra.mxu0 %v4296
        %4319 = vmatprep.subr.bf16.mxu0 0
        %4320 = vmatpush1.bf16.msra.mxu0 %v4295
        %4321 = vmatprep.subr.bf16.mxu0 0
        %4322 = vmatpush1.bf16.msra.mxu0 %v4294
        %4323 = vmatprep.subr.bf16.mxu0 0
        %4324 = vmatpush1.bf16.msra.mxu0 %v4293
        %4325 = vmatprep.subr.bf16.mxu0 0
        %4326 = vmatpush2.bf16.msra.mxu0 0
        %4327 = vmatprep.subr.bf16.mxu0 0
        %4328 = vmatpush2.bf16.msra.mxu0 0
        %4329 = vmatprep.subr.bf16.mxu0 0
        %4330 = vmatpush2.bf16.msra.mxu0 0
        %4331 = vmatprep.subr.bf16.mxu0 0
        %4332 = vmatpush2.bf16.msra.mxu0 0
        %4333 = vmatprep.subr.bf16.mxu0 0
        %4334 = vmatpush2.bf16.msra.mxu0 0
        %4335 = vmatprep.subr.bf16.mxu0 0
        %4336 = vmatpush2.bf16.msra.mxu0 0
        %4337 = vmatprep.subr.bf16.mxu0 0
        %4338 = vmatpush2.bf16.msra.mxu0 0
        %4339 = vmatprep.subr.bf16.mxu0 0
        %4340 = vmatpush2.bf16.msra.mxu0 0
        %4341 = vmatprep.mubr.bf16.mxu0 0
        %4342 = vmatmul.mubr.bf16.gmra.mxu0 %v4240
        %v4343 = vpop.f32.mrf.mxu0
        %v4344 = vadd.f32 0.0, %v4343
        %v4345 = vpop.f32.mrf.mxu0
        %v4346 = vpop.f32.mrf.mxu0
        %v4347 = vadd.f32 0.0, %v4346
        %v4348 = vpop.f32.mrf.mxu0
        %4349 = vmatprep.mubr.bf16.mxu0 0
        %4350 = vmatmul.mubr.bf16.gmra.mxu0 %v4241
        %v4351 = vpop.f32.mrf.mxu0
        %v4352 = vadd.f32 0.0, %v4351
        %v4353 = vpop.f32.mrf.mxu0
        %v4354 = vpop.f32.mrf.mxu0
        %v4355 = vadd.f32 0.0, %v4354
        %v4356 = vpop.f32.mrf.mxu0
        %4357 = vmatprep.mubr.bf16.mxu0 0
        %4358 = vmatmul.mubr.bf16.gmra.mxu0 %v4242
        %v4359 = vpop.f32.mrf.mxu0
        %v4360 = vadd.f32 0.0, %v4359
        %v4361 = vpop.f32.mrf.mxu0
        %v4362 = vpop.f32.mrf.mxu0
        %v4363 = vadd.f32 0.0, %v4362
        %v4364 = vpop.f32.mrf.mxu0
        %4365 = vmatprep.mubr.bf16.mxu0 0
        %4366 = vmatmul.mubr.bf16.gmra.mxu0 %v4243
        %v4367 = vpop.f32.mrf.mxu0
        %v4368 = vadd.f32 0.0, %v4367
        %v4369 = vpop.f32.mrf.mxu0
        %v4370 = vpop.f32.mrf.mxu0
        %v4371 = vadd.f32 0.0, %v4370
        %v4372 = vpop.f32.mrf.mxu0
        %4373 = vdwg.mxu0
        %v4374 = vadd.f32 %v4232, %v4344
        %v4375 = vadd.f32 %v4233, %v4347
        %v4376 = vadd.f32 %v4234, %v4352
        %v4377 = vadd.f32 %v4235, %v4355
        %v4378 = vadd.f32 %v4236, %v4360
        %v4379 = vadd.f32 %v4237, %v4363
        %v4380 = vadd.f32 %v4238, %v4368
        %v4381 = vadd.f32 %v4239, %v4371
        %v4382 = vmul.bf16 %v3385, %v1631
        %v4383 = vmul.bf16 %v3386, %v1632
        %v4384 = vmul.bf16 %v3387, %v1633
        %v4385 = vmul.bf16 %v3384, %v1634
        %s4386 = scalar_lea.vmem [#allocation10], 448
        %v4387 = vld [vmem:[%s4386] sm:$0xf]
        %v4388 = vld [vmem:[%s4386 + $0x4] sm:$0xf]
        %v4389 = vld [vmem:[%s4386 + $0x8] sm:$0xf]
        %v4390 = vld [vmem:[%s4386 + $0xc] sm:$0xf]
        %v4391 = vld [vmem:[%s4386 + $0x10] sm:$0xf]
        %v4392 = vld [vmem:[%s4386 + $0x14] sm:$0xf]
        %v4393 = vld [vmem:[%s4386 + $0x18] sm:$0xf]
        %v4394 = vld [vmem:[%s4386 + $0x1c] sm:$0xf]
        %v4395 = vld [vmem:[%s4386 + $0x20] sm:$0xf]
        %v4396 = vld [vmem:[%s4386 + $0x24] sm:$0xf]
        %v4397 = vld [vmem:[%s4386 + $0x28] sm:$0xf]
        %v4398 = vld [vmem:[%s4386 + $0x2c] sm:$0xf]
        %v4399 = vld [vmem:[%s4386 + $0x30] sm:$0xf]
        %v4400 = vld [vmem:[%s4386 + $0x34] sm:$0xf]
        %v4401 = vld [vmem:[%s4386 + $0x38] sm:$0xf]
        %v4402 = vld [vmem:[%s4386 + $0x3c] sm:$0xf]
        %v4419 = vunpack.c.l.b16 %v4387
        %v4420 = vunpack.c.l.b16 %v4388
        %v4421 = vunpack.c.l.b16 %v4389
        %v4422 = vunpack.c.l.b16 %v4390
        %v4423 = vunpack.c.l.b16 %v4391
        %v4424 = vunpack.c.l.b16 %v4392
        %v4425 = vunpack.c.l.b16 %v4393
        %v4426 = vunpack.c.l.b16 %v4394
        %v4427 = vunpack.c.l.b16 %v4395
        %v4428 = vunpack.c.l.b16 %v4396
        %v4429 = vunpack.c.l.b16 %v4397
        %v4430 = vunpack.c.l.b16 %v4398
        %v4431 = vunpack.c.l.b16 %v4399
        %v4432 = vunpack.c.l.b16 %v4400
        %v4433 = vunpack.c.l.b16 %v4401
        %v4434 = vunpack.c.l.b16 %v4402
        %v4435 = vpack.c.b16 %v4420, %v4419
        %v4436 = vpack.c.b16 %v4422, %v4421
        %v4437 = vpack.c.b16 %v4424, %v4423
        %v4438 = vpack.c.b16 %v4426, %v4425
        %v4439 = vpack.c.b16 %v4428, %v4427
        %v4440 = vpack.c.b16 %v4430, %v4429
        %v4441 = vpack.c.b16 %v4432, %v4431
        %v4442 = vpack.c.b16 %v4434, %v4433
        %4451 = vmatprep.subr.bf16.mxu0 0
        %4452 = vmatpush1.bf16.msra.mxu0 %v4442
        %4453 = vmatprep.subr.bf16.mxu0 0
        %4454 = vmatpush1.bf16.msra.mxu0 %v4441
        %4455 = vmatprep.subr.bf16.mxu0 0
        %4456 = vmatpush1.bf16.msra.mxu0 %v4440
        %4457 = vmatprep.subr.bf16.mxu0 0
        %4458 = vmatpush1.bf16.msra.mxu0 %v4439
        %4459 = vmatprep.subr.bf16.mxu0 0
        %4460 = vmatpush1.bf16.msra.mxu0 %v4438
        %4461 = vmatprep.subr.bf16.mxu0 0
        %4462 = vmatpush1.bf16.msra.mxu0 %v4437
        %4463 = vmatprep.subr.bf16.mxu0 0
        %4464 = vmatpush1.bf16.msra.mxu0 %v4436
        %4465 = vmatprep.subr.bf16.mxu0 0
        %4466 = vmatpush1.bf16.msra.mxu0 %v4435
        %4467 = vmatprep.subr.bf16.mxu0 0
        %4468 = vmatpush2.bf16.msra.mxu0 0
        %4469 = vmatprep.subr.bf16.mxu0 0
        %4470 = vmatpush2.bf16.msra.mxu0 0
        %4471 = vmatprep.subr.bf16.mxu0 0
        %4472 = vmatpush2.bf16.msra.mxu0 0
        %4473 = vmatprep.subr.bf16.mxu0 0
        %4474 = vmatpush2.bf16.msra.mxu0 0
        %4475 = vmatprep.subr.bf16.mxu0 0
        %4476 = vmatpush2.bf16.msra.mxu0 0
        %4477 = vmatprep.subr.bf16.mxu0 0
        %4478 = vmatpush2.bf16.msra.mxu0 0
        %4479 = vmatprep.subr.bf16.mxu0 0
        %4480 = vmatpush2.bf16.msra.mxu0 0
        %4481 = vmatprep.subr.bf16.mxu0 0
        %4482 = vmatpush2.bf16.msra.mxu0 0
        %4483 = vmatprep.mubr.bf16.mxu0 0
        %4484 = vmatmul.mubr.bf16.gmra.mxu0 %v4382
        %v4485 = vpop.f32.mrf.mxu0
        %v4486 = vadd.f32 0.0, %v4485
        %v4487 = vpop.f32.mrf.mxu0
        %v4488 = vpop.f32.mrf.mxu0
        %v4489 = vadd.f32 0.0, %v4488
        %v4490 = vpop.f32.mrf.mxu0
        %4491 = vmatprep.mubr.bf16.mxu0 0
        %4492 = vmatmul.mubr.bf16.gmra.mxu0 %v4383
        %v4493 = vpop.f32.mrf.mxu0
        %v4494 = vadd.f32 0.0, %v4493
        %v4495 = vpop.f32.mrf.mxu0
        %v4496 = vpop.f32.mrf.mxu0
        %v4497 = vadd.f32 0.0, %v4496
        %v4498 = vpop.f32.mrf.mxu0
        %4499 = vmatprep.mubr.bf16.mxu0 0
        %4500 = vmatmul.mubr.bf16.gmra.mxu0 %v4384
        %v4501 = vpop.f32.mrf.mxu0
        %v4502 = vadd.f32 0.0, %v4501
        %v4503 = vpop.f32.mrf.mxu0
        %v4504 = vpop.f32.mrf.mxu0
        %v4505 = vadd.f32 0.0, %v4504
        %v4506 = vpop.f32.mrf.mxu0
        %4507 = vmatprep.mubr.bf16.mxu0 0
        %4508 = vmatmul.mubr.bf16.gmra.mxu0 %v4385
        %v4509 = vpop.f32.mrf.mxu0
        %v4510 = vadd.f32 0.0, %v4509
        %v4511 = vpop.f32.mrf.mxu0
        %v4512 = vpop.f32.mrf.mxu0
        %v4513 = vadd.f32 0.0, %v4512
        %v4514 = vpop.f32.mrf.mxu0
        %4515 = vdwg.mxu0
        %v4516 = vadd.f32 %v4374, %v4486
        %v4517 = vadd.f32 %v4375, %v4489
        %v4518 = vadd.f32 %v4376, %v4494
        %v4519 = vadd.f32 %v4377, %v4497
        %v4520 = vadd.f32 %v4378, %v4502
        %v4521 = vadd.f32 %v4379, %v4505
        %v4522 = vadd.f32 %v4380, %v4510
        %v4523 = vadd.f32 %v4381, %v4513
        %v4524 = vmul.bf16 %v3661, %v1806
        %v4525 = vmul.bf16 %v3662, %v1807
        %v4526 = vmul.bf16 %v3663, %v1808
        %v4527 = vmul.bf16 %v3660, %v1809
        %s4528 = scalar_lea.vmem [#allocation10], 512
        %v4529 = vld [vmem:[%s4528] sm:$0xf]
        %v4530 = vld [vmem:[%s4528 + $0x4] sm:$0xf]
        %v4531 = vld [vmem:[%s4528 + $0x8] sm:$0xf]
        %v4532 = vld [vmem:[%s4528 + $0xc] sm:$0xf]
        %v4533 = vld [vmem:[%s4528 + $0x10] sm:$0xf]
        %v4534 = vld [vmem:[%s4528 + $0x14] sm:$0xf]
        %v4535 = vld [vmem:[%s4528 + $0x18] sm:$0xf]
        %v4536 = vld [vmem:[%s4528 + $0x1c] sm:$0xf]
        %v4537 = vld [vmem:[%s4528 + $0x20] sm:$0xf]
        %v4538 = vld [vmem:[%s4528 + $0x24] sm:$0xf]
        %v4539 = vld [vmem:[%s4528 + $0x28] sm:$0xf]
        %v4540 = vld [vmem:[%s4528 + $0x2c] sm:$0xf]
        %v4541 = vld [vmem:[%s4528 + $0x30] sm:$0xf]
        %v4542 = vld [vmem:[%s4528 + $0x34] sm:$0xf]
        %v4543 = vld [vmem:[%s4528 + $0x38] sm:$0xf]
        %v4544 = vld [vmem:[%s4528 + $0x3c] sm:$0xf]
        %v4561 = vunpack.c.l.b16 %v4529
        %v4562 = vunpack.c.l.b16 %v4530
        %v4563 = vunpack.c.l.b16 %v4531
        %v4564 = vunpack.c.l.b16 %v4532
        %v4565 = vunpack.c.l.b16 %v4533
        %v4566 = vunpack.c.l.b16 %v4534
        %v4567 = vunpack.c.l.b16 %v4535
        %v4568 = vunpack.c.l.b16 %v4536
        %v4569 = vunpack.c.l.b16 %v4537
        %v4570 = vunpack.c.l.b16 %v4538
        %v4571 = vunpack.c.l.b16 %v4539
        %v4572 = vunpack.c.l.b16 %v4540
        %v4573 = vunpack.c.l.b16 %v4541
        %v4574 = vunpack.c.l.b16 %v4542
        %v4575 = vunpack.c.l.b16 %v4543
        %v4576 = vunpack.c.l.b16 %v4544
        %v4577 = vpack.c.b16 %v4562, %v4561
        %v4578 = vpack.c.b16 %v4564, %v4563
        %v4579 = vpack.c.b16 %v4566, %v4565
        %v4580 = vpack.c.b16 %v4568, %v4567
        %v4581 = vpack.c.b16 %v4570, %v4569
        %v4582 = vpack.c.b16 %v4572, %v4571
        %v4583 = vpack.c.b16 %v4574, %v4573
        %v4584 = vpack.c.b16 %v4576, %v4575
        %4593 = vmatprep.subr.bf16.mxu0 0
        %4594 = vmatpush1.bf16.msra.mxu0 %v4584
        %4595 = vmatprep.subr.bf16.mxu0 0
        %4596 = vmatpush1.bf16.msra.mxu0 %v4583
        %4597 = vmatprep.subr.bf16.mxu0 0
        %4598 = vmatpush1.bf16.msra.mxu0 %v4582
        %4599 = vmatprep.subr.bf16.mxu0 0
        %4600 = vmatpush1.bf16.msra.mxu0 %v4581
        %4601 = vmatprep.subr.bf16.mxu0 0
        %4602 = vmatpush1.bf16.msra.mxu0 %v4580
        %4603 = vmatprep.subr.bf16.mxu0 0
        %4604 = vmatpush1.bf16.msra.mxu0 %v4579
        %4605 = vmatprep.subr.bf16.mxu0 0
        %4606 = vmatpush1.bf16.msra.mxu0 %v4578
        %4607 = vmatprep.subr.bf16.mxu0 0
        %4608 = vmatpush1.bf16.msra.mxu0 %v4577
        %4609 = vmatprep.subr.bf16.mxu0 0
        %4610 = vmatpush2.bf16.msra.mxu0 0
        %4611 = vmatprep.subr.bf16.mxu0 0
        %4612 = vmatpush2.bf16.msra.mxu0 0
        %4613 = vmatprep.subr.bf16.mxu0 0
        %4614 = vmatpush2.bf16.msra.mxu0 0
        %4615 = vmatprep.subr.bf16.mxu0 0
        %4616 = vmatpush2.bf16.msra.mxu0 0
        %4617 = vmatprep.subr.bf16.mxu0 0
        %4618 = vmatpush2.bf16.msra.mxu0 0
        %4619 = vmatprep.subr.bf16.mxu0 0
        %4620 = vmatpush2.bf16.msra.mxu0 0
        %4621 = vmatprep.subr.bf16.mxu0 0
        %4622 = vmatpush2.bf16.msra.mxu0 0
        %4623 = vmatprep.subr.bf16.mxu0 0
        %4624 = vmatpush2.bf16.msra.mxu0 0
        %4625 = vmatprep.mubr.bf16.mxu0 0
        %4626 = vmatmul.mubr.bf16.gmra.mxu0 %v4524
        %v4627 = vpop.f32.mrf.mxu0
        %v4628 = vadd.f32 0.0, %v4627
        %v4629 = vpop.f32.mrf.mxu0
        %v4630 = vpop.f32.mrf.mxu0
        %v4631 = vadd.f32 0.0, %v4630
        %v4632 = vpop.f32.mrf.mxu0
        %4633 = vmatprep.mubr.bf16.mxu0 0
        %4634 = vmatmul.mubr.bf16.gmra.mxu0 %v4525
        %v4635 = vpop.f32.mrf.mxu0
        %v4636 = vadd.f32 0.0, %v4635
        %v4637 = vpop.f32.mrf.mxu0
        %v4638 = vpop.f32.mrf.mxu0
        %v4639 = vadd.f32 0.0, %v4638
        %v4640 = vpop.f32.mrf.mxu0
        %4641 = vmatprep.mubr.bf16.mxu0 0
        %4642 = vmatmul.mubr.bf16.gmra.mxu0 %v4526
        %v4643 = vpop.f32.mrf.mxu0
        %v4644 = vadd.f32 0.0, %v4643
        %v4645 = vpop.f32.mrf.mxu0
        %v4646 = vpop.f32.mrf.mxu0
        %v4647 = vadd.f32 0.0, %v4646
        %v4648 = vpop.f32.mrf.mxu0
        %4649 = vmatprep.mubr.bf16.mxu0 0
        %4650 = vmatmul.mubr.bf16.gmra.mxu0 %v4527
        %v4651 = vpop.f32.mrf.mxu0
        %v4652 = vadd.f32 0.0, %v4651
        %v4653 = vpop.f32.mrf.mxu0
        %v4654 = vpop.f32.mrf.mxu0
        %v4655 = vadd.f32 0.0, %v4654
        %v4656 = vpop.f32.mrf.mxu0
        %4657 = vdwg.mxu0
        %v4658 = vadd.f32 %v4516, %v4628
        %v4659 = vadd.f32 %v4517, %v4631
        %v4660 = vadd.f32 %v4518, %v4636
        %v4661 = vadd.f32 %v4519, %v4639
        %v4662 = vadd.f32 %v4520, %v4644
        %v4663 = vadd.f32 %v4521, %v4647
        %v4664 = vadd.f32 %v4522, %v4652
        %v4665 = vadd.f32 %v4523, %v4655
        %v4666 = vmax.f32 %v4658, 0.0
        %v4667 = vmax.f32 %v4659, 0.0
        %v4668 = vmax.f32 %v4660, 0.0
        %v4669 = vmax.f32 %v4661, 0.0
        %v4670 = vmax.f32 %v4662, 0.0
        %v4671 = vmax.f32 %v4663, 0.0
        %v4672 = vmax.f32 %v4664, 0.0
        %v4673 = vmax.f32 %v4665, 0.0
        %v4676 = vrot.slane %v4672, 7
        %v4677 = vrot.slane %v4673, 7
        %v4678 = vsel %vm354, %v4676, %v4677
        %v4687 = vrot.slane %v4666, 7
        %v4688 = vrot.slane %v4667, 7
        %v4689 = vsel %vm354, %v4687, %v4688
        %v4690 = vrot.slane %v4668, 7
        %v4691 = vsel %vm354, %v4688, %v4690
        %v4692 = vrot.slane %v4669, 7
        %v4693 = vsel %vm354, %v4690, %v4692
        %v4694 = vrot.slane %v4670, 7
        %v4695 = vsel %vm354, %v4692, %v4694
        %v4696 = vrot.slane %v4671, 7
        %v4697 = vsel %vm354, %v4694, %v4696
        %v4698 = vsel %vm354, %v4696, %v4676
        %v4706 = vsel %vm354, %v4677, %v4687
        %v4707 = vpack.c.bf16 %v4706, %v4678
        %v4708 = vpack.c.bf16 %v4691, %v4689
        %v4709 = vpack.c.bf16 %v4695, %v4693
        %v4710 = vpack.c.bf16 %v4698, %v4697
        %v4711 = vmul.bf16 %v4707, %v414
        %v4712 = vmul.bf16 %v4708, %v415
        %v4713 = vmul.bf16 %v4709, %v416
        %v4714 = vmul.bf16 %v4710, %v417
        %v4715 = vld [vmem:[#allocation11] sm:$0xf]
        %v4716 = vld [vmem:[#allocation11 + $0x4] sm:$0xf]
        %v4717 = vld [vmem:[#allocation11 + $0x8] sm:$0xf]
        %v4718 = vld [vmem:[#allocation11 + $0xc] sm:$0xf]
        %v4719 = vld [vmem:[#allocation11 + $0x10] sm:$0xf]
        %v4720 = vld [vmem:[#allocation11 + $0x14] sm:$0xf]
        %v4721 = vld [vmem:[#allocation11 + $0x18] sm:$0xf]
        %v4722 = vld [vmem:[#allocation11 + $0x1c] sm:$0xf]
        %v4723 = vld [vmem:[#allocation11 + $0x20] sm:$0xf]
        %v4724 = vld [vmem:[#allocation11 + $0x24] sm:$0xf]
        %v4725 = vld [vmem:[#allocation11 + $0x28] sm:$0xf]
        %v4726 = vld [vmem:[#allocation11 + $0x2c] sm:$0xf]
        %v4727 = vld [vmem:[#allocation11 + $0x30] sm:$0xf]
        %v4728 = vld [vmem:[#allocation11 + $0x34] sm:$0xf]
        %v4729 = vld [vmem:[#allocation11 + $0x38] sm:$0xf]
        %v4730 = vld [vmem:[#allocation11 + $0x3c] sm:$0xf]
        %v4747 = vunpack.c.l.b16 %v4715
        %v4748 = vunpack.c.l.b16 %v4716
        %v4749 = vunpack.c.l.b16 %v4717
        %v4750 = vunpack.c.l.b16 %v4718
        %v4751 = vunpack.c.l.b16 %v4719
        %v4752 = vunpack.c.l.b16 %v4720
        %v4753 = vunpack.c.l.b16 %v4721
        %v4754 = vunpack.c.l.b16 %v4722
        %v4755 = vunpack.c.l.b16 %v4723
        %v4756 = vunpack.c.l.b16 %v4724
        %v4757 = vunpack.c.l.b16 %v4725
        %v4758 = vunpack.c.l.b16 %v4726
        %v4759 = vunpack.c.l.b16 %v4727
        %v4760 = vunpack.c.l.b16 %v4728
        %v4761 = vunpack.c.l.b16 %v4729
        %v4762 = vunpack.c.l.b16 %v4730
        %v4763 = vpack.c.b16 %v4748, %v4747
        %v4764 = vpack.c.b16 %v4750, %v4749
        %v4765 = vpack.c.b16 %v4752, %v4751
        %v4766 = vpack.c.b16 %v4754, %v4753
        %v4767 = vpack.c.b16 %v4756, %v4755
        %v4768 = vpack.c.b16 %v4758, %v4757
        %v4769 = vpack.c.b16 %v4760, %v4759
        %v4770 = vpack.c.b16 %v4762, %v4761
        %4779 = vmatprep.subr.bf16.mxu0 0
        %4780 = vmatpush1.bf16.msra.mxu0 %v4770
        %4781 = vmatprep.subr.bf16.mxu0 0
        %4782 = vmatpush1.bf16.msra.mxu0 %v4769
        %4783 = vmatprep.subr.bf16.mxu0 0
        %4784 = vmatpush1.bf16.msra.mxu0 %v4768
        %4785 = vmatprep.subr.bf16.mxu0 0
        %4786 = vmatpush1.bf16.msra.mxu0 %v4767
        %4787 = vmatprep.subr.bf16.mxu0 0
        %4788 = vmatpush1.bf16.msra.mxu0 %v4766
        %4789 = vmatprep.subr.bf16.mxu0 0
        %4790 = vmatpush1.bf16.msra.mxu0 %v4765
        %4791 = vmatprep.subr.bf16.mxu0 0
        %4792 = vmatpush1.bf16.msra.mxu0 %v4764
        %4793 = vmatprep.subr.bf16.mxu0 0
        %4794 = vmatpush1.bf16.msra.mxu0 %v4763
        %4795 = vmatprep.subr.bf16.mxu0 0
        %4796 = vmatpush2.bf16.msra.mxu0 0
        %4797 = vmatprep.subr.bf16.mxu0 0
        %4798 = vmatpush2.bf16.msra.mxu0 0
        %4799 = vmatprep.subr.bf16.mxu0 0
        %4800 = vmatpush2.bf16.msra.mxu0 0
        %4801 = vmatprep.subr.bf16.mxu0 0
        %4802 = vmatpush2.bf16.msra.mxu0 0
        %4803 = vmatprep.subr.bf16.mxu0 0
        %4804 = vmatpush2.bf16.msra.mxu0 0
        %4805 = vmatprep.subr.bf16.mxu0 0
        %4806 = vmatpush2.bf16.msra.mxu0 0
        %4807 = vmatprep.subr.bf16.mxu0 0
        %4808 = vmatpush2.bf16.msra.mxu0 0
        %4809 = vmatprep.subr.bf16.mxu0 0
        %4810 = vmatpush2.bf16.msra.mxu0 0
        %4811 = vmatprep.mubr.bf16.mxu0 0
        %4812 = vmatmul.mubr.bf16.gmra.mxu0 %v4711
        %v4813 = vpop.f32.mrf.mxu0
        %v4814 = vadd.f32 0.0, %v4813
        %v4815 = vpop.f32.mrf.mxu0
        %v4816 = vpop.f32.mrf.mxu0
        %v4817 = vadd.f32 0.0, %v4816
        %v4818 = vpop.f32.mrf.mxu0
        %4819 = vmatprep.mubr.bf16.mxu0 0
        %4820 = vmatmul.mubr.bf16.gmra.mxu0 %v4712
        %v4821 = vpop.f32.mrf.mxu0
        %v4822 = vadd.f32 0.0, %v4821
        %v4823 = vpop.f32.mrf.mxu0
        %v4824 = vpop.f32.mrf.mxu0
        %v4825 = vadd.f32 0.0, %v4824
        %v4826 = vpop.f32.mrf.mxu0
        %4827 = vmatprep.mubr.bf16.mxu0 0
        %4828 = vmatmul.mubr.bf16.gmra.mxu0 %v4713
        %v4829 = vpop.f32.mrf.mxu0
        %v4830 = vadd.f32 0.0, %v4829
        %v4831 = vpop.f32.mrf.mxu0
        %v4832 = vpop.f32.mrf.mxu0
        %v4833 = vadd.f32 0.0, %v4832
        %v4834 = vpop.f32.mrf.mxu0
        %4835 = vmatprep.mubr.bf16.mxu0 0
        %4836 = vmatmul.mubr.bf16.gmra.mxu0 %v4714
        %v4837 = vpop.f32.mrf.mxu0
        %v4838 = vadd.f32 0.0, %v4837
        %v4839 = vpop.f32.mrf.mxu0
        %v4840 = vpop.f32.mrf.mxu0
        %v4841 = vadd.f32 0.0, %v4840
        %v4842 = vpop.f32.mrf.mxu0
        %4843 = vdwg.mxu0
        %v4844 = vadd.f32 %v3319, %v4814
        %v4845 = vadd.f32 %v3320, %v4817
        %v4846 = vadd.f32 %v3321, %v4822
        %v4847 = vadd.f32 %v3322, %v4825
        %v4848 = vadd.f32 %v3323, %v4830
        %v4849 = vadd.f32 %v3324, %v4833
        %v4850 = vadd.f32 %v3325, %v4838
        %v4851 = vadd.f32 %v3326, %v4841
        %v4852 = vpack.c.bf16 %v4666, %v4673
        %v4853 = vpack.c.bf16 %v4668, %v4667
        %v4854 = vpack.c.bf16 %v4670, %v4669
        %v4855 = vpack.c.bf16 %v4672, %v4671
        %v4856 = vmul.bf16 %v4852, %v471
        %v4857 = vmul.bf16 %v4853, %v472
        %v4858 = vmul.bf16 %v4854, %v473
        %v4859 = vmul.bf16 %v4855, %v474
        %s4860 = scalar_lea.vmem [#allocation11], 64
        %v4861 = vld [vmem:[%s4860] sm:$0xf]
        %v4862 = vld [vmem:[%s4860 + $0x4] sm:$0xf]
        %v4863 = vld [vmem:[%s4860 + $0x8] sm:$0xf]
        %v4864 = vld [vmem:[%s4860 + $0xc] sm:$0xf]
        %v4865 = vld [vmem:[%s4860 + $0x10] sm:$0xf]
        %v4866 = vld [vmem:[%s4860 + $0x14] sm:$0xf]
        %v4867 = vld [vmem:[%s4860 + $0x18] sm:$0xf]
        %v4868 = vld [vmem:[%s4860 + $0x1c] sm:$0xf]
        %v4869 = vld [vmem:[%s4860 + $0x20] sm:$0xf]
        %v4870 = vld [vmem:[%s4860 + $0x24] sm:$0xf]
        %v4871 = vld [vmem:[%s4860 + $0x28] sm:$0xf]
        %v4872 = vld [vmem:[%s4860 + $0x2c] sm:$0xf]
        %v4873 = vld [vmem:[%s4860 + $0x30] sm:$0xf]
        %v4874 = vld [vmem:[%s4860 + $0x34] sm:$0xf]
        %v4875 = vld [vmem:[%s4860 + $0x38] sm:$0xf]
        %v4876 = vld [vmem:[%s4860 + $0x3c] sm:$0xf]
        %v4893 = vunpack.c.l.b16 %v4861
        %v4894 = vunpack.c.l.b16 %v4862
        %v4895 = vunpack.c.l.b16 %v4863
        %v4896 = vunpack.c.l.b16 %v4864
        %v4897 = vunpack.c.l.b16 %v4865
        %v4898 = vunpack.c.l.b16 %v4866
        %v4899 = vunpack.c.l.b16 %v4867
        %v4900 = vunpack.c.l.b16 %v4868
        %v4901 = vunpack.c.l.b16 %v4869
        %v4902 = vunpack.c.l.b16 %v4870
        %v4903 = vunpack.c.l.b16 %v4871
        %v4904 = vunpack.c.l.b16 %v4872
        %v4905 = vunpack.c.l.b16 %v4873
        %v4906 = vunpack.c.l.b16 %v4874
        %v4907 = vunpack.c.l.b16 %v4875
        %v4908 = vunpack.c.l.b16 %v4876
        %v4909 = vpack.c.b16 %v4894, %v4893
        %v4910 = vpack.c.b16 %v4896, %v4895
        %v4911 = vpack.c.b16 %v4898, %v4897
        %v4912 = vpack.c.b16 %v4900, %v4899
        %v4913 = vpack.c.b16 %v4902, %v4901
        %v4914 = vpack.c.b16 %v4904, %v4903
        %v4915 = vpack.c.b16 %v4906, %v4905
        %v4916 = vpack.c.b16 %v4908, %v4907
        %4925 = vmatprep.subr.bf16.mxu0 0
        %4926 = vmatpush1.bf16.msra.mxu0 %v4916
        %4927 = vmatprep.subr.bf16.mxu0 0
        %4928 = vmatpush1.bf16.msra.mxu0 %v4915
        %4929 = vmatprep.subr.bf16.mxu0 0
        %4930 = vmatpush1.bf16.msra.mxu0 %v4914
        %4931 = vmatprep.subr.bf16.mxu0 0
        %4932 = vmatpush1.bf16.msra.mxu0 %v4913
        %4933 = vmatprep.subr.bf16.mxu0 0
        %4934 = vmatpush1.bf16.msra.mxu0 %v4912
        %4935 = vmatprep.subr.bf16.mxu0 0
        %4936 = vmatpush1.bf16.msra.mxu0 %v4911
        %4937 = vmatprep.subr.bf16.mxu0 0
        %4938 = vmatpush1.bf16.msra.mxu0 %v4910
        %4939 = vmatprep.subr.bf16.mxu0 0
        %4940 = vmatpush1.bf16.msra.mxu0 %v4909
        %4941 = vmatprep.subr.bf16.mxu0 0
        %4942 = vmatpush2.bf16.msra.mxu0 0
        %4943 = vmatprep.subr.bf16.mxu0 0
        %4944 = vmatpush2.bf16.msra.mxu0 0
        %4945 = vmatprep.subr.bf16.mxu0 0
        %4946 = vmatpush2.bf16.msra.mxu0 0
        %4947 = vmatprep.subr.bf16.mxu0 0
        %4948 = vmatpush2.bf16.msra.mxu0 0
        %4949 = vmatprep.subr.bf16.mxu0 0
        %4950 = vmatpush2.bf16.msra.mxu0 0
        %4951 = vmatprep.subr.bf16.mxu0 0
        %4952 = vmatpush2.bf16.msra.mxu0 0
        %4953 = vmatprep.subr.bf16.mxu0 0
        %4954 = vmatpush2.bf16.msra.mxu0 0
        %4955 = vmatprep.subr.bf16.mxu0 0
        %4956 = vmatpush2.bf16.msra.mxu0 0
        %4957 = vmatprep.mubr.bf16.mxu0 0
        %4958 = vmatmul.mubr.bf16.gmra.mxu0 %v4856
        %v4959 = vpop.f32.mrf.mxu0
        %v4960 = vadd.f32 0.0, %v4959
        %v4961 = vpop.f32.mrf.mxu0
        %v4962 = vpop.f32.mrf.mxu0
        %v4963 = vadd.f32 0.0, %v4962
        %v4964 = vpop.f32.mrf.mxu0
        %4965 = vmatprep.mubr.bf16.mxu0 0
        %4966 = vmatmul.mubr.bf16.gmra.mxu0 %v4857
        %v4967 = vpop.f32.mrf.mxu0
        %v4968 = vadd.f32 0.0, %v4967
        %v4969 = vpop.f32.mrf.mxu0
        %v4970 = vpop.f32.mrf.mxu0
        %v4971 = vadd.f32 0.0, %v4970
        %v4972 = vpop.f32.mrf.mxu0
        %4973 = vmatprep.mubr.bf16.mxu0 0
        %4974 = vmatmul.mubr.bf16.gmra.mxu0 %v4858
        %v4975 = vpop.f32.mrf.mxu0
        %v4976 = vadd.f32 0.0, %v4975
        %v4977 = vpop.f32.mrf.mxu0
        %v4978 = vpop.f32.mrf.mxu0
        %v4979 = vadd.f32 0.0, %v4978
        %v4980 = vpop.f32.mrf.mxu0
        %4981 = vmatprep.mubr.bf16.mxu0 0
        %4982 = vmatmul.mubr.bf16.gmra.mxu0 %v4859
        %v4983 = vpop.f32.mrf.mxu0
        %v4984 = vadd.f32 0.0, %v4983
        %v4985 = vpop.f32.mrf.mxu0
        %v4986 = vpop.f32.mrf.mxu0
        %v4987 = vadd.f32 0.0, %v4986
        %v4988 = vpop.f32.mrf.mxu0
        %4989 = vdwg.mxu0
        %v4990 = vadd.f32 %v4844, %v4960
        %v4991 = vadd.f32 %v4845, %v4963
        %v4992 = vadd.f32 %v4846, %v4968
        %v4993 = vadd.f32 %v4847, %v4971
        %v4994 = vadd.f32 %v4848, %v4976
        %v4995 = vadd.f32 %v4849, %v4979
        %v4996 = vadd.f32 %v4850, %v4984
        %v4997 = vadd.f32 %v4851, %v4987
        %v4998 = vrot.slane %v4673, 1
        %v5000 = vrot.slane %v4666, 1
        %v5001 = vrot.slane %v4667, 1
        %v5002 = vsel %vm728, %v5000, %v5001
        %v5003 = vrot.slane %v4668, 1
        %v5004 = vsel %vm728, %v5001, %v5003
        %v5005 = vrot.slane %v4669, 1
        %v5006 = vsel %vm728, %v5003, %v5005
        %v5007 = vrot.slane %v4670, 1
        %v5008 = vsel %vm728, %v5005, %v5007
        %v5009 = vrot.slane %v4671, 1
        %v5010 = vsel %vm728, %v5007, %v5009
        %v5011 = vrot.slane %v4672, 1
        %v5012 = vsel %vm728, %v5009, %v5011
        %v5013 = vsel %vm728, %v5011, %v4998
        %v5022 = vsel %vm728, %v4998, %v5000
        %v5023 = vpack.c.bf16 %v5002, %v5022
        %v5024 = vpack.c.bf16 %v5006, %v5004
        %v5025 = vpack.c.bf16 %v5010, %v5008
        %v5026 = vpack.c.bf16 %v5013, %v5012
        %v5027 = vmul.bf16 %v5023, %v781
        %v5028 = vmul.bf16 %v5024, %v782
        %v5029 = vmul.bf16 %v5025, %v783
        %v5030 = vmul.bf16 %v5026, %v784
        %s5031 = scalar_lea.vmem [#allocation11], 128
        %v5032 = vld [vmem:[%s5031] sm:$0xf]
        %v5033 = vld [vmem:[%s5031 + $0x4] sm:$0xf]
        %v5034 = vld [vmem:[%s5031 + $0x8] sm:$0xf]
        %v5035 = vld [vmem:[%s5031 + $0xc] sm:$0xf]
        %v5036 = vld [vmem:[%s5031 + $0x10] sm:$0xf]
        %v5037 = vld [vmem:[%s5031 + $0x14] sm:$0xf]
        %v5038 = vld [vmem:[%s5031 + $0x18] sm:$0xf]
        %v5039 = vld [vmem:[%s5031 + $0x1c] sm:$0xf]
        %v5040 = vld [vmem:[%s5031 + $0x20] sm:$0xf]
        %v5041 = vld [vmem:[%s5031 + $0x24] sm:$0xf]
        %v5042 = vld [vmem:[%s5031 + $0x28] sm:$0xf]
        %v5043 = vld [vmem:[%s5031 + $0x2c] sm:$0xf]
        %v5044 = vld [vmem:[%s5031 + $0x30] sm:$0xf]
        %v5045 = vld [vmem:[%s5031 + $0x34] sm:$0xf]
        %v5046 = vld [vmem:[%s5031 + $0x38] sm:$0xf]
        %v5047 = vld [vmem:[%s5031 + $0x3c] sm:$0xf]
        %v5064 = vunpack.c.l.b16 %v5032
        %v5065 = vunpack.c.l.b16 %v5033
        %v5066 = vunpack.c.l.b16 %v5034
        %v5067 = vunpack.c.l.b16 %v5035
        %v5068 = vunpack.c.l.b16 %v5036
        %v5069 = vunpack.c.l.b16 %v5037
        %v5070 = vunpack.c.l.b16 %v5038
        %v5071 = vunpack.c.l.b16 %v5039
        %v5072 = vunpack.c.l.b16 %v5040
        %v5073 = vunpack.c.l.b16 %v5041
        %v5074 = vunpack.c.l.b16 %v5042
        %v5075 = vunpack.c.l.b16 %v5043
        %v5076 = vunpack.c.l.b16 %v5044
        %v5077 = vunpack.c.l.b16 %v5045
        %v5078 = vunpack.c.l.b16 %v5046
        %v5079 = vunpack.c.l.b16 %v5047
        %v5080 = vpack.c.b16 %v5065, %v5064
        %v5081 = vpack.c.b16 %v5067, %v5066
        %v5082 = vpack.c.b16 %v5069, %v5068
        %v5083 = vpack.c.b16 %v5071, %v5070
        %v5084 = vpack.c.b16 %v5073, %v5072
        %v5085 = vpack.c.b16 %v5075, %v5074
        %v5086 = vpack.c.b16 %v5077, %v5076
        %v5087 = vpack.c.b16 %v5079, %v5078
        %5096 = vmatprep.subr.bf16.mxu0 0
        %5097 = vmatpush1.bf16.msra.mxu0 %v5087
        %5098 = vmatprep.subr.bf16.mxu0 0
        %5099 = vmatpush1.bf16.msra.mxu0 %v5086
        %5100 = vmatprep.subr.bf16.mxu0 0
        %5101 = vmatpush1.bf16.msra.mxu0 %v5085
        %5102 = vmatprep.subr.bf16.mxu0 0
        %5103 = vmatpush1.bf16.msra.mxu0 %v5084
        %5104 = vmatprep.subr.bf16.mxu0 0
        %5105 = vmatpush1.bf16.msra.mxu0 %v5083
        %5106 = vmatprep.subr.bf16.mxu0 0
        %5107 = vmatpush1.bf16.msra.mxu0 %v5082
        %5108 = vmatprep.subr.bf16.mxu0 0
        %5109 = vmatpush1.bf16.msra.mxu0 %v5081
        %5110 = vmatprep.subr.bf16.mxu0 0
        %5111 = vmatpush1.bf16.msra.mxu0 %v5080
        %5112 = vmatprep.subr.bf16.mxu0 0
        %5113 = vmatpush2.bf16.msra.mxu0 0
        %5114 = vmatprep.subr.bf16.mxu0 0
        %5115 = vmatpush2.bf16.msra.mxu0 0
        %5116 = vmatprep.subr.bf16.mxu0 0
        %5117 = vmatpush2.bf16.msra.mxu0 0
        %5118 = vmatprep.subr.bf16.mxu0 0
        %5119 = vmatpush2.bf16.msra.mxu0 0
        %5120 = vmatprep.subr.bf16.mxu0 0
        %5121 = vmatpush2.bf16.msra.mxu0 0
        %5122 = vmatprep.subr.bf16.mxu0 0
        %5123 = vmatpush2.bf16.msra.mxu0 0
        %5124 = vmatprep.subr.bf16.mxu0 0
        %5125 = vmatpush2.bf16.msra.mxu0 0
        %5126 = vmatprep.subr.bf16.mxu0 0
        %5127 = vmatpush2.bf16.msra.mxu0 0
        %5128 = vmatprep.mubr.bf16.mxu0 0
        %5129 = vmatmul.mubr.bf16.gmra.mxu0 %v5027
        %v5130 = vpop.f32.mrf.mxu0
        %v5131 = vadd.f32 0.0, %v5130
        %v5132 = vpop.f32.mrf.mxu0
        %v5133 = vpop.f32.mrf.mxu0
        %v5134 = vadd.f32 0.0, %v5133
        %v5135 = vpop.f32.mrf.mxu0
        %5136 = vmatprep.mubr.bf16.mxu0 0
        %5137 = vmatmul.mubr.bf16.gmra.mxu0 %v5028
        %v5138 = vpop.f32.mrf.mxu0
        %v5139 = vadd.f32 0.0, %v5138
        %v5140 = vpop.f32.mrf.mxu0
        %v5141 = vpop.f32.mrf.mxu0
        %v5142 = vadd.f32 0.0, %v5141
        %v5143 = vpop.f32.mrf.mxu0
        %5144 = vmatprep.mubr.bf16.mxu0 0
        %5145 = vmatmul.mubr.bf16.gmra.mxu0 %v5029
        %v5146 = vpop.f32.mrf.mxu0
        %v5147 = vadd.f32 0.0, %v5146
        %v5148 = vpop.f32.mrf.mxu0
        %v5149 = vpop.f32.mrf.mxu0
        %v5150 = vadd.f32 0.0, %v5149
        %v5151 = vpop.f32.mrf.mxu0
        %5152 = vmatprep.mubr.bf16.mxu0 0
        %5153 = vmatmul.mubr.bf16.gmra.mxu0 %v5030
        %v5154 = vpop.f32.mrf.mxu0
        %v5155 = vadd.f32 0.0, %v5154
        %v5156 = vpop.f32.mrf.mxu0
        %v5157 = vpop.f32.mrf.mxu0
        %v5158 = vadd.f32 0.0, %v5157
        %v5159 = vpop.f32.mrf.mxu0
        %5160 = vdwg.mxu0
        %v5161 = vadd.f32 %v4990, %v5131
        %v5162 = vadd.f32 %v4991, %v5134
        %v5163 = vadd.f32 %v4992, %v5139
        %v5164 = vadd.f32 %v4993, %v5142
        %v5165 = vadd.f32 %v4994, %v5147
        %v5166 = vadd.f32 %v4995, %v5150
        %v5167 = vadd.f32 %v4996, %v5155
        %v5168 = vadd.f32 %v4997, %v5158
        %v5169 = vpack.c.bf16 %v4689, %v4706
        %v5170 = vpack.c.bf16 %v4693, %v4691
        %v5171 = vpack.c.bf16 %v4697, %v4695
        %v5172 = vpack.c.bf16 %v4678, %v4698
        %v5173 = vmul.bf16 %v5169, %v960
        %v5174 = vmul.bf16 %v5170, %v961
        %v5175 = vmul.bf16 %v5171, %v962
        %v5176 = vmul.bf16 %v5172, %v963
        %s5177 = scalar_lea.vmem [#allocation11], 192
        %v5178 = vld [vmem:[%s5177] sm:$0xf]
        %v5179 = vld [vmem:[%s5177 + $0x4] sm:$0xf]
        %v5180 = vld [vmem:[%s5177 + $0x8] sm:$0xf]
        %v5181 = vld [vmem:[%s5177 + $0xc] sm:$0xf]
        %v5182 = vld [vmem:[%s5177 + $0x10] sm:$0xf]
        %v5183 = vld [vmem:[%s5177 + $0x14] sm:$0xf]
        %v5184 = vld [vmem:[%s5177 + $0x18] sm:$0xf]
        %v5185 = vld [vmem:[%s5177 + $0x1c] sm:$0xf]
        %v5186 = vld [vmem:[%s5177 + $0x20] sm:$0xf]
        %v5187 = vld [vmem:[%s5177 + $0x24] sm:$0xf]
        %v5188 = vld [vmem:[%s5177 + $0x28] sm:$0xf]
        %v5189 = vld [vmem:[%s5177 + $0x2c] sm:$0xf]
        %v5190 = vld [vmem:[%s5177 + $0x30] sm:$0xf]
        %v5191 = vld [vmem:[%s5177 + $0x34] sm:$0xf]
        %v5192 = vld [vmem:[%s5177 + $0x38] sm:$0xf]
        %v5193 = vld [vmem:[%s5177 + $0x3c] sm:$0xf]
        %v5210 = vunpack.c.l.b16 %v5178
        %v5211 = vunpack.c.l.b16 %v5179
        %v5212 = vunpack.c.l.b16 %v5180
        %v5213 = vunpack.c.l.b16 %v5181
        %v5214 = vunpack.c.l.b16 %v5182
        %v5215 = vunpack.c.l.b16 %v5183
        %v5216 = vunpack.c.l.b16 %v5184
        %v5217 = vunpack.c.l.b16 %v5185
        %v5218 = vunpack.c.l.b16 %v5186
        %v5219 = vunpack.c.l.b16 %v5187
        %v5220 = vunpack.c.l.b16 %v5188
        %v5221 = vunpack.c.l.b16 %v5189
        %v5222 = vunpack.c.l.b16 %v5190
        %v5223 = vunpack.c.l.b16 %v5191
        %v5224 = vunpack.c.l.b16 %v5192
        %v5225 = vunpack.c.l.b16 %v5193
        %v5226 = vpack.c.b16 %v5211, %v5210
        %v5227 = vpack.c.b16 %v5213, %v5212
        %v5228 = vpack.c.b16 %v5215, %v5214
        %v5229 = vpack.c.b16 %v5217, %v5216
        %v5230 = vpack.c.b16 %v5219, %v5218
        %v5231 = vpack.c.b16 %v5221, %v5220
        %v5232 = vpack.c.b16 %v5223, %v5222
        %v5233 = vpack.c.b16 %v5225, %v5224
        %5242 = vmatprep.subr.bf16.mxu0 0
        %5243 = vmatpush1.bf16.msra.mxu0 %v5233
        %5244 = vmatprep.subr.bf16.mxu0 0
        %5245 = vmatpush1.bf16.msra.mxu0 %v5232
        %5246 = vmatprep.subr.bf16.mxu0 0
        %5247 = vmatpush1.bf16.msra.mxu0 %v5231
        %5248 = vmatprep.subr.bf16.mxu0 0
        %5249 = vmatpush1.bf16.msra.mxu0 %v5230
        %5250 = vmatprep.subr.bf16.mxu0 0
        %5251 = vmatpush1.bf16.msra.mxu0 %v5229
        %5252 = vmatprep.subr.bf16.mxu0 0
        %5253 = vmatpush1.bf16.msra.mxu0 %v5228
        %5254 = vmatprep.subr.bf16.mxu0 0
        %5255 = vmatpush1.bf16.msra.mxu0 %v5227
        %5256 = vmatprep.subr.bf16.mxu0 0
        %5257 = vmatpush1.bf16.msra.mxu0 %v5226
        %5258 = vmatprep.subr.bf16.mxu0 0
        %5259 = vmatpush2.bf16.msra.mxu0 0
        %5260 = vmatprep.subr.bf16.mxu0 0
        %5261 = vmatpush2.bf16.msra.mxu0 0
        %5262 = vmatprep.subr.bf16.mxu0 0
        %5263 = vmatpush2.bf16.msra.mxu0 0
        %5264 = vmatprep.subr.bf16.mxu0 0
        %5265 = vmatpush2.bf16.msra.mxu0 0
        %5266 = vmatprep.subr.bf16.mxu0 0
        %5267 = vmatpush2.bf16.msra.mxu0 0
        %5268 = vmatprep.subr.bf16.mxu0 0
        %5269 = vmatpush2.bf16.msra.mxu0 0
        %5270 = vmatprep.subr.bf16.mxu0 0
        %5271 = vmatpush2.bf16.msra.mxu0 0
        %5272 = vmatprep.subr.bf16.mxu0 0
        %5273 = vmatpush2.bf16.msra.mxu0 0
        %5274 = vmatprep.mubr.bf16.mxu0 0
        %5275 = vmatmul.mubr.bf16.gmra.mxu0 %v5173
        %v5276 = vpop.f32.mrf.mxu0
        %v5277 = vadd.f32 0.0, %v5276
        %v5278 = vpop.f32.mrf.mxu0
        %v5279 = vpop.f32.mrf.mxu0
        %v5280 = vadd.f32 0.0, %v5279
        %v5281 = vpop.f32.mrf.mxu0
        %5282 = vmatprep.mubr.bf16.mxu0 0
        %5283 = vmatmul.mubr.bf16.gmra.mxu0 %v5174
        %v5284 = vpop.f32.mrf.mxu0
        %v5285 = vadd.f32 0.0, %v5284
        %v5286 = vpop.f32.mrf.mxu0
        %v5287 = vpop.f32.mrf.mxu0
        %v5288 = vadd.f32 0.0, %v5287
        %v5289 = vpop.f32.mrf.mxu0
        %5290 = vmatprep.mubr.bf16.mxu0 0
        %5291 = vmatmul.mubr.bf16.gmra.mxu0 %v5175
        %v5292 = vpop.f32.mrf.mxu0
        %v5293 = vadd.f32 0.0, %v5292
        %v5294 = vpop.f32.mrf.mxu0
        %v5295 = vpop.f32.mrf.mxu0
        %v5296 = vadd.f32 0.0, %v5295
        %v5297 = vpop.f32.mrf.mxu0
        %5298 = vmatprep.mubr.bf16.mxu0 0
        %5299 = vmatmul.mubr.bf16.gmra.mxu0 %v5176
        %v5300 = vpop.f32.mrf.mxu0
        %v5301 = vadd.f32 0.0, %v5300
        %v5302 = vpop.f32.mrf.mxu0
        %v5303 = vpop.f32.mrf.mxu0
        %v5304 = vadd.f32 0.0, %v5303
        %v5305 = vpop.f32.mrf.mxu0
        %5306 = vdwg.mxu0
        %v5307 = vadd.f32 %v5161, %v5277
        %v5308 = vadd.f32 %v5162, %v5280
        %v5309 = vadd.f32 %v5163, %v5285
        %v5310 = vadd.f32 %v5164, %v5288
        %v5311 = vadd.f32 %v5165, %v5293
        %v5312 = vadd.f32 %v5166, %v5296
        %v5313 = vadd.f32 %v5167, %v5301
        %v5314 = vadd.f32 %v5168, %v5304
        %v5315 = vpack.c.bf16 %v4667, %v4666
        %v5316 = vpack.c.bf16 %v4669, %v4668
        %v5317 = vpack.c.bf16 %v4671, %v4670
        %v5318 = vpack.c.bf16 %v4673, %v4672
        %s5319 = scalar_lea.vmem [#allocation11], 256
        %v5320 = vld [vmem:[%s5319] sm:$0xf]
        %v5321 = vld [vmem:[%s5319 + $0x4] sm:$0xf]
        %v5322 = vld [vmem:[%s5319 + $0x8] sm:$0xf]
        %v5323 = vld [vmem:[%s5319 + $0xc] sm:$0xf]
        %v5324 = vld [vmem:[%s5319 + $0x10] sm:$0xf]
        %v5325 = vld [vmem:[%s5319 + $0x14] sm:$0xf]
        %v5326 = vld [vmem:[%s5319 + $0x18] sm:$0xf]
        %v5327 = vld [vmem:[%s5319 + $0x1c] sm:$0xf]
        %v5328 = vld [vmem:[%s5319 + $0x20] sm:$0xf]
        %v5329 = vld [vmem:[%s5319 + $0x24] sm:$0xf]
        %v5330 = vld [vmem:[%s5319 + $0x28] sm:$0xf]
        %v5331 = vld [vmem:[%s5319 + $0x2c] sm:$0xf]
        %v5332 = vld [vmem:[%s5319 + $0x30] sm:$0xf]
        %v5333 = vld [vmem:[%s5319 + $0x34] sm:$0xf]
        %v5334 = vld [vmem:[%s5319 + $0x38] sm:$0xf]
        %v5335 = vld [vmem:[%s5319 + $0x3c] sm:$0xf]
        %v5352 = vunpack.c.l.b16 %v5320
        %v5353 = vunpack.c.l.b16 %v5321
        %v5354 = vunpack.c.l.b16 %v5322
        %v5355 = vunpack.c.l.b16 %v5323
        %v5356 = vunpack.c.l.b16 %v5324
        %v5357 = vunpack.c.l.b16 %v5325
        %v5358 = vunpack.c.l.b16 %v5326
        %v5359 = vunpack.c.l.b16 %v5327
        %v5360 = vunpack.c.l.b16 %v5328
        %v5361 = vunpack.c.l.b16 %v5329
        %v5362 = vunpack.c.l.b16 %v5330
        %v5363 = vunpack.c.l.b16 %v5331
        %v5364 = vunpack.c.l.b16 %v5332
        %v5365 = vunpack.c.l.b16 %v5333
        %v5366 = vunpack.c.l.b16 %v5334
        %v5367 = vunpack.c.l.b16 %v5335
        %v5368 = vpack.c.b16 %v5353, %v5352
        %v5369 = vpack.c.b16 %v5355, %v5354
        %v5370 = vpack.c.b16 %v5357, %v5356
        %v5371 = vpack.c.b16 %v5359, %v5358
        %v5372 = vpack.c.b16 %v5361, %v5360
        %v5373 = vpack.c.b16 %v5363, %v5362
        %v5374 = vpack.c.b16 %v5365, %v5364
        %v5375 = vpack.c.b16 %v5367, %v5366
        %5384 = vmatprep.subr.bf16.mxu0 0
        %5385 = vmatpush1.bf16.msra.mxu0 %v5375
        %5386 = vmatprep.subr.bf16.mxu0 0
        %5387 = vmatpush1.bf16.msra.mxu0 %v5374
        %5388 = vmatprep.subr.bf16.mxu0 0
        %5389 = vmatpush1.bf16.msra.mxu0 %v5373
        %5390 = vmatprep.subr.bf16.mxu0 0
        %5391 = vmatpush1.bf16.msra.mxu0 %v5372
        %5392 = vmatprep.subr.bf16.mxu0 0
        %5393 = vmatpush1.bf16.msra.mxu0 %v5371
        %5394 = vmatprep.subr.bf16.mxu0 0
        %5395 = vmatpush1.bf16.msra.mxu0 %v5370
        %5396 = vmatprep.subr.bf16.mxu0 0
        %5397 = vmatpush1.bf16.msra.mxu0 %v5369
        %5398 = vmatprep.subr.bf16.mxu0 0
        %5399 = vmatpush1.bf16.msra.mxu0 %v5368
        %5400 = vmatprep.subr.bf16.mxu0 0
        %5401 = vmatpush2.bf16.msra.mxu0 0
        %5402 = vmatprep.subr.bf16.mxu0 0
        %5403 = vmatpush2.bf16.msra.mxu0 0
        %5404 = vmatprep.subr.bf16.mxu0 0
        %5405 = vmatpush2.bf16.msra.mxu0 0
        %5406 = vmatprep.subr.bf16.mxu0 0
        %5407 = vmatpush2.bf16.msra.mxu0 0
        %5408 = vmatprep.subr.bf16.mxu0 0
        %5409 = vmatpush2.bf16.msra.mxu0 0
        %5410 = vmatprep.subr.bf16.mxu0 0
        %5411 = vmatpush2.bf16.msra.mxu0 0
        %5412 = vmatprep.subr.bf16.mxu0 0
        %5413 = vmatpush2.bf16.msra.mxu0 0
        %5414 = vmatprep.subr.bf16.mxu0 0
        %5415 = vmatpush2.bf16.msra.mxu0 0
        %5416 = vmatprep.mubr.bf16.mxu0 0
        %5417 = vmatmul.mubr.bf16.gmra.mxu0 %v5315
        %v5418 = vpop.f32.mrf.mxu0
        %v5419 = vadd.f32 0.0, %v5418
        %v5420 = vpop.f32.mrf.mxu0
        %v5421 = vpop.f32.mrf.mxu0
        %v5422 = vadd.f32 0.0, %v5421
        %v5423 = vpop.f32.mrf.mxu0
        %5424 = vmatprep.mubr.bf16.mxu0 0
        %5425 = vmatmul.mubr.bf16.gmra.mxu0 %v5316
        %v5426 = vpop.f32.mrf.mxu0
        %v5427 = vadd.f32 0.0, %v5426
        %v5428 = vpop.f32.mrf.mxu0
        %v5429 = vpop.f32.mrf.mxu0
        %v5430 = vadd.f32 0.0, %v5429
        %v5431 = vpop.f32.mrf.mxu0
        %5432 = vmatprep.mubr.bf16.mxu0 0
        %5433 = vmatmul.mubr.bf16.gmra.mxu0 %v5317
        %v5434 = vpop.f32.mrf.mxu0
        %v5435 = vadd.f32 0.0, %v5434
        %v5436 = vpop.f32.mrf.mxu0
        %v5437 = vpop.f32.mrf.mxu0
        %v5438 = vadd.f32 0.0, %v5437
        %v5439 = vpop.f32.mrf.mxu0
        %5440 = vmatprep.mubr.bf16.mxu0 0
        %5441 = vmatmul.mubr.bf16.gmra.mxu0 %v5318
        %v5442 = vpop.f32.mrf.mxu0
        %v5443 = vadd.f32 0.0, %v5442
        %v5444 = vpop.f32.mrf.mxu0
        %v5445 = vpop.f32.mrf.mxu0
        %v5446 = vadd.f32 0.0, %v5445
        %v5447 = vpop.f32.mrf.mxu0
        %5448 = vdwg.mxu0
        %v5449 = vadd.f32 %v5307, %v5419
        %v5450 = vadd.f32 %v5308, %v5422
        %v5451 = vadd.f32 %v5309, %v5427
        %v5452 = vadd.f32 %v5310, %v5430
        %v5453 = vadd.f32 %v5311, %v5435
        %v5454 = vadd.f32 %v5312, %v5438
        %v5455 = vadd.f32 %v5313, %v5443
        %v5456 = vadd.f32 %v5314, %v5446
        %v5457 = vpack.c.bf16 %v5004, %v5002
        %v5458 = vpack.c.bf16 %v5008, %v5006
        %v5459 = vpack.c.bf16 %v5012, %v5010
        %v5460 = vpack.c.bf16 %v5022, %v5013
        %v5461 = vmul.bf16 %v5457, %v1281
        %v5462 = vmul.bf16 %v5458, %v1282
        %v5463 = vmul.bf16 %v5459, %v1283
        %v5464 = vmul.bf16 %v5460, %v1284
        %s5465 = scalar_lea.vmem [#allocation11], 320
        %v5466 = vld [vmem:[%s5465] sm:$0xf]
        %v5467 = vld [vmem:[%s5465 + $0x4] sm:$0xf]
        %v5468 = vld [vmem:[%s5465 + $0x8] sm:$0xf]
        %v5469 = vld [vmem:[%s5465 + $0xc] sm:$0xf]
        %v5470 = vld [vmem:[%s5465 + $0x10] sm:$0xf]
        %v5471 = vld [vmem:[%s5465 + $0x14] sm:$0xf]
        %v5472 = vld [vmem:[%s5465 + $0x18] sm:$0xf]
        %v5473 = vld [vmem:[%s5465 + $0x1c] sm:$0xf]
        %v5474 = vld [vmem:[%s5465 + $0x20] sm:$0xf]
        %v5475 = vld [vmem:[%s5465 + $0x24] sm:$0xf]
        %v5476 = vld [vmem:[%s5465 + $0x28] sm:$0xf]
        %v5477 = vld [vmem:[%s5465 + $0x2c] sm:$0xf]
        %v5478 = vld [vmem:[%s5465 + $0x30] sm:$0xf]
        %v5479 = vld [vmem:[%s5465 + $0x34] sm:$0xf]
        %v5480 = vld [vmem:[%s5465 + $0x38] sm:$0xf]
        %v5481 = vld [vmem:[%s5465 + $0x3c] sm:$0xf]
        %v5498 = vunpack.c.l.b16 %v5466
        %v5499 = vunpack.c.l.b16 %v5467
        %v5500 = vunpack.c.l.b16 %v5468
        %v5501 = vunpack.c.l.b16 %v5469
        %v5502 = vunpack.c.l.b16 %v5470
        %v5503 = vunpack.c.l.b16 %v5471
        %v5504 = vunpack.c.l.b16 %v5472
        %v5505 = vunpack.c.l.b16 %v5473
        %v5506 = vunpack.c.l.b16 %v5474
        %v5507 = vunpack.c.l.b16 %v5475
        %v5508 = vunpack.c.l.b16 %v5476
        %v5509 = vunpack.c.l.b16 %v5477
        %v5510 = vunpack.c.l.b16 %v5478
        %v5511 = vunpack.c.l.b16 %v5479
        %v5512 = vunpack.c.l.b16 %v5480
        %v5513 = vunpack.c.l.b16 %v5481
        %v5514 = vpack.c.b16 %v5499, %v5498
        %v5515 = vpack.c.b16 %v5501, %v5500
        %v5516 = vpack.c.b16 %v5503, %v5502
        %v5517 = vpack.c.b16 %v5505, %v5504
        %v5518 = vpack.c.b16 %v5507, %v5506
        %v5519 = vpack.c.b16 %v5509, %v5508
        %v5520 = vpack.c.b16 %v5511, %v5510
        %v5521 = vpack.c.b16 %v5513, %v5512
        %5530 = vmatprep.subr.bf16.mxu0 0
        %5531 = vmatpush1.bf16.msra.mxu0 %v5521
        %5532 = vmatprep.subr.bf16.mxu0 0
        %5533 = vmatpush1.bf16.msra.mxu0 %v5520
        %5534 = vmatprep.subr.bf16.mxu0 0
        %5535 = vmatpush1.bf16.msra.mxu0 %v5519
        %5536 = vmatprep.subr.bf16.mxu0 0
        %5537 = vmatpush1.bf16.msra.mxu0 %v5518
        %5538 = vmatprep.subr.bf16.mxu0 0
        %5539 = vmatpush1.bf16.msra.mxu0 %v5517
        %5540 = vmatprep.subr.bf16.mxu0 0
        %5541 = vmatpush1.bf16.msra.mxu0 %v5516
        %5542 = vmatprep.subr.bf16.mxu0 0
        %5543 = vmatpush1.bf16.msra.mxu0 %v5515
        %5544 = vmatprep.subr.bf16.mxu0 0
        %5545 = vmatpush1.bf16.msra.mxu0 %v5514
        %5546 = vmatprep.subr.bf16.mxu0 0
        %5547 = vmatpush2.bf16.msra.mxu0 0
        %5548 = vmatprep.subr.bf16.mxu0 0
        %5549 = vmatpush2.bf16.msra.mxu0 0
        %5550 = vmatprep.subr.bf16.mxu0 0
        %5551 = vmatpush2.bf16.msra.mxu0 0
        %5552 = vmatprep.subr.bf16.mxu0 0
        %5553 = vmatpush2.bf16.msra.mxu0 0
        %5554 = vmatprep.subr.bf16.mxu0 0
        %5555 = vmatpush2.bf16.msra.mxu0 0
        %5556 = vmatprep.subr.bf16.mxu0 0
        %5557 = vmatpush2.bf16.msra.mxu0 0
        %5558 = vmatprep.subr.bf16.mxu0 0
        %5559 = vmatpush2.bf16.msra.mxu0 0
        %5560 = vmatprep.subr.bf16.mxu0 0
        %5561 = vmatpush2.bf16.msra.mxu0 0
        %5562 = vmatprep.mubr.bf16.mxu0 0
        %5563 = vmatmul.mubr.bf16.gmra.mxu0 %v5461
        %v5564 = vpop.f32.mrf.mxu0
        %v5565 = vadd.f32 0.0, %v5564
        %v5566 = vpop.f32.mrf.mxu0
        %v5567 = vpop.f32.mrf.mxu0
        %v5568 = vadd.f32 0.0, %v5567
        %v5569 = vpop.f32.mrf.mxu0
        %5570 = vmatprep.mubr.bf16.mxu0 0
        %5571 = vmatmul.mubr.bf16.gmra.mxu0 %v5462
        %v5572 = vpop.f32.mrf.mxu0
        %v5573 = vadd.f32 0.0, %v5572
        %v5574 = vpop.f32.mrf.mxu0
        %v5575 = vpop.f32.mrf.mxu0
        %v5576 = vadd.f32 0.0, %v5575
        %v5577 = vpop.f32.mrf.mxu0
        %5578 = vmatprep.mubr.bf16.mxu0 0
        %5579 = vmatmul.mubr.bf16.gmra.mxu0 %v5463
        %v5580 = vpop.f32.mrf.mxu0
        %v5581 = vadd.f32 0.0, %v5580
        %v5582 = vpop.f32.mrf.mxu0
        %v5583 = vpop.f32.mrf.mxu0
        %v5584 = vadd.f32 0.0, %v5583
        %v5585 = vpop.f32.mrf.mxu0
        %5586 = vmatprep.mubr.bf16.mxu0 0
        %5587 = vmatmul.mubr.bf16.gmra.mxu0 %v5464
        %v5588 = vpop.f32.mrf.mxu0
        %v5589 = vadd.f32 0.0, %v5588
        %v5590 = vpop.f32.mrf.mxu0
        %v5591 = vpop.f32.mrf.mxu0
        %v5592 = vadd.f32 0.0, %v5591
        %v5593 = vpop.f32.mrf.mxu0
        %5594 = vdwg.mxu0
        %v5595 = vadd.f32 %v5449, %v5565
        %v5596 = vadd.f32 %v5450, %v5568
        %v5597 = vadd.f32 %v5451, %v5573
        %v5598 = vadd.f32 %v5452, %v5576
        %v5599 = vadd.f32 %v5453, %v5581
        %v5600 = vadd.f32 %v5454, %v5584
        %v5601 = vadd.f32 %v5455, %v5589
        %v5602 = vadd.f32 %v5456, %v5592
        %v5603 = vmul.bf16 %v4708, %v1456
        %v5604 = vmul.bf16 %v4709, %v1457
        %v5605 = vmul.bf16 %v4710, %v1458
        %v5606 = vmul.bf16 %v4707, %v1459
        %s5607 = scalar_lea.vmem [#allocation11], 384
        %v5608 = vld [vmem:[%s5607] sm:$0xf]
        %v5609 = vld [vmem:[%s5607 + $0x4] sm:$0xf]
        %v5610 = vld [vmem:[%s5607 + $0x8] sm:$0xf]
        %v5611 = vld [vmem:[%s5607 + $0xc] sm:$0xf]
        %v5612 = vld [vmem:[%s5607 + $0x10] sm:$0xf]
        %v5613 = vld [vmem:[%s5607 + $0x14] sm:$0xf]
        %v5614 = vld [vmem:[%s5607 + $0x18] sm:$0xf]
        %v5615 = vld [vmem:[%s5607 + $0x1c] sm:$0xf]
        %v5616 = vld [vmem:[%s5607 + $0x20] sm:$0xf]
        %v5617 = vld [vmem:[%s5607 + $0x24] sm:$0xf]
        %v5618 = vld [vmem:[%s5607 + $0x28] sm:$0xf]
        %v5619 = vld [vmem:[%s5607 + $0x2c] sm:$0xf]
        %v5620 = vld [vmem:[%s5607 + $0x30] sm:$0xf]
        %v5621 = vld [vmem:[%s5607 + $0x34] sm:$0xf]
        %v5622 = vld [vmem:[%s5607 + $0x38] sm:$0xf]
        %v5623 = vld [vmem:[%s5607 + $0x3c] sm:$0xf]
        %v5640 = vunpack.c.l.b16 %v5608
        %v5641 = vunpack.c.l.b16 %v5609
        %v5642 = vunpack.c.l.b16 %v5610
        %v5643 = vunpack.c.l.b16 %v5611
        %v5644 = vunpack.c.l.b16 %v5612
        %v5645 = vunpack.c.l.b16 %v5613
        %v5646 = vunpack.c.l.b16 %v5614
        %v5647 = vunpack.c.l.b16 %v5615
        %v5648 = vunpack.c.l.b16 %v5616
        %v5649 = vunpack.c.l.b16 %v5617
        %v5650 = vunpack.c.l.b16 %v5618
        %v5651 = vunpack.c.l.b16 %v5619
        %v5652 = vunpack.c.l.b16 %v5620
        %v5653 = vunpack.c.l.b16 %v5621
        %v5654 = vunpack.c.l.b16 %v5622
        %v5655 = vunpack.c.l.b16 %v5623
        %v5656 = vpack.c.b16 %v5641, %v5640
        %v5657 = vpack.c.b16 %v5643, %v5642
        %v5658 = vpack.c.b16 %v5645, %v5644
        %v5659 = vpack.c.b16 %v5647, %v5646
        %v5660 = vpack.c.b16 %v5649, %v5648
        %v5661 = vpack.c.b16 %v5651, %v5650
        %v5662 = vpack.c.b16 %v5653, %v5652
        %v5663 = vpack.c.b16 %v5655, %v5654
        %5672 = vmatprep.subr.bf16.mxu0 0
        %5673 = vmatpush1.bf16.msra.mxu0 %v5663
        %5674 = vmatprep.subr.bf16.mxu0 0
        %5675 = vmatpush1.bf16.msra.mxu0 %v5662
        %5676 = vmatprep.subr.bf16.mxu0 0
        %5677 = vmatpush1.bf16.msra.mxu0 %v5661
        %5678 = vmatprep.subr.bf16.mxu0 0
        %5679 = vmatpush1.bf16.msra.mxu0 %v5660
        %5680 = vmatprep.subr.bf16.mxu0 0
        %5681 = vmatpush1.bf16.msra.mxu0 %v5659
        %5682 = vmatprep.subr.bf16.mxu0 0
        %5683 = vmatpush1.bf16.msra.mxu0 %v5658
        %5684 = vmatprep.subr.bf16.mxu0 0
        %5685 = vmatpush1.bf16.msra.mxu0 %v5657
        %5686 = vmatprep.subr.bf16.mxu0 0
        %5687 = vmatpush1.bf16.msra.mxu0 %v5656
        %5688 = vmatprep.subr.bf16.mxu0 0
        %5689 = vmatpush2.bf16.msra.mxu0 0
        %5690 = vmatprep.subr.bf16.mxu0 0
        %5691 = vmatpush2.bf16.msra.mxu0 0
        %5692 = vmatprep.subr.bf16.mxu0 0
        %5693 = vmatpush2.bf16.msra.mxu0 0
        %5694 = vmatprep.subr.bf16.mxu0 0
        %5695 = vmatpush2.bf16.msra.mxu0 0
        %5696 = vmatprep.subr.bf16.mxu0 0
        %5697 = vmatpush2.bf16.msra.mxu0 0
        %5698 = vmatprep.subr.bf16.mxu0 0
        %5699 = vmatpush2.bf16.msra.mxu0 0
        %5700 = vmatprep.subr.bf16.mxu0 0
        %5701 = vmatpush2.bf16.msra.mxu0 0
        %5702 = vmatprep.subr.bf16.mxu0 0
        %5703 = vmatpush2.bf16.msra.mxu0 0
        %5704 = vmatprep.mubr.bf16.mxu0 0
        %5705 = vmatmul.mubr.bf16.gmra.mxu0 %v5603
        %v5706 = vpop.f32.mrf.mxu0
        %v5707 = vadd.f32 0.0, %v5706
        %v5708 = vpop.f32.mrf.mxu0
        %v5709 = vpop.f32.mrf.mxu0
        %v5710 = vadd.f32 0.0, %v5709
        %v5711 = vpop.f32.mrf.mxu0
        %5712 = vmatprep.mubr.bf16.mxu0 0
        %5713 = vmatmul.mubr.bf16.gmra.mxu0 %v5604
        %v5714 = vpop.f32.mrf.mxu0
        %v5715 = vadd.f32 0.0, %v5714
        %v5716 = vpop.f32.mrf.mxu0
        %v5717 = vpop.f32.mrf.mxu0
        %v5718 = vadd.f32 0.0, %v5717
        %v5719 = vpop.f32.mrf.mxu0
        %5720 = vmatprep.mubr.bf16.mxu0 0
        %5721 = vmatmul.mubr.bf16.gmra.mxu0 %v5605
        %v5722 = vpop.f32.mrf.mxu0
        %v5723 = vadd.f32 0.0, %v5722
        %v5724 = vpop.f32.mrf.mxu0
        %v5725 = vpop.f32.mrf.mxu0
        %v5726 = vadd.f32 0.0, %v5725
        %v5727 = vpop.f32.mrf.mxu0
        %5728 = vmatprep.mubr.bf16.mxu0 0
        %5729 = vmatmul.mubr.bf16.gmra.mxu0 %v5606
        %v5730 = vpop.f32.mrf.mxu0
        %v5731 = vadd.f32 0.0, %v5730
        %v5732 = vpop.f32.mrf.mxu0
        %v5733 = vpop.f32.mrf.mxu0
        %v5734 = vadd.f32 0.0, %v5733
        %v5735 = vpop.f32.mrf.mxu0
        %5736 = vdwg.mxu0
        %v5737 = vadd.f32 %v5595, %v5707
        %v5738 = vadd.f32 %v5596, %v5710
        %v5739 = vadd.f32 %v5597, %v5715
        %v5740 = vadd.f32 %v5598, %v5718
        %v5741 = vadd.f32 %v5599, %v5723
        %v5742 = vadd.f32 %v5600, %v5726
        %v5743 = vadd.f32 %v5601, %v5731
        %v5744 = vadd.f32 %v5602, %v5734
        %v5745 = vmul.bf16 %v4853, %v1631
        %v5746 = vmul.bf16 %v4854, %v1632
        %v5747 = vmul.bf16 %v4855, %v1633
        %v5748 = vmul.bf16 %v4852, %v1634
        %s5749 = scalar_lea.vmem [#allocation11], 448
        %v5750 = vld [vmem:[%s5749] sm:$0xf]
        %v5751 = vld [vmem:[%s5749 + $0x4] sm:$0xf]
        %v5752 = vld [vmem:[%s5749 + $0x8] sm:$0xf]
        %v5753 = vld [vmem:[%s5749 + $0xc] sm:$0xf]
        %v5754 = vld [vmem:[%s5749 + $0x10] sm:$0xf]
        %v5755 = vld [vmem:[%s5749 + $0x14] sm:$0xf]
        %v5756 = vld [vmem:[%s5749 + $0x18] sm:$0xf]
        %v5757 = vld [vmem:[%s5749 + $0x1c] sm:$0xf]
        %v5758 = vld [vmem:[%s5749 + $0x20] sm:$0xf]
        %v5759 = vld [vmem:[%s5749 + $0x24] sm:$0xf]
        %v5760 = vld [vmem:[%s5749 + $0x28] sm:$0xf]
        %v5761 = vld [vmem:[%s5749 + $0x2c] sm:$0xf]
        %v5762 = vld [vmem:[%s5749 + $0x30] sm:$0xf]
        %v5763 = vld [vmem:[%s5749 + $0x34] sm:$0xf]
        %v5764 = vld [vmem:[%s5749 + $0x38] sm:$0xf]
        %v5765 = vld [vmem:[%s5749 + $0x3c] sm:$0xf]
        %v5782 = vunpack.c.l.b16 %v5750
        %v5783 = vunpack.c.l.b16 %v5751
        %v5784 = vunpack.c.l.b16 %v5752
        %v5785 = vunpack.c.l.b16 %v5753
        %v5786 = vunpack.c.l.b16 %v5754
        %v5787 = vunpack.c.l.b16 %v5755
        %v5788 = vunpack.c.l.b16 %v5756
        %v5789 = vunpack.c.l.b16 %v5757
        %v5790 = vunpack.c.l.b16 %v5758
        %v5791 = vunpack.c.l.b16 %v5759
        %v5792 = vunpack.c.l.b16 %v5760
        %v5793 = vunpack.c.l.b16 %v5761
        %v5794 = vunpack.c.l.b16 %v5762
        %v5795 = vunpack.c.l.b16 %v5763
        %v5796 = vunpack.c.l.b16 %v5764
        %v5797 = vunpack.c.l.b16 %v5765
        %v5798 = vpack.c.b16 %v5783, %v5782
        %v5799 = vpack.c.b16 %v5785, %v5784
        %v5800 = vpack.c.b16 %v5787, %v5786
        %v5801 = vpack.c.b16 %v5789, %v5788
        %v5802 = vpack.c.b16 %v5791, %v5790
        %v5803 = vpack.c.b16 %v5793, %v5792
        %v5804 = vpack.c.b16 %v5795, %v5794
        %v5805 = vpack.c.b16 %v5797, %v5796
        %5814 = vmatprep.subr.bf16.mxu0 0
        %5815 = vmatpush1.bf16.msra.mxu0 %v5805
        %5816 = vmatprep.subr.bf16.mxu0 0
        %5817 = vmatpush1.bf16.msra.mxu0 %v5804
        %5818 = vmatprep.subr.bf16.mxu0 0
        %5819 = vmatpush1.bf16.msra.mxu0 %v5803
        %5820 = vmatprep.subr.bf16.mxu0 0
        %5821 = vmatpush1.bf16.msra.mxu0 %v5802
        %5822 = vmatprep.subr.bf16.mxu0 0
        %5823 = vmatpush1.bf16.msra.mxu0 %v5801
        %5824 = vmatprep.subr.bf16.mxu0 0
        %5825 = vmatpush1.bf16.msra.mxu0 %v5800
        %5826 = vmatprep.subr.bf16.mxu0 0
        %5827 = vmatpush1.bf16.msra.mxu0 %v5799
        %5828 = vmatprep.subr.bf16.mxu0 0
        %5829 = vmatpush1.bf16.msra.mxu0 %v5798
        %5830 = vmatprep.subr.bf16.mxu0 0
        %5831 = vmatpush2.bf16.msra.mxu0 0
        %5832 = vmatprep.subr.bf16.mxu0 0
        %5833 = vmatpush2.bf16.msra.mxu0 0
        %5834 = vmatprep.subr.bf16.mxu0 0
        %5835 = vmatpush2.bf16.msra.mxu0 0
        %5836 = vmatprep.subr.bf16.mxu0 0
        %5837 = vmatpush2.bf16.msra.mxu0 0
        %5838 = vmatprep.subr.bf16.mxu0 0
        %5839 = vmatpush2.bf16.msra.mxu0 0
        %5840 = vmatprep.subr.bf16.mxu0 0
        %5841 = vmatpush2.bf16.msra.mxu0 0
        %5842 = vmatprep.subr.bf16.mxu0 0
        %5843 = vmatpush2.bf16.msra.mxu0 0
        %5844 = vmatprep.subr.bf16.mxu0 0
        %5845 = vmatpush2.bf16.msra.mxu0 0
        %5846 = vmatprep.mubr.bf16.mxu0 0
        %5847 = vmatmul.mubr.bf16.gmra.mxu0 %v5745
        %v5848 = vpop.f32.mrf.mxu0
        %v5849 = vadd.f32 0.0, %v5848
        %v5850 = vpop.f32.mrf.mxu0
        %v5851 = vpop.f32.mrf.mxu0
        %v5852 = vadd.f32 0.0, %v5851
        %v5853 = vpop.f32.mrf.mxu0
        %5854 = vmatprep.mubr.bf16.mxu0 0
        %5855 = vmatmul.mubr.bf16.gmra.mxu0 %v5746
        %v5856 = vpop.f32.mrf.mxu0
        %v5857 = vadd.f32 0.0, %v5856
        %v5858 = vpop.f32.mrf.mxu0
        %v5859 = vpop.f32.mrf.mxu0
        %v5860 = vadd.f32 0.0, %v5859
        %v5861 = vpop.f32.mrf.mxu0
        %5862 = vmatprep.mubr.bf16.mxu0 0
        %5863 = vmatmul.mubr.bf16.gmra.mxu0 %v5747
        %v5864 = vpop.f32.mrf.mxu0
        %v5865 = vadd.f32 0.0, %v5864
        %v5866 = vpop.f32.mrf.mxu0
        %v5867 = vpop.f32.mrf.mxu0
        %v5868 = vadd.f32 0.0, %v5867
        %v5869 = vpop.f32.mrf.mxu0
        %5870 = vmatprep.mubr.bf16.mxu0 0
        %5871 = vmatmul.mubr.bf16.gmra.mxu0 %v5748
        %v5872 = vpop.f32.mrf.mxu0
        %v5873 = vadd.f32 0.0, %v5872
        %v5874 = vpop.f32.mrf.mxu0
        %v5875 = vpop.f32.mrf.mxu0
        %v5876 = vadd.f32 0.0, %v5875
        %v5877 = vpop.f32.mrf.mxu0
        %5878 = vdwg.mxu0
        %v5879 = vadd.f32 %v5737, %v5849
        %v5880 = vadd.f32 %v5738, %v5852
        %v5881 = vadd.f32 %v5739, %v5857
        %v5882 = vadd.f32 %v5740, %v5860
        %v5883 = vadd.f32 %v5741, %v5865
        %v5884 = vadd.f32 %v5742, %v5868
        %v5885 = vadd.f32 %v5743, %v5873
        %v5886 = vadd.f32 %v5744, %v5876
        %v5887 = vmul.bf16 %v5024, %v1806
        %v5888 = vmul.bf16 %v5025, %v1807
        %v5889 = vmul.bf16 %v5026, %v1808
        %v5890 = vmul.bf16 %v5023, %v1809
        %s5891 = scalar_lea.vmem [#allocation11], 512
        %v5892 = vld [vmem:[%s5891] sm:$0xf]
        %v5893 = vld [vmem:[%s5891 + $0x4] sm:$0xf]
        %v5894 = vld [vmem:[%s5891 + $0x8] sm:$0xf]
        %v5895 = vld [vmem:[%s5891 + $0xc] sm:$0xf]
        %v5896 = vld [vmem:[%s5891 + $0x10] sm:$0xf]
        %v5897 = vld [vmem:[%s5891 + $0x14] sm:$0xf]
        %v5898 = vld [vmem:[%s5891 + $0x18] sm:$0xf]
        %v5899 = vld [vmem:[%s5891 + $0x1c] sm:$0xf]
        %v5900 = vld [vmem:[%s5891 + $0x20] sm:$0xf]
        %v5901 = vld [vmem:[%s5891 + $0x24] sm:$0xf]
        %v5902 = vld [vmem:[%s5891 + $0x28] sm:$0xf]
        %v5903 = vld [vmem:[%s5891 + $0x2c] sm:$0xf]
        %v5904 = vld [vmem:[%s5891 + $0x30] sm:$0xf]
        %v5905 = vld [vmem:[%s5891 + $0x34] sm:$0xf]
        %v5906 = vld [vmem:[%s5891 + $0x38] sm:$0xf]
        %v5907 = vld [vmem:[%s5891 + $0x3c] sm:$0xf]
        %v5924 = vunpack.c.l.b16 %v5892
        %v5925 = vunpack.c.l.b16 %v5893
        %v5926 = vunpack.c.l.b16 %v5894
        %v5927 = vunpack.c.l.b16 %v5895
        %v5928 = vunpack.c.l.b16 %v5896
        %v5929 = vunpack.c.l.b16 %v5897
        %v5930 = vunpack.c.l.b16 %v5898
        %v5931 = vunpack.c.l.b16 %v5899
        %v5932 = vunpack.c.l.b16 %v5900
        %v5933 = vunpack.c.l.b16 %v5901
        %v5934 = vunpack.c.l.b16 %v5902
        %v5935 = vunpack.c.l.b16 %v5903
        %v5936 = vunpack.c.l.b16 %v5904
        %v5937 = vunpack.c.l.b16 %v5905
        %v5938 = vunpack.c.l.b16 %v5906
        %v5939 = vunpack.c.l.b16 %v5907
        %v5940 = vpack.c.b16 %v5925, %v5924
        %v5941 = vpack.c.b16 %v5927, %v5926
        %v5942 = vpack.c.b16 %v5929, %v5928
        %v5943 = vpack.c.b16 %v5931, %v5930
        %v5944 = vpack.c.b16 %v5933, %v5932
        %v5945 = vpack.c.b16 %v5935, %v5934
        %v5946 = vpack.c.b16 %v5937, %v5936
        %v5947 = vpack.c.b16 %v5939, %v5938
        %5956 = vmatprep.subr.bf16.mxu0 0
        %5957 = vmatpush1.bf16.msra.mxu0 %v5947
        %5958 = vmatprep.subr.bf16.mxu0 0
        %5959 = vmatpush1.bf16.msra.mxu0 %v5946
        %5960 = vmatprep.subr.bf16.mxu0 0
        %5961 = vmatpush1.bf16.msra.mxu0 %v5945
        %5962 = vmatprep.subr.bf16.mxu0 0
        %5963 = vmatpush1.bf16.msra.mxu0 %v5944
        %5964 = vmatprep.subr.bf16.mxu0 0
        %5965 = vmatpush1.bf16.msra.mxu0 %v5943
        %5966 = vmatprep.subr.bf16.mxu0 0
        %5967 = vmatpush1.bf16.msra.mxu0 %v5942
        %5968 = vmatprep.subr.bf16.mxu0 0
        %5969 = vmatpush1.bf16.msra.mxu0 %v5941
        %5970 = vmatprep.subr.bf16.mxu0 0
        %5971 = vmatpush1.bf16.msra.mxu0 %v5940
        %5972 = vmatprep.subr.bf16.mxu0 0
        %5973 = vmatpush2.bf16.msra.mxu0 0
        %5974 = vmatprep.subr.bf16.mxu0 0
        %5975 = vmatpush2.bf16.msra.mxu0 0
        %5976 = vmatprep.subr.bf16.mxu0 0
        %5977 = vmatpush2.bf16.msra.mxu0 0
        %5978 = vmatprep.subr.bf16.mxu0 0
        %5979 = vmatpush2.bf16.msra.mxu0 0
        %5980 = vmatprep.subr.bf16.mxu0 0
        %5981 = vmatpush2.bf16.msra.mxu0 0
        %5982 = vmatprep.subr.bf16.mxu0 0
        %5983 = vmatpush2.bf16.msra.mxu0 0
        %5984 = vmatprep.subr.bf16.mxu0 0
        %5985 = vmatpush2.bf16.msra.mxu0 0
        %5986 = vmatprep.subr.bf16.mxu0 0
        %5987 = vmatpush2.bf16.msra.mxu0 0
        %5988 = vmatprep.mubr.bf16.mxu0 0
        %5989 = vmatmul.mubr.bf16.gmra.mxu0 %v5887
        %v5990 = vpop.f32.mrf.mxu0
        %v5991 = vadd.f32 0.0, %v5990
        %v5992 = vpop.f32.mrf.mxu0
        %v5993 = vpop.f32.mrf.mxu0
        %v5994 = vadd.f32 0.0, %v5993
        %v5995 = vpop.f32.mrf.mxu0
        %5996 = vmatprep.mubr.bf16.mxu0 0
        %5997 = vmatmul.mubr.bf16.gmra.mxu0 %v5888
        %v5998 = vpop.f32.mrf.mxu0
        %v5999 = vadd.f32 0.0, %v5998
        %v6000 = vpop.f32.mrf.mxu0
        %v6001 = vpop.f32.mrf.mxu0
        %v6002 = vadd.f32 0.0, %v6001
        %v6003 = vpop.f32.mrf.mxu0
        %6004 = vmatprep.mubr.bf16.mxu0 0
        %6005 = vmatmul.mubr.bf16.gmra.mxu0 %v5889
        %v6006 = vpop.f32.mrf.mxu0
        %v6007 = vadd.f32 0.0, %v6006
        %v6008 = vpop.f32.mrf.mxu0
        %v6009 = vpop.f32.mrf.mxu0
        %v6010 = vadd.f32 0.0, %v6009
        %v6011 = vpop.f32.mrf.mxu0
        %6012 = vmatprep.mubr.bf16.mxu0 0
        %6013 = vmatmul.mubr.bf16.gmra.mxu0 %v5890
        %v6014 = vpop.f32.mrf.mxu0
        %v6015 = vadd.f32 0.0, %v6014
        %v6016 = vpop.f32.mrf.mxu0
        %v6017 = vpop.f32.mrf.mxu0
        %v6018 = vadd.f32 0.0, %v6017
        %v6019 = vpop.f32.mrf.mxu0
        %6020 = vdwg.mxu0
        %v6021 = vadd.f32 %v5879, %v5991
        %v6022 = vadd.f32 %v5880, %v5994
        %v6023 = vadd.f32 %v5881, %v5999
        %v6024 = vadd.f32 %v5882, %v6002
        %v6025 = vadd.f32 %v5883, %v6007
        %v6026 = vadd.f32 %v5884, %v6010
        %v6027 = vadd.f32 %v5885, %v6015
        %v6028 = vadd.f32 %v5886, %v6018
        %v6029 = vmax.f32 %v6021, 0.0
        %v6030 = vmax.f32 %v6022, 0.0
        %v6031 = vmax.f32 %v6023, 0.0
        %v6032 = vmax.f32 %v6024, 0.0
        %v6033 = vmax.f32 %v6025, 0.0
        %v6034 = vmax.f32 %v6026, 0.0
        %v6035 = vmax.f32 %v6027, 0.0
        %v6036 = vmax.f32 %v6028, 0.0
        %6037 = vst [vmem:[%s342] sm:$0xff] %v6029
        %6038 = vst [vmem:[%s342 + $0x8] sm:$0xff] %v6030
        %6039 = vst [vmem:[%s342 + $0x10] sm:$0xff] %v6031
        %6040 = vst [vmem:[%s342 + $0x18] sm:$0xff] %v6032
        %6041 = vst [vmem:[%s342 + $0x20] sm:$0xff] %v6033
        %6042 = vst [vmem:[%s342 + $0x28] sm:$0xff] %v6034
        %6043 = vst [vmem:[%s342 + $0x30] sm:$0xff] %v6035
        %6044 = vst [vmem:[%s342 + $0x38] sm:$0xff] %v6036
        %s6045 = sand.u32 %s165, 1
        %s6046 = scalar_lea.sflag [#allocation4], %s6045
        %s6047 = sand.u32 %s165, 1
        %s6048 = smul.addr %s6047, 64
        %s6049 = scalar_lea.vmem [#allocation13], %s6048
        // Predicated region
        $region69: #{tpu_custom_call.1} parent=43 // pred_check
          %p6050 = pneg %p175
        $region70: #{tpu_custom_call.1} parent=43 // pred_check_branch
          %6052 = sbr.rel (%p6050) target = $region72
        $region71: #{tpu_custom_call.1} parent=43 // pred_region
          %s6054 = ssub.s32 1024, 1024
          %6055 = vsyncadd %s6046, %s6054
          %s6056 = smul.addr %s26, 8
          %s6057 = smul.addr %s6056, 128
          %s6058 = scalar_lea.hbm %s6, %s6057
          %s6059 = sshll.u32 %s6049, 4
          %s6060 = int_to_ptr.vmem [resolvable:$true] %s6059
          %6065 = dma.vmem_to_hbm [thread:$0]  %s6060, 1024, %s6058, %s6046, 128, 128, 8
        $region72: #{tpu_custom_call.1} parent=43 // pred_fallthru
          _
      $region44: #{tpu_custom_call.1} parent=5 // pred_fallthru
        _
      %p6066 = scmp.le.s32.totalorder 2, %s21
      // Predicated region
      $region73: #{tpu_custom_call.1} parent=5 // pred_check
        %p6067 = pneg %p6066
      $region74: #{tpu_custom_call.1} parent=5 // pred_check_branch
        %6069 = sbr.rel (%p6067) target = $region76
      $region75: #{tpu_custom_call.1} parent=5 // pred_region
        %s6070 = ssub.s32 %s21, 2
        // Predicated region
        $region77: #{tpu_custom_call.1} parent=75 // pred_check
          %p6071 = pneg %p181
        $region78: #{tpu_custom_call.1} parent=75 // pred_check_branch
          %6073 = sbr.rel (%p6071) target = $region80
        $region79: #{tpu_custom_call.1} parent=75 // pred_region
          %s6074 = sand.u32 %s166, 1
          %s6075 = scalar_lea.sflag [#allocation4], %s6074
          %s6076 = sand.u32 %s166, 1
          %s6077 = smul.addr %s6076, 64
          %s6078 = scalar_lea.vmem [#allocation13], %s6077
          %6079 = dma.done %s6075, 1024
        $region80: #{tpu_custom_call.1} parent=75 // pred_fallthru
          _
      $region76: #{tpu_custom_call.1} parent=5 // pred_fallthru
        _
    $region6: #{tpu_custom_call.1} parent=1 // loop_footer
      %s25 = sadd.s32 1, %s21
    $region7: #{tpu_custom_call.1} parent=1 // loop_footer_branch
      %20 = sbr.rel target = $region3
    $region8: #{tpu_custom_call.1} parent=1 // loop_exit
      _
    %6080 = vsyncpa [#allocation3], 1
    %s6081 = scalar_lea.sflag [#allocation3], 1
    %6082 = vsyncpa %s6081, 1
    %6083 = vsyncpa [#allocation6], 1
    %6084 = vsyncpa [#allocation9], 1
    %6085 = vsyncpa [#allocation12], 1
    %6086 = vsyncpa [#allocation4], 1
    %s6087 = scalar_lea.sflag [#allocation4], 1
    %6088 = vsyncpa %s6087, 1

</llo_original>
